<compile_context>
chip_gen: v7x
topology: tpu7x:2x2x1
jax: 0.10.0
libtpu: 0.0.40
codegen_flags: <defaults>
</compile_context>

<pallas_src>
import functools

import jax
import jax.numpy as jnp
from jax.experimental import pallas as pl
from jax.experimental.pallas import tpu as pltpu


_VMEM = pl.BlockSpec(memory_space=pltpu.MemorySpace.VMEM)


def _leaky_relu(x):
    return jnp.where(x >= 0.0, x, 0.01 * x)


# ----------------------------------------------------------------------------
# Kernel 1: encoder (simplified CNN + fused bidirectional LSTM + output linear)
# ----------------------------------------------------------------------------
def _encoder_kernel(patches_ref, cnn_w_ref, cnn_b_ref,
                    wih_ref, bih_ref, whh_f_ref, whh_b_ref,
                    lw_f_ref, lw_b_ref, lb_ref,
                    enc_ref, *, T, N, H):
    # "CNN": fused im2col matmul + leaky_relu.
    feat = jnp.dot(patches_ref[...], cnn_w_ref[...],
                   preferred_element_type=jnp.float32) + cnn_b_ref[...]
    feat = _leaky_relu(feat)                                        # (T*N, F)

    # Hoisted input projection for BOTH LSTM directions in one matmul.
    # Gate/column layout: [fwd i f g o | bwd i f g o]  ->  (T*N, 8H).
    xproj = jnp.dot(feat, wih_ref[...],
                    preferred_element_type=jnp.float32) + bih_ref[...]

    whh_f = whh_f_ref[...]
    whh_b = whh_b_ref[...]
    lw_f = lw_f_ref[...]
    lw_b = lw_b_ref[...]
    lb = lb_ref[...]

    def lstm_cell(x_gates, h, c, whh):
        # PyTorch LSTM gate order (i, f, g, o); bias already folded into x_gates.
        gates = x_gates + jnp.dot(h, whh, preferred_element_type=jnp.float32)
        i = jax.nn.sigmoid(gates[:, 0:H])
        f = jax.nn.sigmoid(gates[:, H:2 * H])
        g = jnp.tanh(gates[:, 2 * H:3 * H])
        o = jax.nn.sigmoid(gates[:, 3 * H:4 * H])
        c_new = f * c + i * g
        return o * jnp.tanh(c_new), c_new

    h_f = jnp.zeros((N, H), jnp.float32)
    c_f = jnp.zeros((N, H), jnp.float32)
    h_b = jnp.zeros((N, H), jnp.float32)
    c_b = jnp.zeros((N, H), jnp.float32)

    fwd = []
    for t in range(T):                       # forward direction (static unroll)
        xg = xproj[t * N:(t + 1) * N, 0:4 * H]
        h_f, c_f = lstm_cell(xg, h_f, c_f, whh_f)
        fwd.append(h_f)

    for t in range(T - 1, -1, -1):           # backward direction + output linear
        xg = xproj[t * N:(t + 1) * N, 4 * H:8 * H]
        h_b, c_b = lstm_cell(xg, h_b, c_b, whh_b)
        enc_ref[t] = (jnp.dot(fwd[t], lw_f, preferred_element_type=jnp.float32)
                      + jnp.dot(h_b, lw_b, preferred_element_type=jnp.float32)
                      + lb)


# ----------------------------------------------------------------------------
# Kernel 2: fused attention decoder loop (attention + combine + GRU)
# ----------------------------------------------------------------------------
def _decoder_kernel(enc_ref, emb_ref,
                    wa_ref, ba_ref, ww_ref,
                    comb_w_ref, comb_b_ref,
                    gru_wih_ref, gru_whh_ref, gru_bih_ref, gru_bhh_ref,
                    hseq_ref, *, steps, N, H):
    enc = enc_ref[...]                       # (N, T, H), resident for whole loop
    wa = wa_ref[...]
    ba = ba_ref[...]
    ww = ww_ref[...]                         # (1, H) row vector
    comb_w = comb_w_ref[...]
    comb_b = comb_b_ref[...]
    gwih = gru_wih_ref[...]
    gwhh = gru_whh_ref[...]
    gbih = gru_bih_ref[...]
    gbhh = gru_bhh_ref[...]

    # Hoisted time-invariant score term:
    #   score[n,t] = (tanh(W_a h + b_a + emb)[n] + enc[n,t,:]) . w_w + b_w
    # enc . w_w is computed once; b_w is constant over T and cancels in softmax.
    enc_score = jnp.sum(enc * ww[None, :, :], axis=-1)              # (N, T)

    h = jnp.zeros((N, H), jnp.float32)
    for i in range(steps):                   # static unroll of the decode loop
        emb = emb_ref[i]                                            # (N, H)
        aw = jnp.tanh(jnp.dot(h, wa, preferred_element_type=jnp.float32)
                      + ba + emb)                                   # (N, H)
        hscore = jnp.sum(aw * ww, axis=-1, keepdims=True)           # (N, 1)
        scores = enc_score + hscore                                 # (N, T)
        scores = scores - jnp.max(scores, axis=-1, keepdims=True)
        p = jnp.exp(scores)
        attw = p / jnp.sum(p, axis=-1, keepdims=True)               # (N, T)

        # context = attw @ enc  (batched matmul on the MXU)
        ctx = jnp.einsum('nqt,nth->nqh', attw[:, None, :], enc,
                         preferred_element_type=jnp.float32)[:, 0, :]   # (N, H)

        x = _leaky_relu(jnp.dot(ctx, comb_w,
                                preferred_element_type=jnp.float32) + comb_b)

        # GRU cell (PyTorch gate order r, z, n)
        gi = jnp.dot(x, gwih, preferred_element_type=jnp.float32) + gbih
        gh = jnp.dot(h, gwhh, preferred_element_type=jnp.float32) + gbhh
        r = jax.nn.sigmoid(gi[:, 0:H] + gh[:, 0:H])
        z = jax.nn.sigmoid(gi[:, H:2 * H] + gh[:, H:2 * H])
        n = jnp.tanh(gi[:, 2 * H:3 * H] + r * gh[:, 2 * H:3 * H])
        h = (1.0 - z) * n + z * h

        hseq_ref[i] = h


# ----------------------------------------------------------------------------
# Kernel 3: batched linear (+ optional activation)
# ----------------------------------------------------------------------------
def _linear_kernel(x_ref, w_ref, b_ref, o_ref, *, act):
    y = jnp.dot(x_ref[...], w_ref[...],
                preferred_element_type=jnp.float32) + b_ref[...]
    if act == "leaky_relu":
        y = _leaky_relu(y)
    elif act == "log_softmax":
        m = jnp.max(y, axis=-1, keepdims=True)
        s = y - m
        y = s - jnp.log(jnp.sum(jnp.exp(s), axis=-1, keepdims=True))
    o_ref[...] = y


def linear(x, w, b, act="none"):
    return pl.pallas_call(
        functools.partial(_linear_kernel, act=act),
        out_shape=jax.ShapeDtypeStruct((x.shape[0], w.shape[1]), jnp.float32),
        in_specs=[_VMEM, _VMEM, _VMEM],
        out_specs=_VMEM,
    )(x, w, b)


# ----------------------------------------------------------------------------
# Model glue (parameter setup, reshapes, kernel dispatch)
# ----------------------------------------------------------------------------
def init_params(hidden_size, classes, conv_in, conv_out):
    key = jax.random.PRNGKey(0)
    keys = iter(jax.random.split(key, 24))

    def w(shape, scale=0.1):
        return jax.random.normal(next(keys), shape, jnp.float32) * scale

    H = hidden_size
    return dict(
        # simplified CNN (single strided conv), weights stored (in, out)
        cnn_w=w((conv_in, conv_out)), cnn_b=w((1, conv_out)),
        # bidirectional LSTM: W_ih fused for both directions along the gate
        # axis -> (F, 8H); single bias b = b_ih + b_hh (also fused fwd|bwd).
        lstm_wih=w((conv_out, 8 * H)), lstm_b=w((1, 8 * H)),
        lstm_whh_f=w((H, 4 * H)), lstm_whh_b=w((H, 4 * H)),
        # BiLSTM output linear (2H -> H), split into fwd/bwd input halves
        rnn_lin_w_f=w((H, H)), rnn_lin_w_b=w((H, H)), rnn_lin_b=w((1, H)),
        # attention decoder
        embedding=w((classes, H)),
        attn_w=w((H, H)), attn_b=w((1, H)),
        attnw_w=w((1, H)),   # attention_weights_linear weight (row vector);
                             # its bias is a softmax no-op over T and is dropped.
        gru_wih=w((H, 3 * H)), gru_whh=w((H, 3 * H)),
        gru_bih=w((1, 3 * H)), gru_bhh=w((1, 3 * H)),
        comb_w=w((H, H)), comb_b=w((1, H)),
        fc_w=w((H, classes)), fc_b=w((1, classes)),
    )


def encoder_forward(params, x, hidden_size):
    """Encoder: im2col conv + leaky_relu -> BiLSTM -> linear, one pallas_call."""
    N, C, H_img, W_img = x.shape
    KH, KW = H_img, 4                        # collapse height, stride 4 on width
    T = W_img // KW
    # time-major im2col (glue): (N, C, H, W) -> (T*N, C*KH*KW)
    patches = (x.reshape(N, C, KH, T, KW)
                 .transpose(3, 0, 1, 2, 4)
                 .reshape(T * N, C * KH * KW))
    return pl.pallas_call(
        functools.partial(_encoder_kernel, T=T, N=N, H=hidden_size),
        out_shape=jax.ShapeDtypeStruct((T, N, hidden_size), jnp.float32),
        in_specs=[_VMEM] * 10,
        out_specs=_VMEM,
    )(patches, params["cnn_w"], params["cnn_b"],
      params["lstm_wih"], params["lstm_b"],
      params["lstm_whh_f"], params["lstm_whh_b"],
      params["rnn_lin_w_f"], params["rnn_lin_w_b"], params["rnn_lin_b"])


def attention_forward(params, x, target, hidden_size):
    """Full `Attention.forward`: encoder + teacher-forced decode loop."""
    N = target.shape[0]
    addition = jnp.ones((N, 1), jnp.int32)
    target = jnp.concatenate([target.astype(jnp.int32), addition], axis=1)  # (N, L+1)
    steps = target.shape[1]

    enc_seq = encoder_forward(params, x, hidden_size)            # (T, N, H)
    enc = jnp.transpose(enc_seq, (1, 0, 2))                      # (N, T, H)

    # Pre-gather the embeddings for every decode step (teacher forcing).
    emb_seq = jnp.transpose(jnp.take(params["embedding"], target, axis=0),
                            (1, 0, 2))                           # (steps, N, H)

    hseq = pl.pallas_call(
        functools.partial(_decoder_kernel, steps=steps, N=N, H=hidden_size),
        out_shape=jax.ShapeDtypeStruct((steps, N, hidden_size), jnp.float32),
        in_specs=[_VMEM] * 11,
        out_specs=_VMEM,
    )(enc, emb_seq,
      params["attn_w"], params["attn_b"], params["attnw_w"],
      params["comb_w"], params["comb_b"],
      params["gru_wih"], params["gru_whh"], params["gru_bih"], params["gru_bhh"])

    # Final fc + log_softmax, batched over all decode steps (matches the
    # reference's per-step concatenation along dim 0).
    return linear(hseq.reshape(steps * N, hidden_size),
                  params["fc_w"], params["fc_b"], act="log_softmax")


# ----------------------------------------------------------------------------
if __name__ == "__main__":
    hidden_size = 32
    classes = 10
    max_length = 5           # unused by forward (kept for parity with the module)

    N, C, H_img, W_img = 2, 3, 32, 32
    conv_out = 16
    conv_in = C * H_img * 4  # im2col patch size for the simplified conv

    params = init_params(hidden_size, classes, conv_in, conv_out)

    key = jax.random.PRNGKey(0)
    kx, kt = jax.random.split(key)
    x = jax.random.normal(kx, (N, C, H_img, W_img), jnp.float32)
    target = jax.random.randint(kt, (N, 4), 0, classes, dtype=jnp.int32)

    fwd = jax.jit(functools.partial(attention_forward, hidden_size=hidden_size))
    out = fwd(params, x, target)
    out = jax.block_until_ready(out)

    assert out.shape == ((target.shape[1] + 1) * N, classes), out.shape
    assert out.dtype == jnp.float32
    print("KERNEL_OK")
</pallas_src>

<mosaic_0001>
module attributes {stable_mosaic.version = 11 : i64} {
  func.func @_encoder_kernel(%arg0: memref<16x384xf32, #tpu.memory_space<vmem>>, %arg1: memref<384x16xf32, #tpu.memory_space<vmem>>, %arg2: memref<1x16xf32, #tpu.memory_space<vmem>>, %arg3: memref<16x256xf32, #tpu.memory_space<vmem>>, %arg4: memref<1x256xf32, #tpu.memory_space<vmem>>, %arg5: memref<32x128xf32, #tpu.memory_space<vmem>>, %arg6: memref<32x128xf32, #tpu.memory_space<vmem>>, %arg7: memref<32x32xf32, #tpu.memory_space<vmem>>, %arg8: memref<32x32xf32, #tpu.memory_space<vmem>>, %arg9: memref<1x32xf32, #tpu.memory_space<vmem>>, %arg10: memref<8x2x32xf32, #tpu.memory_space<vmem>>) attributes {dimension_semantics = [], scalar_prefetch = 0 : i64, scratch_operands = 0 : i64, tpu.core_type = #tpu.core_type<tc>} {
    %c0 = arith.constant 0 : index
    %c0_0 = arith.constant 0 : index
    %0 = vector.load %arg0[%c0, %c0_0] : memref<16x384xf32, #tpu.memory_space<vmem>>, vector<16x384xf32>
    %c0_1 = arith.constant 0 : index
    %c0_2 = arith.constant 0 : index
    %1 = vector.load %arg1[%c0_1, %c0_2] : memref<384x16xf32, #tpu.memory_space<vmem>>, vector<384x16xf32>
    %cst = arith.constant dense<0.000000e+00> : vector<16x16xf32>
    %2 = tpu.matmul %0, %1, %cst {dimension_numbers = #tpu.dot_dimension_numbers<[1], [0], [0], [1], [0, 0, 1, 1], [], []>} : vector<16x384xf32>, vector<384x16xf32>, vector<16x16xf32> -> vector<16x16xf32>
    %c0_3 = arith.constant 0 : index
    %c0_4 = arith.constant 0 : index
    %3 = vector.load %arg2[%c0_3, %c0_4] : memref<1x16xf32, #tpu.memory_space<vmem>>, vector<1x16xf32>
    %4 = vector.broadcast %3 : vector<1x16xf32> to vector<16x16xf32>
    %5 = arith.addf %2, %4 : vector<16x16xf32>
    %cst_5 = arith.constant 0.000000e+00 : f32
    %6 = vector.broadcast %cst_5 : f32 to vector<16x16xf32>
    %7 = arith.cmpf oge, %5, %6 : vector<16x16xf32>
    %cst_6 = arith.constant 0.00999999977 : f32
    %8 = vector.broadcast %cst_6 : f32 to vector<16x16xf32>
    %9 = arith.mulf %8, %5 : vector<16x16xf32>
    %10 = arith.select %7, %5, %9 : vector<16x16xi1>, vector<16x16xf32>
    %c0_7 = arith.constant 0 : index
    %c0_8 = arith.constant 0 : index
    %11 = vector.load %arg3[%c0_7, %c0_8] : memref<16x256xf32, #tpu.memory_space<vmem>>, vector<16x256xf32>
    %cst_9 = arith.constant dense<0.000000e+00> : vector<16x256xf32>
    %12 = tpu.matmul %10, %11, %cst_9 {dimension_numbers = #tpu.dot_dimension_numbers<[1], [0], [0], [1], [0, 0, 1, 1], [], []>} : vector<16x16xf32>, vector<16x256xf32>, vector<16x256xf32> -> vector<16x256xf32>
    %c0_10 = arith.constant 0 : index
    %c0_11 = arith.constant 0 : index
    %13 = vector.load %arg4[%c0_10, %c0_11] : memref<1x256xf32, #tpu.memory_space<vmem>>, vector<1x256xf32>
    %14 = vector.broadcast %13 : vector<1x256xf32> to vector<16x256xf32>
    %15 = arith.addf %12, %14 : vector<16x256xf32>
    %c0_12 = arith.constant 0 : index
    %c0_13 = arith.constant 0 : index
    %16 = vector.load %arg5[%c0_12, %c0_13] : memref<32x128xf32, #tpu.memory_space<vmem>>, vector<32x128xf32>
    %c0_14 = arith.constant 0 : index
    %c0_15 = arith.constant 0 : index
    %17 = vector.load %arg6[%c0_14, %c0_15] : memref<32x128xf32, #tpu.memory_space<vmem>>, vector<32x128xf32>
    %c0_16 = arith.constant 0 : index
    %c0_17 = arith.constant 0 : index
    %18 = vector.load %arg7[%c0_16, %c0_17] : memref<32x32xf32, #tpu.memory_space<vmem>>, vector<32x32xf32>
    %c0_18 = arith.constant 0 : index
    %c0_19 = arith.constant 0 : index
    %19 = vector.load %arg8[%c0_18, %c0_19] : memref<32x32xf32, #tpu.memory_space<vmem>>, vector<32x32xf32>
    %c0_20 = arith.constant 0 : index
    %c0_21 = arith.constant 0 : index
    %20 = vector.load %arg9[%c0_20, %c0_21] : memref<1x32xf32, #tpu.memory_space<vmem>>, vector<1x32xf32>
    %cst_22 = arith.constant 0.000000e+00 : f32
    %21 = vector.broadcast %cst_22 : f32 to vector<2x32xf32>
    %cst_23 = arith.constant 0.000000e+00 : f32
    %22 = vector.broadcast %cst_23 : f32 to vector<2x32xf32>
    %cst_24 = arith.constant 0.000000e+00 : f32
    %23 = vector.broadcast %cst_24 : f32 to vector<2x32xf32>
    %cst_25 = arith.constant 0.000000e+00 : f32
    %24 = vector.broadcast %cst_25 : f32 to vector<2x32xf32>
    %25 = vector.extract_strided_slice %15 {offsets = [0, 0], sizes = [2, 128], strides = [1, 1]} : vector<16x256xf32> to vector<2x128xf32>
    %cst_26 = arith.constant dense<0.000000e+00> : vector<2x128xf32>
    %26 = tpu.matmul %21, %16, %cst_26 {dimension_numbers = #tpu.dot_dimension_numbers<[1], [0], [0], [1], [0, 0, 1, 1], [], []>} : vector<2x32xf32>, vector<32x128xf32>, vector<2x128xf32> -> vector<2x128xf32>
    %27 = arith.addf %25, %26 : vector<2x128xf32>
    %28 = vector.extract_strided_slice %27 {offsets = [0, 0], sizes = [2, 32], strides = [1, 1]} : vector<2x128xf32> to vector<2x32xf32>
    %29 = arith.negf %28 : vector<2x32xf32>
    %30 = math.exp %29 : vector<2x32xf32>
    %cst_27 = arith.constant 1.000000e+00 : f32
    %31 = vector.broadcast %cst_27 : f32 to vector<2x32xf32>
    %32 = arith.addf %31, %30 : vector<2x32xf32>
    %33 = arith.divf %31, %32 : vector<2x32xf32>
    %34 = vector.extract_strided_slice %27 {offsets = [0, 32], sizes = [2, 32], strides = [1, 1]} : vector<2x128xf32> to vector<2x32xf32>
    %35 = arith.negf %34 : vector<2x32xf32>
    %36 = math.exp %35 : vector<2x32xf32>
    %cst_28 = arith.constant 1.000000e+00 : f32
    %37 = vector.broadcast %cst_28 : f32 to vector<2x32xf32>
    %38 = arith.addf %37, %36 : vector<2x32xf32>
    %39 = arith.divf %37, %38 : vector<2x32xf32>
    %40 = vector.extract_strided_slice %27 {offsets = [0, 64], sizes = [2, 32], strides = [1, 1]} : vector<2x128xf32> to vector<2x32xf32>
    %41 = math.tanh %40 : vector<2x32xf32>
    %42 = vector.extract_strided_slice %27 {offsets = [0, 96], sizes = [2, 32], strides = [1, 1]} : vector<2x128xf32> to vector<2x32xf32>
    %43 = arith.negf %42 : vector<2x32xf32>
    %44 = math.exp %43 : vector<2x32xf32>
    %cst_29 = arith.constant 1.000000e+00 : f32
    %45 = vector.broadcast %cst_29 : f32 to vector<2x32xf32>
    %46 = arith.addf %45, %44 : vector<2x32xf32>
    %47 = arith.divf %45, %46 : vector<2x32xf32>
    %48 = arith.mulf %39, %22 : vector<2x32xf32>
    %49 = arith.mulf %33, %41 : vector<2x32xf32>
    %50 = arith.addf %48, %49 : vector<2x32xf32>
    %51 = math.tanh %50 : vector<2x32xf32>
    %52 = arith.mulf %47, %51 : vector<2x32xf32>
    %53 = vector.extract_strided_slice %15 {offsets = [2, 0], sizes = [2, 128], strides = [1, 1]} : vector<16x256xf32> to vector<2x128xf32>
    %cst_30 = arith.constant dense<0.000000e+00> : vector<2x128xf32>
    %54 = tpu.matmul %52, %16, %cst_30 {dimension_numbers = #tpu.dot_dimension_numbers<[1], [0], [0], [1], [0, 0, 1, 1], [], []>} : vector<2x32xf32>, vector<32x128xf32>, vector<2x128xf32> -> vector<2x128xf32>
    %55 = arith.addf %53, %54 : vector<2x128xf32>
    %56 = vector.extract_strided_slice %55 {offsets = [0, 0], sizes = [2, 32], strides = [1, 1]} : vector<2x128xf32> to vector<2x32xf32>
    %57 = arith.negf %56 : vector<2x32xf32>
    %58 = math.exp %57 : vector<2x32xf32>
    %cst_31 = arith.constant 1.000000e+00 : f32
    %59 = vector.broadcast %cst_31 : f32 to vector<2x32xf32>
    %60 = arith.addf %59, %58 : vector<2x32xf32>
    %61 = arith.divf %59, %60 : vector<2x32xf32>
    %62 = vector.extract_strided_slice %55 {offsets = [0, 32], sizes = [2, 32], strides = [1, 1]} : vector<2x128xf32> to vector<2x32xf32>
    %63 = arith.negf %62 : vector<2x32xf32>
    %64 = math.exp %63 : vector<2x32xf32>
    %cst_32 = arith.constant 1.000000e+00 : f32
    %65 = vector.broadcast %cst_32 : f32 to vector<2x32xf32>
    %66 = arith.addf %65, %64 : vector<2x32xf32>
    %67 = arith.divf %65, %66 : vector<2x32xf32>
    %68 = vector.extract_strided_slice %55 {offsets = [0, 64], sizes = [2, 32], strides = [1, 1]} : vector<2x128xf32> to vector<2x32xf32>
    %69 = math.tanh %68 : vector<2x32xf32>
    %70 = vector.extract_strided_slice %55 {offsets = [0, 96], sizes = [2, 32], strides = [1, 1]} : vector<2x128xf32> to vector<2x32xf32>
    %71 = arith.negf %70 : vector<2x32xf32>
    %72 = math.exp %71 : vector<2x32xf32>
    %cst_33 = arith.constant 1.000000e+00 : f32
    %73 = vector.broadcast %cst_33 : f32 to vector<2x32xf32>
    %74 = arith.addf %73, %72 : vector<2x32xf32>
    %75 = arith.divf %73, %74 : vector<2x32xf32>
    %76 = arith.mulf %67, %50 : vector<2x32xf32>
    %77 = arith.mulf %61, %69 : vector<2x32xf32>
    %78 = arith.addf %76, %77 : vector<2x32xf32>
    %79 = math.tanh %78 : vector<2x32xf32>
    %80 = arith.mulf %75, %79 : vector<2x32xf32>
    %81 = vector.extract_strided_slice %15 {offsets = [4, 0], sizes = [2, 128], strides = [1, 1]} : vector<16x256xf32> to vector<2x128xf32>
    %cst_34 = arith.constant dense<0.000000e+00> : vector<2x128xf32>
    %82 = tpu.matmul %80, %16, %cst_34 {dimension_numbers = #tpu.dot_dimension_numbers<[1], [0], [0], [1], [0, 0, 1, 1], [], []>} : vector<2x32xf32>, vector<32x128xf32>, vector<2x128xf32> -> vector<2x128xf32>
    %83 = arith.addf %81, %82 : vector<2x128xf32>
    %84 = vector.extract_strided_slice %83 {offsets = [0, 0], sizes = [2, 32], strides = [1, 1]} : vector<2x128xf32> to vector<2x32xf32>
    %85 = arith.negf %84 : vector<2x32xf32>
    %86 = math.exp %85 : vector<2x32xf32>
    %cst_35 = arith.constant 1.000000e+00 : f32
    %87 = vector.broadcast %cst_35 : f32 to vector<2x32xf32>
    %88 = arith.addf %87, %86 : vector<2x32xf32>
    %89 = arith.divf %87, %88 : vector<2x32xf32>
    %90 = vector.extract_strided_slice %83 {offsets = [0, 32], sizes = [2, 32], strides = [1, 1]} : vector<2x128xf32> to vector<2x32xf32>
    %91 = arith.negf %90 : vector<2x32xf32>
    %92 = math.exp %91 : vector<2x32xf32>
    %cst_36 = arith.constant 1.000000e+00 : f32
    %93 = vector.broadcast %cst_36 : f32 to vector<2x32xf32>
    %94 = arith.addf %93, %92 : vector<2x32xf32>
    %95 = arith.divf %93, %94 : vector<2x32xf32>
    %96 = vector.extract_strided_slice %83 {offsets = [0, 64], sizes = [2, 32], strides = [1, 1]} : vector<2x128xf32> to vector<2x32xf32>
    %97 = math.tanh %96 : vector<2x32xf32>
    %98 = vector.extract_strided_slice %83 {offsets = [0, 96], sizes = [2, 32], strides = [1, 1]} : vector<2x128xf32> to vector<2x32xf32>
    %99 = arith.negf %98 : vector<2x32xf32>
    %100 = math.exp %99 : vector<2x32xf32>
    %cst_37 = arith.constant 1.000000e+00 : f32
    %101 = vector.broadcast %cst_37 : f32 to vector<2x32xf32>
    %102 = arith.addf %101, %100 : vector<2x32xf32>
    %103 = arith.divf %101, %102 : vector<2x32xf32>
    %104 = arith.mulf %95, %78 : vector<2x32xf32>
    %105 = arith.mulf %89, %97 : vector<2x32xf32>
    %106 = arith.addf %104, %105 : vector<2x32xf32>
    %107 = math.tanh %106 : vector<2x32xf32>
    %108 = arith.mulf %103, %107 : vector<2x32xf32>
    %109 = vector.extract_strided_slice %15 {offsets = [6, 0], sizes = [2, 128], strides = [1, 1]} : vector<16x256xf32> to vector<2x128xf32>
    %cst_38 = arith.constant dense<0.000000e+00> : vector<2x128xf32>
    %110 = tpu.matmul %108, %16, %cst_38 {dimension_numbers = #tpu.dot_dimension_numbers<[1], [0], [0], [1], [0, 0, 1, 1], [], []>} : vector<2x32xf32>, vector<32x128xf32>, vector<2x128xf32> -> vector<2x128xf32>
    %111 = arith.addf %109, %110 : vector<2x128xf32>
    %112 = vector.extract_strided_slice %111 {offsets = [0, 0], sizes = [2, 32], strides = [1, 1]} : vector<2x128xf32> to vector<2x32xf32>
    %113 = arith.negf %112 : vector<2x32xf32>
    %114 = math.exp %113 : vector<2x32xf32>
    %cst_39 = arith.constant 1.000000e+00 : f32
    %115 = vector.broadcast %cst_39 : f32 to vector<2x32xf32>
    %116 = arith.addf %115, %114 : vector<2x32xf32>
    %117 = arith.divf %115, %116 : vector<2x32xf32>
    %118 = vector.extract_strided_slice %111 {offsets = [0, 32], sizes = [2, 32], strides = [1, 1]} : vector<2x128xf32> to vector<2x32xf32>
    %119 = arith.negf %118 : vector<2x32xf32>
    %120 = math.exp %119 : vector<2x32xf32>
    %cst_40 = arith.constant 1.000000e+00 : f32
    %121 = vector.broadcast %cst_40 : f32 to vector<2x32xf32>
    %122 = arith.addf %121, %120 : vector<2x32xf32>
    %123 = arith.divf %121, %122 : vector<2x32xf32>
    %124 = vector.extract_strided_slice %111 {offsets = [0, 64], sizes = [2, 32], strides = [1, 1]} : vector<2x128xf32> to vector<2x32xf32>
    %125 = math.tanh %124 : vector<2x32xf32>
    %126 = vector.extract_strided_slice %111 {offsets = [0, 96], sizes = [2, 32], strides = [1, 1]} : vector<2x128xf32> to vector<2x32xf32>
    %127 = arith.negf %126 : vector<2x32xf32>
    %128 = math.exp %127 : vector<2x32xf32>
    %cst_41 = arith.constant 1.000000e+00 : f32
    %129 = vector.broadcast %cst_41 : f32 to vector<2x32xf32>
    %130 = arith.addf %129, %128 : vector<2x32xf32>
    %131 = arith.divf %129, %130 : vector<2x32xf32>
    %132 = arith.mulf %123, %106 : vector<2x32xf32>
    %133 = arith.mulf %117, %125 : vector<2x32xf32>
    %134 = arith.addf %132, %133 : vector<2x32xf32>
    %135 = math.tanh %134 : vector<2x32xf32>
    %136 = arith.mulf %131, %135 : vector<2x32xf32>
    %137 = vector.extract_strided_slice %15 {offsets = [8, 0], sizes = [2, 128], strides = [1, 1]} : vector<16x256xf32> to vector<2x128xf32>
    %cst_42 = arith.constant dense<0.000000e+00> : vector<2x128xf32>
    %138 = tpu.matmul %136, %16, %cst_42 {dimension_numbers = #tpu.dot_dimension_numbers<[1], [0], [0], [1], [0, 0, 1, 1], [], []>} : vector<2x32xf32>, vector<32x128xf32>, vector<2x128xf32> -> vector<2x128xf32>
    %139 = arith.addf %137, %138 : vector<2x128xf32>
    %140 = vector.extract_strided_slice %139 {offsets = [0, 0], sizes = [2, 32], strides = [1, 1]} : vector<2x128xf32> to vector<2x32xf32>
    %141 = arith.negf %140 : vector<2x32xf32>
    %142 = math.exp %141 : vector<2x32xf32>
    %cst_43 = arith.constant 1.000000e+00 : f32
    %143 = vector.broadcast %cst_43 : f32 to vector<2x32xf32>
    %144 = arith.addf %143, %142 : vector<2x32xf32>
    %145 = arith.divf %143, %144 : vector<2x32xf32>
    %146 = vector.extract_strided_slice %139 {offsets = [0, 32], sizes = [2, 32], strides = [1, 1]} : vector<2x128xf32> to vector<2x32xf32>
    %147 = arith.negf %146 : vector<2x32xf32>
    %148 = math.exp %147 : vector<2x32xf32>
    %cst_44 = arith.constant 1.000000e+00 : f32
    %149 = vector.broadcast %cst_44 : f32 to vector<2x32xf32>
    %150 = arith.addf %149, %148 : vector<2x32xf32>
    %151 = arith.divf %149, %150 : vector<2x32xf32>
    %152 = vector.extract_strided_slice %139 {offsets = [0, 64], sizes = [2, 32], strides = [1, 1]} : vector<2x128xf32> to vector<2x32xf32>
    %153 = math.tanh %152 : vector<2x32xf32>
    %154 = vector.extract_strided_slice %139 {offsets = [0, 96], sizes = [2, 32], strides = [1, 1]} : vector<2x128xf32> to vector<2x32xf32>
    %155 = arith.negf %154 : vector<2x32xf32>
    %156 = math.exp %155 : vector<2x32xf32>
    %cst_45 = arith.constant 1.000000e+00 : f32
    %157 = vector.broadcast %cst_45 : f32 to vector<2x32xf32>
    %158 = arith.addf %157, %156 : vector<2x32xf32>
    %159 = arith.divf %157, %158 : vector<2x32xf32>
    %160 = arith.mulf %151, %134 : vector<2x32xf32>
    %161 = arith.mulf %145, %153 : vector<2x32xf32>
    %162 = arith.addf %160, %161 : vector<2x32xf32>
    %163 = math.tanh %162 : vector<2x32xf32>
    %164 = arith.mulf %159, %163 : vector<2x32xf32>
    %165 = vector.extract_strided_slice %15 {offsets = [10, 0], sizes = [2, 128], strides = [1, 1]} : vector<16x256xf32> to vector<2x128xf32>
    %cst_46 = arith.constant dense<0.000000e+00> : vector<2x128xf32>
    %166 = tpu.matmul %164, %16, %cst_46 {dimension_numbers = #tpu.dot_dimension_numbers<[1], [0], [0], [1], [0, 0, 1, 1], [], []>} : vector<2x32xf32>, vector<32x128xf32>, vector<2x128xf32> -> vector<2x128xf32>
    %167 = arith.addf %165, %166 : vector<2x128xf32>
    %168 = vector.extract_strided_slice %167 {offsets = [0, 0], sizes = [2, 32], strides = [1, 1]} : vector<2x128xf32> to vector<2x32xf32>
    %169 = arith.negf %168 : vector<2x32xf32>
    %170 = math.exp %169 : vector<2x32xf32>
    %cst_47 = arith.constant 1.000000e+00 : f32
    %171 = vector.broadcast %cst_47 : f32 to vector<2x32xf32>
    %172 = arith.addf %171, %170 : vector<2x32xf32>
    %173 = arith.divf %171, %172 : vector<2x32xf32>
    %174 = vector.extract_strided_slice %167 {offsets = [0, 32], sizes = [2, 32], strides = [1, 1]} : vector<2x128xf32> to vector<2x32xf32>
    %175 = arith.negf %174 : vector<2x32xf32>
    %176 = math.exp %175 : vector<2x32xf32>
    %cst_48 = arith.constant 1.000000e+00 : f32
    %177 = vector.broadcast %cst_48 : f32 to vector<2x32xf32>
    %178 = arith.addf %177, %176 : vector<2x32xf32>
    %179 = arith.divf %177, %178 : vector<2x32xf32>
    %180 = vector.extract_strided_slice %167 {offsets = [0, 64], sizes = [2, 32], strides = [1, 1]} : vector<2x128xf32> to vector<2x32xf32>
    %181 = math.tanh %180 : vector<2x32xf32>
    %182 = vector.extract_strided_slice %167 {offsets = [0, 96], sizes = [2, 32], strides = [1, 1]} : vector<2x128xf32> to vector<2x32xf32>
    %183 = arith.negf %182 : vector<2x32xf32>
    %184 = math.exp %183 : vector<2x32xf32>
    %cst_49 = arith.constant 1.000000e+00 : f32
    %185 = vector.broadcast %cst_49 : f32 to vector<2x32xf32>
    %186 = arith.addf %185, %184 : vector<2x32xf32>
    %187 = arith.divf %185, %186 : vector<2x32xf32>
    %188 = arith.mulf %179, %162 : vector<2x32xf32>
    %189 = arith.mulf %173, %181 : vector<2x32xf32>
    %190 = arith.addf %188, %189 : vector<2x32xf32>
    %191 = math.tanh %190 : vector<2x32xf32>
    %192 = arith.mulf %187, %191 : vector<2x32xf32>
    %193 = vector.extract_strided_slice %15 {offsets = [12, 0], sizes = [2, 128], strides = [1, 1]} : vector<16x256xf32> to vector<2x128xf32>
    %cst_50 = arith.constant dense<0.000000e+00> : vector<2x128xf32>
    %194 = tpu.matmul %192, %16, %cst_50 {dimension_numbers = #tpu.dot_dimension_numbers<[1], [0], [0], [1], [0, 0, 1, 1], [], []>} : vector<2x32xf32>, vector<32x128xf32>, vector<2x128xf32> -> vector<2x128xf32>
    %195 = arith.addf %193, %194 : vector<2x128xf32>
    %196 = vector.extract_strided_slice %195 {offsets = [0, 0], sizes = [2, 32], strides = [1, 1]} : vector<2x128xf32> to vector<2x32xf32>
    %197 = arith.negf %196 : vector<2x32xf32>
    %198 = math.exp %197 : vector<2x32xf32>
    %cst_51 = arith.constant 1.000000e+00 : f32
    %199 = vector.broadcast %cst_51 : f32 to vector<2x32xf32>
    %200 = arith.addf %199, %198 : vector<2x32xf32>
    %201 = arith.divf %199, %200 : vector<2x32xf32>
    %202 = vector.extract_strided_slice %195 {offsets = [0, 32], sizes = [2, 32], strides = [1, 1]} : vector<2x128xf32> to vector<2x32xf32>
    %203 = arith.negf %202 : vector<2x32xf32>
    %204 = math.exp %203 : vector<2x32xf32>
    %cst_52 = arith.constant 1.000000e+00 : f32
    %205 = vector.broadcast %cst_52 : f32 to vector<2x32xf32>
    %206 = arith.addf %205, %204 : vector<2x32xf32>
    %207 = arith.divf %205, %206 : vector<2x32xf32>
    %208 = vector.extract_strided_slice %195 {offsets = [0, 64], sizes = [2, 32], strides = [1, 1]} : vector<2x128xf32> to vector<2x32xf32>
    %209 = math.tanh %208 : vector<2x32xf32>
    %210 = vector.extract_strided_slice %195 {offsets = [0, 96], sizes = [2, 32], strides = [1, 1]} : vector<2x128xf32> to vector<2x32xf32>
    %211 = arith.negf %210 : vector<2x32xf32>
    %212 = math.exp %211 : vector<2x32xf32>
    %cst_53 = arith.constant 1.000000e+00 : f32
    %213 = vector.broadcast %cst_53 : f32 to vector<2x32xf32>
    %214 = arith.addf %213, %212 : vector<2x32xf32>
    %215 = arith.divf %213, %214 : vector<2x32xf32>
    %216 = arith.mulf %207, %190 : vector<2x32xf32>
    %217 = arith.mulf %201, %209 : vector<2x32xf32>
    %218 = arith.addf %216, %217 : vector<2x32xf32>
    %219 = math.tanh %218 : vector<2x32xf32>
    %220 = arith.mulf %215, %219 : vector<2x32xf32>
    %221 = vector.extract_strided_slice %15 {offsets = [14, 0], sizes = [2, 128], strides = [1, 1]} : vector<16x256xf32> to vector<2x128xf32>
    %cst_54 = arith.constant dense<0.000000e+00> : vector<2x128xf32>
    %222 = tpu.matmul %220, %16, %cst_54 {dimension_numbers = #tpu.dot_dimension_numbers<[1], [0], [0], [1], [0, 0, 1, 1], [], []>} : vector<2x32xf32>, vector<32x128xf32>, vector<2x128xf32> -> vector<2x128xf32>
    %223 = arith.addf %221, %222 : vector<2x128xf32>
    %224 = vector.extract_strided_slice %223 {offsets = [0, 0], sizes = [2, 32], strides = [1, 1]} : vector<2x128xf32> to vector<2x32xf32>
    %225 = arith.negf %224 : vector<2x32xf32>
    %226 = math.exp %225 : vector<2x32xf32>
    %cst_55 = arith.constant 1.000000e+00 : f32
    %227 = vector.broadcast %cst_55 : f32 to vector<2x32xf32>
    %228 = arith.addf %227, %226 : vector<2x32xf32>
    %229 = arith.divf %227, %228 : vector<2x32xf32>
    %230 = vector.extract_strided_slice %223 {offsets = [0, 32], sizes = [2, 32], strides = [1, 1]} : vector<2x128xf32> to vector<2x32xf32>
    %231 = arith.negf %230 : vector<2x32xf32>
    %232 = math.exp %231 : vector<2x32xf32>
    %cst_56 = arith.constant 1.000000e+00 : f32
    %233 = vector.broadcast %cst_56 : f32 to vector<2x32xf32>
    %234 = arith.addf %233, %232 : vector<2x32xf32>
    %235 = arith.divf %233, %234 : vector<2x32xf32>
    %236 = vector.extract_strided_slice %223 {offsets = [0, 64], sizes = [2, 32], strides = [1, 1]} : vector<2x128xf32> to vector<2x32xf32>
    %237 = math.tanh %236 : vector<2x32xf32>
    %238 = vector.extract_strided_slice %223 {offsets = [0, 96], sizes = [2, 32], strides = [1, 1]} : vector<2x128xf32> to vector<2x32xf32>
    %239 = arith.negf %238 : vector<2x32xf32>
    %240 = math.exp %239 : vector<2x32xf32>
    %cst_57 = arith.constant 1.000000e+00 : f32
    %241 = vector.broadcast %cst_57 : f32 to vector<2x32xf32>
    %242 = arith.addf %241, %240 : vector<2x32xf32>
    %243 = arith.divf %241, %242 : vector<2x32xf32>
    %244 = arith.mulf %235, %218 : vector<2x32xf32>
    %245 = arith.mulf %229, %237 : vector<2x32xf32>
    %246 = arith.addf %244, %245 : vector<2x32xf32>
    %247 = math.tanh %246 : vector<2x32xf32>
    %248 = arith.mulf %243, %247 : vector<2x32xf32>
    %249 = vector.extract_strided_slice %15 {offsets = [14, 128], sizes = [2, 128], strides = [1, 1]} : vector<16x256xf32> to vector<2x128xf32>
    %cst_58 = arith.constant dense<0.000000e+00> : vector<2x128xf32>
    %250 = tpu.matmul %23, %17, %cst_58 {dimension_numbers = #tpu.dot_dimension_numbers<[1], [0], [0], [1], [0, 0, 1, 1], [], []>} : vector<2x32xf32>, vector<32x128xf32>, vector<2x128xf32> -> vector<2x128xf32>
    %251 = arith.addf %249, %250 : vector<2x128xf32>
    %252 = vector.extract_strided_slice %251 {offsets = [0, 0], sizes = [2, 32], strides = [1, 1]} : vector<2x128xf32> to vector<2x32xf32>
    %253 = arith.negf %252 : vector<2x32xf32>
    %254 = math.exp %253 : vector<2x32xf32>
    %cst_59 = arith.constant 1.000000e+00 : f32
    %255 = vector.broadcast %cst_59 : f32 to vector<2x32xf32>
    %256 = arith.addf %255, %254 : vector<2x32xf32>
    %257 = arith.divf %255, %256 : vector<2x32xf32>
    %258 = vector.extract_strided_slice %251 {offsets = [0, 32], sizes = [2, 32], strides = [1, 1]} : vector<2x128xf32> to vector<2x32xf32>
    %259 = arith.negf %258 : vector<2x32xf32>
    %260 = math.exp %259 : vector<2x32xf32>
    %cst_60 = arith.constant 1.000000e+00 : f32
    %261 = vector.broadcast %cst_60 : f32 to vector<2x32xf32>
    %262 = arith.addf %261, %260 : vector<2x32xf32>
    %263 = arith.divf %261, %262 : vector<2x32xf32>
    %264 = vector.extract_strided_slice %251 {offsets = [0, 64], sizes = [2, 32], strides = [1, 1]} : vector<2x128xf32> to vector<2x32xf32>
    %265 = math.tanh %264 : vector<2x32xf32>
    %266 = vector.extract_strided_slice %251 {offsets = [0, 96], sizes = [2, 32], strides = [1, 1]} : vector<2x128xf32> to vector<2x32xf32>
    %267 = arith.negf %266 : vector<2x32xf32>
    %268 = math.exp %267 : vector<2x32xf32>
    %cst_61 = arith.constant 1.000000e+00 : f32
    %269 = vector.broadcast %cst_61 : f32 to vector<2x32xf32>
    %270 = arith.addf %269, %268 : vector<2x32xf32>
    %271 = arith.divf %269, %270 : vector<2x32xf32>
    %272 = arith.mulf %263, %24 : vector<2x32xf32>
    %273 = arith.mulf %257, %265 : vector<2x32xf32>
    %274 = arith.addf %272, %273 : vector<2x32xf32>
    %275 = math.tanh %274 : vector<2x32xf32>
    %276 = arith.mulf %271, %275 : vector<2x32xf32>
    %cst_62 = arith.constant dense<0.000000e+00> : vector<2x32xf32>
    %277 = tpu.matmul %248, %18, %cst_62 {dimension_numbers = #tpu.dot_dimension_numbers<[1], [0], [0], [1], [0, 0, 1, 1], [], []>} : vector<2x32xf32>, vector<32x32xf32>, vector<2x32xf32> -> vector<2x32xf32>
    %cst_63 = arith.constant dense<0.000000e+00> : vector<2x32xf32>
    %278 = tpu.matmul %276, %19, %cst_63 {dimension_numbers = #tpu.dot_dimension_numbers<[1], [0], [0], [1], [0, 0, 1, 1], [], []>} : vector<2x32xf32>, vector<32x32xf32>, vector<2x32xf32> -> vector<2x32xf32>
    %279 = arith.addf %277, %278 : vector<2x32xf32>
    %280 = vector.broadcast %20 : vector<1x32xf32> to vector<2x32xf32>
    %281 = arith.addf %279, %280 : vector<2x32xf32>
    %c7 = arith.constant 7 : index
    %c0_64 = arith.constant 0 : index
    %c0_65 = arith.constant 0 : index
    %282 = vector.load %arg10[%c7, %c0_64, %c0_65] : memref<8x2x32xf32, #tpu.memory_space<vmem>>, vector<1x2x32xf32>
    %283 = vector.shape_cast %282 : vector<1x2x32xf32> to vector<2x32xf32>
    %284 = vector.shape_cast %281 : vector<2x32xf32> to vector<1x2x32xf32>
    tpu.vector_store %arg10[%c7, %c0_64, %c0_65], %284 {strides = array<i32>} : memref<8x2x32xf32, #tpu.memory_space<vmem>>, vector<1x2x32xf32>,
    %285 = vector.extract_strided_slice %15 {offsets = [12, 128], sizes = [2, 128], strides = [1, 1]} : vector<16x256xf32> to vector<2x128xf32>
    %cst_66 = arith.constant dense<0.000000e+00> : vector<2x128xf32>
    %286 = tpu.matmul %276, %17, %cst_66 {dimension_numbers = #tpu.dot_dimension_numbers<[1], [0], [0], [1], [0, 0, 1, 1], [], []>} : vector<2x32xf32>, vector<32x128xf32>, vector<2x128xf32> -> vector<2x128xf32>
    %287 = arith.addf %285, %286 : vector<2x128xf32>
    %288 = vector.extract_strided_slice %287 {offsets = [0, 0], sizes = [2, 32], strides = [1, 1]} : vector<2x128xf32> to vector<2x32xf32>
    %289 = arith.negf %288 : vector<2x32xf32>
    %290 = math.exp %289 : vector<2x32xf32>
    %cst_67 = arith.constant 1.000000e+00 : f32
    %291 = vector.broadcast %cst_67 : f32 to vector<2x32xf32>
    %292 = arith.addf %291, %290 : vector<2x32xf32>
    %293 = arith.divf %291, %292 : vector<2x32xf32>
    %294 = vector.extract_strided_slice %287 {offsets = [0, 32], sizes = [2, 32], strides = [1, 1]} : vector<2x128xf32> to vector<2x32xf32>
    %295 = arith.negf %294 : vector<2x32xf32>
    %296 = math.exp %295 : vector<2x32xf32>
    %cst_68 = arith.constant 1.000000e+00 : f32
    %297 = vector.broadcast %cst_68 : f32 to vector<2x32xf32>
    %298 = arith.addf %297, %296 : vector<2x32xf32>
    %299 = arith.divf %297, %298 : vector<2x32xf32>
    %300 = vector.extract_strided_slice %287 {offsets = [0, 64], sizes = [2, 32], strides = [1, 1]} : vector<2x128xf32> to vector<2x32xf32>
    %301 = math.tanh %300 : vector<2x32xf32>
    %302 = vector.extract_strided_slice %287 {offsets = [0, 96], sizes = [2, 32], strides = [1, 1]} : vector<2x128xf32> to vector<2x32xf32>
    %303 = arith.negf %302 : vector<2x32xf32>
    %304 = math.exp %303 : vector<2x32xf32>
    %cst_69 = arith.constant 1.000000e+00 : f32
    %305 = vector.broadcast %cst_69 : f32 to vector<2x32xf32>
    %306 = arith.addf %305, %304 : vector<2x32xf32>
    %307 = arith.divf %305, %306 : vector<2x32xf32>
    %308 = arith.mulf %299, %274 : vector<2x32xf32>
    %309 = arith.mulf %293, %301 : vector<2x32xf32>
    %310 = arith.addf %308, %309 : vector<2x32xf32>
    %311 = math.tanh %310 : vector<2x32xf32>
    %312 = arith.mulf %307, %311 : vector<2x32xf32>
    %cst_70 = arith.constant dense<0.000000e+00> : vector<2x32xf32>
    %313 = tpu.matmul %220, %18, %cst_70 {dimension_numbers = #tpu.dot_dimension_numbers<[1], [0], [0], [1], [0, 0, 1, 1], [], []>} : vector<2x32xf32>, vector<32x32xf32>, vector<2x32xf32> -> vector<2x32xf32>
    %cst_71 = arith.constant dense<0.000000e+00> : vector<2x32xf32>
    %314 = tpu.matmul %312, %19, %cst_71 {dimension_numbers = #tpu.dot_dimension_numbers<[1], [0], [0], [1], [0, 0, 1, 1], [], []>} : vector<2x32xf32>, vector<32x32xf32>, vector<2x32xf32> -> vector<2x32xf32>
    %315 = arith.addf %313, %314 : vector<2x32xf32>
    %316 = vector.broadcast %20 : vector<1x32xf32> to vector<2x32xf32>
    %317 = arith.addf %315, %316 : vector<2x32xf32>
    %c6 = arith.constant 6 : index
    %c0_72 = arith.constant 0 : index
    %c0_73 = arith.constant 0 : index
    %318 = vector.load %arg10[%c6, %c0_72, %c0_73] : memref<8x2x32xf32, #tpu.memory_space<vmem>>, vector<1x2x32xf32>
    %319 = vector.shape_cast %318 : vector<1x2x32xf32> to vector<2x32xf32>
    %320 = vector.shape_cast %317 : vector<2x32xf32> to vector<1x2x32xf32>
    tpu.vector_store %arg10[%c6, %c0_72, %c0_73], %320 {strides = array<i32>} : memref<8x2x32xf32, #tpu.memory_space<vmem>>, vector<1x2x32xf32>,
    %321 = vector.extract_strided_slice %15 {offsets = [10, 128], sizes = [2, 128], strides = [1, 1]} : vector<16x256xf32> to vector<2x128xf32>
    %cst_74 = arith.constant dense<0.000000e+00> : vector<2x128xf32>
    %322 = tpu.matmul %312, %17, %cst_74 {dimension_numbers = #tpu.dot_dimension_numbers<[1], [0], [0], [1], [0, 0, 1, 1], [], []>} : vector<2x32xf32>, vector<32x128xf32>, vector<2x128xf32> -> vector<2x128xf32>
    %323 = arith.addf %321, %322 : vector<2x128xf32>
    %324 = vector.extract_strided_slice %323 {offsets = [0, 0], sizes = [2, 32], strides = [1, 1]} : vector<2x128xf32> to vector<2x32xf32>
    %325 = arith.negf %324 : vector<2x32xf32>
    %326 = math.exp %325 : vector<2x32xf32>
    %cst_75 = arith.constant 1.000000e+00 : f32
    %327 = vector.broadcast %cst_75 : f32 to vector<2x32xf32>
    %328 = arith.addf %327, %326 : vector<2x32xf32>
    %329 = arith.divf %327, %328 : vector<2x32xf32>
    %330 = vector.extract_strided_slice %323 {offsets = [0, 32], sizes = [2, 32], strides = [1, 1]} : vector<2x128xf32> to vector<2x32xf32>
    %331 = arith.negf %330 : vector<2x32xf32>
    %332 = math.exp %331 : vector<2x32xf32>
    %cst_76 = arith.constant 1.000000e+00 : f32
    %333 = vector.broadcast %cst_76 : f32 to vector<2x32xf32>
    %334 = arith.addf %333, %332 : vector<2x32xf32>
    %335 = arith.divf %333, %334 : vector<2x32xf32>
    %336 = vector.extract_strided_slice %323 {offsets = [0, 64], sizes = [2, 32], strides = [1, 1]} : vector<2x128xf32> to vector<2x32xf32>
    %337 = math.tanh %336 : vector<2x32xf32>
    %338 = vector.extract_strided_slice %323 {offsets = [0, 96], sizes = [2, 32], strides = [1, 1]} : vector<2x128xf32> to vector<2x32xf32>
    %339 = arith.negf %338 : vector<2x32xf32>
    %340 = math.exp %339 : vector<2x32xf32>
    %cst_77 = arith.constant 1.000000e+00 : f32
    %341 = vector.broadcast %cst_77 : f32 to vector<2x32xf32>
    %342 = arith.addf %341, %340 : vector<2x32xf32>
    %343 = arith.divf %341, %342 : vector<2x32xf32>
    %344 = arith.mulf %335, %310 : vector<2x32xf32>
    %345 = arith.mulf %329, %337 : vector<2x32xf32>
    %346 = arith.addf %344, %345 : vector<2x32xf32>
    %347 = math.tanh %346 : vector<2x32xf32>
    %348 = arith.mulf %343, %347 : vector<2x32xf32>
    %cst_78 = arith.constant dense<0.000000e+00> : vector<2x32xf32>
    %349 = tpu.matmul %192, %18, %cst_78 {dimension_numbers = #tpu.dot_dimension_numbers<[1], [0], [0], [1], [0, 0, 1, 1], [], []>} : vector<2x32xf32>, vector<32x32xf32>, vector<2x32xf32> -> vector<2x32xf32>
    %cst_79 = arith.constant dense<0.000000e+00> : vector<2x32xf32>
    %350 = tpu.matmul %348, %19, %cst_79 {dimension_numbers = #tpu.dot_dimension_numbers<[1], [0], [0], [1], [0, 0, 1, 1], [], []>} : vector<2x32xf32>, vector<32x32xf32>, vector<2x32xf32> -> vector<2x32xf32>
    %351 = arith.addf %349, %350 : vector<2x32xf32>
    %352 = vector.broadcast %20 : vector<1x32xf32> to vector<2x32xf32>
    %353 = arith.addf %351, %352 : vector<2x32xf32>
    %c5 = arith.constant 5 : index
    %c0_80 = arith.constant 0 : index
    %c0_81 = arith.constant 0 : index
    %354 = vector.load %arg10[%c5, %c0_80, %c0_81] : memref<8x2x32xf32, #tpu.memory_space<vmem>>, vector<1x2x32xf32>
    %355 = vector.shape_cast %354 : vector<1x2x32xf32> to vector<2x32xf32>
    %356 = vector.shape_cast %353 : vector<2x32xf32> to vector<1x2x32xf32>
    tpu.vector_store %arg10[%c5, %c0_80, %c0_81], %356 {strides = array<i32>} : memref<8x2x32xf32, #tpu.memory_space<vmem>>, vector<1x2x32xf32>,
    %357 = vector.extract_strided_slice %15 {offsets = [8, 128], sizes = [2, 128], strides = [1, 1]} : vector<16x256xf32> to vector<2x128xf32>
    %cst_82 = arith.constant dense<0.000000e+00> : vector<2x128xf32>
    %358 = tpu.matmul %348, %17, %cst_82 {dimension_numbers = #tpu.dot_dimension_numbers<[1], [0], [0], [1], [0, 0, 1, 1], [], []>} : vector<2x32xf32>, vector<32x128xf32>, vector<2x128xf32> -> vector<2x128xf32>
    %359 = arith.addf %357, %358 : vector<2x128xf32>
    %360 = vector.extract_strided_slice %359 {offsets = [0, 0], sizes = [2, 32], strides = [1, 1]} : vector<2x128xf32> to vector<2x32xf32>
    %361 = arith.negf %360 : vector<2x32xf32>
    %362 = math.exp %361 : vector<2x32xf32>
    %cst_83 = arith.constant 1.000000e+00 : f32
    %363 = vector.broadcast %cst_83 : f32 to vector<2x32xf32>
    %364 = arith.addf %363, %362 : vector<2x32xf32>
    %365 = arith.divf %363, %364 : vector<2x32xf32>
    %366 = vector.extract_strided_slice %359 {offsets = [0, 32], sizes = [2, 32], strides = [1, 1]} : vector<2x128xf32> to vector<2x32xf32>
    %367 = arith.negf %366 : vector<2x32xf32>
    %368 = math.exp %367 : vector<2x32xf32>
    %cst_84 = arith.constant 1.000000e+00 : f32
    %369 = vector.broadcast %cst_84 : f32 to vector<2x32xf32>
    %370 = arith.addf %369, %368 : vector<2x32xf32>
    %371 = arith.divf %369, %370 : vector<2x32xf32>
    %372 = vector.extract_strided_slice %359 {offsets = [0, 64], sizes = [2, 32], strides = [1, 1]} : vector<2x128xf32> to vector<2x32xf32>
    %373 = math.tanh %372 : vector<2x32xf32>
    %374 = vector.extract_strided_slice %359 {offsets = [0, 96], sizes = [2, 32], strides = [1, 1]} : vector<2x128xf32> to vector<2x32xf32>
    %375 = arith.negf %374 : vector<2x32xf32>
    %376 = math.exp %375 : vector<2x32xf32>
    %cst_85 = arith.constant 1.000000e+00 : f32
    %377 = vector.broadcast %cst_85 : f32 to vector<2x32xf32>
    %378 = arith.addf %377, %376 : vector<2x32xf32>
    %379 = arith.divf %377, %378 : vector<2x32xf32>
    %380 = arith.mulf %371, %346 : vector<2x32xf32>
    %381 = arith.mulf %365, %373 : vector<2x32xf32>
    %382 = arith.addf %380, %381 : vector<2x32xf32>
    %383 = math.tanh %382 : vector<2x32xf32>
    %384 = arith.mulf %379, %383 : vector<2x32xf32>
    %cst_86 = arith.constant dense<0.000000e+00> : vector<2x32xf32>
    %385 = tpu.matmul %164, %18, %cst_86 {dimension_numbers = #tpu.dot_dimension_numbers<[1], [0], [0], [1], [0, 0, 1, 1], [], []>} : vector<2x32xf32>, vector<32x32xf32>, vector<2x32xf32> -> vector<2x32xf32>
    %cst_87 = arith.constant dense<0.000000e+00> : vector<2x32xf32>
    %386 = tpu.matmul %384, %19, %cst_87 {dimension_numbers = #tpu.dot_dimension_numbers<[1], [0], [0], [1], [0, 0, 1, 1], [], []>} : vector<2x32xf32>, vector<32x32xf32>, vector<2x32xf32> -> vector<2x32xf32>
    %387 = arith.addf %385, %386 : vector<2x32xf32>
    %388 = vector.broadcast %20 : vector<1x32xf32> to vector<2x32xf32>
    %389 = arith.addf %387, %388 : vector<2x32xf32>
    %c4 = arith.constant 4 : index
    %c0_88 = arith.constant 0 : index
    %c0_89 = arith.constant 0 : index
    %390 = vector.load %arg10[%c4, %c0_88, %c0_89] : memref<8x2x32xf32, #tpu.memory_space<vmem>>, vector<1x2x32xf32>
    %391 = vector.shape_cast %390 : vector<1x2x32xf32> to vector<2x32xf32>
    %392 = vector.shape_cast %389 : vector<2x32xf32> to vector<1x2x32xf32>
    tpu.vector_store %arg10[%c4, %c0_88, %c0_89], %392 {strides = array<i32>} : memref<8x2x32xf32, #tpu.memory_space<vmem>>, vector<1x2x32xf32>,
    %393 = vector.extract_strided_slice %15 {offsets = [6, 128], sizes = [2, 128], strides = [1, 1]} : vector<16x256xf32> to vector<2x128xf32>
    %cst_90 = arith.constant dense<0.000000e+00> : vector<2x128xf32>
    %394 = tpu.matmul %384, %17, %cst_90 {dimension_numbers = #tpu.dot_dimension_numbers<[1], [0], [0], [1], [0, 0, 1, 1], [], []>} : vector<2x32xf32>, vector<32x128xf32>, vector<2x128xf32> -> vector<2x128xf32>
    %395 = arith.addf %393, %394 : vector<2x128xf32>
    %396 = vector.extract_strided_slice %395 {offsets = [0, 0], sizes = [2, 32], strides = [1, 1]} : vector<2x128xf32> to vector<2x32xf32>
    %397 = arith.negf %396 : vector<2x32xf32>
    %398 = math.exp %397 : vector<2x32xf32>
    %cst_91 = arith.constant 1.000000e+00 : f32
    %399 = vector.broadcast %cst_91 : f32 to vector<2x32xf32>
    %400 = arith.addf %399, %398 : vector<2x32xf32>
    %401 = arith.divf %399, %400 : vector<2x32xf32>
    %402 = vector.extract_strided_slice %395 {offsets = [0, 32], sizes = [2, 32], strides = [1, 1]} : vector<2x128xf32> to vector<2x32xf32>
    %403 = arith.negf %402 : vector<2x32xf32>
    %404 = math.exp %403 : vector<2x32xf32>
    %cst_92 = arith.constant 1.000000e+00 : f32
    %405 = vector.broadcast %cst_92 : f32 to vector<2x32xf32>
    %406 = arith.addf %405, %404 : vector<2x32xf32>
    %407 = arith.divf %405, %406 : vector<2x32xf32>
    %408 = vector.extract_strided_slice %395 {offsets = [0, 64], sizes = [2, 32], strides = [1, 1]} : vector<2x128xf32> to vector<2x32xf32>
    %409 = math.tanh %408 : vector<2x32xf32>
    %410 = vector.extract_strided_slice %395 {offsets = [0, 96], sizes = [2, 32], strides = [1, 1]} : vector<2x128xf32> to vector<2x32xf32>
    %411 = arith.negf %410 : vector<2x32xf32>
    %412 = math.exp %411 : vector<2x32xf32>
    %cst_93 = arith.constant 1.000000e+00 : f32
    %413 = vector.broadcast %cst_93 : f32 to vector<2x32xf32>
    %414 = arith.addf %413, %412 : vector<2x32xf32>
    %415 = arith.divf %413, %414 : vector<2x32xf32>
    %416 = arith.mulf %407, %382 : vector<2x32xf32>
    %417 = arith.mulf %401, %409 : vector<2x32xf32>
    %418 = arith.addf %416, %417 : vector<2x32xf32>
    %419 = math.tanh %418 : vector<2x32xf32>
    %420 = arith.mulf %415, %419 : vector<2x32xf32>
    %cst_94 = arith.constant dense<0.000000e+00> : vector<2x32xf32>
    %421 = tpu.matmul %136, %18, %cst_94 {dimension_numbers = #tpu.dot_dimension_numbers<[1], [0], [0], [1], [0, 0, 1, 1], [], []>} : vector<2x32xf32>, vector<32x32xf32>, vector<2x32xf32> -> vector<2x32xf32>
    %cst_95 = arith.constant dense<0.000000e+00> : vector<2x32xf32>
    %422 = tpu.matmul %420, %19, %cst_95 {dimension_numbers = #tpu.dot_dimension_numbers<[1], [0], [0], [1], [0, 0, 1, 1], [], []>} : vector<2x32xf32>, vector<32x32xf32>, vector<2x32xf32> -> vector<2x32xf32>
    %423 = arith.addf %421, %422 : vector<2x32xf32>
    %424 = vector.broadcast %20 : vector<1x32xf32> to vector<2x32xf32>
    %425 = arith.addf %423, %424 : vector<2x32xf32>
    %c3 = arith.constant 3 : index
    %c0_96 = arith.constant 0 : index
    %c0_97 = arith.constant 0 : index
    %426 = vector.load %arg10[%c3, %c0_96, %c0_97] : memref<8x2x32xf32, #tpu.memory_space<vmem>>, vector<1x2x32xf32>
    %427 = vector.shape_cast %426 : vector<1x2x32xf32> to vector<2x32xf32>
    %428 = vector.shape_cast %425 : vector<2x32xf32> to vector<1x2x32xf32>
    tpu.vector_store %arg10[%c3, %c0_96, %c0_97], %428 {strides = array<i32>} : memref<8x2x32xf32, #tpu.memory_space<vmem>>, vector<1x2x32xf32>,
    %429 = vector.extract_strided_slice %15 {offsets = [4, 128], sizes = [2, 128], strides = [1, 1]} : vector<16x256xf32> to vector<2x128xf32>
    %cst_98 = arith.constant dense<0.000000e+00> : vector<2x128xf32>
    %430 = tpu.matmul %420, %17, %cst_98 {dimension_numbers = #tpu.dot_dimension_numbers<[1], [0], [0], [1], [0, 0, 1, 1], [], []>} : vector<2x32xf32>, vector<32x128xf32>, vector<2x128xf32> -> vector<2x128xf32>
    %431 = arith.addf %429, %430 : vector<2x128xf32>
    %432 = vector.extract_strided_slice %431 {offsets = [0, 0], sizes = [2, 32], strides = [1, 1]} : vector<2x128xf32> to vector<2x32xf32>
    %433 = arith.negf %432 : vector<2x32xf32>
    %434 = math.exp %433 : vector<2x32xf32>
    %cst_99 = arith.constant 1.000000e+00 : f32
    %435 = vector.broadcast %cst_99 : f32 to vector<2x32xf32>
    %436 = arith.addf %435, %434 : vector<2x32xf32>
    %437 = arith.divf %435, %436 : vector<2x32xf32>
    %438 = vector.extract_strided_slice %431 {offsets = [0, 32], sizes = [2, 32], strides = [1, 1]} : vector<2x128xf32> to vector<2x32xf32>
    %439 = arith.negf %438 : vector<2x32xf32>
    %440 = math.exp %439 : vector<2x32xf32>
    %cst_100 = arith.constant 1.000000e+00 : f32
    %441 = vector.broadcast %cst_100 : f32 to vector<2x32xf32>
    %442 = arith.addf %441, %440 : vector<2x32xf32>
    %443 = arith.divf %441, %442 : vector<2x32xf32>
    %444 = vector.extract_strided_slice %431 {offsets = [0, 64], sizes = [2, 32], strides = [1, 1]} : vector<2x128xf32> to vector<2x32xf32>
    %445 = math.tanh %444 : vector<2x32xf32>
    %446 = vector.extract_strided_slice %431 {offsets = [0, 96], sizes = [2, 32], strides = [1, 1]} : vector<2x128xf32> to vector<2x32xf32>
    %447 = arith.negf %446 : vector<2x32xf32>
    %448 = math.exp %447 : vector<2x32xf32>
    %cst_101 = arith.constant 1.000000e+00 : f32
    %449 = vector.broadcast %cst_101 : f32 to vector<2x32xf32>
    %450 = arith.addf %449, %448 : vector<2x32xf32>
    %451 = arith.divf %449, %450 : vector<2x32xf32>
    %452 = arith.mulf %443, %418 : vector<2x32xf32>
    %453 = arith.mulf %437, %445 : vector<2x32xf32>
    %454 = arith.addf %452, %453 : vector<2x32xf32>
    %455 = math.tanh %454 : vector<2x32xf32>
    %456 = arith.mulf %451, %455 : vector<2x32xf32>
    %cst_102 = arith.constant dense<0.000000e+00> : vector<2x32xf32>
    %457 = tpu.matmul %108, %18, %cst_102 {dimension_numbers = #tpu.dot_dimension_numbers<[1], [0], [0], [1], [0, 0, 1, 1], [], []>} : vector<2x32xf32>, vector<32x32xf32>, vector<2x32xf32> -> vector<2x32xf32>
    %cst_103 = arith.constant dense<0.000000e+00> : vector<2x32xf32>
    %458 = tpu.matmul %456, %19, %cst_103 {dimension_numbers = #tpu.dot_dimension_numbers<[1], [0], [0], [1], [0, 0, 1, 1], [], []>} : vector<2x32xf32>, vector<32x32xf32>, vector<2x32xf32> -> vector<2x32xf32>
    %459 = arith.addf %457, %458 : vector<2x32xf32>
    %460 = vector.broadcast %20 : vector<1x32xf32> to vector<2x32xf32>
    %461 = arith.addf %459, %460 : vector<2x32xf32>
    %c2 = arith.constant 2 : index
    %c0_104 = arith.constant 0 : index
    %c0_105 = arith.constant 0 : index
    %462 = vector.load %arg10[%c2, %c0_104, %c0_105] : memref<8x2x32xf32, #tpu.memory_space<vmem>>, vector<1x2x32xf32>
    %463 = vector.shape_cast %462 : vector<1x2x32xf32> to vector<2x32xf32>
    %464 = vector.shape_cast %461 : vector<2x32xf32> to vector<1x2x32xf32>
    tpu.vector_store %arg10[%c2, %c0_104, %c0_105], %464 {strides = array<i32>} : memref<8x2x32xf32, #tpu.memory_space<vmem>>, vector<1x2x32xf32>,
    %465 = vector.extract_strided_slice %15 {offsets = [2, 128], sizes = [2, 128], strides = [1, 1]} : vector<16x256xf32> to vector<2x128xf32>
    %cst_106 = arith.constant dense<0.000000e+00> : vector<2x128xf32>
    %466 = tpu.matmul %456, %17, %cst_106 {dimension_numbers = #tpu.dot_dimension_numbers<[1], [0], [0], [1], [0, 0, 1, 1], [], []>} : vector<2x32xf32>, vector<32x128xf32>, vector<2x128xf32> -> vector<2x128xf32>
    %467 = arith.addf %465, %466 : vector<2x128xf32>
    %468 = vector.extract_strided_slice %467 {offsets = [0, 0], sizes = [2, 32], strides = [1, 1]} : vector<2x128xf32> to vector<2x32xf32>
    %469 = arith.negf %468 : vector<2x32xf32>
    %470 = math.exp %469 : vector<2x32xf32>
    %cst_107 = arith.constant 1.000000e+00 : f32
    %471 = vector.broadcast %cst_107 : f32 to vector<2x32xf32>
    %472 = arith.addf %471, %470 : vector<2x32xf32>
    %473 = arith.divf %471, %472 : vector<2x32xf32>
    %474 = vector.extract_strided_slice %467 {offsets = [0, 32], sizes = [2, 32], strides = [1, 1]} : vector<2x128xf32> to vector<2x32xf32>
    %475 = arith.negf %474 : vector<2x32xf32>
    %476 = math.exp %475 : vector<2x32xf32>
    %cst_108 = arith.constant 1.000000e+00 : f32
    %477 = vector.broadcast %cst_108 : f32 to vector<2x32xf32>
    %478 = arith.addf %477, %476 : vector<2x32xf32>
    %479 = arith.divf %477, %478 : vector<2x32xf32>
    %480 = vector.extract_strided_slice %467 {offsets = [0, 64], sizes = [2, 32], strides = [1, 1]} : vector<2x128xf32> to vector<2x32xf32>
    %481 = math.tanh %480 : vector<2x32xf32>
    %482 = vector.extract_strided_slice %467 {offsets = [0, 96], sizes = [2, 32], strides = [1, 1]} : vector<2x128xf32> to vector<2x32xf32>
    %483 = arith.negf %482 : vector<2x32xf32>
    %484 = math.exp %483 : vector<2x32xf32>
    %cst_109 = arith.constant 1.000000e+00 : f32
    %485 = vector.broadcast %cst_109 : f32 to vector<2x32xf32>
    %486 = arith.addf %485, %484 : vector<2x32xf32>
    %487 = arith.divf %485, %486 : vector<2x32xf32>
    %488 = arith.mulf %479, %454 : vector<2x32xf32>
    %489 = arith.mulf %473, %481 : vector<2x32xf32>
    %490 = arith.addf %488, %489 : vector<2x32xf32>
    %491 = math.tanh %490 : vector<2x32xf32>
    %492 = arith.mulf %487, %491 : vector<2x32xf32>
    %cst_110 = arith.constant dense<0.000000e+00> : vector<2x32xf32>
    %493 = tpu.matmul %80, %18, %cst_110 {dimension_numbers = #tpu.dot_dimension_numbers<[1], [0], [0], [1], [0, 0, 1, 1], [], []>} : vector<2x32xf32>, vector<32x32xf32>, vector<2x32xf32> -> vector<2x32xf32>
    %cst_111 = arith.constant dense<0.000000e+00> : vector<2x32xf32>
    %494 = tpu.matmul %492, %19, %cst_111 {dimension_numbers = #tpu.dot_dimension_numbers<[1], [0], [0], [1], [0, 0, 1, 1], [], []>} : vector<2x32xf32>, vector<32x32xf32>, vector<2x32xf32> -> vector<2x32xf32>
    %495 = arith.addf %493, %494 : vector<2x32xf32>
    %496 = vector.broadcast %20 : vector<1x32xf32> to vector<2x32xf32>
    %497 = arith.addf %495, %496 : vector<2x32xf32>
    %c1 = arith.constant 1 : index
    %c0_112 = arith.constant 0 : index
    %c0_113 = arith.constant 0 : index
    %498 = vector.load %arg10[%c1, %c0_112, %c0_113] : memref<8x2x32xf32, #tpu.memory_space<vmem>>, vector<1x2x32xf32>
    %499 = vector.shape_cast %498 : vector<1x2x32xf32> to vector<2x32xf32>
    %500 = vector.shape_cast %497 : vector<2x32xf32> to vector<1x2x32xf32>
    tpu.vector_store %arg10[%c1, %c0_112, %c0_113], %500 {strides = array<i32>} : memref<8x2x32xf32, #tpu.memory_space<vmem>>, vector<1x2x32xf32>,
    %501 = vector.extract_strided_slice %15 {offsets = [0, 128], sizes = [2, 128], strides = [1, 1]} : vector<16x256xf32> to vector<2x128xf32>
    %cst_114 = arith.constant dense<0.000000e+00> : vector<2x128xf32>
    %502 = tpu.matmul %492, %17, %cst_114 {dimension_numbers = #tpu.dot_dimension_numbers<[1], [0], [0], [1], [0, 0, 1, 1], [], []>} : vector<2x32xf32>, vector<32x128xf32>, vector<2x128xf32> -> vector<2x128xf32>
    %503 = arith.addf %501, %502 : vector<2x128xf32>
    %504 = vector.extract_strided_slice %503 {offsets = [0, 0], sizes = [2, 32], strides = [1, 1]} : vector<2x128xf32> to vector<2x32xf32>
    %505 = arith.negf %504 : vector<2x32xf32>
    %506 = math.exp %505 : vector<2x32xf32>
    %cst_115 = arith.constant 1.000000e+00 : f32
    %507 = vector.broadcast %cst_115 : f32 to vector<2x32xf32>
    %508 = arith.addf %507, %506 : vector<2x32xf32>
    %509 = arith.divf %507, %508 : vector<2x32xf32>
    %510 = vector.extract_strided_slice %503 {offsets = [0, 32], sizes = [2, 32], strides = [1, 1]} : vector<2x128xf32> to vector<2x32xf32>
    %511 = arith.negf %510 : vector<2x32xf32>
    %512 = math.exp %511 : vector<2x32xf32>
    %cst_116 = arith.constant 1.000000e+00 : f32
    %513 = vector.broadcast %cst_116 : f32 to vector<2x32xf32>
    %514 = arith.addf %513, %512 : vector<2x32xf32>
    %515 = arith.divf %513, %514 : vector<2x32xf32>
    %516 = vector.extract_strided_slice %503 {offsets = [0, 64], sizes = [2, 32], strides = [1, 1]} : vector<2x128xf32> to vector<2x32xf32>
    %517 = math.tanh %516 : vector<2x32xf32>
    %518 = vector.extract_strided_slice %503 {offsets = [0, 96], sizes = [2, 32], strides = [1, 1]} : vector<2x128xf32> to vector<2x32xf32>
    %519 = arith.negf %518 : vector<2x32xf32>
    %520 = math.exp %519 : vector<2x32xf32>
    %cst_117 = arith.constant 1.000000e+00 : f32
    %521 = vector.broadcast %cst_117 : f32 to vector<2x32xf32>
    %522 = arith.addf %521, %520 : vector<2x32xf32>
    %523 = arith.divf %521, %522 : vector<2x32xf32>
    %524 = arith.mulf %515, %490 : vector<2x32xf32>
    %525 = arith.mulf %509, %517 : vector<2x32xf32>
    %526 = arith.addf %524, %525 : vector<2x32xf32>
    %527 = math.tanh %526 : vector<2x32xf32>
    %528 = arith.mulf %523, %527 : vector<2x32xf32>
    %cst_118 = arith.constant dense<0.000000e+00> : vector<2x32xf32>
    %529 = tpu.matmul %52, %18, %cst_118 {dimension_numbers = #tpu.dot_dimension_numbers<[1], [0], [0], [1], [0, 0, 1, 1], [], []>} : vector<2x32xf32>, vector<32x32xf32>, vector<2x32xf32> -> vector<2x32xf32>
    %cst_119 = arith.constant dense<0.000000e+00> : vector<2x32xf32>
    %530 = tpu.matmul %528, %19, %cst_119 {dimension_numbers = #tpu.dot_dimension_numbers<[1], [0], [0], [1], [0, 0, 1, 1], [], []>} : vector<2x32xf32>, vector<32x32xf32>, vector<2x32xf32> -> vector<2x32xf32>
    %531 = arith.addf %529, %530 : vector<2x32xf32>
    %532 = vector.broadcast %20 : vector<1x32xf32> to vector<2x32xf32>
    %533 = arith.addf %531, %532 : vector<2x32xf32>
    %c0_120 = arith.constant 0 : index
    %c0_121 = arith.constant 0 : index
    %c0_122 = arith.constant 0 : index
    %534 = vector.load %arg10[%c0_120, %c0_121, %c0_122] : memref<8x2x32xf32, #tpu.memory_space<vmem>>, vector<1x2x32xf32>
    %535 = vector.shape_cast %534 : vector<1x2x32xf32> to vector<2x32xf32>
    %536 = vector.shape_cast %533 : vector<2x32xf32> to vector<1x2x32xf32>
    tpu.vector_store %arg10[%c0_120, %c0_121, %c0_122], %536 {strides = array<i32>} : memref<8x2x32xf32, #tpu.memory_space<vmem>>, vector<1x2x32xf32>,
    return
  }
}

module attributes {stable_mosaic.version = 11 : i64} {
  func.func @_decoder_kernel(%arg0: memref<2x8x32xf32, #tpu.memory_space<vmem>>, %arg1: memref<5x2x32xf32, #tpu.memory_space<vmem>>, %arg2: memref<32x32xf32, #tpu.memory_space<vmem>>, %arg3: memref<1x32xf32, #tpu.memory_space<vmem>>, %arg4: memref<1x32xf32, #tpu.memory_space<vmem>>, %arg5: memref<32x32xf32, #tpu.memory_space<vmem>>, %arg6: memref<1x32xf32, #tpu.memory_space<vmem>>, %arg7: memref<32x96xf32, #tpu.memory_space<vmem>>, %arg8: memref<32x96xf32, #tpu.memory_space<vmem>>, %arg9: memref<1x96xf32, #tpu.memory_space<vmem>>, %arg10: memref<1x96xf32, #tpu.memory_space<vmem>>, %arg11: memref<5x2x32xf32, #tpu.memory_space<vmem>>) attributes {dimension_semantics = [], scalar_prefetch = 0 : i64, scratch_operands = 0 : i64, tpu.core_type = #tpu.core_type<tc>} {
    %c0 = arith.constant 0 : index
    %c0_0 = arith.constant 0 : index
    %c0_1 = arith.constant 0 : index
    %0 = vector.load %arg0[%c0, %c0_0, %c0_1] : memref<2x8x32xf32, #tpu.memory_space<vmem>>, vector<2x8x32xf32>
    %c0_2 = arith.constant 0 : index
    %c0_3 = arith.constant 0 : index
    %1 = vector.load %arg2[%c0_2, %c0_3] : memref<32x32xf32, #tpu.memory_space<vmem>>, vector<32x32xf32>
    %c0_4 = arith.constant 0 : index
    %c0_5 = arith.constant 0 : index
    %2 = vector.load %arg3[%c0_4, %c0_5] : memref<1x32xf32, #tpu.memory_space<vmem>>, vector<1x32xf32>
    %c0_6 = arith.constant 0 : index
    %c0_7 = arith.constant 0 : index
    %3 = vector.load %arg4[%c0_6, %c0_7] : memref<1x32xf32, #tpu.memory_space<vmem>>, vector<1x32xf32>
    %c0_8 = arith.constant 0 : index
    %c0_9 = arith.constant 0 : index
    %4 = vector.load %arg5[%c0_8, %c0_9] : memref<32x32xf32, #tpu.memory_space<vmem>>, vector<32x32xf32>
    %c0_10 = arith.constant 0 : index
    %c0_11 = arith.constant 0 : index
    %5 = vector.load %arg6[%c0_10, %c0_11] : memref<1x32xf32, #tpu.memory_space<vmem>>, vector<1x32xf32>
    %c0_12 = arith.constant 0 : index
    %c0_13 = arith.constant 0 : index
    %6 = vector.load %arg7[%c0_12, %c0_13] : memref<32x96xf32, #tpu.memory_space<vmem>>, vector<32x96xf32>
    %c0_14 = arith.constant 0 : index
    %c0_15 = arith.constant 0 : index
    %7 = vector.load %arg8[%c0_14, %c0_15] : memref<32x96xf32, #tpu.memory_space<vmem>>, vector<32x96xf32>
    %c0_16 = arith.constant 0 : index
    %c0_17 = arith.constant 0 : index
    %8 = vector.load %arg9[%c0_16, %c0_17] : memref<1x96xf32, #tpu.memory_space<vmem>>, vector<1x96xf32>
    %c0_18 = arith.constant 0 : index
    %c0_19 = arith.constant 0 : index
    %9 = vector.load %arg10[%c0_18, %c0_19] : memref<1x96xf32, #tpu.memory_space<vmem>>, vector<1x96xf32>
    %10 = vector.shape_cast %3 : vector<1x32xf32> to vector<1x1x32xf32>
    %11 = vector.broadcast %10 : vector<1x1x32xf32> to vector<2x8x32xf32>
    %12 = arith.mulf %0, %11 : vector<2x8x32xf32>
    %cst = arith.constant dense<0.000000e+00> : vector<2x8xf32>
    %13 = vector.multi_reduction <add>, %12, %cst [2] : vector<2x8x32xf32> to vector<2x8xf32>
    %cst_20 = arith.constant 0.000000e+00 : f32
    %14 = vector.broadcast %cst_20 : f32 to vector<2x32xf32>
    %c0_21 = arith.constant 0 : index
    %c0_22 = arith.constant 0 : index
    %c0_23 = arith.constant 0 : index
    %15 = vector.load %arg1[%c0_21, %c0_22, %c0_23] : memref<5x2x32xf32, #tpu.memory_space<vmem>>, vector<1x2x32xf32>
    %16 = vector.shape_cast %15 : vector<1x2x32xf32> to vector<2x32xf32>
    %cst_24 = arith.constant dense<0.000000e+00> : vector<2x32xf32>
    %17 = tpu.matmul %14, %1, %cst_24 {dimension_numbers = #tpu.dot_dimension_numbers<[1], [0], [0], [1], [0, 0, 1, 1], [], []>} : vector<2x32xf32>, vector<32x32xf32>, vector<2x32xf32> -> vector<2x32xf32>
    %18 = vector.broadcast %2 : vector<1x32xf32> to vector<2x32xf32>
    %19 = arith.addf %17, %18 : vector<2x32xf32>
    %20 = arith.addf %19, %16 : vector<2x32xf32>
    %21 = math.tanh %20 : vector<2x32xf32>
    %22 = vector.broadcast %3 : vector<1x32xf32> to vector<2x32xf32>
    %23 = arith.mulf %21, %22 : vector<2x32xf32>
    %cst_25 = arith.constant dense<0.000000e+00> : vector<2xf32>
    %24 = vector.multi_reduction <add>, %23, %cst_25 [1] : vector<2x32xf32> to vector<2xf32>
    %25 = vector.shape_cast %24 : vector<2xf32> to vector<2x1xf32>
    %26 = vector.broadcast %25 : vector<2x1xf32> to vector<2x8xf32>
    %27 = arith.addf %13, %26 : vector<2x8xf32>
    %cst_26 = arith.constant dense<0xFF800000> : vector<2xf32>
    %28 = vector.multi_reduction <maximumf>, %27, %cst_26 [1] : vector<2x8xf32> to vector<2xf32>
    %29 = vector.shape_cast %28 : vector<2xf32> to vector<2x1xf32>
    %30 = vector.broadcast %29 : vector<2x1xf32> to vector<2x8xf32>
    %31 = arith.subf %27, %30 : vector<2x8xf32>
    %32 = math.exp %31 : vector<2x8xf32>
    %cst_27 = arith.constant dense<0.000000e+00> : vector<2xf32>
    %33 = vector.multi_reduction <add>, %32, %cst_27 [1] : vector<2x8xf32> to vector<2xf32>
    %34 = vector.shape_cast %33 : vector<2xf32> to vector<2x1xf32>
    %35 = vector.broadcast %34 : vector<2x1xf32> to vector<2x8xf32>
    %36 = arith.divf %32, %35 : vector<2x8xf32>
    %37 = vector.shape_cast %36 : vector<2x8xf32> to vector<2x1x8xf32>
    "tpu.trace_start"() <{level = 10 : i32, message = "nqt,nth->nqh"}> : () -> ()
    %cst_28 = arith.constant dense<0.000000e+00> : vector<2x1x32xf32>
    %38 = tpu.matmul %37, %0, %cst_28 {dimension_numbers = #tpu.dot_dimension_numbers<[2], [1], [1], [2], [0, 0, 0, 1, 1, 2], [0], [0]>} : vector<2x1x8xf32>, vector<2x8x32xf32>, vector<2x1x32xf32> -> vector<2x1x32xf32>
    "tpu.trace_stop"() : () -> ()
    %39 = vector.shape_cast %38 : vector<2x1x32xf32> to vector<2x32xf32>
    %cst_29 = arith.constant dense<0.000000e+00> : vector<2x32xf32>
    %40 = tpu.matmul %39, %4, %cst_29 {dimension_numbers = #tpu.dot_dimension_numbers<[1], [0], [0], [1], [0, 0, 1, 1], [], []>} : vector<2x32xf32>, vector<32x32xf32>, vector<2x32xf32> -> vector<2x32xf32>
    %41 = vector.broadcast %5 : vector<1x32xf32> to vector<2x32xf32>
    %42 = arith.addf %40, %41 : vector<2x32xf32>
    %cst_30 = arith.constant 0.000000e+00 : f32
    %43 = vector.broadcast %cst_30 : f32 to vector<2x32xf32>
    %44 = arith.cmpf oge, %42, %43 : vector<2x32xf32>
    %cst_31 = arith.constant 0.00999999977 : f32
    %45 = vector.broadcast %cst_31 : f32 to vector<2x32xf32>
    %46 = arith.mulf %45, %42 : vector<2x32xf32>
    %47 = arith.select %44, %42, %46 : vector<2x32xi1>, vector<2x32xf32>
    %cst_32 = arith.constant dense<0.000000e+00> : vector<2x96xf32>
    %48 = tpu.matmul %47, %6, %cst_32 {dimension_numbers = #tpu.dot_dimension_numbers<[1], [0], [0], [1], [0, 0, 1, 1], [], []>} : vector<2x32xf32>, vector<32x96xf32>, vector<2x96xf32> -> vector<2x96xf32>
    %49 = vector.broadcast %8 : vector<1x96xf32> to vector<2x96xf32>
    %50 = arith.addf %48, %49 : vector<2x96xf32>
    %cst_33 = arith.constant dense<0.000000e+00> : vector<2x96xf32>
    %51 = tpu.matmul %14, %7, %cst_33 {dimension_numbers = #tpu.dot_dimension_numbers<[1], [0], [0], [1], [0, 0, 1, 1], [], []>} : vector<2x32xf32>, vector<32x96xf32>, vector<2x96xf32> -> vector<2x96xf32>
    %52 = vector.broadcast %9 : vector<1x96xf32> to vector<2x96xf32>
    %53 = arith.addf %51, %52 : vector<2x96xf32>
    %54 = vector.extract_strided_slice %50 {offsets = [0, 0], sizes = [2, 32], strides = [1, 1]} : vector<2x96xf32> to vector<2x32xf32>
    %55 = vector.extract_strided_slice %53 {offsets = [0, 0], sizes = [2, 32], strides = [1, 1]} : vector<2x96xf32> to vector<2x32xf32>
    %56 = arith.addf %54, %55 : vector<2x32xf32>
    %57 = arith.negf %56 : vector<2x32xf32>
    %58 = math.exp %57 : vector<2x32xf32>
    %cst_34 = arith.constant 1.000000e+00 : f32
    %59 = vector.broadcast %cst_34 : f32 to vector<2x32xf32>
    %60 = arith.addf %59, %58 : vector<2x32xf32>
    %61 = arith.divf %59, %60 : vector<2x32xf32>
    %62 = vector.extract_strided_slice %50 {offsets = [0, 32], sizes = [2, 32], strides = [1, 1]} : vector<2x96xf32> to vector<2x32xf32>
    %63 = vector.extract_strided_slice %53 {offsets = [0, 32], sizes = [2, 32], strides = [1, 1]} : vector<2x96xf32> to vector<2x32xf32>
    %64 = arith.addf %62, %63 : vector<2x32xf32>
    %65 = arith.negf %64 : vector<2x32xf32>
    %66 = math.exp %65 : vector<2x32xf32>
    %cst_35 = arith.constant 1.000000e+00 : f32
    %67 = vector.broadcast %cst_35 : f32 to vector<2x32xf32>
    %68 = arith.addf %67, %66 : vector<2x32xf32>
    %69 = arith.divf %67, %68 : vector<2x32xf32>
    %70 = vector.extract_strided_slice %50 {offsets = [0, 64], sizes = [2, 32], strides = [1, 1]} : vector<2x96xf32> to vector<2x32xf32>
    %71 = vector.extract_strided_slice %53 {offsets = [0, 64], sizes = [2, 32], strides = [1, 1]} : vector<2x96xf32> to vector<2x32xf32>
    %72 = arith.mulf %61, %71 : vector<2x32xf32>
    %73 = arith.addf %70, %72 : vector<2x32xf32>
    %74 = math.tanh %73 : vector<2x32xf32>
    %cst_36 = arith.constant 1.000000e+00 : f32
    %75 = vector.broadcast %cst_36 : f32 to vector<2x32xf32>
    %76 = arith.subf %75, %69 : vector<2x32xf32>
    %77 = arith.mulf %76, %74 : vector<2x32xf32>
    %78 = arith.mulf %69, %14 : vector<2x32xf32>
    %79 = arith.addf %77, %78 : vector<2x32xf32>
    %c0_37 = arith.constant 0 : index
    %c0_38 = arith.constant 0 : index
    %c0_39 = arith.constant 0 : index
    %80 = vector.load %arg11[%c0_37, %c0_38, %c0_39] : memref<5x2x32xf32, #tpu.memory_space<vmem>>, vector<1x2x32xf32>
    %81 = vector.shape_cast %80 : vector<1x2x32xf32> to vector<2x32xf32>
    %82 = vector.shape_cast %79 : vector<2x32xf32> to vector<1x2x32xf32>
    tpu.vector_store %arg11[%c0_37, %c0_38, %c0_39], %82 {strides = array<i32>} : memref<5x2x32xf32, #tpu.memory_space<vmem>>, vector<1x2x32xf32>,
    %c1 = arith.constant 1 : index
    %c0_40 = arith.constant 0 : index
    %c0_41 = arith.constant 0 : index
    %83 = vector.load %arg1[%c1, %c0_40, %c0_41] : memref<5x2x32xf32, #tpu.memory_space<vmem>>, vector<1x2x32xf32>
    %84 = vector.shape_cast %83 : vector<1x2x32xf32> to vector<2x32xf32>
    %cst_42 = arith.constant dense<0.000000e+00> : vector<2x32xf32>
    %85 = tpu.matmul %79, %1, %cst_42 {dimension_numbers = #tpu.dot_dimension_numbers<[1], [0], [0], [1], [0, 0, 1, 1], [], []>} : vector<2x32xf32>, vector<32x32xf32>, vector<2x32xf32> -> vector<2x32xf32>
    %86 = vector.broadcast %2 : vector<1x32xf32> to vector<2x32xf32>
    %87 = arith.addf %85, %86 : vector<2x32xf32>
    %88 = arith.addf %87, %84 : vector<2x32xf32>
    %89 = math.tanh %88 : vector<2x32xf32>
    %90 = vector.broadcast %3 : vector<1x32xf32> to vector<2x32xf32>
    %91 = arith.mulf %89, %90 : vector<2x32xf32>
    %cst_43 = arith.constant dense<0.000000e+00> : vector<2xf32>
    %92 = vector.multi_reduction <add>, %91, %cst_43 [1] : vector<2x32xf32> to vector<2xf32>
    %93 = vector.shape_cast %92 : vector<2xf32> to vector<2x1xf32>
    %94 = vector.broadcast %93 : vector<2x1xf32> to vector<2x8xf32>
    %95 = arith.addf %13, %94 : vector<2x8xf32>
    %cst_44 = arith.constant dense<0xFF800000> : vector<2xf32>
    %96 = vector.multi_reduction <maximumf>, %95, %cst_44 [1] : vector<2x8xf32> to vector<2xf32>
    %97 = vector.shape_cast %96 : vector<2xf32> to vector<2x1xf32>
    %98 = vector.broadcast %97 : vector<2x1xf32> to vector<2x8xf32>
    %99 = arith.subf %95, %98 : vector<2x8xf32>
    %100 = math.exp %99 : vector<2x8xf32>
    %cst_45 = arith.constant dense<0.000000e+00> : vector<2xf32>
    %101 = vector.multi_reduction <add>, %100, %cst_45 [1] : vector<2x8xf32> to vector<2xf32>
    %102 = vector.shape_cast %101 : vector<2xf32> to vector<2x1xf32>
    %103 = vector.broadcast %102 : vector<2x1xf32> to vector<2x8xf32>
    %104 = arith.divf %100, %103 : vector<2x8xf32>
    %105 = vector.shape_cast %104 : vector<2x8xf32> to vector<2x1x8xf32>
    "tpu.trace_start"() <{level = 10 : i32, message = "nqt,nth->nqh"}> : () -> ()
    %cst_46 = arith.constant dense<0.000000e+00> : vector<2x1x32xf32>
    %106 = tpu.matmul %105, %0, %cst_46 {dimension_numbers = #tpu.dot_dimension_numbers<[2], [1], [1], [2], [0, 0, 0, 1, 1, 2], [0], [0]>} : vector<2x1x8xf32>, vector<2x8x32xf32>, vector<2x1x32xf32> -> vector<2x1x32xf32>
    "tpu.trace_stop"() : () -> ()
    %107 = vector.shape_cast %106 : vector<2x1x32xf32> to vector<2x32xf32>
    %cst_47 = arith.constant dense<0.000000e+00> : vector<2x32xf32>
    %108 = tpu.matmul %107, %4, %cst_47 {dimension_numbers = #tpu.dot_dimension_numbers<[1], [0], [0], [1], [0, 0, 1, 1], [], []>} : vector<2x32xf32>, vector<32x32xf32>, vector<2x32xf32> -> vector<2x32xf32>
    %109 = vector.broadcast %5 : vector<1x32xf32> to vector<2x32xf32>
    %110 = arith.addf %108, %109 : vector<2x32xf32>
    %cst_48 = arith.constant 0.000000e+00 : f32
    %111 = vector.broadcast %cst_48 : f32 to vector<2x32xf32>
    %112 = arith.cmpf oge, %110, %111 : vector<2x32xf32>
    %cst_49 = arith.constant 0.00999999977 : f32
    %113 = vector.broadcast %cst_49 : f32 to vector<2x32xf32>
    %114 = arith.mulf %113, %110 : vector<2x32xf32>
    %115 = arith.select %112, %110, %114 : vector<2x32xi1>, vector<2x32xf32>
    %cst_50 = arith.constant dense<0.000000e+00> : vector<2x96xf32>
    %116 = tpu.matmul %115, %6, %cst_50 {dimension_numbers = #tpu.dot_dimension_numbers<[1], [0], [0], [1], [0, 0, 1, 1], [], []>} : vector<2x32xf32>, vector<32x96xf32>, vector<2x96xf32> -> vector<2x96xf32>
    %117 = vector.broadcast %8 : vector<1x96xf32> to vector<2x96xf32>
    %118 = arith.addf %116, %117 : vector<2x96xf32>
    %cst_51 = arith.constant dense<0.000000e+00> : vector<2x96xf32>
    %119 = tpu.matmul %79, %7, %cst_51 {dimension_numbers = #tpu.dot_dimension_numbers<[1], [0], [0], [1], [0, 0, 1, 1], [], []>} : vector<2x32xf32>, vector<32x96xf32>, vector<2x96xf32> -> vector<2x96xf32>
    %120 = vector.broadcast %9 : vector<1x96xf32> to vector<2x96xf32>
    %121 = arith.addf %119, %120 : vector<2x96xf32>
    %122 = vector.extract_strided_slice %118 {offsets = [0, 0], sizes = [2, 32], strides = [1, 1]} : vector<2x96xf32> to vector<2x32xf32>
    %123 = vector.extract_strided_slice %121 {offsets = [0, 0], sizes = [2, 32], strides = [1, 1]} : vector<2x96xf32> to vector<2x32xf32>
    %124 = arith.addf %122, %123 : vector<2x32xf32>
    %125 = arith.negf %124 : vector<2x32xf32>
    %126 = math.exp %125 : vector<2x32xf32>
    %cst_52 = arith.constant 1.000000e+00 : f32
    %127 = vector.broadcast %cst_52 : f32 to vector<2x32xf32>
    %128 = arith.addf %127, %126 : vector<2x32xf32>
    %129 = arith.divf %127, %128 : vector<2x32xf32>
    %130 = vector.extract_strided_slice %118 {offsets = [0, 32], sizes = [2, 32], strides = [1, 1]} : vector<2x96xf32> to vector<2x32xf32>
    %131 = vector.extract_strided_slice %121 {offsets = [0, 32], sizes = [2, 32], strides = [1, 1]} : vector<2x96xf32> to vector<2x32xf32>
    %132 = arith.addf %130, %131 : vector<2x32xf32>
    %133 = arith.negf %132 : vector<2x32xf32>
    %134 = math.exp %133 : vector<2x32xf32>
    %cst_53 = arith.constant 1.000000e+00 : f32
    %135 = vector.broadcast %cst_53 : f32 to vector<2x32xf32>
    %136 = arith.addf %135, %134 : vector<2x32xf32>
    %137 = arith.divf %135, %136 : vector<2x32xf32>
    %138 = vector.extract_strided_slice %118 {offsets = [0, 64], sizes = [2, 32], strides = [1, 1]} : vector<2x96xf32> to vector<2x32xf32>
    %139 = vector.extract_strided_slice %121 {offsets = [0, 64], sizes = [2, 32], strides = [1, 1]} : vector<2x96xf32> to vector<2x32xf32>
    %140 = arith.mulf %129, %139 : vector<2x32xf32>
    %141 = arith.addf %138, %140 : vector<2x32xf32>
    %142 = math.tanh %141 : vector<2x32xf32>
    %cst_54 = arith.constant 1.000000e+00 : f32
    %143 = vector.broadcast %cst_54 : f32 to vector<2x32xf32>
    %144 = arith.subf %143, %137 : vector<2x32xf32>
    %145 = arith.mulf %144, %142 : vector<2x32xf32>
    %146 = arith.mulf %137, %79 : vector<2x32xf32>
    %147 = arith.addf %145, %146 : vector<2x32xf32>
    %c1_55 = arith.constant 1 : index
    %c0_56 = arith.constant 0 : index
    %c0_57 = arith.constant 0 : index
    %148 = vector.load %arg11[%c1_55, %c0_56, %c0_57] : memref<5x2x32xf32, #tpu.memory_space<vmem>>, vector<1x2x32xf32>
    %149 = vector.shape_cast %148 : vector<1x2x32xf32> to vector<2x32xf32>
    %150 = vector.shape_cast %147 : vector<2x32xf32> to vector<1x2x32xf32>
    tpu.vector_store %arg11[%c1_55, %c0_56, %c0_57], %150 {strides = array<i32>} : memref<5x2x32xf32, #tpu.memory_space<vmem>>, vector<1x2x32xf32>,
    %c2 = arith.constant 2 : index
    %c0_58 = arith.constant 0 : index
    %c0_59 = arith.constant 0 : index
    %151 = vector.load %arg1[%c2, %c0_58, %c0_59] : memref<5x2x32xf32, #tpu.memory_space<vmem>>, vector<1x2x32xf32>
    %152 = vector.shape_cast %151 : vector<1x2x32xf32> to vector<2x32xf32>
    %cst_60 = arith.constant dense<0.000000e+00> : vector<2x32xf32>
    %153 = tpu.matmul %147, %1, %cst_60 {dimension_numbers = #tpu.dot_dimension_numbers<[1], [0], [0], [1], [0, 0, 1, 1], [], []>} : vector<2x32xf32>, vector<32x32xf32>, vector<2x32xf32> -> vector<2x32xf32>
    %154 = vector.broadcast %2 : vector<1x32xf32> to vector<2x32xf32>
    %155 = arith.addf %153, %154 : vector<2x32xf32>
    %156 = arith.addf %155, %152 : vector<2x32xf32>
    %157 = math.tanh %156 : vector<2x32xf32>
    %158 = vector.broadcast %3 : vector<1x32xf32> to vector<2x32xf32>
    %159 = arith.mulf %157, %158 : vector<2x32xf32>
    %cst_61 = arith.constant dense<0.000000e+00> : vector<2xf32>
    %160 = vector.multi_reduction <add>, %159, %cst_61 [1] : vector<2x32xf32> to vector<2xf32>
    %161 = vector.shape_cast %160 : vector<2xf32> to vector<2x1xf32>
    %162 = vector.broadcast %161 : vector<2x1xf32> to vector<2x8xf32>
    %163 = arith.addf %13, %162 : vector<2x8xf32>
    %cst_62 = arith.constant dense<0xFF800000> : vector<2xf32>
    %164 = vector.multi_reduction <maximumf>, %163, %cst_62 [1] : vector<2x8xf32> to vector<2xf32>
    %165 = vector.shape_cast %164 : vector<2xf32> to vector<2x1xf32>
    %166 = vector.broadcast %165 : vector<2x1xf32> to vector<2x8xf32>
    %167 = arith.subf %163, %166 : vector<2x8xf32>
    %168 = math.exp %167 : vector<2x8xf32>
    %cst_63 = arith.constant dense<0.000000e+00> : vector<2xf32>
    %169 = vector.multi_reduction <add>, %168, %cst_63 [1] : vector<2x8xf32> to vector<2xf32>
    %170 = vector.shape_cast %169 : vector<2xf32> to vector<2x1xf32>
    %171 = vector.broadcast %170 : vector<2x1xf32> to vector<2x8xf32>
    %172 = arith.divf %168, %171 : vector<2x8xf32>
    %173 = vector.shape_cast %172 : vector<2x8xf32> to vector<2x1x8xf32>
    "tpu.trace_start"() <{level = 10 : i32, message = "nqt,nth->nqh"}> : () -> ()
    %cst_64 = arith.constant dense<0.000000e+00> : vector<2x1x32xf32>
    %174 = tpu.matmul %173, %0, %cst_64 {dimension_numbers = #tpu.dot_dimension_numbers<[2], [1], [1], [2], [0, 0, 0, 1, 1, 2], [0], [0]>} : vector<2x1x8xf32>, vector<2x8x32xf32>, vector<2x1x32xf32> -> vector<2x1x32xf32>
    "tpu.trace_stop"() : () -> ()
    %175 = vector.shape_cast %174 : vector<2x1x32xf32> to vector<2x32xf32>
    %cst_65 = arith.constant dense<0.000000e+00> : vector<2x32xf32>
    %176 = tpu.matmul %175, %4, %cst_65 {dimension_numbers = #tpu.dot_dimension_numbers<[1], [0], [0], [1], [0, 0, 1, 1], [], []>} : vector<2x32xf32>, vector<32x32xf32>, vector<2x32xf32> -> vector<2x32xf32>
    %177 = vector.broadcast %5 : vector<1x32xf32> to vector<2x32xf32>
    %178 = arith.addf %176, %177 : vector<2x32xf32>
    %cst_66 = arith.constant 0.000000e+00 : f32
    %179 = vector.broadcast %cst_66 : f32 to vector<2x32xf32>
    %180 = arith.cmpf oge, %178, %179 : vector<2x32xf32>
    %cst_67 = arith.constant 0.00999999977 : f32
    %181 = vector.broadcast %cst_67 : f32 to vector<2x32xf32>
    %182 = arith.mulf %181, %178 : vector<2x32xf32>
    %183 = arith.select %180, %178, %182 : vector<2x32xi1>, vector<2x32xf32>
    %cst_68 = arith.constant dense<0.000000e+00> : vector<2x96xf32>
    %184 = tpu.matmul %183, %6, %cst_68 {dimension_numbers = #tpu.dot_dimension_numbers<[1], [0], [0], [1], [0, 0, 1, 1], [], []>} : vector<2x32xf32>, vector<32x96xf32>, vector<2x96xf32> -> vector<2x96xf32>
    %185 = vector.broadcast %8 : vector<1x96xf32> to vector<2x96xf32>
    %186 = arith.addf %184, %185 : vector<2x96xf32>
    %cst_69 = arith.constant dense<0.000000e+00> : vector<2x96xf32>
    %187 = tpu.matmul %147, %7, %cst_69 {dimension_numbers = #tpu.dot_dimension_numbers<[1], [0], [0], [1], [0, 0, 1, 1], [], []>} : vector<2x32xf32>, vector<32x96xf32>, vector<2x96xf32> -> vector<2x96xf32>
    %188 = vector.broadcast %9 : vector<1x96xf32> to vector<2x96xf32>
    %189 = arith.addf %187, %188 : vector<2x96xf32>
    %190 = vector.extract_strided_slice %186 {offsets = [0, 0], sizes = [2, 32], strides = [1, 1]} : vector<2x96xf32> to vector<2x32xf32>
    %191 = vector.extract_strided_slice %189 {offsets = [0, 0], sizes = [2, 32], strides = [1, 1]} : vector<2x96xf32> to vector<2x32xf32>
    %192 = arith.addf %190, %191 : vector<2x32xf32>
    %193 = arith.negf %192 : vector<2x32xf32>
    %194 = math.exp %193 : vector<2x32xf32>
    %cst_70 = arith.constant 1.000000e+00 : f32
    %195 = vector.broadcast %cst_70 : f32 to vector<2x32xf32>
    %196 = arith.addf %195, %194 : vector<2x32xf32>
    %197 = arith.divf %195, %196 : vector<2x32xf32>
    %198 = vector.extract_strided_slice %186 {offsets = [0, 32], sizes = [2, 32], strides = [1, 1]} : vector<2x96xf32> to vector<2x32xf32>
    %199 = vector.extract_strided_slice %189 {offsets = [0, 32], sizes = [2, 32], strides = [1, 1]} : vector<2x96xf32> to vector<2x32xf32>
    %200 = arith.addf %198, %199 : vector<2x32xf32>
    %201 = arith.negf %200 : vector<2x32xf32>
    %202 = math.exp %201 : vector<2x32xf32>
    %cst_71 = arith.constant 1.000000e+00 : f32
    %203 = vector.broadcast %cst_71 : f32 to vector<2x32xf32>
    %204 = arith.addf %203, %202 : vector<2x32xf32>
    %205 = arith.divf %203, %204 : vector<2x32xf32>
    %206 = vector.extract_strided_slice %186 {offsets = [0, 64], sizes = [2, 32], strides = [1, 1]} : vector<2x96xf32> to vector<2x32xf32>
    %207 = vector.extract_strided_slice %189 {offsets = [0, 64], sizes = [2, 32], strides = [1, 1]} : vector<2x96xf32> to vector<2x32xf32>
    %208 = arith.mulf %197, %207 : vector<2x32xf32>
    %209 = arith.addf %206, %208 : vector<2x32xf32>
    %210 = math.tanh %209 : vector<2x32xf32>
    %cst_72 = arith.constant 1.000000e+00 : f32
    %211 = vector.broadcast %cst_72 : f32 to vector<2x32xf32>
    %212 = arith.subf %211, %205 : vector<2x32xf32>
    %213 = arith.mulf %212, %210 : vector<2x32xf32>
    %214 = arith.mulf %205, %147 : vector<2x32xf32>
    %215 = arith.addf %213, %214 : vector<2x32xf32>
    %c2_73 = arith.constant 2 : index
    %c0_74 = arith.constant 0 : index
    %c0_75 = arith.constant 0 : index
    %216 = vector.load %arg11[%c2_73, %c0_74, %c0_75] : memref<5x2x32xf32, #tpu.memory_space<vmem>>, vector<1x2x32xf32>
    %217 = vector.shape_cast %216 : vector<1x2x32xf32> to vector<2x32xf32>
    %218 = vector.shape_cast %215 : vector<2x32xf32> to vector<1x2x32xf32>
    tpu.vector_store %arg11[%c2_73, %c0_74, %c0_75], %218 {strides = array<i32>} : memref<5x2x32xf32, #tpu.memory_space<vmem>>, vector<1x2x32xf32>,
    %c3 = arith.constant 3 : index
    %c0_76 = arith.constant 0 : index
    %c0_77 = arith.constant 0 : index
    %219 = vector.load %arg1[%c3, %c0_76, %c0_77] : memref<5x2x32xf32, #tpu.memory_space<vmem>>, vector<1x2x32xf32>
    %220 = vector.shape_cast %219 : vector<1x2x32xf32> to vector<2x32xf32>
    %cst_78 = arith.constant dense<0.000000e+00> : vector<2x32xf32>
    %221 = tpu.matmul %215, %1, %cst_78 {dimension_numbers = #tpu.dot_dimension_numbers<[1], [0], [0], [1], [0, 0, 1, 1], [], []>} : vector<2x32xf32>, vector<32x32xf32>, vector<2x32xf32> -> vector<2x32xf32>
    %222 = vector.broadcast %2 : vector<1x32xf32> to vector<2x32xf32>
    %223 = arith.addf %221, %222 : vector<2x32xf32>
    %224 = arith.addf %223, %220 : vector<2x32xf32>
    %225 = math.tanh %224 : vector<2x32xf32>
    %226 = vector.broadcast %3 : vector<1x32xf32> to vector<2x32xf32>
    %227 = arith.mulf %225, %226 : vector<2x32xf32>
    %cst_79 = arith.constant dense<0.000000e+00> : vector<2xf32>
    %228 = vector.multi_reduction <add>, %227, %cst_79 [1] : vector<2x32xf32> to vector<2xf32>
    %229 = vector.shape_cast %228 : vector<2xf32> to vector<2x1xf32>
    %230 = vector.broadcast %229 : vector<2x1xf32> to vector<2x8xf32>
    %231 = arith.addf %13, %230 : vector<2x8xf32>
    %cst_80 = arith.constant dense<0xFF800000> : vector<2xf32>
    %232 = vector.multi_reduction <maximumf>, %231, %cst_80 [1] : vector<2x8xf32> to vector<2xf32>
    %233 = vector.shape_cast %232 : vector<2xf32> to vector<2x1xf32>
    %234 = vector.broadcast %233 : vector<2x1xf32> to vector<2x8xf32>
    %235 = arith.subf %231, %234 : vector<2x8xf32>
    %236 = math.exp %235 : vector<2x8xf32>
    %cst_81 = arith.constant dense<0.000000e+00> : vector<2xf32>
    %237 = vector.multi_reduction <add>, %236, %cst_81 [1] : vector<2x8xf32> to vector<2xf32>
    %238 = vector.shape_cast %237 : vector<2xf32> to vector<2x1xf32>
    %239 = vector.broadcast %238 : vector<2x1xf32> to vector<2x8xf32>
    %240 = arith.divf %236, %239 : vector<2x8xf32>
    %241 = vector.shape_cast %240 : vector<2x8xf32> to vector<2x1x8xf32>
    "tpu.trace_start"() <{level = 10 : i32, message = "nqt,nth->nqh"}> : () -> ()
    %cst_82 = arith.constant dense<0.000000e+00> : vector<2x1x32xf32>
    %242 = tpu.matmul %241, %0, %cst_82 {dimension_numbers = #tpu.dot_dimension_numbers<[2], [1], [1], [2], [0, 0, 0, 1, 1, 2], [0], [0]>} : vector<2x1x8xf32>, vector<2x8x32xf32>, vector<2x1x32xf32> -> vector<2x1x32xf32>
    "tpu.trace_stop"() : () -> ()
    %243 = vector.shape_cast %242 : vector<2x1x32xf32> to vector<2x32xf32>
    %cst_83 = arith.constant dense<0.000000e+00> : vector<2x32xf32>
    %244 = tpu.matmul %243, %4, %cst_83 {dimension_numbers = #tpu.dot_dimension_numbers<[1], [0], [0], [1], [0, 0, 1, 1], [], []>} : vector<2x32xf32>, vector<32x32xf32>, vector<2x32xf32> -> vector<2x32xf32>
    %245 = vector.broadcast %5 : vector<1x32xf32> to vector<2x32xf32>
    %246 = arith.addf %244, %245 : vector<2x32xf32>
    %cst_84 = arith.constant 0.000000e+00 : f32
    %247 = vector.broadcast %cst_84 : f32 to vector<2x32xf32>
    %248 = arith.cmpf oge, %246, %247 : vector<2x32xf32>
    %cst_85 = arith.constant 0.00999999977 : f32
    %249 = vector.broadcast %cst_85 : f32 to vector<2x32xf32>
    %250 = arith.mulf %249, %246 : vector<2x32xf32>
    %251 = arith.select %248, %246, %250 : vector<2x32xi1>, vector<2x32xf32>
    %cst_86 = arith.constant dense<0.000000e+00> : vector<2x96xf32>
    %252 = tpu.matmul %251, %6, %cst_86 {dimension_numbers = #tpu.dot_dimension_numbers<[1], [0], [0], [1], [0, 0, 1, 1], [], []>} : vector<2x32xf32>, vector<32x96xf32>, vector<2x96xf32> -> vector<2x96xf32>
    %253 = vector.broadcast %8 : vector<1x96xf32> to vector<2x96xf32>
    %254 = arith.addf %252, %253 : vector<2x96xf32>
    %cst_87 = arith.constant dense<0.000000e+00> : vector<2x96xf32>
    %255 = tpu.matmul %215, %7, %cst_87 {dimension_numbers = #tpu.dot_dimension_numbers<[1], [0], [0], [1], [0, 0, 1, 1], [], []>} : vector<2x32xf32>, vector<32x96xf32>, vector<2x96xf32> -> vector<2x96xf32>
    %256 = vector.broadcast %9 : vector<1x96xf32> to vector<2x96xf32>
    %257 = arith.addf %255, %256 : vector<2x96xf32>
    %258 = vector.extract_strided_slice %254 {offsets = [0, 0], sizes = [2, 32], strides = [1, 1]} : vector<2x96xf32> to vector<2x32xf32>
    %259 = vector.extract_strided_slice %257 {offsets = [0, 0], sizes = [2, 32], strides = [1, 1]} : vector<2x96xf32> to vector<2x32xf32>
    %260 = arith.addf %258, %259 : vector<2x32xf32>
    %261 = arith.negf %260 : vector<2x32xf32>
    %262 = math.exp %261 : vector<2x32xf32>
    %cst_88 = arith.constant 1.000000e+00 : f32
    %263 = vector.broadcast %cst_88 : f32 to vector<2x32xf32>
    %264 = arith.addf %263, %262 : vector<2x32xf32>
    %265 = arith.divf %263, %264 : vector<2x32xf32>
    %266 = vector.extract_strided_slice %254 {offsets = [0, 32], sizes = [2, 32], strides = [1, 1]} : vector<2x96xf32> to vector<2x32xf32>
    %267 = vector.extract_strided_slice %257 {offsets = [0, 32], sizes = [2, 32], strides = [1, 1]} : vector<2x96xf32> to vector<2x32xf32>
    %268 = arith.addf %266, %267 : vector<2x32xf32>
    %269 = arith.negf %268 : vector<2x32xf32>
    %270 = math.exp %269 : vector<2x32xf32>
    %cst_89 = arith.constant 1.000000e+00 : f32
    %271 = vector.broadcast %cst_89 : f32 to vector<2x32xf32>
    %272 = arith.addf %271, %270 : vector<2x32xf32>
    %273 = arith.divf %271, %272 : vector<2x32xf32>
    %274 = vector.extract_strided_slice %254 {offsets = [0, 64], sizes = [2, 32], strides = [1, 1]} : vector<2x96xf32> to vector<2x32xf32>
    %275 = vector.extract_strided_slice %257 {offsets = [0, 64], sizes = [2, 32], strides = [1, 1]} : vector<2x96xf32> to vector<2x32xf32>
    %276 = arith.mulf %265, %275 : vector<2x32xf32>
    %277 = arith.addf %274, %276 : vector<2x32xf32>
    %278 = math.tanh %277 : vector<2x32xf32>
    %cst_90 = arith.constant 1.000000e+00 : f32
    %279 = vector.broadcast %cst_90 : f32 to vector<2x32xf32>
    %280 = arith.subf %279, %273 : vector<2x32xf32>
    %281 = arith.mulf %280, %278 : vector<2x32xf32>
    %282 = arith.mulf %273, %215 : vector<2x32xf32>
    %283 = arith.addf %281, %282 : vector<2x32xf32>
    %c3_91 = arith.constant 3 : index
    %c0_92 = arith.constant 0 : index
    %c0_93 = arith.constant 0 : index
    %284 = vector.load %arg11[%c3_91, %c0_92, %c0_93] : memref<5x2x32xf32, #tpu.memory_space<vmem>>, vector<1x2x32xf32>
    %285 = vector.shape_cast %284 : vector<1x2x32xf32> to vector<2x32xf32>
    %286 = vector.shape_cast %283 : vector<2x32xf32> to vector<1x2x32xf32>
    tpu.vector_store %arg11[%c3_91, %c0_92, %c0_93], %286 {strides = array<i32>} : memref<5x2x32xf32, #tpu.memory_space<vmem>>, vector<1x2x32xf32>,
    %c4 = arith.constant 4 : index
    %c0_94 = arith.constant 0 : index
    %c0_95 = arith.constant 0 : index
    %287 = vector.load %arg1[%c4, %c0_94, %c0_95] : memref<5x2x32xf32, #tpu.memory_space<vmem>>, vector<1x2x32xf32>
    %288 = vector.shape_cast %287 : vector<1x2x32xf32> to vector<2x32xf32>
    %cst_96 = arith.constant dense<0.000000e+00> : vector<2x32xf32>
    %289 = tpu.matmul %283, %1, %cst_96 {dimension_numbers = #tpu.dot_dimension_numbers<[1], [0], [0], [1], [0, 0, 1, 1], [], []>} : vector<2x32xf32>, vector<32x32xf32>, vector<2x32xf32> -> vector<2x32xf32>
    %290 = vector.broadcast %2 : vector<1x32xf32> to vector<2x32xf32>
    %291 = arith.addf %289, %290 : vector<2x32xf32>
    %292 = arith.addf %291, %288 : vector<2x32xf32>
    %293 = math.tanh %292 : vector<2x32xf32>
    %294 = vector.broadcast %3 : vector<1x32xf32> to vector<2x32xf32>
    %295 = arith.mulf %293, %294 : vector<2x32xf32>
    %cst_97 = arith.constant dense<0.000000e+00> : vector<2xf32>
    %296 = vector.multi_reduction <add>, %295, %cst_97 [1] : vector<2x32xf32> to vector<2xf32>
    %297 = vector.shape_cast %296 : vector<2xf32> to vector<2x1xf32>
    %298 = vector.broadcast %297 : vector<2x1xf32> to vector<2x8xf32>
    %299 = arith.addf %13, %298 : vector<2x8xf32>
    %cst_98 = arith.constant dense<0xFF800000> : vector<2xf32>
    %300 = vector.multi_reduction <maximumf>, %299, %cst_98 [1] : vector<2x8xf32> to vector<2xf32>
    %301 = vector.shape_cast %300 : vector<2xf32> to vector<2x1xf32>
    %302 = vector.broadcast %301 : vector<2x1xf32> to vector<2x8xf32>
    %303 = arith.subf %299, %302 : vector<2x8xf32>
    %304 = math.exp %303 : vector<2x8xf32>
    %cst_99 = arith.constant dense<0.000000e+00> : vector<2xf32>
    %305 = vector.multi_reduction <add>, %304, %cst_99 [1] : vector<2x8xf32> to vector<2xf32>
    %306 = vector.shape_cast %305 : vector<2xf32> to vector<2x1xf32>
    %307 = vector.broadcast %306 : vector<2x1xf32> to vector<2x8xf32>
    %308 = arith.divf %304, %307 : vector<2x8xf32>
    %309 = vector.shape_cast %308 : vector<2x8xf32> to vector<2x1x8xf32>
    "tpu.trace_start"() <{level = 10 : i32, message = "nqt,nth->nqh"}> : () -> ()
    %cst_100 = arith.constant dense<0.000000e+00> : vector<2x1x32xf32>
    %310 = tpu.matmul %309, %0, %cst_100 {dimension_numbers = #tpu.dot_dimension_numbers<[2], [1], [1], [2], [0, 0, 0, 1, 1, 2], [0], [0]>} : vector<2x1x8xf32>, vector<2x8x32xf32>, vector<2x1x32xf32> -> vector<2x1x32xf32>
    "tpu.trace_stop"() : () -> ()
    %311 = vector.shape_cast %310 : vector<2x1x32xf32> to vector<2x32xf32>
    %cst_101 = arith.constant dense<0.000000e+00> : vector<2x32xf32>
    %312 = tpu.matmul %311, %4, %cst_101 {dimension_numbers = #tpu.dot_dimension_numbers<[1], [0], [0], [1], [0, 0, 1, 1], [], []>} : vector<2x32xf32>, vector<32x32xf32>, vector<2x32xf32> -> vector<2x32xf32>
    %313 = vector.broadcast %5 : vector<1x32xf32> to vector<2x32xf32>
    %314 = arith.addf %312, %313 : vector<2x32xf32>
    %cst_102 = arith.constant 0.000000e+00 : f32
    %315 = vector.broadcast %cst_102 : f32 to vector<2x32xf32>
    %316 = arith.cmpf oge, %314, %315 : vector<2x32xf32>
    %cst_103 = arith.constant 0.00999999977 : f32
    %317 = vector.broadcast %cst_103 : f32 to vector<2x32xf32>
    %318 = arith.mulf %317, %314 : vector<2x32xf32>
    %319 = arith.select %316, %314, %318 : vector<2x32xi1>, vector<2x32xf32>
    %cst_104 = arith.constant dense<0.000000e+00> : vector<2x96xf32>
    %320 = tpu.matmul %319, %6, %cst_104 {dimension_numbers = #tpu.dot_dimension_numbers<[1], [0], [0], [1], [0, 0, 1, 1], [], []>} : vector<2x32xf32>, vector<32x96xf32>, vector<2x96xf32> -> vector<2x96xf32>
    %321 = vector.broadcast %8 : vector<1x96xf32> to vector<2x96xf32>
    %322 = arith.addf %320, %321 : vector<2x96xf32>
    %cst_105 = arith.constant dense<0.000000e+00> : vector<2x96xf32>
    %323 = tpu.matmul %283, %7, %cst_105 {dimension_numbers = #tpu.dot_dimension_numbers<[1], [0], [0], [1], [0, 0, 1, 1], [], []>} : vector<2x32xf32>, vector<32x96xf32>, vector<2x96xf32> -> vector<2x96xf32>
    %324 = vector.broadcast %9 : vector<1x96xf32> to vector<2x96xf32>
    %325 = arith.addf %323, %324 : vector<2x96xf32>
    %326 = vector.extract_strided_slice %322 {offsets = [0, 0], sizes = [2, 32], strides = [1, 1]} : vector<2x96xf32> to vector<2x32xf32>
    %327 = vector.extract_strided_slice %325 {offsets = [0, 0], sizes = [2, 32], strides = [1, 1]} : vector<2x96xf32> to vector<2x32xf32>
    %328 = arith.addf %326, %327 : vector<2x32xf32>
    %329 = arith.negf %328 : vector<2x32xf32>
    %330 = math.exp %329 : vector<2x32xf32>
    %cst_106 = arith.constant 1.000000e+00 : f32
    %331 = vector.broadcast %cst_106 : f32 to vector<2x32xf32>
    %332 = arith.addf %331, %330 : vector<2x32xf32>
    %333 = arith.divf %331, %332 : vector<2x32xf32>
    %334 = vector.extract_strided_slice %322 {offsets = [0, 32], sizes = [2, 32], strides = [1, 1]} : vector<2x96xf32> to vector<2x32xf32>
    %335 = vector.extract_strided_slice %325 {offsets = [0, 32], sizes = [2, 32], strides = [1, 1]} : vector<2x96xf32> to vector<2x32xf32>
    %336 = arith.addf %334, %335 : vector<2x32xf32>
    %337 = arith.negf %336 : vector<2x32xf32>
    %338 = math.exp %337 : vector<2x32xf32>
    %cst_107 = arith.constant 1.000000e+00 : f32
    %339 = vector.broadcast %cst_107 : f32 to vector<2x32xf32>
    %340 = arith.addf %339, %338 : vector<2x32xf32>
    %341 = arith.divf %339, %340 : vector<2x32xf32>
    %342 = vector.extract_strided_slice %322 {offsets = [0, 64], sizes = [2, 32], strides = [1, 1]} : vector<2x96xf32> to vector<2x32xf32>
    %343 = vector.extract_strided_slice %325 {offsets = [0, 64], sizes = [2, 32], strides = [1, 1]} : vector<2x96xf32> to vector<2x32xf32>
    %344 = arith.mulf %333, %343 : vector<2x32xf32>
    %345 = arith.addf %342, %344 : vector<2x32xf32>
    %346 = math.tanh %345 : vector<2x32xf32>
    %cst_108 = arith.constant 1.000000e+00 : f32
    %347 = vector.broadcast %cst_108 : f32 to vector<2x32xf32>
    %348 = arith.subf %347, %341 : vector<2x32xf32>
    %349 = arith.mulf %348, %346 : vector<2x32xf32>
    %350 = arith.mulf %341, %283 : vector<2x32xf32>
    %351 = arith.addf %349, %350 : vector<2x32xf32>
    %c4_109 = arith.constant 4 : index
    %c0_110 = arith.constant 0 : index
    %c0_111 = arith.constant 0 : index
    %352 = vector.load %arg11[%c4_109, %c0_110, %c0_111] : memref<5x2x32xf32, #tpu.memory_space<vmem>>, vector<1x2x32xf32>
    %353 = vector.shape_cast %352 : vector<1x2x32xf32> to vector<2x32xf32>
    %354 = vector.shape_cast %351 : vector<2x32xf32> to vector<1x2x32xf32>
    tpu.vector_store %arg11[%c4_109, %c0_110, %c0_111], %354 {strides = array<i32>} : memref<5x2x32xf32, #tpu.memory_space<vmem>>, vector<1x2x32xf32>,
    return
  }
}

module attributes {stable_mosaic.version = 11 : i64} {
  func.func @_linear_kernel(%arg0: memref<10x32xf32, #tpu.memory_space<vmem>>, %arg1: memref<32x10xf32, #tpu.memory_space<vmem>>, %arg2: memref<1x10xf32, #tpu.memory_space<vmem>>, %arg3: memref<10x10xf32, #tpu.memory_space<vmem>>) attributes {dimension_semantics = [], scalar_prefetch = 0 : i64, scratch_operands = 0 : i64, tpu.core_type = #tpu.core_type<tc>} {
    %c0 = arith.constant 0 : index
    %c0_0 = arith.constant 0 : index
    %0 = vector.load %arg0[%c0, %c0_0] : memref<10x32xf32, #tpu.memory_space<vmem>>, vector<10x32xf32>
    %c0_1 = arith.constant 0 : index
    %c0_2 = arith.constant 0 : index
    %1 = vector.load %arg1[%c0_1, %c0_2] : memref<32x10xf32, #tpu.memory_space<vmem>>, vector<32x10xf32>
    %cst = arith.constant dense<0.000000e+00> : vector<10x10xf32>
    %2 = tpu.matmul %0, %1, %cst {dimension_numbers = #tpu.dot_dimension_numbers<[1], [0], [0], [1], [0, 0, 1, 1], [], []>} : vector<10x32xf32>, vector<32x10xf32>, vector<10x10xf32> -> vector<10x10xf32>
    %c0_3 = arith.constant 0 : index
    %c0_4 = arith.constant 0 : index
    %3 = vector.load %arg2[%c0_3, %c0_4] : memref<1x10xf32, #tpu.memory_space<vmem>>, vector<1x10xf32>
    %4 = vector.broadcast %3 : vector<1x10xf32> to vector<10x10xf32>
    %5 = arith.addf %2, %4 : vector<10x10xf32>
    %cst_5 = arith.constant dense<0xFF800000> : vector<10xf32>
    %6 = vector.multi_reduction <maximumf>, %5, %cst_5 [1] : vector<10x10xf32> to vector<10xf32>
    %7 = vector.shape_cast %6 : vector<10xf32> to vector<10x1xf32>
    %8 = vector.broadcast %7 : vector<10x1xf32> to vector<10x10xf32>
    %9 = arith.subf %5, %8 : vector<10x10xf32>
    %10 = math.exp %9 : vector<10x10xf32>
    %cst_6 = arith.constant dense<0.000000e+00> : vector<10xf32>
    %11 = vector.multi_reduction <add>, %10, %cst_6 [1] : vector<10x10xf32> to vector<10xf32>
    %12 = vector.shape_cast %11 : vector<10xf32> to vector<10x1xf32>
    %13 = math.log %12 : vector<10x1xf32>
    %14 = vector.broadcast %13 : vector<10x1xf32> to vector<10x10xf32>
    %15 = arith.subf %9, %14 : vector<10x10xf32>
    %c0_7 = arith.constant 0 : index
    %c0_8 = arith.constant 0 : index
    %16 = vector.load %arg3[%c0_7, %c0_8] : memref<10x10xf32, #tpu.memory_space<vmem>>, vector<10x10xf32>
    tpu.vector_store %arg3[%c0_7, %c0_8], %15 {strides = array<i32>} : memref<10x10xf32, #tpu.memory_space<vmem>>, vector<10x10xf32>,
    return
  }
}

</mosaic_0001>

<llo_original>
// kernel: attention_forward.5
$region0: #{attention_forward.5}
  #allocation0 [shape = 'u32[]', space=smem, size = 0x4, offset = 0x4, fixed_abs, tag = 'smem constant byte address 0x4 - core index']
  #allocation1 [shape = 'u32[144,128]{1,0:T(1,128)}', space=vmem, size = 0x12000, scoped, tag = 'internal scratch']
  %s0 = inlined_call_operand.vmem [shape: f32[10,32], index: 0, kind: input, shape index: {}]
  %s1 = inlined_call_operand.vmem [shape: f32[32,10], index: 1, kind: input, shape index: {}]
  %s2 = inlined_call_operand.vmem [shape: f32[1,10], index: 2, kind: input, shape index: {}]
  %s3 = inlined_call_operand.hbm [shape: f32[10,10], index: 3, kind: output, shape index: {}]
  %s4 = sld [smem:[#allocation0]]
  $region22: #{attention_forward.5} parent=0
    _
  %s6 = ssub.s32 1, %s4
  %s7 = scalar_select 0, %s6, %s4
  $region1: #{attention_forward.5} parent=0
    #allocation2 [shape = 'u8[8192]{0}', space=vmem, size = 0x2000, scoped, tag = 'output window, operand 0, single buffered']
    #allocation3 [shape = 's32[1]{0}', space=sflag, size = 0x4, scoped, tag = 'scoped memory for attention_forward.5']
    %8 = vsyncpa [#allocation3], 0
    // Predicated region
    $region2: #{attention_forward.5} parent=1 // pred_check
      _
    $region3: #{attention_forward.5} parent=1 // pred_check_branch
      %10 = sbr.rel (0) target = $region5
    $region4: #{attention_forward.5} parent=1 // pred_region
      _
    $region5: #{attention_forward.5} parent=1 // pred_fallthru
      _
    // Predicated region
    $region6: #{attention_forward.5} parent=1 // pred_check
      _
    $region7: #{attention_forward.5} parent=1 // pred_check_branch
      %12 = sbr.rel (0) target = $region9
    $region8: #{attention_forward.5} parent=1 // pred_region
      _
    $region9: #{attention_forward.5} parent=1 // pred_fallthru
      _
    // Predicated region
    $region10: #{attention_forward.5} parent=1 // pred_check
      _
    $region11: #{attention_forward.5} parent=1 // pred_check_branch
      %14 = sbr.rel (0) target = $region13
    $region12: #{attention_forward.5} parent=1 // pred_region
      _
    $region13: #{attention_forward.5} parent=1 // pred_fallthru
      _
    %v15 = vld [vmem:[%s0] sm:$0xff]
    %v16 = vld [vmem:[%s0 + $0x8] sm:$0x3]
    %v17 = vld [vmem:[%s1] sm:$0xff]
    %v18 = vld [vmem:[%s1 + $0x8] sm:$0xff]
    %v19 = vld [vmem:[%s1 + $0x10] sm:$0xff]
    %v20 = vld [vmem:[%s1 + $0x18] sm:$0xff]
    %v21 = vld [vmem:[%s2] sm:$0x1]
    %v23 = vlaneseq
    %v24 = vshrl.u32 %v23, 7
    %v25 = vsub.s32 0, %v24
    %v26 = vrot.slane %v21, %v25
    %vm28 = vcmask 261120
    %v30 = vsel %vm28, %v15, 0
    %v33 = vsel %vm28, %v16, 0
    %35 = vmatprep.subr.mxu0 0.0
    %36 = vmatpush1.msra.mxu0 %v17
    %37 = vmatprep.subr.mxu0 0.0
    %38 = vmatpush1.msra.mxu0 %v18
    %39 = vmatprep.subr.mxu0 0.0
    %40 = vmatpush1.msra.mxu0 %v19
    %41 = vmatprep.subr.mxu0 0.0
    %42 = vmatpush1.msra.mxu0 %v20
    %43 = vmatprep.subr.mxu0 0.0
    %44 = vmatpush1.msra.mxu0 0.0
    %45 = vmatprep.subr.mxu0 0.0
    %46 = vmatpush1.msra.mxu0 0.0
    %47 = vmatprep.subr.mxu0 0.0
    %48 = vmatpush1.msra.mxu0 0.0
    %49 = vmatprep.subr.mxu0 0.0
    %50 = vmatpush1.msra.mxu0 0.0
    %51 = vmatprep.subr.mxu0 0.0
    %52 = vmatpush1.msra.mxu0 0.0
    %53 = vmatprep.subr.mxu0 0.0
    %54 = vmatpush1.msra.mxu0 0.0
    %55 = vmatprep.subr.mxu0 0.0
    %56 = vmatpush1.msra.mxu0 0.0
    %57 = vmatprep.subr.mxu0 0.0
    %58 = vmatpush1.msra.mxu0 0.0
    %59 = vmatprep.subr.mxu0 0.0
    %60 = vmatpush1.msra.mxu0 0.0
    %61 = vmatprep.subr.mxu0 0.0
    %62 = vmatpush1.msra.mxu0 0.0
    %63 = vmatprep.subr.mxu0 0.0
    %64 = vmatpush1.msra.mxu0 0.0
    %65 = vmatprep.subr.mxu0 0.0
    %66 = vmatpush1.msra.mxu0 0.0
    %67 = vmatprep.subr.mxu0 0.0
    %68 = vmatpush1.msra.mxu0 0.0
    %69 = vmatprep.subr.mxu0 0.0
    %70 = vmatpush1.msra.mxu0 0.0
    %71 = vmatprep.subr.mxu0 0.0
    %72 = vmatpush1.msra.mxu0 0.0
    %73 = vmatprep.subr.mxu0 0.0
    %74 = vmatpush1.msra.mxu0 0.0
    %75 = vmatprep.subr.mxu0 0.0
    %76 = vmatpush1.msra.mxu0 0.0
    %77 = vmatprep.subr.mxu0 0.0
    %78 = vmatpush1.msra.mxu0 0.0
    %79 = vmatprep.subr.mxu0 0.0
    %80 = vmatpush1.msra.mxu0 0.0
    %81 = vmatprep.subr.mxu0 0.0
    %82 = vmatpush1.msra.mxu0 0.0
    %83 = vmatprep.subr.mxu0 0.0
    %84 = vmatpush1.msra.mxu0 0.0
    %85 = vmatprep.subr.mxu0 0.0
    %86 = vmatpush1.msra.mxu0 0.0
    %87 = vmatprep.subr.mxu0 0.0
    %88 = vmatpush1.msra.mxu0 0.0
    %89 = vmatprep.subr.mxu0 0.0
    %90 = vmatpush1.msra.mxu0 0.0
    %91 = vmatprep.subr.mxu0 0.0
    %92 = vmatpush1.msra.mxu0 0.0
    %93 = vmatprep.subr.mxu0 0.0
    %94 = vmatpush1.msra.mxu0 0.0
    %95 = vmatprep.subr.mxu0 0.0
    %96 = vmatpush1.msra.mxu0 0.0
    %97 = vmatprep.subr.mxu0 0.0
    %98 = vmatpush1.msra.mxu0 0.0
    %99 = vmatprep.mubr.f32.mxu0 0.0
    %100 = vmatmul.mubr.f32.gmra.mrb[0].mxu0 %v30
    %v101 = vpop.f32.mrb[0].mxu0
    %v102 = vadd.f32 %v26, %v101
    %v103 = vpop.f32.mrb[0].mxu0
    %104 = vmatprep.mubr.f32.mxu0 0.0
    %105 = vmatmul.mubr.f32.gmra.mrb[0].mxu0 %v33
    %v106 = vpop.f32.mrb[0].mxu0
    %v107 = vadd.f32 %v26, %v106
    %v108 = vpop.f32.mrb[0].mxu0
    %109 = vdwg.mxu0
    %vm110 = vcmask 80896
    %v111 = vsel %vm110, %v102, -inf
    %112 = vmax.xlane.f32.xlu0 %v111
    %v113 = vpop.xlane.xlu0 %112
    %vm114 = vcmask 74752
    %v115 = vsel %vm114, %v107, -inf
    %116 = vmax.xlane.f32.xlu0 %v115
    %v117 = vpop.xlane.xlu0 %116
    %v118 = vsub.f32 %v102, %v113
    %v119 = vsub.f32 %v107, %v117
    %v120 = vmul.f32 %v118, 1.442695
    %v121 = vpow.pop %v120
    %v122 = vmul.f32 %v119, 1.442695
    %v123 = vpow.pop %v122
    %v124 = vsel %vm110, %v121, 0.0
    %125 = vadd.xlane.f32.xlu0 %v124
    %v126 = vpop.xlane.xlu0 %125
    %v127 = vsel %vm114, %v123, 0.0
    %128 = vadd.xlane.f32.xlu0 %v127
    %v129 = vpop.xlane.xlu0 %128
    %v130 = vlog2.pop %v126
    %v131 = vmul.f32 %v130, 0.6931472
    %v132 = vlog2.pop %v129
    %v133 = vmul.f32 %v132, 0.6931472
    %v134 = vsub.f32 %v118, %v131
    %v135 = vsub.f32 %v119, %v133
    %136 = vst.msk [vmem:[#allocation2] sm:$0xff] %vm110, %v134
    %137 = vst.msk [vmem:[#allocation2 + $0x8] sm:$0x3] %vm114, %v135
    // Predicated region
    $region14: #{attention_forward.5} parent=1 // pred_check
      _
    $region15: #{attention_forward.5} parent=1 // pred_check_branch
      %139 = sbr.rel (0) target = $region17
    $region16: #{attention_forward.5} parent=1 // pred_region
      %s141 = ssub.s32 256, 256
      %142 = vsyncadd [#allocation3], %s141
      %s143 = sshll.u32 [#allocation2], 4
      %s144 = int_to_ptr.vmem [resolvable:$true] %s143
      %149 = dma.vmem_to_hbm [thread:$0]  %s144, 256, %s3, [#allocation3], 128, 128, 8
    $region17: #{attention_forward.5} parent=1 // pred_fallthru
      _
    // Predicated region
    $region18: #{attention_forward.5} parent=1 // pred_check
      _
    $region19: #{attention_forward.5} parent=1 // pred_check_branch
      %151 = sbr.rel (0) target = $region21
    $region20: #{attention_forward.5} parent=1 // pred_region
      %152 = dma.done [#allocation3], 256
    $region21: #{attention_forward.5} parent=1 // pred_fallthru
      _
    %153 = vsyncpa [#allocation3], 1

// kernel: attention_forward.4
$region0: #{attention_forward.4}
  #allocation0 [shape = 'u32[]', space=smem, size = 0x4, offset = 0x4, fixed_abs, tag = 'smem constant byte address 0x4 - core index']
  #allocation1 [shape = 'u32[144,128]{1,0:T(1,128)}', space=vmem, size = 0x12000, scoped, tag = 'internal scratch']
  %s0 = inlined_call_operand.vmem [shape: f32[2,8,32], index: 0, kind: input, shape index: {}]
  %s1 = inlined_call_operand.vmem [shape: f32[5,2,32], index: 1, kind: input, shape index: {}]
  %s2 = inlined_call_operand.vmem [shape: f32[32,32], index: 2, kind: input, shape index: {}]
  %s3 = inlined_call_operand.vmem [shape: f32[1,32], index: 3, kind: input, shape index: {}]
  %s4 = inlined_call_operand.vmem [shape: f32[1,32], index: 4, kind: input, shape index: {}]
  %s5 = inlined_call_operand.vmem [shape: f32[32,32], index: 5, kind: input, shape index: {}]
  %s6 = inlined_call_operand.vmem [shape: f32[1,32], index: 6, kind: input, shape index: {}]
  %s7 = inlined_call_operand.vmem [shape: f32[32,96], index: 7, kind: input, shape index: {}]
  %s8 = inlined_call_operand.vmem [shape: f32[32,96], index: 8, kind: input, shape index: {}]
  %s9 = inlined_call_operand.vmem [shape: f32[1,96], index: 9, kind: input, shape index: {}]
  %s10 = inlined_call_operand.vmem [shape: f32[1,96], index: 10, kind: input, shape index: {}]
  %s11 = inlined_call_operand.vmem [shape: f32[5,2,32], index: 11, kind: output, shape index: {}]
  %s12 = sld [smem:[#allocation0]]
  $region54: #{attention_forward.4} parent=0
    _
  %s14 = ssub.s32 1, %s12
  %s15 = scalar_select 0, %s14, %s12
  // Predicated region
  $region2: #{attention_forward.4} parent=0 // pred_check
    _
  $region3: #{attention_forward.4} parent=0 // pred_check_branch
    %17 = sbr.rel (0) target = $region5
  $region4: #{attention_forward.4} parent=0 // pred_region
    _
  $region5: #{attention_forward.4} parent=0 // pred_fallthru
    _
  // Predicated region
  $region6: #{attention_forward.4} parent=0 // pred_check
    _
  $region7: #{attention_forward.4} parent=0 // pred_check_branch
    %19 = sbr.rel (0) target = $region9
  $region8: #{attention_forward.4} parent=0 // pred_region
    _
  $region9: #{attention_forward.4} parent=0 // pred_fallthru
    _
  // Predicated region
  $region10: #{attention_forward.4} parent=0 // pred_check
    _
  $region11: #{attention_forward.4} parent=0 // pred_check_branch
    %21 = sbr.rel (0) target = $region13
  $region12: #{attention_forward.4} parent=0 // pred_region
    _
  $region13: #{attention_forward.4} parent=0 // pred_fallthru
    _
  // Predicated region
  $region14: #{attention_forward.4} parent=0 // pred_check
    _
  $region15: #{attention_forward.4} parent=0 // pred_check_branch
    %23 = sbr.rel (0) target = $region17
  $region16: #{attention_forward.4} parent=0 // pred_region
    _
  $region17: #{attention_forward.4} parent=0 // pred_fallthru
    _
  // Predicated region
  $region18: #{attention_forward.4} parent=0 // pred_check
    _
  $region19: #{attention_forward.4} parent=0 // pred_check_branch
    %25 = sbr.rel (0) target = $region21
  $region20: #{attention_forward.4} parent=0 // pred_region
    _
  $region21: #{attention_forward.4} parent=0 // pred_fallthru
    _
  // Predicated region
  $region22: #{attention_forward.4} parent=0 // pred_check
    _
  $region23: #{attention_forward.4} parent=0 // pred_check_branch
    %27 = sbr.rel (0) target = $region25
  $region24: #{attention_forward.4} parent=0 // pred_region
    _
  $region25: #{attention_forward.4} parent=0 // pred_fallthru
    _
  // Predicated region
  $region26: #{attention_forward.4} parent=0 // pred_check
    _
  $region27: #{attention_forward.4} parent=0 // pred_check_branch
    %29 = sbr.rel (0) target = $region29
  $region28: #{attention_forward.4} parent=0 // pred_region
    _
  $region29: #{attention_forward.4} parent=0 // pred_fallthru
    _
  // Predicated region
  $region30: #{attention_forward.4} parent=0 // pred_check
    _
  $region31: #{attention_forward.4} parent=0 // pred_check_branch
    %31 = sbr.rel (0) target = $region33
  $region32: #{attention_forward.4} parent=0 // pred_region
    _
  $region33: #{attention_forward.4} parent=0 // pred_fallthru
    _
  // Predicated region
  $region34: #{attention_forward.4} parent=0 // pred_check
    _
  $region35: #{attention_forward.4} parent=0 // pred_check_branch
    %33 = sbr.rel (0) target = $region37
  $region36: #{attention_forward.4} parent=0 // pred_region
    _
  $region37: #{attention_forward.4} parent=0 // pred_fallthru
    _
  // Predicated region
  $region38: #{attention_forward.4} parent=0 // pred_check
    _
  $region39: #{attention_forward.4} parent=0 // pred_check_branch
    %35 = sbr.rel (0) target = $region41
  $region40: #{attention_forward.4} parent=0 // pred_region
    _
  $region41: #{attention_forward.4} parent=0 // pred_fallthru
    _
  // Predicated region
  $region42: #{attention_forward.4} parent=0 // pred_check
    _
  $region43: #{attention_forward.4} parent=0 // pred_check_branch
    %37 = sbr.rel (0) target = $region45
  $region44: #{attention_forward.4} parent=0 // pred_region
    _
  $region45: #{attention_forward.4} parent=0 // pred_fallthru
    _
  %v38 = vld [vmem:[%s0] sm:$0xff]
  %v39 = vld [vmem:[%s0 + $0x8] sm:$0xff]
  %v40 = vld [vmem:[%s2] sm:$0xff]
  %v41 = vld [vmem:[%s2 + $0x8] sm:$0xff]
  %v42 = vld [vmem:[%s2 + $0x10] sm:$0xff]
  %v43 = vld [vmem:[%s2 + $0x18] sm:$0xff]
  %v44 = vld [vmem:[%s3] sm:$0x1]
  %v45 = vld [vmem:[%s4] sm:$0x1]
  %v46 = vld [vmem:[%s5] sm:$0xff]
  %v47 = vld [vmem:[%s5 + $0x8] sm:$0xff]
  %v48 = vld [vmem:[%s5 + $0x10] sm:$0xff]
  %v49 = vld [vmem:[%s5 + $0x18] sm:$0xff]
  %v50 = vld [vmem:[%s6] sm:$0x1]
  %v51 = vld [vmem:[%s7] sm:$0xff]
  %v52 = vld [vmem:[%s7 + $0x8] sm:$0xff]
  %v53 = vld [vmem:[%s7 + $0x10] sm:$0xff]
  %v54 = vld [vmem:[%s7 + $0x18] sm:$0xff]
  %v55 = vld [vmem:[%s8] sm:$0xff]
  %v56 = vld [vmem:[%s8 + $0x8] sm:$0xff]
  %v57 = vld [vmem:[%s8 + $0x10] sm:$0xff]
  %v58 = vld [vmem:[%s8 + $0x18] sm:$0xff]
  %v59 = vld [vmem:[%s9] sm:$0x1]
  %v60 = vld [vmem:[%s10] sm:$0x1]
  %v62 = vlaneseq
  %v63 = vshrl.u32 %v62, 7
  %v64 = vsub.s32 0, %v63
  %v65 = vrot.slane %v45, %v64
  %v67 = vmul.f32 %v38, %v65
  %v68 = vmul.f32 %v39, %v65
  %vm69 = vcmask 261120
  %v70 = vsel %vm69, %v67, 0.0
  %71 = vadd.xlane.f32.xlu0 %v70
  %v72 = vpop.xlane.xlu0 %71
  %v73 = vsel %vm69, %v68, 0.0
  %74 = vadd.xlane.f32.xlu0 %v73
  %v75 = vpop.xlane.xlu0 %74
  %v76 = vld [vmem:[%s1] sm:$0x3]
  %v78 = vlaneseq
  %v79 = vshrl.u32 %v78, 7
  %v80 = vsub.s32 0, %v79
  %v81 = vrot.slane %v44, %v80
  %v84 = vsel %vm69, 0.0, 0
  %86 = vmatprep.subr.mxu0 0.0
  %87 = vmatpush1.msra.mxu0 %v40
  %88 = vmatprep.subr.mxu0 0.0
  %89 = vmatpush1.msra.mxu0 %v41
  %90 = vmatprep.subr.mxu0 0.0
  %91 = vmatpush1.msra.mxu0 %v42
  %92 = vmatprep.subr.mxu0 0.0
  %93 = vmatpush1.msra.mxu0 %v43
  %94 = vmatprep.subr.mxu0 0.0
  %95 = vmatpush1.msra.mxu0 0.0
  %96 = vmatprep.subr.mxu0 0.0
  %97 = vmatpush1.msra.mxu0 0.0
  %98 = vmatprep.subr.mxu0 0.0
  %99 = vmatpush1.msra.mxu0 0.0
  %100 = vmatprep.subr.mxu0 0.0
  %101 = vmatpush1.msra.mxu0 0.0
  %102 = vmatprep.subr.mxu0 0.0
  %103 = vmatpush1.msra.mxu0 0.0
  %104 = vmatprep.subr.mxu0 0.0
  %105 = vmatpush1.msra.mxu0 0.0
  %106 = vmatprep.subr.mxu0 0.0
  %107 = vmatpush1.msra.mxu0 0.0
  %108 = vmatprep.subr.mxu0 0.0
  %109 = vmatpush1.msra.mxu0 0.0
  %110 = vmatprep.subr.mxu0 0.0
  %111 = vmatpush1.msra.mxu0 0.0
  %112 = vmatprep.subr.mxu0 0.0
  %113 = vmatpush1.msra.mxu0 0.0
  %114 = vmatprep.subr.mxu0 0.0
  %115 = vmatpush1.msra.mxu0 0.0
  %116 = vmatprep.subr.mxu0 0.0
  %117 = vmatpush1.msra.mxu0 0.0
  %118 = vmatprep.subr.mxu0 0.0
  %119 = vmatpush1.msra.mxu0 0.0
  %120 = vmatprep.subr.mxu0 0.0
  %121 = vmatpush1.msra.mxu0 0.0
  %122 = vmatprep.subr.mxu0 0.0
  %123 = vmatpush1.msra.mxu0 0.0
  %124 = vmatprep.subr.mxu0 0.0
  %125 = vmatpush1.msra.mxu0 0.0
  %126 = vmatprep.subr.mxu0 0.0
  %127 = vmatpush1.msra.mxu0 0.0
  %128 = vmatprep.subr.mxu0 0.0
  %129 = vmatpush1.msra.mxu0 0.0
  %130 = vmatprep.subr.mxu0 0.0
  %131 = vmatpush1.msra.mxu0 0.0
  %132 = vmatprep.subr.mxu0 0.0
  %133 = vmatpush1.msra.mxu0 0.0
  %134 = vmatprep.subr.mxu0 0.0
  %135 = vmatpush1.msra.mxu0 0.0
  %136 = vmatprep.subr.mxu0 0.0
  %137 = vmatpush1.msra.mxu0 0.0
  %138 = vmatprep.subr.mxu0 0.0
  %139 = vmatpush1.msra.mxu0 0.0
  %140 = vmatprep.subr.mxu0 0.0
  %141 = vmatpush1.msra.mxu0 0.0
  %142 = vmatprep.subr.mxu0 0.0
  %143 = vmatpush1.msra.mxu0 0.0
  %144 = vmatprep.subr.mxu0 0.0
  %145 = vmatpush1.msra.mxu0 0.0
  %146 = vmatprep.subr.mxu0 0.0
  %147 = vmatpush1.msra.mxu0 0.0
  %148 = vmatprep.subr.mxu0 0.0
  %149 = vmatpush1.msra.mxu0 0.0
  %150 = vmatprep.mubr.f32.mxu0 0.0
  %151 = vmatmul.mubr.f32.gmra.mrb[0].mxu0 %v84
  %v152 = vpop.f32.mrb[0].mxu0
  %v153 = vadd.f32 %v81, %v152
  %v154 = vpop.f32.mrb[0].mxu0
  %155 = vdwg.mxu0
  %v156 = vadd.f32 %v153, %v76
  %v157 = vtanh.pop %v156
  %v158 = vmul.f32 %v157, %v65
  %vm159 = vcmask 254976
  %v160 = vsel %vm159, %v158, 0.0
  %161 = vadd.xlane.f32.xlu0 %v160
  %v162 = vpop.xlane.xlu0 %161
  %v164 = vlaneseq
  %v165 = vshrl.u32 %v164, 7
  %v166 = vsub.s32 0, %v165
  %v167 = vrot.slane %v162, %v166
  %v168 = vlaneseq
  %v169 = vshrl.u32 %v168, 7
  %v170 = vsub.s32 1, %v169
  %v171 = vrot.slane %v162, %v170
  %v174 = vadd.f32 %v72, %v167
  %v175 = vadd.f32 %v75, %v171
  %178 = vset.pattern.permute.xlu0 0
  %179 = vperm.xlu0 %178, %v174
  %v180 = vpop.permute.xlu0 %179
  %181 = vset.pattern.permute.xlu0 0
  %182 = vperm.xlu0 %181, %v175
  %v183 = vpop.permute.xlu0 %182
  %v184 = vlaneseq
  %v185 = vand.u32 %v184, 127
  %v186 = vlaneseq
  %v187 = vshrl.u32 %v186, 7
  %v188 = vsub.s32 %v185, %v187
  %v189 = vrot.slane %v180, %v188
  %v190 = vlaneseq
  %v191 = vshrl.u32 %v190, 7
  %v192 = vsub.s32 %v185, %v191
  %v193 = vrot.slane %v183, %v192
  %vm194 = vcmask 1041409
  %v195 = vsel %vm194, %v193, %v189
  %vm197 = vcmask 58368
  %v198 = vsel %vm197, %v195, -inf
  %199 = vmax.xlane.f32.xlu0 %v198
  %v200 = vpop.xlane.xlu0 %199
  %v202 = vlaneseq
  %v203 = vshrl.u32 %v202, 7
  %v204 = vsub.s32 0, %v203
  %v205 = vrot.slane %v200, %v204
  %v206 = vlaneseq
  %v207 = vshrl.u32 %v206, 7
  %v208 = vsub.s32 1, %v207
  %v209 = vrot.slane %v200, %v208
  %v212 = vsub.f32 %v174, %v205
  %v213 = vsub.f32 %v175, %v209
  %v214 = vmul.f32 %v212, 1.442695
  %v215 = vpow.pop %v214
  %v216 = vmul.f32 %v213, 1.442695
  %v217 = vpow.pop %v216
  %220 = vset.pattern.permute.xlu0 0
  %221 = vperm.xlu0 %220, %v215
  %v222 = vpop.permute.xlu0 %221
  %223 = vset.pattern.permute.xlu0 0
  %224 = vperm.xlu0 %223, %v217
  %v225 = vpop.permute.xlu0 %224
  %v226 = vlaneseq
  %v227 = vshrl.u32 %v226, 7
  %v228 = vsub.s32 %v185, %v227
  %v229 = vrot.slane %v222, %v228
  %v230 = vlaneseq
  %v231 = vshrl.u32 %v230, 7
  %v232 = vsub.s32 %v185, %v231
  %v233 = vrot.slane %v225, %v232
  %v234 = vsel %vm194, %v233, %v229
  %v236 = vsel %vm197, %v234, 0.0
  %237 = vadd.xlane.f32.xlu0 %v236
  %v238 = vpop.xlane.xlu0 %237
  %v240 = vlaneseq
  %v241 = vshrl.u32 %v240, 7
  %v242 = vsub.s32 0, %v241
  %v243 = vrot.slane %v238, %v242
  %v244 = vlaneseq
  %v245 = vshrl.u32 %v244, 7
  %v246 = vsub.s32 1, %v245
  %v247 = vrot.slane %v238, %v246
  %v250 = vrcp.pop %v243
  %v251 = vmul.f32 %v215, %v250
  %v252 = vrcp.pop %v247
  %v253 = vmul.f32 %v217, %v252
  %255 = vset.pattern.permute.xlu0 0
  %256 = vperm.xlu0 %255, %v251
  %v257 = vpop.permute.xlu0 %256
  %v258 = vlaneseq
  %v259 = vshrl.u32 %v258, 7
  %v260 = vsub.s32 %v185, %v259
  %v261 = vrot.slane %v257, %v260
  %vm262 = vcmask 64512
  %v263 = vsel %vm262, %v261, 0
  %265 = vmatprep.subr.mxu0 0.0
  %266 = vmatpush1.msra.mxu0 %v38
  %267 = vmatprep.subr.mxu0 0.0
  %268 = vmatpush1.msra.mxu0 0.0
  %269 = vmatprep.subr.mxu0 0.0
  %270 = vmatpush1.msra.mxu0 0.0
  %271 = vmatprep.subr.mxu0 0.0
  %272 = vmatpush1.msra.mxu0 0.0
  %273 = vmatprep.subr.mxu0 0.0
  %274 = vmatpush1.msra.mxu0 0.0
  %275 = vmatprep.subr.mxu0 0.0
  %276 = vmatpush1.msra.mxu0 0.0
  %277 = vmatprep.subr.mxu0 0.0
  %278 = vmatpush1.msra.mxu0 0.0
  %279 = vmatprep.subr.mxu0 0.0
  %280 = vmatpush1.msra.mxu0 0.0
  %281 = vmatprep.subr.mxu0 0.0
  %282 = vmatpush1.msra.mxu0 0.0
  %283 = vmatprep.subr.mxu0 0.0
  %284 = vmatpush1.msra.mxu0 0.0
  %285 = vmatprep.subr.mxu0 0.0
  %286 = vmatpush1.msra.mxu0 0.0
  %287 = vmatprep.subr.mxu0 0.0
  %288 = vmatpush1.msra.mxu0 0.0
  %289 = vmatprep.subr.mxu0 0.0
  %290 = vmatpush1.msra.mxu0 0.0
  %291 = vmatprep.subr.mxu0 0.0
  %292 = vmatpush1.msra.mxu0 0.0
  %293 = vmatprep.subr.mxu0 0.0
  %294 = vmatpush1.msra.mxu0 0.0
  %295 = vmatprep.subr.mxu0 0.0
  %296 = vmatpush1.msra.mxu0 0.0
  %297 = vmatprep.subr.mxu0 0.0
  %298 = vmatpush1.msra.mxu0 0.0
  %299 = vmatprep.subr.mxu0 0.0
  %300 = vmatpush1.msra.mxu0 0.0
  %301 = vmatprep.subr.mxu0 0.0
  %302 = vmatpush1.msra.mxu0 0.0
  %303 = vmatprep.subr.mxu0 0.0
  %304 = vmatpush1.msra.mxu0 0.0
  %305 = vmatprep.subr.mxu0 0.0
  %306 = vmatpush1.msra.mxu0 0.0
  %307 = vmatprep.subr.mxu0 0.0
  %308 = vmatpush1.msra.mxu0 0.0
  %309 = vmatprep.subr.mxu0 0.0
  %310 = vmatpush1.msra.mxu0 0.0
  %311 = vmatprep.subr.mxu0 0.0
  %312 = vmatpush1.msra.mxu0 0.0
  %313 = vmatprep.subr.mxu0 0.0
  %314 = vmatpush1.msra.mxu0 0.0
  %315 = vmatprep.subr.mxu0 0.0
  %316 = vmatpush1.msra.mxu0 0.0
  %317 = vmatprep.subr.mxu0 0.0
  %318 = vmatpush1.msra.mxu0 0.0
  %319 = vmatprep.subr.mxu0 0.0
  %320 = vmatpush1.msra.mxu0 0.0
  %321 = vmatprep.subr.mxu0 0.0
  %322 = vmatpush1.msra.mxu0 0.0
  %323 = vmatprep.subr.mxu0 0.0
  %324 = vmatpush1.msra.mxu0 0.0
  %325 = vmatprep.subr.mxu0 0.0
  %326 = vmatpush1.msra.mxu0 0.0
  %327 = vmatprep.subr.mxu0 0.0
  %328 = vmatpush1.msra.mxu0 0.0
  %329 = vmatprep.mubr.f32.mxu0 0.0
  %330 = vmatmul.mubr.f32.gmra.mrb[0].mxu0 %v263
  %v331 = vpop.f32.mrb[0].mxu0
  %v332 = vadd.f32 0.0, %v331
  %v333 = vpop.f32.mrb[0].mxu0
  %334 = vdwg.mxu0
  %336 = vset.pattern.permute.xlu0 0
  %337 = vperm.xlu0 %336, %v253
  %v338 = vpop.permute.xlu0 %337
  %v339 = vlaneseq
  %v340 = vshrl.u32 %v339, 7
  %v341 = vsub.s32 %v185, %v340
  %v342 = vrot.slane %v338, %v341
  %v343 = vsel %vm262, %v342, 0
  %345 = vmatprep.subr.mxu0 0.0
  %346 = vmatpush1.msra.mxu0 %v39
  %347 = vmatprep.subr.mxu0 0.0
  %348 = vmatpush1.msra.mxu0 0.0
  %349 = vmatprep.subr.mxu0 0.0
  %350 = vmatpush1.msra.mxu0 0.0
  %351 = vmatprep.subr.mxu0 0.0
  %352 = vmatpush1.msra.mxu0 0.0
  %353 = vmatprep.subr.mxu0 0.0
  %354 = vmatpush1.msra.mxu0 0.0
  %355 = vmatprep.subr.mxu0 0.0
  %356 = vmatpush1.msra.mxu0 0.0
  %357 = vmatprep.subr.mxu0 0.0
  %358 = vmatpush1.msra.mxu0 0.0
  %359 = vmatprep.subr.mxu0 0.0
  %360 = vmatpush1.msra.mxu0 0.0
  %361 = vmatprep.subr.mxu0 0.0
  %362 = vmatpush1.msra.mxu0 0.0
  %363 = vmatprep.subr.mxu0 0.0
  %364 = vmatpush1.msra.mxu0 0.0
  %365 = vmatprep.subr.mxu0 0.0
  %366 = vmatpush1.msra.mxu0 0.0
  %367 = vmatprep.subr.mxu0 0.0
  %368 = vmatpush1.msra.mxu0 0.0
  %369 = vmatprep.subr.mxu0 0.0
  %370 = vmatpush1.msra.mxu0 0.0
  %371 = vmatprep.subr.mxu0 0.0
  %372 = vmatpush1.msra.mxu0 0.0
  %373 = vmatprep.subr.mxu0 0.0
  %374 = vmatpush1.msra.mxu0 0.0
  %375 = vmatprep.subr.mxu0 0.0
  %376 = vmatpush1.msra.mxu0 0.0
  %377 = vmatprep.subr.mxu0 0.0
  %378 = vmatpush1.msra.mxu0 0.0
  %379 = vmatprep.subr.mxu0 0.0
  %380 = vmatpush1.msra.mxu0 0.0
  %381 = vmatprep.subr.mxu0 0.0
  %382 = vmatpush1.msra.mxu0 0.0
  %383 = vmatprep.subr.mxu0 0.0
  %384 = vmatpush1.msra.mxu0 0.0
  %385 = vmatprep.subr.mxu0 0.0
  %386 = vmatpush1.msra.mxu0 0.0
  %387 = vmatprep.subr.mxu0 0.0
  %388 = vmatpush1.msra.mxu0 0.0
  %389 = vmatprep.subr.mxu0 0.0
  %390 = vmatpush1.msra.mxu0 0.0
  %391 = vmatprep.subr.mxu0 0.0
  %392 = vmatpush1.msra.mxu0 0.0
  %393 = vmatprep.subr.mxu0 0.0
  %394 = vmatpush1.msra.mxu0 0.0
  %395 = vmatprep.subr.mxu0 0.0
  %396 = vmatpush1.msra.mxu0 0.0
  %397 = vmatprep.subr.mxu0 0.0
  %398 = vmatpush1.msra.mxu0 0.0
  %399 = vmatprep.subr.mxu0 0.0
  %400 = vmatpush1.msra.mxu0 0.0
  %401 = vmatprep.subr.mxu0 0.0
  %402 = vmatpush1.msra.mxu0 0.0
  %403 = vmatprep.subr.mxu0 0.0
  %404 = vmatpush1.msra.mxu0 0.0
  %405 = vmatprep.subr.mxu0 0.0
  %406 = vmatpush1.msra.mxu0 0.0
  %407 = vmatprep.subr.mxu0 0.0
  %408 = vmatpush1.msra.mxu0 0.0
  %409 = vmatprep.mubr.f32.mxu0 0.0
  %410 = vmatmul.mubr.f32.gmra.mrb[0].mxu0 %v343
  %v411 = vpop.f32.mrb[0].mxu0
  %v412 = vadd.f32 0.0, %v411
  %v413 = vpop.f32.mrb[0].mxu0
  %414 = vdwg.mxu0
  %v416 = vlaneseq
  %v417 = vshrl.u32 %v416, 7
  %v418 = vsub.s32 0, %v417
  %v419 = vrot.slane %v50, %v418
  %v423 = vrot.slane %v412, 7
  %v424 = vsel %vm194, %v423, %v332
  %v425 = vsel %vm69, %v424, 0
  %427 = vmatprep.subr.mxu0 0.0
  %428 = vmatpush1.msra.mxu0 %v46
  %429 = vmatprep.subr.mxu0 0.0
  %430 = vmatpush1.msra.mxu0 %v47
  %431 = vmatprep.subr.mxu0 0.0
  %432 = vmatpush1.msra.mxu0 %v48
  %433 = vmatprep.subr.mxu0 0.0
  %434 = vmatpush1.msra.mxu0 %v49
  %435 = vmatprep.subr.mxu0 0.0
  %436 = vmatpush1.msra.mxu0 0.0
  %437 = vmatprep.subr.mxu0 0.0
  %438 = vmatpush1.msra.mxu0 0.0
  %439 = vmatprep.subr.mxu0 0.0
  %440 = vmatpush1.msra.mxu0 0.0
  %441 = vmatprep.subr.mxu0 0.0
  %442 = vmatpush1.msra.mxu0 0.0
  %443 = vmatprep.subr.mxu0 0.0
  %444 = vmatpush1.msra.mxu0 0.0
  %445 = vmatprep.subr.mxu0 0.0
  %446 = vmatpush1.msra.mxu0 0.0
  %447 = vmatprep.subr.mxu0 0.0
  %448 = vmatpush1.msra.mxu0 0.0
  %449 = vmatprep.subr.mxu0 0.0
  %450 = vmatpush1.msra.mxu0 0.0
  %451 = vmatprep.subr.mxu0 0.0
  %452 = vmatpush1.msra.mxu0 0.0
  %453 = vmatprep.subr.mxu0 0.0
  %454 = vmatpush1.msra.mxu0 0.0
  %455 = vmatprep.subr.mxu0 0.0
  %456 = vmatpush1.msra.mxu0 0.0
  %457 = vmatprep.subr.mxu0 0.0
  %458 = vmatpush1.msra.mxu0 0.0
  %459 = vmatprep.subr.mxu0 0.0
  %460 = vmatpush1.msra.mxu0 0.0
  %461 = vmatprep.subr.mxu0 0.0
  %462 = vmatpush1.msra.mxu0 0.0
  %463 = vmatprep.subr.mxu0 0.0
  %464 = vmatpush1.msra.mxu0 0.0
  %465 = vmatprep.subr.mxu0 0.0
  %466 = vmatpush1.msra.mxu0 0.0
  %467 = vmatprep.subr.mxu0 0.0
  %468 = vmatpush1.msra.mxu0 0.0
  %469 = vmatprep.subr.mxu0 0.0
  %470 = vmatpush1.msra.mxu0 0.0
  %471 = vmatprep.subr.mxu0 0.0
  %472 = vmatpush1.msra.mxu0 0.0
  %473 = vmatprep.subr.mxu0 0.0
  %474 = vmatpush1.msra.mxu0 0.0
  %475 = vmatprep.subr.mxu0 0.0
  %476 = vmatpush1.msra.mxu0 0.0
  %477 = vmatprep.subr.mxu0 0.0
  %478 = vmatpush1.msra.mxu0 0.0
  %479 = vmatprep.subr.mxu0 0.0
  %480 = vmatpush1.msra.mxu0 0.0
  %481 = vmatprep.subr.mxu0 0.0
  %482 = vmatpush1.msra.mxu0 0.0
  %483 = vmatprep.subr.mxu0 0.0
  %484 = vmatpush1.msra.mxu0 0.0
  %485 = vmatprep.subr.mxu0 0.0
  %486 = vmatpush1.msra.mxu0 0.0
  %487 = vmatprep.subr.mxu0 0.0
  %488 = vmatpush1.msra.mxu0 0.0
  %489 = vmatprep.subr.mxu0 0.0
  %490 = vmatpush1.msra.mxu0 0.0
  %491 = vmatprep.mubr.f32.mxu0 0.0
  %492 = vmatmul.mubr.f32.gmra.mrb[0].mxu0 %v425
  %v493 = vpop.f32.mrb[0].mxu0
  %v494 = vadd.f32 %v419, %v493
  %v495 = vpop.f32.mrb[0].mxu0
  %496 = vdwg.mxu0
  %vm497 = vcmp.ge.f32.partialorder %v494, 0.0
  %v498 = vmul.f32 %v494, 0.01
  %v499 = vsel %vm497, %v494, %v498
  %v501 = vlaneseq
  %v502 = vshrl.u32 %v501, 7
  %v503 = vsub.s32 0, %v502
  %v504 = vrot.slane %v59, %v503
  %v507 = vsel %vm69, %v499, 0
  %509 = vmatprep.subr.mxu0 0.0
  %510 = vmatpush1.msra.mxu0 %v51
  %511 = vmatprep.subr.mxu0 0.0
  %512 = vmatpush1.msra.mxu0 %v52
  %513 = vmatprep.subr.mxu0 0.0
  %514 = vmatpush1.msra.mxu0 %v53
  %515 = vmatprep.subr.mxu0 0.0
  %516 = vmatpush1.msra.mxu0 %v54
  %517 = vmatprep.subr.mxu0 0.0
  %518 = vmatpush1.msra.mxu0 0.0
  %519 = vmatprep.subr.mxu0 0.0
  %520 = vmatpush1.msra.mxu0 0.0
  %521 = vmatprep.subr.mxu0 0.0
  %522 = vmatpush1.msra.mxu0 0.0
  %523 = vmatprep.subr.mxu0 0.0
  %524 = vmatpush1.msra.mxu0 0.0
  %525 = vmatprep.subr.mxu0 0.0
  %526 = vmatpush1.msra.mxu0 0.0
  %527 = vmatprep.subr.mxu0 0.0
  %528 = vmatpush1.msra.mxu0 0.0
  %529 = vmatprep.subr.mxu0 0.0
  %530 = vmatpush1.msra.mxu0 0.0
  %531 = vmatprep.subr.mxu0 0.0
  %532 = vmatpush1.msra.mxu0 0.0
  %533 = vmatprep.subr.mxu0 0.0
  %534 = vmatpush1.msra.mxu0 0.0
  %535 = vmatprep.subr.mxu0 0.0
  %536 = vmatpush1.msra.mxu0 0.0
  %537 = vmatprep.subr.mxu0 0.0
  %538 = vmatpush1.msra.mxu0 0.0
  %539 = vmatprep.subr.mxu0 0.0
  %540 = vmatpush1.msra.mxu0 0.0
  %541 = vmatprep.subr.mxu0 0.0
  %542 = vmatpush1.msra.mxu0 0.0
  %543 = vmatprep.subr.mxu0 0.0
  %544 = vmatpush1.msra.mxu0 0.0
  %545 = vmatprep.subr.mxu0 0.0
  %546 = vmatpush1.msra.mxu0 0.0
  %547 = vmatprep.subr.mxu0 0.0
  %548 = vmatpush1.msra.mxu0 0.0
  %549 = vmatprep.subr.mxu0 0.0
  %550 = vmatpush1.msra.mxu0 0.0
  %551 = vmatprep.subr.mxu0 0.0
  %552 = vmatpush1.msra.mxu0 0.0
  %553 = vmatprep.subr.mxu0 0.0
  %554 = vmatpush1.msra.mxu0 0.0
  %555 = vmatprep.subr.mxu0 0.0
  %556 = vmatpush1.msra.mxu0 0.0
  %557 = vmatprep.subr.mxu0 0.0
  %558 = vmatpush1.msra.mxu0 0.0
  %559 = vmatprep.subr.mxu0 0.0
  %560 = vmatpush1.msra.mxu0 0.0
  %561 = vmatprep.subr.mxu0 0.0
  %562 = vmatpush1.msra.mxu0 0.0
  %563 = vmatprep.subr.mxu0 0.0
  %564 = vmatpush1.msra.mxu0 0.0
  %565 = vmatprep.subr.mxu0 0.0
  %566 = vmatpush1.msra.mxu0 0.0
  %567 = vmatprep.subr.mxu0 0.0
  %568 = vmatpush1.msra.mxu0 0.0
  %569 = vmatprep.subr.mxu0 0.0
  %570 = vmatpush1.msra.mxu0 0.0
  %571 = vmatprep.subr.mxu0 0.0
  %572 = vmatpush1.msra.mxu0 0.0
  %573 = vmatprep.mubr.f32.mxu0 0.0
  %574 = vmatmul.mubr.f32.gmra.mrb[0].mxu0 %v507
  %v575 = vpop.f32.mrb[0].mxu0
  %v576 = vadd.f32 %v504, %v575
  %v577 = vpop.f32.mrb[0].mxu0
  %578 = vdwg.mxu0
  %v580 = vlaneseq
  %v581 = vshrl.u32 %v580, 7
  %v582 = vsub.s32 0, %v581
  %v583 = vrot.slane %v60, %v582
  %585 = vmatprep.subr.mxu0 0.0
  %586 = vmatpush1.msra.mxu0 %v55
  %587 = vmatprep.subr.mxu0 0.0
  %588 = vmatpush1.msra.mxu0 %v56
  %589 = vmatprep.subr.mxu0 0.0
  %590 = vmatpush1.msra.mxu0 %v57
  %591 = vmatprep.subr.mxu0 0.0
  %592 = vmatpush1.msra.mxu0 %v58
  %593 = vmatprep.subr.mxu0 0.0
  %594 = vmatpush1.msra.mxu0 0.0
  %595 = vmatprep.subr.mxu0 0.0
  %596 = vmatpush1.msra.mxu0 0.0
  %597 = vmatprep.subr.mxu0 0.0
  %598 = vmatpush1.msra.mxu0 0.0
  %599 = vmatprep.subr.mxu0 0.0
  %600 = vmatpush1.msra.mxu0 0.0
  %601 = vmatprep.subr.mxu0 0.0
  %602 = vmatpush1.msra.mxu0 0.0
  %603 = vmatprep.subr.mxu0 0.0
  %604 = vmatpush1.msra.mxu0 0.0
  %605 = vmatprep.subr.mxu0 0.0
  %606 = vmatpush1.msra.mxu0 0.0
  %607 = vmatprep.subr.mxu0 0.0
  %608 = vmatpush1.msra.mxu0 0.0
  %609 = vmatprep.subr.mxu0 0.0
  %610 = vmatpush1.msra.mxu0 0.0
  %611 = vmatprep.subr.mxu0 0.0
  %612 = vmatpush1.msra.mxu0 0.0
  %613 = vmatprep.subr.mxu0 0.0
  %614 = vmatpush1.msra.mxu0 0.0
  %615 = vmatprep.subr.mxu0 0.0
  %616 = vmatpush1.msra.mxu0 0.0
  %617 = vmatprep.subr.mxu0 0.0
  %618 = vmatpush1.msra.mxu0 0.0
  %619 = vmatprep.subr.mxu0 0.0
  %620 = vmatpush1.msra.mxu0 0.0
  %621 = vmatprep.subr.mxu0 0.0
  %622 = vmatpush1.msra.mxu0 0.0
  %623 = vmatprep.subr.mxu0 0.0
  %624 = vmatpush1.msra.mxu0 0.0
  %625 = vmatprep.subr.mxu0 0.0
  %626 = vmatpush1.msra.mxu0 0.0
  %627 = vmatprep.subr.mxu0 0.0
  %628 = vmatpush1.msra.mxu0 0.0
  %629 = vmatprep.subr.mxu0 0.0
  %630 = vmatpush1.msra.mxu0 0.0
  %631 = vmatprep.subr.mxu0 0.0
  %632 = vmatpush1.msra.mxu0 0.0
  %633 = vmatprep.subr.mxu0 0.0
  %634 = vmatpush1.msra.mxu0 0.0
  %635 = vmatprep.subr.mxu0 0.0
  %636 = vmatpush1.msra.mxu0 0.0
  %637 = vmatprep.subr.mxu0 0.0
  %638 = vmatpush1.msra.mxu0 0.0
  %639 = vmatprep.subr.mxu0 0.0
  %640 = vmatpush1.msra.mxu0 0.0
  %641 = vmatprep.subr.mxu0 0.0
  %642 = vmatpush1.msra.mxu0 0.0
  %643 = vmatprep.subr.mxu0 0.0
  %644 = vmatpush1.msra.mxu0 0.0
  %645 = vmatprep.subr.mxu0 0.0
  %646 = vmatpush1.msra.mxu0 0.0
  %647 = vmatprep.subr.mxu0 0.0
  %648 = vmatpush1.msra.mxu0 0.0
  %649 = vmatprep.mubr.f32.mxu0 0.0
  %650 = vmatmul.mubr.f32.gmra.mrb[0].mxu0 %v84
  %v651 = vpop.f32.mrb[0].mxu0
  %v652 = vadd.f32 %v583, %v651
  %v653 = vpop.f32.mrb[0].mxu0
  %654 = vdwg.mxu0
  %v655 = vadd.f32 %v576, %v652
  %v656 = vxor.u32 %v655, 2147483648
  %v657 = vmul.f32 %v656, 1.442695
  %v658 = vpow.pop %v657
  %v659 = vadd.f32 %v658, 1.0
  %v660 = vrcp.pop %v659
  %v661 = vmul.f32 1.0, %v660
  %663 = vrot.lane.b32.xlu0 %v652, 64
  %v664 = vpop.permute.xlu0 %663
  %v666 = vmul.f32 %v661, %v664
  %668 = vrot.lane.b32.xlu0 %v666, 64
  %v669 = vpop.permute.xlu0 %668
  %v671 = vadd.f32 %v576, %v669
  %v672 = vtanh.pop %v671
  %v673 = vsub.f32 1.0, %v661
  %675 = vrot.lane.b32.xlu0 %v672, 96
  %v676 = vpop.permute.xlu0 %675
  %v678 = vmul.f32 %v673, %v676
  %v679 = vmul.f32 %v661, 0.0
  %v680 = vadd.f32 %v678, %v679
  %682 = vrot.lane.b32.xlu0 %v680, 96
  %v683 = vpop.permute.xlu0 %682
  %685 = vst.msk [vmem:[%s11] sm:$0x3] %vm159, %v683
  %s686 = scalar_lea.vmem %s1, 2
  %v687 = vld [vmem:[%s686] sm:$0x3]
  %v688 = vsel %vm69, %v683, 0
  %690 = vmatprep.subr.mxu0 0.0
  %691 = vmatpush1.msra.mxu0 %v40
  %692 = vmatprep.subr.mxu0 0.0
  %693 = vmatpush1.msra.mxu0 %v41
  %694 = vmatprep.subr.mxu0 0.0
  %695 = vmatpush1.msra.mxu0 %v42
  %696 = vmatprep.subr.mxu0 0.0
  %697 = vmatpush1.msra.mxu0 %v43
  %698 = vmatprep.subr.mxu0 0.0
  %699 = vmatpush1.msra.mxu0 0.0
  %700 = vmatprep.subr.mxu0 0.0
  %701 = vmatpush1.msra.mxu0 0.0
  %702 = vmatprep.subr.mxu0 0.0
  %703 = vmatpush1.msra.mxu0 0.0
  %704 = vmatprep.subr.mxu0 0.0
  %705 = vmatpush1.msra.mxu0 0.0
  %706 = vmatprep.subr.mxu0 0.0
  %707 = vmatpush1.msra.mxu0 0.0
  %708 = vmatprep.subr.mxu0 0.0
  %709 = vmatpush1.msra.mxu0 0.0
  %710 = vmatprep.subr.mxu0 0.0
  %711 = vmatpush1.msra.mxu0 0.0
  %712 = vmatprep.subr.mxu0 0.0
  %713 = vmatpush1.msra.mxu0 0.0
  %714 = vmatprep.subr.mxu0 0.0
  %715 = vmatpush1.msra.mxu0 0.0
  %716 = vmatprep.subr.mxu0 0.0
  %717 = vmatpush1.msra.mxu0 0.0
  %718 = vmatprep.subr.mxu0 0.0
  %719 = vmatpush1.msra.mxu0 0.0
  %720 = vmatprep.subr.mxu0 0.0
  %721 = vmatpush1.msra.mxu0 0.0
  %722 = vmatprep.subr.mxu0 0.0
  %723 = vmatpush1.msra.mxu0 0.0
  %724 = vmatprep.subr.mxu0 0.0
  %725 = vmatpush1.msra.mxu0 0.0
  %726 = vmatprep.subr.mxu0 0.0
  %727 = vmatpush1.msra.mxu0 0.0
  %728 = vmatprep.subr.mxu0 0.0
  %729 = vmatpush1.msra.mxu0 0.0
  %730 = vmatprep.subr.mxu0 0.0
  %731 = vmatpush1.msra.mxu0 0.0
  %732 = vmatprep.subr.mxu0 0.0
  %733 = vmatpush1.msra.mxu0 0.0
  %734 = vmatprep.subr.mxu0 0.0
  %735 = vmatpush1.msra.mxu0 0.0
  %736 = vmatprep.subr.mxu0 0.0
  %737 = vmatpush1.msra.mxu0 0.0
  %738 = vmatprep.subr.mxu0 0.0
  %739 = vmatpush1.msra.mxu0 0.0
  %740 = vmatprep.subr.mxu0 0.0
  %741 = vmatpush1.msra.mxu0 0.0
  %742 = vmatprep.subr.mxu0 0.0
  %743 = vmatpush1.msra.mxu0 0.0
  %744 = vmatprep.subr.mxu0 0.0
  %745 = vmatpush1.msra.mxu0 0.0
  %746 = vmatprep.subr.mxu0 0.0
  %747 = vmatpush1.msra.mxu0 0.0
  %748 = vmatprep.subr.mxu0 0.0
  %749 = vmatpush1.msra.mxu0 0.0
  %750 = vmatprep.subr.mxu0 0.0
  %751 = vmatpush1.msra.mxu0 0.0
  %752 = vmatprep.subr.mxu0 0.0
  %753 = vmatpush1.msra.mxu0 0.0
  %754 = vmatprep.mubr.f32.mxu0 0.0
  %755 = vmatmul.mubr.f32.gmra.mrb[0].mxu0 %v688
  %v756 = vpop.f32.mrb[0].mxu0
  %v757 = vadd.f32 %v81, %v756
  %v758 = vpop.f32.mrb[0].mxu0
  %759 = vdwg.mxu0
  %v760 = vadd.f32 %v757, %v687
  %v761 = vtanh.pop %v760
  %v762 = vmul.f32 %v761, %v65
  %v763 = vsel %vm159, %v762, 0.0
  %764 = vadd.xlane.f32.xlu0 %v763
  %v765 = vpop.xlane.xlu0 %764
  %v767 = vlaneseq
  %v768 = vshrl.u32 %v767, 7
  %v769 = vsub.s32 0, %v768
  %v770 = vrot.slane %v765, %v769
  %v771 = vlaneseq
  %v772 = vshrl.u32 %v771, 7
  %v773 = vsub.s32 1, %v772
  %v774 = vrot.slane %v765, %v773
  %v777 = vadd.f32 %v72, %v770
  %v778 = vadd.f32 %v75, %v774
  %781 = vset.pattern.permute.xlu0 0
  %782 = vperm.xlu0 %781, %v777
  %v783 = vpop.permute.xlu0 %782
  %784 = vset.pattern.permute.xlu0 0
  %785 = vperm.xlu0 %784, %v778
  %v786 = vpop.permute.xlu0 %785
  %v787 = vlaneseq
  %v788 = vshrl.u32 %v787, 7
  %v789 = vsub.s32 %v185, %v788
  %v790 = vrot.slane %v783, %v789
  %v791 = vlaneseq
  %v792 = vshrl.u32 %v791, 7
  %v793 = vsub.s32 %v185, %v792
  %v794 = vrot.slane %v786, %v793
  %v795 = vsel %vm194, %v794, %v790
  %v797 = vsel %vm197, %v795, -inf
  %798 = vmax.xlane.f32.xlu0 %v797
  %v799 = vpop.xlane.xlu0 %798
  %v801 = vlaneseq
  %v802 = vshrl.u32 %v801, 7
  %v803 = vsub.s32 0, %v802
  %v804 = vrot.slane %v799, %v803
  %v805 = vlaneseq
  %v806 = vshrl.u32 %v805, 7
  %v807 = vsub.s32 1, %v806
  %v808 = vrot.slane %v799, %v807
  %v811 = vsub.f32 %v777, %v804
  %v812 = vsub.f32 %v778, %v808
  %v813 = vmul.f32 %v811, 1.442695
  %v814 = vpow.pop %v813
  %v815 = vmul.f32 %v812, 1.442695
  %v816 = vpow.pop %v815
  %819 = vset.pattern.permute.xlu0 0
  %820 = vperm.xlu0 %819, %v814
  %v821 = vpop.permute.xlu0 %820
  %822 = vset.pattern.permute.xlu0 0
  %823 = vperm.xlu0 %822, %v816
  %v824 = vpop.permute.xlu0 %823
  %v825 = vlaneseq
  %v826 = vshrl.u32 %v825, 7
  %v827 = vsub.s32 %v185, %v826
  %v828 = vrot.slane %v821, %v827
  %v829 = vlaneseq
  %v830 = vshrl.u32 %v829, 7
  %v831 = vsub.s32 %v185, %v830
  %v832 = vrot.slane %v824, %v831
  %v833 = vsel %vm194, %v832, %v828
  %v835 = vsel %vm197, %v833, 0.0
  %836 = vadd.xlane.f32.xlu0 %v835
  %v837 = vpop.xlane.xlu0 %836
  %v839 = vlaneseq
  %v840 = vshrl.u32 %v839, 7
  %v841 = vsub.s32 0, %v840
  %v842 = vrot.slane %v837, %v841
  %v843 = vlaneseq
  %v844 = vshrl.u32 %v843, 7
  %v845 = vsub.s32 1, %v844
  %v846 = vrot.slane %v837, %v845
  %v849 = vrcp.pop %v842
  %v850 = vmul.f32 %v814, %v849
  %v851 = vrcp.pop %v846
  %v852 = vmul.f32 %v816, %v851
  %854 = vset.pattern.permute.xlu0 0
  %855 = vperm.xlu0 %854, %v850
  %v856 = vpop.permute.xlu0 %855
  %v857 = vlaneseq
  %v858 = vshrl.u32 %v857, 7
  %v859 = vsub.s32 %v185, %v858
  %v860 = vrot.slane %v856, %v859
  %v861 = vsel %vm262, %v860, 0
  %863 = vmatprep.subr.mxu0 0.0
  %864 = vmatpush1.msra.mxu0 %v38
  %865 = vmatprep.subr.mxu0 0.0
  %866 = vmatpush1.msra.mxu0 0.0
  %867 = vmatprep.subr.mxu0 0.0
  %868 = vmatpush1.msra.mxu0 0.0
  %869 = vmatprep.subr.mxu0 0.0
  %870 = vmatpush1.msra.mxu0 0.0
  %871 = vmatprep.subr.mxu0 0.0
  %872 = vmatpush1.msra.mxu0 0.0
  %873 = vmatprep.subr.mxu0 0.0
  %874 = vmatpush1.msra.mxu0 0.0
  %875 = vmatprep.subr.mxu0 0.0
  %876 = vmatpush1.msra.mxu0 0.0
  %877 = vmatprep.subr.mxu0 0.0
  %878 = vmatpush1.msra.mxu0 0.0
  %879 = vmatprep.subr.mxu0 0.0
  %880 = vmatpush1.msra.mxu0 0.0
  %881 = vmatprep.subr.mxu0 0.0
  %882 = vmatpush1.msra.mxu0 0.0
  %883 = vmatprep.subr.mxu0 0.0
  %884 = vmatpush1.msra.mxu0 0.0
  %885 = vmatprep.subr.mxu0 0.0
  %886 = vmatpush1.msra.mxu0 0.0
  %887 = vmatprep.subr.mxu0 0.0
  %888 = vmatpush1.msra.mxu0 0.0
  %889 = vmatprep.subr.mxu0 0.0
  %890 = vmatpush1.msra.mxu0 0.0
  %891 = vmatprep.subr.mxu0 0.0
  %892 = vmatpush1.msra.mxu0 0.0
  %893 = vmatprep.subr.mxu0 0.0
  %894 = vmatpush1.msra.mxu0 0.0
  %895 = vmatprep.subr.mxu0 0.0
  %896 = vmatpush1.msra.mxu0 0.0
  %897 = vmatprep.subr.mxu0 0.0
  %898 = vmatpush1.msra.mxu0 0.0
  %899 = vmatprep.subr.mxu0 0.0
  %900 = vmatpush1.msra.mxu0 0.0
  %901 = vmatprep.subr.mxu0 0.0
  %902 = vmatpush1.msra.mxu0 0.0
  %903 = vmatprep.subr.mxu0 0.0
  %904 = vmatpush1.msra.mxu0 0.0
  %905 = vmatprep.subr.mxu0 0.0
  %906 = vmatpush1.msra.mxu0 0.0
  %907 = vmatprep.subr.mxu0 0.0
  %908 = vmatpush1.msra.mxu0 0.0
  %909 = vmatprep.subr.mxu0 0.0
  %910 = vmatpush1.msra.mxu0 0.0
  %911 = vmatprep.subr.mxu0 0.0
  %912 = vmatpush1.msra.mxu0 0.0
  %913 = vmatprep.subr.mxu0 0.0
  %914 = vmatpush1.msra.mxu0 0.0
  %915 = vmatprep.subr.mxu0 0.0
  %916 = vmatpush1.msra.mxu0 0.0
  %917 = vmatprep.subr.mxu0 0.0
  %918 = vmatpush1.msra.mxu0 0.0
  %919 = vmatprep.subr.mxu0 0.0
  %920 = vmatpush1.msra.mxu0 0.0
  %921 = vmatprep.subr.mxu0 0.0
  %922 = vmatpush1.msra.mxu0 0.0
  %923 = vmatprep.subr.mxu0 0.0
  %924 = vmatpush1.msra.mxu0 0.0
  %925 = vmatprep.subr.mxu0 0.0
  %926 = vmatpush1.msra.mxu0 0.0
  %927 = vmatprep.mubr.f32.mxu0 0.0
  %928 = vmatmul.mubr.f32.gmra.mrb[0].mxu0 %v861
  %v929 = vpop.f32.mrb[0].mxu0
  %v930 = vadd.f32 0.0, %v929
  %v931 = vpop.f32.mrb[0].mxu0
  %932 = vdwg.mxu0
  %934 = vset.pattern.permute.xlu0 0
  %935 = vperm.xlu0 %934, %v852
  %v936 = vpop.permute.xlu0 %935
  %v937 = vlaneseq
  %v938 = vshrl.u32 %v937, 7
  %v939 = vsub.s32 %v185, %v938
  %v940 = vrot.slane %v936, %v939
  %v941 = vsel %vm262, %v940, 0
  %943 = vmatprep.subr.mxu0 0.0
  %944 = vmatpush1.msra.mxu0 %v39
  %945 = vmatprep.subr.mxu0 0.0
  %946 = vmatpush1.msra.mxu0 0.0
  %947 = vmatprep.subr.mxu0 0.0
  %948 = vmatpush1.msra.mxu0 0.0
  %949 = vmatprep.subr.mxu0 0.0
  %950 = vmatpush1.msra.mxu0 0.0
  %951 = vmatprep.subr.mxu0 0.0
  %952 = vmatpush1.msra.mxu0 0.0
  %953 = vmatprep.subr.mxu0 0.0
  %954 = vmatpush1.msra.mxu0 0.0
  %955 = vmatprep.subr.mxu0 0.0
  %956 = vmatpush1.msra.mxu0 0.0
  %957 = vmatprep.subr.mxu0 0.0
  %958 = vmatpush1.msra.mxu0 0.0
  %959 = vmatprep.subr.mxu0 0.0
  %960 = vmatpush1.msra.mxu0 0.0
  %961 = vmatprep.subr.mxu0 0.0
  %962 = vmatpush1.msra.mxu0 0.0
  %963 = vmatprep.subr.mxu0 0.0
  %964 = vmatpush1.msra.mxu0 0.0
  %965 = vmatprep.subr.mxu0 0.0
  %966 = vmatpush1.msra.mxu0 0.0
  %967 = vmatprep.subr.mxu0 0.0
  %968 = vmatpush1.msra.mxu0 0.0
  %969 = vmatprep.subr.mxu0 0.0
  %970 = vmatpush1.msra.mxu0 0.0
  %971 = vmatprep.subr.mxu0 0.0
  %972 = vmatpush1.msra.mxu0 0.0
  %973 = vmatprep.subr.mxu0 0.0
  %974 = vmatpush1.msra.mxu0 0.0
  %975 = vmatprep.subr.mxu0 0.0
  %976 = vmatpush1.msra.mxu0 0.0
  %977 = vmatprep.subr.mxu0 0.0
  %978 = vmatpush1.msra.mxu0 0.0
  %979 = vmatprep.subr.mxu0 0.0
  %980 = vmatpush1.msra.mxu0 0.0
  %981 = vmatprep.subr.mxu0 0.0
  %982 = vmatpush1.msra.mxu0 0.0
  %983 = vmatprep.subr.mxu0 0.0
  %984 = vmatpush1.msra.mxu0 0.0
  %985 = vmatprep.subr.mxu0 0.0
  %986 = vmatpush1.msra.mxu0 0.0
  %987 = vmatprep.subr.mxu0 0.0
  %988 = vmatpush1.msra.mxu0 0.0
  %989 = vmatprep.subr.mxu0 0.0
  %990 = vmatpush1.msra.mxu0 0.0
  %991 = vmatprep.subr.mxu0 0.0
  %992 = vmatpush1.msra.mxu0 0.0
  %993 = vmatprep.subr.mxu0 0.0
  %994 = vmatpush1.msra.mxu0 0.0
  %995 = vmatprep.subr.mxu0 0.0
  %996 = vmatpush1.msra.mxu0 0.0
  %997 = vmatprep.subr.mxu0 0.0
  %998 = vmatpush1.msra.mxu0 0.0
  %999 = vmatprep.subr.mxu0 0.0
  %1000 = vmatpush1.msra.mxu0 0.0
  %1001 = vmatprep.subr.mxu0 0.0
  %1002 = vmatpush1.msra.mxu0 0.0
  %1003 = vmatprep.subr.mxu0 0.0
  %1004 = vmatpush1.msra.mxu0 0.0
  %1005 = vmatprep.subr.mxu0 0.0
  %1006 = vmatpush1.msra.mxu0 0.0
  %1007 = vmatprep.mubr.f32.mxu0 0.0
  %1008 = vmatmul.mubr.f32.gmra.mrb[0].mxu0 %v941
  %v1009 = vpop.f32.mrb[0].mxu0
  %v1010 = vadd.f32 0.0, %v1009
  %v1011 = vpop.f32.mrb[0].mxu0
  %1012 = vdwg.mxu0
  %v1015 = vrot.slane %v1010, 7
  %v1016 = vsel %vm194, %v1015, %v930
  %v1017 = vsel %vm69, %v1016, 0
  %1019 = vmatprep.subr.mxu0 0.0
  %1020 = vmatpush1.msra.mxu0 %v46
  %1021 = vmatprep.subr.mxu0 0.0
  %1022 = vmatpush1.msra.mxu0 %v47
  %1023 = vmatprep.subr.mxu0 0.0
  %1024 = vmatpush1.msra.mxu0 %v48
  %1025 = vmatprep.subr.mxu0 0.0
  %1026 = vmatpush1.msra.mxu0 %v49
  %1027 = vmatprep.subr.mxu0 0.0
  %1028 = vmatpush1.msra.mxu0 0.0
  %1029 = vmatprep.subr.mxu0 0.0
  %1030 = vmatpush1.msra.mxu0 0.0
  %1031 = vmatprep.subr.mxu0 0.0
  %1032 = vmatpush1.msra.mxu0 0.0
  %1033 = vmatprep.subr.mxu0 0.0
  %1034 = vmatpush1.msra.mxu0 0.0
  %1035 = vmatprep.subr.mxu0 0.0
  %1036 = vmatpush1.msra.mxu0 0.0
  %1037 = vmatprep.subr.mxu0 0.0
  %1038 = vmatpush1.msra.mxu0 0.0
  %1039 = vmatprep.subr.mxu0 0.0
  %1040 = vmatpush1.msra.mxu0 0.0
  %1041 = vmatprep.subr.mxu0 0.0
  %1042 = vmatpush1.msra.mxu0 0.0
  %1043 = vmatprep.subr.mxu0 0.0
  %1044 = vmatpush1.msra.mxu0 0.0
  %1045 = vmatprep.subr.mxu0 0.0
  %1046 = vmatpush1.msra.mxu0 0.0
  %1047 = vmatprep.subr.mxu0 0.0
  %1048 = vmatpush1.msra.mxu0 0.0
  %1049 = vmatprep.subr.mxu0 0.0
  %1050 = vmatpush1.msra.mxu0 0.0
  %1051 = vmatprep.subr.mxu0 0.0
  %1052 = vmatpush1.msra.mxu0 0.0
  %1053 = vmatprep.subr.mxu0 0.0
  %1054 = vmatpush1.msra.mxu0 0.0
  %1055 = vmatprep.subr.mxu0 0.0
  %1056 = vmatpush1.msra.mxu0 0.0
  %1057 = vmatprep.subr.mxu0 0.0
  %1058 = vmatpush1.msra.mxu0 0.0
  %1059 = vmatprep.subr.mxu0 0.0
  %1060 = vmatpush1.msra.mxu0 0.0
  %1061 = vmatprep.subr.mxu0 0.0
  %1062 = vmatpush1.msra.mxu0 0.0
  %1063 = vmatprep.subr.mxu0 0.0
  %1064 = vmatpush1.msra.mxu0 0.0
  %1065 = vmatprep.subr.mxu0 0.0
  %1066 = vmatpush1.msra.mxu0 0.0
  %1067 = vmatprep.subr.mxu0 0.0
  %1068 = vmatpush1.msra.mxu0 0.0
  %1069 = vmatprep.subr.mxu0 0.0
  %1070 = vmatpush1.msra.mxu0 0.0
  %1071 = vmatprep.subr.mxu0 0.0
  %1072 = vmatpush1.msra.mxu0 0.0
  %1073 = vmatprep.subr.mxu0 0.0
  %1074 = vmatpush1.msra.mxu0 0.0
  %1075 = vmatprep.subr.mxu0 0.0
  %1076 = vmatpush1.msra.mxu0 0.0
  %1077 = vmatprep.subr.mxu0 0.0
  %1078 = vmatpush1.msra.mxu0 0.0
  %1079 = vmatprep.subr.mxu0 0.0
  %1080 = vmatpush1.msra.mxu0 0.0
  %1081 = vmatprep.subr.mxu0 0.0
  %1082 = vmatpush1.msra.mxu0 0.0
  %1083 = vmatprep.mubr.f32.mxu0 0.0
  %1084 = vmatmul.mubr.f32.gmra.mrb[0].mxu0 %v1017
  %v1085 = vpop.f32.mrb[0].mxu0
  %v1086 = vadd.f32 %v419, %v1085
  %v1087 = vpop.f32.mrb[0].mxu0
  %1088 = vdwg.mxu0
  %vm1089 = vcmp.ge.f32.partialorder %v1086, 0.0
  %v1090 = vmul.f32 %v1086, 0.01
  %v1091 = vsel %vm1089, %v1086, %v1090
  %v1093 = vsel %vm69, %v1091, 0
  %1095 = vmatprep.subr.mxu0 0.0
  %1096 = vmatpush1.msra.mxu0 %v51
  %1097 = vmatprep.subr.mxu0 0.0
  %1098 = vmatpush1.msra.mxu0 %v52
  %1099 = vmatprep.subr.mxu0 0.0
  %1100 = vmatpush1.msra.mxu0 %v53
  %1101 = vmatprep.subr.mxu0 0.0
  %1102 = vmatpush1.msra.mxu0 %v54
  %1103 = vmatprep.subr.mxu0 0.0
  %1104 = vmatpush1.msra.mxu0 0.0
  %1105 = vmatprep.subr.mxu0 0.0
  %1106 = vmatpush1.msra.mxu0 0.0
  %1107 = vmatprep.subr.mxu0 0.0
  %1108 = vmatpush1.msra.mxu0 0.0
  %1109 = vmatprep.subr.mxu0 0.0
  %1110 = vmatpush1.msra.mxu0 0.0
  %1111 = vmatprep.subr.mxu0 0.0
  %1112 = vmatpush1.msra.mxu0 0.0
  %1113 = vmatprep.subr.mxu0 0.0
  %1114 = vmatpush1.msra.mxu0 0.0
  %1115 = vmatprep.subr.mxu0 0.0
  %1116 = vmatpush1.msra.mxu0 0.0
  %1117 = vmatprep.subr.mxu0 0.0
  %1118 = vmatpush1.msra.mxu0 0.0
  %1119 = vmatprep.subr.mxu0 0.0
  %1120 = vmatpush1.msra.mxu0 0.0
  %1121 = vmatprep.subr.mxu0 0.0
  %1122 = vmatpush1.msra.mxu0 0.0
  %1123 = vmatprep.subr.mxu0 0.0
  %1124 = vmatpush1.msra.mxu0 0.0
  %1125 = vmatprep.subr.mxu0 0.0
  %1126 = vmatpush1.msra.mxu0 0.0
  %1127 = vmatprep.subr.mxu0 0.0
  %1128 = vmatpush1.msra.mxu0 0.0
  %1129 = vmatprep.subr.mxu0 0.0
  %1130 = vmatpush1.msra.mxu0 0.0
  %1131 = vmatprep.subr.mxu0 0.0
  %1132 = vmatpush1.msra.mxu0 0.0
  %1133 = vmatprep.subr.mxu0 0.0
  %1134 = vmatpush1.msra.mxu0 0.0
  %1135 = vmatprep.subr.mxu0 0.0
  %1136 = vmatpush1.msra.mxu0 0.0
  %1137 = vmatprep.subr.mxu0 0.0
  %1138 = vmatpush1.msra.mxu0 0.0
  %1139 = vmatprep.subr.mxu0 0.0
  %1140 = vmatpush1.msra.mxu0 0.0
  %1141 = vmatprep.subr.mxu0 0.0
  %1142 = vmatpush1.msra.mxu0 0.0
  %1143 = vmatprep.subr.mxu0 0.0
  %1144 = vmatpush1.msra.mxu0 0.0
  %1145 = vmatprep.subr.mxu0 0.0
  %1146 = vmatpush1.msra.mxu0 0.0
  %1147 = vmatprep.subr.mxu0 0.0
  %1148 = vmatpush1.msra.mxu0 0.0
  %1149 = vmatprep.subr.mxu0 0.0
  %1150 = vmatpush1.msra.mxu0 0.0
  %1151 = vmatprep.subr.mxu0 0.0
  %1152 = vmatpush1.msra.mxu0 0.0
  %1153 = vmatprep.subr.mxu0 0.0
  %1154 = vmatpush1.msra.mxu0 0.0
  %1155 = vmatprep.subr.mxu0 0.0
  %1156 = vmatpush1.msra.mxu0 0.0
  %1157 = vmatprep.subr.mxu0 0.0
  %1158 = vmatpush1.msra.mxu0 0.0
  %1159 = vmatprep.mubr.f32.mxu0 0.0
  %1160 = vmatmul.mubr.f32.gmra.mrb[0].mxu0 %v1093
  %v1161 = vpop.f32.mrb[0].mxu0
  %v1162 = vadd.f32 %v504, %v1161
  %v1163 = vpop.f32.mrb[0].mxu0
  %1164 = vdwg.mxu0
  %1165 = vmatprep.subr.mxu0 0.0
  %1166 = vmatpush1.msra.mxu0 %v55
  %1167 = vmatprep.subr.mxu0 0.0
  %1168 = vmatpush1.msra.mxu0 %v56
  %1169 = vmatprep.subr.mxu0 0.0
  %1170 = vmatpush1.msra.mxu0 %v57
  %1171 = vmatprep.subr.mxu0 0.0
  %1172 = vmatpush1.msra.mxu0 %v58
  %1173 = vmatprep.subr.mxu0 0.0
  %1174 = vmatpush1.msra.mxu0 0.0
  %1175 = vmatprep.subr.mxu0 0.0
  %1176 = vmatpush1.msra.mxu0 0.0
  %1177 = vmatprep.subr.mxu0 0.0
  %1178 = vmatpush1.msra.mxu0 0.0
  %1179 = vmatprep.subr.mxu0 0.0
  %1180 = vmatpush1.msra.mxu0 0.0
  %1181 = vmatprep.subr.mxu0 0.0
  %1182 = vmatpush1.msra.mxu0 0.0
  %1183 = vmatprep.subr.mxu0 0.0
  %1184 = vmatpush1.msra.mxu0 0.0
  %1185 = vmatprep.subr.mxu0 0.0
  %1186 = vmatpush1.msra.mxu0 0.0
  %1187 = vmatprep.subr.mxu0 0.0
  %1188 = vmatpush1.msra.mxu0 0.0
  %1189 = vmatprep.subr.mxu0 0.0
  %1190 = vmatpush1.msra.mxu0 0.0
  %1191 = vmatprep.subr.mxu0 0.0
  %1192 = vmatpush1.msra.mxu0 0.0
  %1193 = vmatprep.subr.mxu0 0.0
  %1194 = vmatpush1.msra.mxu0 0.0
  %1195 = vmatprep.subr.mxu0 0.0
  %1196 = vmatpush1.msra.mxu0 0.0
  %1197 = vmatprep.subr.mxu0 0.0
  %1198 = vmatpush1.msra.mxu0 0.0
  %1199 = vmatprep.subr.mxu0 0.0
  %1200 = vmatpush1.msra.mxu0 0.0
  %1201 = vmatprep.subr.mxu0 0.0
  %1202 = vmatpush1.msra.mxu0 0.0
  %1203 = vmatprep.subr.mxu0 0.0
  %1204 = vmatpush1.msra.mxu0 0.0
  %1205 = vmatprep.subr.mxu0 0.0
  %1206 = vmatpush1.msra.mxu0 0.0
  %1207 = vmatprep.subr.mxu0 0.0
  %1208 = vmatpush1.msra.mxu0 0.0
  %1209 = vmatprep.subr.mxu0 0.0
  %1210 = vmatpush1.msra.mxu0 0.0
  %1211 = vmatprep.subr.mxu0 0.0
  %1212 = vmatpush1.msra.mxu0 0.0
  %1213 = vmatprep.subr.mxu0 0.0
  %1214 = vmatpush1.msra.mxu0 0.0
  %1215 = vmatprep.subr.mxu0 0.0
  %1216 = vmatpush1.msra.mxu0 0.0
  %1217 = vmatprep.subr.mxu0 0.0
  %1218 = vmatpush1.msra.mxu0 0.0
  %1219 = vmatprep.subr.mxu0 0.0
  %1220 = vmatpush1.msra.mxu0 0.0
  %1221 = vmatprep.subr.mxu0 0.0
  %1222 = vmatpush1.msra.mxu0 0.0
  %1223 = vmatprep.subr.mxu0 0.0
  %1224 = vmatpush1.msra.mxu0 0.0
  %1225 = vmatprep.subr.mxu0 0.0
  %1226 = vmatpush1.msra.mxu0 0.0
  %1227 = vmatprep.subr.mxu0 0.0
  %1228 = vmatpush1.msra.mxu0 0.0
  %1229 = vmatprep.mubr.f32.mxu0 0.0
  %1230 = vmatmul.mubr.f32.gmra.mrb[0].mxu0 %v688
  %v1231 = vpop.f32.mrb[0].mxu0
  %v1232 = vadd.f32 %v583, %v1231
  %v1233 = vpop.f32.mrb[0].mxu0
  %1234 = vdwg.mxu0
  %v1235 = vadd.f32 %v1162, %v1232
  %v1236 = vxor.u32 %v1235, 2147483648
  %v1237 = vmul.f32 %v1236, 1.442695
  %v1238 = vpow.pop %v1237
  %v1239 = vadd.f32 %v1238, 1.0
  %v1240 = vrcp.pop %v1239
  %v1241 = vmul.f32 1.0, %v1240
  %1243 = vrot.lane.b32.xlu0 %v1232, 64
  %v1244 = vpop.permute.xlu0 %1243
  %v1246 = vmul.f32 %v1241, %v1244
  %1248 = vrot.lane.b32.xlu0 %v1246, 64
  %v1249 = vpop.permute.xlu0 %1248
  %v1251 = vadd.f32 %v1162, %v1249
  %v1252 = vtanh.pop %v1251
  %v1253 = vsub.f32 1.0, %v1241
  %1255 = vrot.lane.b32.xlu0 %v1252, 96
  %v1256 = vpop.permute.xlu0 %1255
  %v1258 = vmul.f32 %v1253, %v1256
  %v1259 = vmul.f32 %v1241, %v680
  %v1260 = vadd.f32 %v1258, %v1259
  %1262 = vrot.lane.b32.xlu0 %v1260, 96
  %v1263 = vpop.permute.xlu0 %1262
  %s1265 = scalar_lea.vmem %s11, 2
  %1266 = vst.msk [vmem:[%s1265] sm:$0x3] %vm159, %v1263
  %s1267 = scalar_lea.vmem %s1, 4
  %v1268 = vld [vmem:[%s1267] sm:$0x3]
  %v1269 = vsel %vm69, %v1263, 0
  %1271 = vmatprep.subr.mxu0 0.0
  %1272 = vmatpush1.msra.mxu0 %v40
  %1273 = vmatprep.subr.mxu0 0.0
  %1274 = vmatpush1.msra.mxu0 %v41
  %1275 = vmatprep.subr.mxu0 0.0
  %1276 = vmatpush1.msra.mxu0 %v42
  %1277 = vmatprep.subr.mxu0 0.0
  %1278 = vmatpush1.msra.mxu0 %v43
  %1279 = vmatprep.subr.mxu0 0.0
  %1280 = vmatpush1.msra.mxu0 0.0
  %1281 = vmatprep.subr.mxu0 0.0
  %1282 = vmatpush1.msra.mxu0 0.0
  %1283 = vmatprep.subr.mxu0 0.0
  %1284 = vmatpush1.msra.mxu0 0.0
  %1285 = vmatprep.subr.mxu0 0.0
  %1286 = vmatpush1.msra.mxu0 0.0
  %1287 = vmatprep.subr.mxu0 0.0
  %1288 = vmatpush1.msra.mxu0 0.0
  %1289 = vmatprep.subr.mxu0 0.0
  %1290 = vmatpush1.msra.mxu0 0.0
  %1291 = vmatprep.subr.mxu0 0.0
  %1292 = vmatpush1.msra.mxu0 0.0
  %1293 = vmatprep.subr.mxu0 0.0
  %1294 = vmatpush1.msra.mxu0 0.0
  %1295 = vmatprep.subr.mxu0 0.0
  %1296 = vmatpush1.msra.mxu0 0.0
  %1297 = vmatprep.subr.mxu0 0.0
  %1298 = vmatpush1.msra.mxu0 0.0
  %1299 = vmatprep.subr.mxu0 0.0
  %1300 = vmatpush1.msra.mxu0 0.0
  %1301 = vmatprep.subr.mxu0 0.0
  %1302 = vmatpush1.msra.mxu0 0.0
  %1303 = vmatprep.subr.mxu0 0.0
  %1304 = vmatpush1.msra.mxu0 0.0
  %1305 = vmatprep.subr.mxu0 0.0
  %1306 = vmatpush1.msra.mxu0 0.0
  %1307 = vmatprep.subr.mxu0 0.0
  %1308 = vmatpush1.msra.mxu0 0.0
  %1309 = vmatprep.subr.mxu0 0.0
  %1310 = vmatpush1.msra.mxu0 0.0
  %1311 = vmatprep.subr.mxu0 0.0
  %1312 = vmatpush1.msra.mxu0 0.0
  %1313 = vmatprep.subr.mxu0 0.0
  %1314 = vmatpush1.msra.mxu0 0.0
  %1315 = vmatprep.subr.mxu0 0.0
  %1316 = vmatpush1.msra.mxu0 0.0
  %1317 = vmatprep.subr.mxu0 0.0
  %1318 = vmatpush1.msra.mxu0 0.0
  %1319 = vmatprep.subr.mxu0 0.0
  %1320 = vmatpush1.msra.mxu0 0.0
  %1321 = vmatprep.subr.mxu0 0.0
  %1322 = vmatpush1.msra.mxu0 0.0
  %1323 = vmatprep.subr.mxu0 0.0
  %1324 = vmatpush1.msra.mxu0 0.0
  %1325 = vmatprep.subr.mxu0 0.0
  %1326 = vmatpush1.msra.mxu0 0.0
  %1327 = vmatprep.subr.mxu0 0.0
  %1328 = vmatpush1.msra.mxu0 0.0
  %1329 = vmatprep.subr.mxu0 0.0
  %1330 = vmatpush1.msra.mxu0 0.0
  %1331 = vmatprep.subr.mxu0 0.0
  %1332 = vmatpush1.msra.mxu0 0.0
  %1333 = vmatprep.subr.mxu0 0.0
  %1334 = vmatpush1.msra.mxu0 0.0
  %1335 = vmatprep.mubr.f32.mxu0 0.0
  %1336 = vmatmul.mubr.f32.gmra.mrb[0].mxu0 %v1269
  %v1337 = vpop.f32.mrb[0].mxu0
  %v1338 = vadd.f32 %v81, %v1337
  %v1339 = vpop.f32.mrb[0].mxu0
  %1340 = vdwg.mxu0
  %v1341 = vadd.f32 %v1338, %v1268
  %v1342 = vtanh.pop %v1341
  %v1343 = vmul.f32 %v1342, %v65
  %v1344 = vsel %vm159, %v1343, 0.0
  %1345 = vadd.xlane.f32.xlu0 %v1344
  %v1346 = vpop.xlane.xlu0 %1345
  %v1348 = vlaneseq
  %v1349 = vshrl.u32 %v1348, 7
  %v1350 = vsub.s32 0, %v1349
  %v1351 = vrot.slane %v1346, %v1350
  %v1352 = vlaneseq
  %v1353 = vshrl.u32 %v1352, 7
  %v1354 = vsub.s32 1, %v1353
  %v1355 = vrot.slane %v1346, %v1354
  %v1358 = vadd.f32 %v72, %v1351
  %v1359 = vadd.f32 %v75, %v1355
  %1362 = vset.pattern.permute.xlu0 0
  %1363 = vperm.xlu0 %1362, %v1358
  %v1364 = vpop.permute.xlu0 %1363
  %1365 = vset.pattern.permute.xlu0 0
  %1366 = vperm.xlu0 %1365, %v1359
  %v1367 = vpop.permute.xlu0 %1366
  %v1368 = vlaneseq
  %v1369 = vshrl.u32 %v1368, 7
  %v1370 = vsub.s32 %v185, %v1369
  %v1371 = vrot.slane %v1364, %v1370
  %v1372 = vlaneseq
  %v1373 = vshrl.u32 %v1372, 7
  %v1374 = vsub.s32 %v185, %v1373
  %v1375 = vrot.slane %v1367, %v1374
  %v1376 = vsel %vm194, %v1375, %v1371
  %v1378 = vsel %vm197, %v1376, -inf
  %1379 = vmax.xlane.f32.xlu0 %v1378
  %v1380 = vpop.xlane.xlu0 %1379
  %v1382 = vlaneseq
  %v1383 = vshrl.u32 %v1382, 7
  %v1384 = vsub.s32 0, %v1383
  %v1385 = vrot.slane %v1380, %v1384
  %v1386 = vlaneseq
  %v1387 = vshrl.u32 %v1386, 7
  %v1388 = vsub.s32 1, %v1387
  %v1389 = vrot.slane %v1380, %v1388
  %v1392 = vsub.f32 %v1358, %v1385
  %v1393 = vsub.f32 %v1359, %v1389
  %v1394 = vmul.f32 %v1392, 1.442695
  %v1395 = vpow.pop %v1394
  %v1396 = vmul.f32 %v1393, 1.442695
  %v1397 = vpow.pop %v1396
  %1400 = vset.pattern.permute.xlu0 0
  %1401 = vperm.xlu0 %1400, %v1395
  %v1402 = vpop.permute.xlu0 %1401
  %1403 = vset.pattern.permute.xlu0 0
  %1404 = vperm.xlu0 %1403, %v1397
  %v1405 = vpop.permute.xlu0 %1404
  %v1406 = vlaneseq
  %v1407 = vshrl.u32 %v1406, 7
  %v1408 = vsub.s32 %v185, %v1407
  %v1409 = vrot.slane %v1402, %v1408
  %v1410 = vlaneseq
  %v1411 = vshrl.u32 %v1410, 7
  %v1412 = vsub.s32 %v185, %v1411
  %v1413 = vrot.slane %v1405, %v1412
  %v1414 = vsel %vm194, %v1413, %v1409
  %v1416 = vsel %vm197, %v1414, 0.0
  %1417 = vadd.xlane.f32.xlu0 %v1416
  %v1418 = vpop.xlane.xlu0 %1417
  %v1420 = vlaneseq
  %v1421 = vshrl.u32 %v1420, 7
  %v1422 = vsub.s32 0, %v1421
  %v1423 = vrot.slane %v1418, %v1422
  %v1424 = vlaneseq
  %v1425 = vshrl.u32 %v1424, 7
  %v1426 = vsub.s32 1, %v1425
  %v1427 = vrot.slane %v1418, %v1426
  %v1430 = vrcp.pop %v1423
  %v1431 = vmul.f32 %v1395, %v1430
  %v1432 = vrcp.pop %v1427
  %v1433 = vmul.f32 %v1397, %v1432
  %1435 = vset.pattern.permute.xlu0 0
  %1436 = vperm.xlu0 %1435, %v1431
  %v1437 = vpop.permute.xlu0 %1436
  %v1438 = vlaneseq
  %v1439 = vshrl.u32 %v1438, 7
  %v1440 = vsub.s32 %v185, %v1439
  %v1441 = vrot.slane %v1437, %v1440
  %v1442 = vsel %vm262, %v1441, 0
  %1444 = vmatprep.subr.mxu0 0.0
  %1445 = vmatpush1.msra.mxu0 %v38
  %1446 = vmatprep.subr.mxu0 0.0
  %1447 = vmatpush1.msra.mxu0 0.0
  %1448 = vmatprep.subr.mxu0 0.0
  %1449 = vmatpush1.msra.mxu0 0.0
  %1450 = vmatprep.subr.mxu0 0.0
  %1451 = vmatpush1.msra.mxu0 0.0
  %1452 = vmatprep.subr.mxu0 0.0
  %1453 = vmatpush1.msra.mxu0 0.0
  %1454 = vmatprep.subr.mxu0 0.0
  %1455 = vmatpush1.msra.mxu0 0.0
  %1456 = vmatprep.subr.mxu0 0.0
  %1457 = vmatpush1.msra.mxu0 0.0
  %1458 = vmatprep.subr.mxu0 0.0
  %1459 = vmatpush1.msra.mxu0 0.0
  %1460 = vmatprep.subr.mxu0 0.0
  %1461 = vmatpush1.msra.mxu0 0.0
  %1462 = vmatprep.subr.mxu0 0.0
  %1463 = vmatpush1.msra.mxu0 0.0
  %1464 = vmatprep.subr.mxu0 0.0
  %1465 = vmatpush1.msra.mxu0 0.0
  %1466 = vmatprep.subr.mxu0 0.0
  %1467 = vmatpush1.msra.mxu0 0.0
  %1468 = vmatprep.subr.mxu0 0.0
  %1469 = vmatpush1.msra.mxu0 0.0
  %1470 = vmatprep.subr.mxu0 0.0
  %1471 = vmatpush1.msra.mxu0 0.0
  %1472 = vmatprep.subr.mxu0 0.0
  %1473 = vmatpush1.msra.mxu0 0.0
  %1474 = vmatprep.subr.mxu0 0.0
  %1475 = vmatpush1.msra.mxu0 0.0
  %1476 = vmatprep.subr.mxu0 0.0
  %1477 = vmatpush1.msra.mxu0 0.0
  %1478 = vmatprep.subr.mxu0 0.0
  %1479 = vmatpush1.msra.mxu0 0.0
  %1480 = vmatprep.subr.mxu0 0.0
  %1481 = vmatpush1.msra.mxu0 0.0
  %1482 = vmatprep.subr.mxu0 0.0
  %1483 = vmatpush1.msra.mxu0 0.0
  %1484 = vmatprep.subr.mxu0 0.0
  %1485 = vmatpush1.msra.mxu0 0.0
  %1486 = vmatprep.subr.mxu0 0.0
  %1487 = vmatpush1.msra.mxu0 0.0
  %1488 = vmatprep.subr.mxu0 0.0
  %1489 = vmatpush1.msra.mxu0 0.0
  %1490 = vmatprep.subr.mxu0 0.0
  %1491 = vmatpush1.msra.mxu0 0.0
  %1492 = vmatprep.subr.mxu0 0.0
  %1493 = vmatpush1.msra.mxu0 0.0
  %1494 = vmatprep.subr.mxu0 0.0
  %1495 = vmatpush1.msra.mxu0 0.0
  %1496 = vmatprep.subr.mxu0 0.0
  %1497 = vmatpush1.msra.mxu0 0.0
  %1498 = vmatprep.subr.mxu0 0.0
  %1499 = vmatpush1.msra.mxu0 0.0
  %1500 = vmatprep.subr.mxu0 0.0
  %1501 = vmatpush1.msra.mxu0 0.0
  %1502 = vmatprep.subr.mxu0 0.0
  %1503 = vmatpush1.msra.mxu0 0.0
  %1504 = vmatprep.subr.mxu0 0.0
  %1505 = vmatpush1.msra.mxu0 0.0
  %1506 = vmatprep.subr.mxu0 0.0
  %1507 = vmatpush1.msra.mxu0 0.0
  %1508 = vmatprep.mubr.f32.mxu0 0.0
  %1509 = vmatmul.mubr.f32.gmra.mrb[0].mxu0 %v1442
  %v1510 = vpop.f32.mrb[0].mxu0
  %v1511 = vadd.f32 0.0, %v1510
  %v1512 = vpop.f32.mrb[0].mxu0
  %1513 = vdwg.mxu0
  %1515 = vset.pattern.permute.xlu0 0
  %1516 = vperm.xlu0 %1515, %v1433
  %v1517 = vpop.permute.xlu0 %1516
  %v1518 = vlaneseq
  %v1519 = vshrl.u32 %v1518, 7
  %v1520 = vsub.s32 %v185, %v1519
  %v1521 = vrot.slane %v1517, %v1520
  %v1522 = vsel %vm262, %v1521, 0
  %1524 = vmatprep.subr.mxu0 0.0
  %1525 = vmatpush1.msra.mxu0 %v39
  %1526 = vmatprep.subr.mxu0 0.0
  %1527 = vmatpush1.msra.mxu0 0.0
  %1528 = vmatprep.subr.mxu0 0.0
  %1529 = vmatpush1.msra.mxu0 0.0
  %1530 = vmatprep.subr.mxu0 0.0
  %1531 = vmatpush1.msra.mxu0 0.0
  %1532 = vmatprep.subr.mxu0 0.0
  %1533 = vmatpush1.msra.mxu0 0.0
  %1534 = vmatprep.subr.mxu0 0.0
  %1535 = vmatpush1.msra.mxu0 0.0
  %1536 = vmatprep.subr.mxu0 0.0
  %1537 = vmatpush1.msra.mxu0 0.0
  %1538 = vmatprep.subr.mxu0 0.0
  %1539 = vmatpush1.msra.mxu0 0.0
  %1540 = vmatprep.subr.mxu0 0.0
  %1541 = vmatpush1.msra.mxu0 0.0
  %1542 = vmatprep.subr.mxu0 0.0
  %1543 = vmatpush1.msra.mxu0 0.0
  %1544 = vmatprep.subr.mxu0 0.0
  %1545 = vmatpush1.msra.mxu0 0.0
  %1546 = vmatprep.subr.mxu0 0.0
  %1547 = vmatpush1.msra.mxu0 0.0
  %1548 = vmatprep.subr.mxu0 0.0
  %1549 = vmatpush1.msra.mxu0 0.0
  %1550 = vmatprep.subr.mxu0 0.0
  %1551 = vmatpush1.msra.mxu0 0.0
  %1552 = vmatprep.subr.mxu0 0.0
  %1553 = vmatpush1.msra.mxu0 0.0
  %1554 = vmatprep.subr.mxu0 0.0
  %1555 = vmatpush1.msra.mxu0 0.0
  %1556 = vmatprep.subr.mxu0 0.0
  %1557 = vmatpush1.msra.mxu0 0.0
  %1558 = vmatprep.subr.mxu0 0.0
  %1559 = vmatpush1.msra.mxu0 0.0
  %1560 = vmatprep.subr.mxu0 0.0
  %1561 = vmatpush1.msra.mxu0 0.0
  %1562 = vmatprep.subr.mxu0 0.0
  %1563 = vmatpush1.msra.mxu0 0.0
  %1564 = vmatprep.subr.mxu0 0.0
  %1565 = vmatpush1.msra.mxu0 0.0
  %1566 = vmatprep.subr.mxu0 0.0
  %1567 = vmatpush1.msra.mxu0 0.0
  %1568 = vmatprep.subr.mxu0 0.0
  %1569 = vmatpush1.msra.mxu0 0.0
  %1570 = vmatprep.subr.mxu0 0.0
  %1571 = vmatpush1.msra.mxu0 0.0
  %1572 = vmatprep.subr.mxu0 0.0
  %1573 = vmatpush1.msra.mxu0 0.0
  %1574 = vmatprep.subr.mxu0 0.0
  %1575 = vmatpush1.msra.mxu0 0.0
  %1576 = vmatprep.subr.mxu0 0.0
  %1577 = vmatpush1.msra.mxu0 0.0
  %1578 = vmatprep.subr.mxu0 0.0
  %1579 = vmatpush1.msra.mxu0 0.0
  %1580 = vmatprep.subr.mxu0 0.0
  %1581 = vmatpush1.msra.mxu0 0.0
  %1582 = vmatprep.subr.mxu0 0.0
  %1583 = vmatpush1.msra.mxu0 0.0
  %1584 = vmatprep.subr.mxu0 0.0
  %1585 = vmatpush1.msra.mxu0 0.0
  %1586 = vmatprep.subr.mxu0 0.0
  %1587 = vmatpush1.msra.mxu0 0.0
  %1588 = vmatprep.mubr.f32.mxu0 0.0
  %1589 = vmatmul.mubr.f32.gmra.mrb[0].mxu0 %v1522
  %v1590 = vpop.f32.mrb[0].mxu0
  %v1591 = vadd.f32 0.0, %v1590
  %v1592 = vpop.f32.mrb[0].mxu0
  %1593 = vdwg.mxu0
  %v1596 = vrot.slane %v1591, 7
  %v1597 = vsel %vm194, %v1596, %v1511
  %v1598 = vsel %vm69, %v1597, 0
  %1600 = vmatprep.subr.mxu0 0.0
  %1601 = vmatpush1.msra.mxu0 %v46
  %1602 = vmatprep.subr.mxu0 0.0
  %1603 = vmatpush1.msra.mxu0 %v47
  %1604 = vmatprep.subr.mxu0 0.0
  %1605 = vmatpush1.msra.mxu0 %v48
  %1606 = vmatprep.subr.mxu0 0.0
  %1607 = vmatpush1.msra.mxu0 %v49
  %1608 = vmatprep.subr.mxu0 0.0
  %1609 = vmatpush1.msra.mxu0 0.0
  %1610 = vmatprep.subr.mxu0 0.0
  %1611 = vmatpush1.msra.mxu0 0.0
  %1612 = vmatprep.subr.mxu0 0.0
  %1613 = vmatpush1.msra.mxu0 0.0
  %1614 = vmatprep.subr.mxu0 0.0
  %1615 = vmatpush1.msra.mxu0 0.0
  %1616 = vmatprep.subr.mxu0 0.0
  %1617 = vmatpush1.msra.mxu0 0.0
  %1618 = vmatprep.subr.mxu0 0.0
  %1619 = vmatpush1.msra.mxu0 0.0
  %1620 = vmatprep.subr.mxu0 0.0
  %1621 = vmatpush1.msra.mxu0 0.0
  %1622 = vmatprep.subr.mxu0 0.0
  %1623 = vmatpush1.msra.mxu0 0.0
  %1624 = vmatprep.subr.mxu0 0.0
  %1625 = vmatpush1.msra.mxu0 0.0
  %1626 = vmatprep.subr.mxu0 0.0
  %1627 = vmatpush1.msra.mxu0 0.0
  %1628 = vmatprep.subr.mxu0 0.0
  %1629 = vmatpush1.msra.mxu0 0.0
  %1630 = vmatprep.subr.mxu0 0.0
  %1631 = vmatpush1.msra.mxu0 0.0
  %1632 = vmatprep.subr.mxu0 0.0
  %1633 = vmatpush1.msra.mxu0 0.0
  %1634 = vmatprep.subr.mxu0 0.0
  %1635 = vmatpush1.msra.mxu0 0.0
  %1636 = vmatprep.subr.mxu0 0.0
  %1637 = vmatpush1.msra.mxu0 0.0
  %1638 = vmatprep.subr.mxu0 0.0
  %1639 = vmatpush1.msra.mxu0 0.0
  %1640 = vmatprep.subr.mxu0 0.0
  %1641 = vmatpush1.msra.mxu0 0.0
  %1642 = vmatprep.subr.mxu0 0.0
  %1643 = vmatpush1.msra.mxu0 0.0
  %1644 = vmatprep.subr.mxu0 0.0
  %1645 = vmatpush1.msra.mxu0 0.0
  %1646 = vmatprep.subr.mxu0 0.0
  %1647 = vmatpush1.msra.mxu0 0.0
  %1648 = vmatprep.subr.mxu0 0.0
  %1649 = vmatpush1.msra.mxu0 0.0
  %1650 = vmatprep.subr.mxu0 0.0
  %1651 = vmatpush1.msra.mxu0 0.0
  %1652 = vmatprep.subr.mxu0 0.0
  %1653 = vmatpush1.msra.mxu0 0.0
  %1654 = vmatprep.subr.mxu0 0.0
  %1655 = vmatpush1.msra.mxu0 0.0
  %1656 = vmatprep.subr.mxu0 0.0
  %1657 = vmatpush1.msra.mxu0 0.0
  %1658 = vmatprep.subr.mxu0 0.0
  %1659 = vmatpush1.msra.mxu0 0.0
  %1660 = vmatprep.subr.mxu0 0.0
  %1661 = vmatpush1.msra.mxu0 0.0
  %1662 = vmatprep.subr.mxu0 0.0
  %1663 = vmatpush1.msra.mxu0 0.0
  %1664 = vmatprep.mubr.f32.mxu0 0.0
  %1665 = vmatmul.mubr.f32.gmra.mrb[0].mxu0 %v1598
  %v1666 = vpop.f32.mrb[0].mxu0
  %v1667 = vadd.f32 %v419, %v1666
  %v1668 = vpop.f32.mrb[0].mxu0
  %1669 = vdwg.mxu0
  %vm1670 = vcmp.ge.f32.partialorder %v1667, 0.0
  %v1671 = vmul.f32 %v1667, 0.01
  %v1672 = vsel %vm1670, %v1667, %v1671
  %v1674 = vsel %vm69, %v1672, 0
  %1676 = vmatprep.subr.mxu0 0.0
  %1677 = vmatpush1.msra.mxu0 %v51
  %1678 = vmatprep.subr.mxu0 0.0
  %1679 = vmatpush1.msra.mxu0 %v52
  %1680 = vmatprep.subr.mxu0 0.0
  %1681 = vmatpush1.msra.mxu0 %v53
  %1682 = vmatprep.subr.mxu0 0.0
  %1683 = vmatpush1.msra.mxu0 %v54
  %1684 = vmatprep.subr.mxu0 0.0
  %1685 = vmatpush1.msra.mxu0 0.0
  %1686 = vmatprep.subr.mxu0 0.0
  %1687 = vmatpush1.msra.mxu0 0.0
  %1688 = vmatprep.subr.mxu0 0.0
  %1689 = vmatpush1.msra.mxu0 0.0
  %1690 = vmatprep.subr.mxu0 0.0
  %1691 = vmatpush1.msra.mxu0 0.0
  %1692 = vmatprep.subr.mxu0 0.0
  %1693 = vmatpush1.msra.mxu0 0.0
  %1694 = vmatprep.subr.mxu0 0.0
  %1695 = vmatpush1.msra.mxu0 0.0
  %1696 = vmatprep.subr.mxu0 0.0
  %1697 = vmatpush1.msra.mxu0 0.0
  %1698 = vmatprep.subr.mxu0 0.0
  %1699 = vmatpush1.msra.mxu0 0.0
  %1700 = vmatprep.subr.mxu0 0.0
  %1701 = vmatpush1.msra.mxu0 0.0
  %1702 = vmatprep.subr.mxu0 0.0
  %1703 = vmatpush1.msra.mxu0 0.0
  %1704 = vmatprep.subr.mxu0 0.0
  %1705 = vmatpush1.msra.mxu0 0.0
  %1706 = vmatprep.subr.mxu0 0.0
  %1707 = vmatpush1.msra.mxu0 0.0
  %1708 = vmatprep.subr.mxu0 0.0
  %1709 = vmatpush1.msra.mxu0 0.0
  %1710 = vmatprep.subr.mxu0 0.0
  %1711 = vmatpush1.msra.mxu0 0.0
  %1712 = vmatprep.subr.mxu0 0.0
  %1713 = vmatpush1.msra.mxu0 0.0
  %1714 = vmatprep.subr.mxu0 0.0
  %1715 = vmatpush1.msra.mxu0 0.0
  %1716 = vmatprep.subr.mxu0 0.0
  %1717 = vmatpush1.msra.mxu0 0.0
  %1718 = vmatprep.subr.mxu0 0.0
  %1719 = vmatpush1.msra.mxu0 0.0
  %1720 = vmatprep.subr.mxu0 0.0
  %1721 = vmatpush1.msra.mxu0 0.0
  %1722 = vmatprep.subr.mxu0 0.0
  %1723 = vmatpush1.msra.mxu0 0.0
  %1724 = vmatprep.subr.mxu0 0.0
  %1725 = vmatpush1.msra.mxu0 0.0
  %1726 = vmatprep.subr.mxu0 0.0
  %1727 = vmatpush1.msra.mxu0 0.0
  %1728 = vmatprep.subr.mxu0 0.0
  %1729 = vmatpush1.msra.mxu0 0.0
  %1730 = vmatprep.subr.mxu0 0.0
  %1731 = vmatpush1.msra.mxu0 0.0
  %1732 = vmatprep.subr.mxu0 0.0
  %1733 = vmatpush1.msra.mxu0 0.0
  %1734 = vmatprep.subr.mxu0 0.0
  %1735 = vmatpush1.msra.mxu0 0.0
  %1736 = vmatprep.subr.mxu0 0.0
  %1737 = vmatpush1.msra.mxu0 0.0
  %1738 = vmatprep.subr.mxu0 0.0
  %1739 = vmatpush1.msra.mxu0 0.0
  %1740 = vmatprep.mubr.f32.mxu0 0.0
  %1741 = vmatmul.mubr.f32.gmra.mrb[0].mxu0 %v1674
  %v1742 = vpop.f32.mrb[0].mxu0
  %v1743 = vadd.f32 %v504, %v1742
  %v1744 = vpop.f32.mrb[0].mxu0
  %1745 = vdwg.mxu0
  %1746 = vmatprep.subr.mxu0 0.0
  %1747 = vmatpush1.msra.mxu0 %v55
  %1748 = vmatprep.subr.mxu0 0.0
  %1749 = vmatpush1.msra.mxu0 %v56
  %1750 = vmatprep.subr.mxu0 0.0
  %1751 = vmatpush1.msra.mxu0 %v57
  %1752 = vmatprep.subr.mxu0 0.0
  %1753 = vmatpush1.msra.mxu0 %v58
  %1754 = vmatprep.subr.mxu0 0.0
  %1755 = vmatpush1.msra.mxu0 0.0
  %1756 = vmatprep.subr.mxu0 0.0
  %1757 = vmatpush1.msra.mxu0 0.0
  %1758 = vmatprep.subr.mxu0 0.0
  %1759 = vmatpush1.msra.mxu0 0.0
  %1760 = vmatprep.subr.mxu0 0.0
  %1761 = vmatpush1.msra.mxu0 0.0
  %1762 = vmatprep.subr.mxu0 0.0
  %1763 = vmatpush1.msra.mxu0 0.0
  %1764 = vmatprep.subr.mxu0 0.0
  %1765 = vmatpush1.msra.mxu0 0.0
  %1766 = vmatprep.subr.mxu0 0.0
  %1767 = vmatpush1.msra.mxu0 0.0
  %1768 = vmatprep.subr.mxu0 0.0
  %1769 = vmatpush1.msra.mxu0 0.0
  %1770 = vmatprep.subr.mxu0 0.0
  %1771 = vmatpush1.msra.mxu0 0.0
  %1772 = vmatprep.subr.mxu0 0.0
  %1773 = vmatpush1.msra.mxu0 0.0
  %1774 = vmatprep.subr.mxu0 0.0
  %1775 = vmatpush1.msra.mxu0 0.0
  %1776 = vmatprep.subr.mxu0 0.0
  %1777 = vmatpush1.msra.mxu0 0.0
  %1778 = vmatprep.subr.mxu0 0.0
  %1779 = vmatpush1.msra.mxu0 0.0
  %1780 = vmatprep.subr.mxu0 0.0
  %1781 = vmatpush1.msra.mxu0 0.0
  %1782 = vmatprep.subr.mxu0 0.0
  %1783 = vmatpush1.msra.mxu0 0.0
  %1784 = vmatprep.subr.mxu0 0.0
  %1785 = vmatpush1.msra.mxu0 0.0
  %1786 = vmatprep.subr.mxu0 0.0
  %1787 = vmatpush1.msra.mxu0 0.0
  %1788 = vmatprep.subr.mxu0 0.0
  %1789 = vmatpush1.msra.mxu0 0.0
  %1790 = vmatprep.subr.mxu0 0.0
  %1791 = vmatpush1.msra.mxu0 0.0
  %1792 = vmatprep.subr.mxu0 0.0
  %1793 = vmatpush1.msra.mxu0 0.0
  %1794 = vmatprep.subr.mxu0 0.0
  %1795 = vmatpush1.msra.mxu0 0.0
  %1796 = vmatprep.subr.mxu0 0.0
  %1797 = vmatpush1.msra.mxu0 0.0
  %1798 = vmatprep.subr.mxu0 0.0
  %1799 = vmatpush1.msra.mxu0 0.0
  %1800 = vmatprep.subr.mxu0 0.0
  %1801 = vmatpush1.msra.mxu0 0.0
  %1802 = vmatprep.subr.mxu0 0.0
  %1803 = vmatpush1.msra.mxu0 0.0
  %1804 = vmatprep.subr.mxu0 0.0
  %1805 = vmatpush1.msra.mxu0 0.0
  %1806 = vmatprep.subr.mxu0 0.0
  %1807 = vmatpush1.msra.mxu0 0.0
  %1808 = vmatprep.subr.mxu0 0.0
  %1809 = vmatpush1.msra.mxu0 0.0
  %1810 = vmatprep.mubr.f32.mxu0 0.0
  %1811 = vmatmul.mubr.f32.gmra.mrb[0].mxu0 %v1269
  %v1812 = vpop.f32.mrb[0].mxu0
  %v1813 = vadd.f32 %v583, %v1812
  %v1814 = vpop.f32.mrb[0].mxu0
  %1815 = vdwg.mxu0
  %v1816 = vadd.f32 %v1743, %v1813
  %v1817 = vxor.u32 %v1816, 2147483648
  %v1818 = vmul.f32 %v1817, 1.442695
  %v1819 = vpow.pop %v1818
  %v1820 = vadd.f32 %v1819, 1.0
  %v1821 = vrcp.pop %v1820
  %v1822 = vmul.f32 1.0, %v1821
  %1824 = vrot.lane.b32.xlu0 %v1813, 64
  %v1825 = vpop.permute.xlu0 %1824
  %v1827 = vmul.f32 %v1822, %v1825
  %1829 = vrot.lane.b32.xlu0 %v1827, 64
  %v1830 = vpop.permute.xlu0 %1829
  %v1832 = vadd.f32 %v1743, %v1830
  %v1833 = vtanh.pop %v1832
  %v1834 = vsub.f32 1.0, %v1822
  %1836 = vrot.lane.b32.xlu0 %v1833, 96
  %v1837 = vpop.permute.xlu0 %1836
  %v1839 = vmul.f32 %v1834, %v1837
  %v1840 = vmul.f32 %v1822, %v1260
  %v1841 = vadd.f32 %v1839, %v1840
  %1843 = vrot.lane.b32.xlu0 %v1841, 96
  %v1844 = vpop.permute.xlu0 %1843
  %s1846 = scalar_lea.vmem %s11, 4
  %1847 = vst.msk [vmem:[%s1846] sm:$0x3] %vm159, %v1844
  %s1848 = scalar_lea.vmem %s1, 6
  %v1849 = vld [vmem:[%s1848] sm:$0x3]
  %v1850 = vsel %vm69, %v1844, 0
  %1852 = vmatprep.subr.mxu0 0.0
  %1853 = vmatpush1.msra.mxu0 %v40
  %1854 = vmatprep.subr.mxu0 0.0
  %1855 = vmatpush1.msra.mxu0 %v41
  %1856 = vmatprep.subr.mxu0 0.0
  %1857 = vmatpush1.msra.mxu0 %v42
  %1858 = vmatprep.subr.mxu0 0.0
  %1859 = vmatpush1.msra.mxu0 %v43
  %1860 = vmatprep.subr.mxu0 0.0
  %1861 = vmatpush1.msra.mxu0 0.0
  %1862 = vmatprep.subr.mxu0 0.0
  %1863 = vmatpush1.msra.mxu0 0.0
  %1864 = vmatprep.subr.mxu0 0.0
  %1865 = vmatpush1.msra.mxu0 0.0
  %1866 = vmatprep.subr.mxu0 0.0
  %1867 = vmatpush1.msra.mxu0 0.0
  %1868 = vmatprep.subr.mxu0 0.0
  %1869 = vmatpush1.msra.mxu0 0.0
  %1870 = vmatprep.subr.mxu0 0.0
  %1871 = vmatpush1.msra.mxu0 0.0
  %1872 = vmatprep.subr.mxu0 0.0
  %1873 = vmatpush1.msra.mxu0 0.0
  %1874 = vmatprep.subr.mxu0 0.0
  %1875 = vmatpush1.msra.mxu0 0.0
  %1876 = vmatprep.subr.mxu0 0.0
  %1877 = vmatpush1.msra.mxu0 0.0
  %1878 = vmatprep.subr.mxu0 0.0
  %1879 = vmatpush1.msra.mxu0 0.0
  %1880 = vmatprep.subr.mxu0 0.0
  %1881 = vmatpush1.msra.mxu0 0.0
  %1882 = vmatprep.subr.mxu0 0.0
  %1883 = vmatpush1.msra.mxu0 0.0
  %1884 = vmatprep.subr.mxu0 0.0
  %1885 = vmatpush1.msra.mxu0 0.0
  %1886 = vmatprep.subr.mxu0 0.0
  %1887 = vmatpush1.msra.mxu0 0.0
  %1888 = vmatprep.subr.mxu0 0.0
  %1889 = vmatpush1.msra.mxu0 0.0
  %1890 = vmatprep.subr.mxu0 0.0
  %1891 = vmatpush1.msra.mxu0 0.0
  %1892 = vmatprep.subr.mxu0 0.0
  %1893 = vmatpush1.msra.mxu0 0.0
  %1894 = vmatprep.subr.mxu0 0.0
  %1895 = vmatpush1.msra.mxu0 0.0
  %1896 = vmatprep.subr.mxu0 0.0
  %1897 = vmatpush1.msra.mxu0 0.0
  %1898 = vmatprep.subr.mxu0 0.0
  %1899 = vmatpush1.msra.mxu0 0.0
  %1900 = vmatprep.subr.mxu0 0.0
  %1901 = vmatpush1.msra.mxu0 0.0
  %1902 = vmatprep.subr.mxu0 0.0
  %1903 = vmatpush1.msra.mxu0 0.0
  %1904 = vmatprep.subr.mxu0 0.0
  %1905 = vmatpush1.msra.mxu0 0.0
  %1906 = vmatprep.subr.mxu0 0.0
  %1907 = vmatpush1.msra.mxu0 0.0
  %1908 = vmatprep.subr.mxu0 0.0
  %1909 = vmatpush1.msra.mxu0 0.0
  %1910 = vmatprep.subr.mxu0 0.0
  %1911 = vmatpush1.msra.mxu0 0.0
  %1912 = vmatprep.subr.mxu0 0.0
  %1913 = vmatpush1.msra.mxu0 0.0
  %1914 = vmatprep.subr.mxu0 0.0
  %1915 = vmatpush1.msra.mxu0 0.0
  %1916 = vmatprep.mubr.f32.mxu0 0.0
  %1917 = vmatmul.mubr.f32.gmra.mrb[0].mxu0 %v1850
  %v1918 = vpop.f32.mrb[0].mxu0
  %v1919 = vadd.f32 %v81, %v1918
  %v1920 = vpop.f32.mrb[0].mxu0
  %1921 = vdwg.mxu0
  %v1922 = vadd.f32 %v1919, %v1849
  %v1923 = vtanh.pop %v1922
  %v1924 = vmul.f32 %v1923, %v65
  %v1925 = vsel %vm159, %v1924, 0.0
  %1926 = vadd.xlane.f32.xlu0 %v1925
  %v1927 = vpop.xlane.xlu0 %1926
  %v1929 = vlaneseq
  %v1930 = vshrl.u32 %v1929, 7
  %v1931 = vsub.s32 0, %v1930
  %v1932 = vrot.slane %v1927, %v1931
  %v1933 = vlaneseq
  %v1934 = vshrl.u32 %v1933, 7
  %v1935 = vsub.s32 1, %v1934
  %v1936 = vrot.slane %v1927, %v1935
  %v1939 = vadd.f32 %v72, %v1932
  %v1940 = vadd.f32 %v75, %v1936
  %1943 = vset.pattern.permute.xlu0 0
  %1944 = vperm.xlu0 %1943, %v1939
  %v1945 = vpop.permute.xlu0 %1944
  %1946 = vset.pattern.permute.xlu0 0
  %1947 = vperm.xlu0 %1946, %v1940
  %v1948 = vpop.permute.xlu0 %1947
  %v1949 = vlaneseq
  %v1950 = vshrl.u32 %v1949, 7
  %v1951 = vsub.s32 %v185, %v1950
  %v1952 = vrot.slane %v1945, %v1951
  %v1953 = vlaneseq
  %v1954 = vshrl.u32 %v1953, 7
  %v1955 = vsub.s32 %v185, %v1954
  %v1956 = vrot.slane %v1948, %v1955
  %v1957 = vsel %vm194, %v1956, %v1952
  %v1959 = vsel %vm197, %v1957, -inf
  %1960 = vmax.xlane.f32.xlu0 %v1959
  %v1961 = vpop.xlane.xlu0 %1960
  %v1963 = vlaneseq
  %v1964 = vshrl.u32 %v1963, 7
  %v1965 = vsub.s32 0, %v1964
  %v1966 = vrot.slane %v1961, %v1965
  %v1967 = vlaneseq
  %v1968 = vshrl.u32 %v1967, 7
  %v1969 = vsub.s32 1, %v1968
  %v1970 = vrot.slane %v1961, %v1969
  %v1973 = vsub.f32 %v1939, %v1966
  %v1974 = vsub.f32 %v1940, %v1970
  %v1975 = vmul.f32 %v1973, 1.442695
  %v1976 = vpow.pop %v1975
  %v1977 = vmul.f32 %v1974, 1.442695
  %v1978 = vpow.pop %v1977
  %1981 = vset.pattern.permute.xlu0 0
  %1982 = vperm.xlu0 %1981, %v1976
  %v1983 = vpop.permute.xlu0 %1982
  %1984 = vset.pattern.permute.xlu0 0
  %1985 = vperm.xlu0 %1984, %v1978
  %v1986 = vpop.permute.xlu0 %1985
  %v1987 = vlaneseq
  %v1988 = vshrl.u32 %v1987, 7
  %v1989 = vsub.s32 %v185, %v1988
  %v1990 = vrot.slane %v1983, %v1989
  %v1991 = vlaneseq
  %v1992 = vshrl.u32 %v1991, 7
  %v1993 = vsub.s32 %v185, %v1992
  %v1994 = vrot.slane %v1986, %v1993
  %v1995 = vsel %vm194, %v1994, %v1990
  %v1997 = vsel %vm197, %v1995, 0.0
  %1998 = vadd.xlane.f32.xlu0 %v1997
  %v1999 = vpop.xlane.xlu0 %1998
  %v2001 = vlaneseq
  %v2002 = vshrl.u32 %v2001, 7
  %v2003 = vsub.s32 0, %v2002
  %v2004 = vrot.slane %v1999, %v2003
  %v2005 = vlaneseq
  %v2006 = vshrl.u32 %v2005, 7
  %v2007 = vsub.s32 1, %v2006
  %v2008 = vrot.slane %v1999, %v2007
  %v2011 = vrcp.pop %v2004
  %v2012 = vmul.f32 %v1976, %v2011
  %v2013 = vrcp.pop %v2008
  %v2014 = vmul.f32 %v1978, %v2013
  %2016 = vset.pattern.permute.xlu0 0
  %2017 = vperm.xlu0 %2016, %v2012
  %v2018 = vpop.permute.xlu0 %2017
  %v2019 = vlaneseq
  %v2020 = vshrl.u32 %v2019, 7
  %v2021 = vsub.s32 %v185, %v2020
  %v2022 = vrot.slane %v2018, %v2021
  %v2023 = vsel %vm262, %v2022, 0
  %2025 = vmatprep.subr.mxu0 0.0
  %2026 = vmatpush1.msra.mxu0 %v38
  %2027 = vmatprep.subr.mxu0 0.0
  %2028 = vmatpush1.msra.mxu0 0.0
  %2029 = vmatprep.subr.mxu0 0.0
  %2030 = vmatpush1.msra.mxu0 0.0
  %2031 = vmatprep.subr.mxu0 0.0
  %2032 = vmatpush1.msra.mxu0 0.0
  %2033 = vmatprep.subr.mxu0 0.0
  %2034 = vmatpush1.msra.mxu0 0.0
  %2035 = vmatprep.subr.mxu0 0.0
  %2036 = vmatpush1.msra.mxu0 0.0
  %2037 = vmatprep.subr.mxu0 0.0
  %2038 = vmatpush1.msra.mxu0 0.0
  %2039 = vmatprep.subr.mxu0 0.0
  %2040 = vmatpush1.msra.mxu0 0.0
  %2041 = vmatprep.subr.mxu0 0.0
  %2042 = vmatpush1.msra.mxu0 0.0
  %2043 = vmatprep.subr.mxu0 0.0
  %2044 = vmatpush1.msra.mxu0 0.0
  %2045 = vmatprep.subr.mxu0 0.0
  %2046 = vmatpush1.msra.mxu0 0.0
  %2047 = vmatprep.subr.mxu0 0.0
  %2048 = vmatpush1.msra.mxu0 0.0
  %2049 = vmatprep.subr.mxu0 0.0
  %2050 = vmatpush1.msra.mxu0 0.0
  %2051 = vmatprep.subr.mxu0 0.0
  %2052 = vmatpush1.msra.mxu0 0.0
  %2053 = vmatprep.subr.mxu0 0.0
  %2054 = vmatpush1.msra.mxu0 0.0
  %2055 = vmatprep.subr.mxu0 0.0
  %2056 = vmatpush1.msra.mxu0 0.0
  %2057 = vmatprep.subr.mxu0 0.0
  %2058 = vmatpush1.msra.mxu0 0.0
  %2059 = vmatprep.subr.mxu0 0.0
  %2060 = vmatpush1.msra.mxu0 0.0
  %2061 = vmatprep.subr.mxu0 0.0
  %2062 = vmatpush1.msra.mxu0 0.0
  %2063 = vmatprep.subr.mxu0 0.0
  %2064 = vmatpush1.msra.mxu0 0.0
  %2065 = vmatprep.subr.mxu0 0.0
  %2066 = vmatpush1.msra.mxu0 0.0
  %2067 = vmatprep.subr.mxu0 0.0
  %2068 = vmatpush1.msra.mxu0 0.0
  %2069 = vmatprep.subr.mxu0 0.0
  %2070 = vmatpush1.msra.mxu0 0.0
  %2071 = vmatprep.subr.mxu0 0.0
  %2072 = vmatpush1.msra.mxu0 0.0
  %2073 = vmatprep.subr.mxu0 0.0
  %2074 = vmatpush1.msra.mxu0 0.0
  %2075 = vmatprep.subr.mxu0 0.0
  %2076 = vmatpush1.msra.mxu0 0.0
  %2077 = vmatprep.subr.mxu0 0.0
  %2078 = vmatpush1.msra.mxu0 0.0
  %2079 = vmatprep.subr.mxu0 0.0
  %2080 = vmatpush1.msra.mxu0 0.0
  %2081 = vmatprep.subr.mxu0 0.0
  %2082 = vmatpush1.msra.mxu0 0.0
  %2083 = vmatprep.subr.mxu0 0.0
  %2084 = vmatpush1.msra.mxu0 0.0
  %2085 = vmatprep.subr.mxu0 0.0
  %2086 = vmatpush1.msra.mxu0 0.0
  %2087 = vmatprep.subr.mxu0 0.0
  %2088 = vmatpush1.msra.mxu0 0.0
  %2089 = vmatprep.mubr.f32.mxu0 0.0
  %2090 = vmatmul.mubr.f32.gmra.mrb[0].mxu0 %v2023
  %v2091 = vpop.f32.mrb[0].mxu0
  %v2092 = vadd.f32 0.0, %v2091
  %v2093 = vpop.f32.mrb[0].mxu0
  %2094 = vdwg.mxu0
  %2096 = vset.pattern.permute.xlu0 0
  %2097 = vperm.xlu0 %2096, %v2014
  %v2098 = vpop.permute.xlu0 %2097
  %v2099 = vlaneseq
  %v2100 = vshrl.u32 %v2099, 7
  %v2101 = vsub.s32 %v185, %v2100
  %v2102 = vrot.slane %v2098, %v2101
  %v2103 = vsel %vm262, %v2102, 0
  %2105 = vmatprep.subr.mxu0 0.0
  %2106 = vmatpush1.msra.mxu0 %v39
  %2107 = vmatprep.subr.mxu0 0.0
  %2108 = vmatpush1.msra.mxu0 0.0
  %2109 = vmatprep.subr.mxu0 0.0
  %2110 = vmatpush1.msra.mxu0 0.0
  %2111 = vmatprep.subr.mxu0 0.0
  %2112 = vmatpush1.msra.mxu0 0.0
  %2113 = vmatprep.subr.mxu0 0.0
  %2114 = vmatpush1.msra.mxu0 0.0
  %2115 = vmatprep.subr.mxu0 0.0
  %2116 = vmatpush1.msra.mxu0 0.0
  %2117 = vmatprep.subr.mxu0 0.0
  %2118 = vmatpush1.msra.mxu0 0.0
  %2119 = vmatprep.subr.mxu0 0.0
  %2120 = vmatpush1.msra.mxu0 0.0
  %2121 = vmatprep.subr.mxu0 0.0
  %2122 = vmatpush1.msra.mxu0 0.0
  %2123 = vmatprep.subr.mxu0 0.0
  %2124 = vmatpush1.msra.mxu0 0.0
  %2125 = vmatprep.subr.mxu0 0.0
  %2126 = vmatpush1.msra.mxu0 0.0
  %2127 = vmatprep.subr.mxu0 0.0
  %2128 = vmatpush1.msra.mxu0 0.0
  %2129 = vmatprep.subr.mxu0 0.0
  %2130 = vmatpush1.msra.mxu0 0.0
  %2131 = vmatprep.subr.mxu0 0.0
  %2132 = vmatpush1.msra.mxu0 0.0
  %2133 = vmatprep.subr.mxu0 0.0
  %2134 = vmatpush1.msra.mxu0 0.0
  %2135 = vmatprep.subr.mxu0 0.0
  %2136 = vmatpush1.msra.mxu0 0.0
  %2137 = vmatprep.subr.mxu0 0.0
  %2138 = vmatpush1.msra.mxu0 0.0
  %2139 = vmatprep.subr.mxu0 0.0
  %2140 = vmatpush1.msra.mxu0 0.0
  %2141 = vmatprep.subr.mxu0 0.0
  %2142 = vmatpush1.msra.mxu0 0.0
  %2143 = vmatprep.subr.mxu0 0.0
  %2144 = vmatpush1.msra.mxu0 0.0
  %2145 = vmatprep.subr.mxu0 0.0
  %2146 = vmatpush1.msra.mxu0 0.0
  %2147 = vmatprep.subr.mxu0 0.0
  %2148 = vmatpush1.msra.mxu0 0.0
  %2149 = vmatprep.subr.mxu0 0.0
  %2150 = vmatpush1.msra.mxu0 0.0
  %2151 = vmatprep.subr.mxu0 0.0
  %2152 = vmatpush1.msra.mxu0 0.0
  %2153 = vmatprep.subr.mxu0 0.0
  %2154 = vmatpush1.msra.mxu0 0.0
  %2155 = vmatprep.subr.mxu0 0.0
  %2156 = vmatpush1.msra.mxu0 0.0
  %2157 = vmatprep.subr.mxu0 0.0
  %2158 = vmatpush1.msra.mxu0 0.0
  %2159 = vmatprep.subr.mxu0 0.0
  %2160 = vmatpush1.msra.mxu0 0.0
  %2161 = vmatprep.subr.mxu0 0.0
  %2162 = vmatpush1.msra.mxu0 0.0
  %2163 = vmatprep.subr.mxu0 0.0
  %2164 = vmatpush1.msra.mxu0 0.0
  %2165 = vmatprep.subr.mxu0 0.0
  %2166 = vmatpush1.msra.mxu0 0.0
  %2167 = vmatprep.subr.mxu0 0.0
  %2168 = vmatpush1.msra.mxu0 0.0
  %2169 = vmatprep.mubr.f32.mxu0 0.0
  %2170 = vmatmul.mubr.f32.gmra.mrb[0].mxu0 %v2103
  %v2171 = vpop.f32.mrb[0].mxu0
  %v2172 = vadd.f32 0.0, %v2171
  %v2173 = vpop.f32.mrb[0].mxu0
  %2174 = vdwg.mxu0
  %v2177 = vrot.slane %v2172, 7
  %v2178 = vsel %vm194, %v2177, %v2092
  %v2179 = vsel %vm69, %v2178, 0
  %2181 = vmatprep.subr.mxu0 0.0
  %2182 = vmatpush1.msra.mxu0 %v46
  %2183 = vmatprep.subr.mxu0 0.0
  %2184 = vmatpush1.msra.mxu0 %v47
  %2185 = vmatprep.subr.mxu0 0.0
  %2186 = vmatpush1.msra.mxu0 %v48
  %2187 = vmatprep.subr.mxu0 0.0
  %2188 = vmatpush1.msra.mxu0 %v49
  %2189 = vmatprep.subr.mxu0 0.0
  %2190 = vmatpush1.msra.mxu0 0.0
  %2191 = vmatprep.subr.mxu0 0.0
  %2192 = vmatpush1.msra.mxu0 0.0
  %2193 = vmatprep.subr.mxu0 0.0
  %2194 = vmatpush1.msra.mxu0 0.0
  %2195 = vmatprep.subr.mxu0 0.0
  %2196 = vmatpush1.msra.mxu0 0.0
  %2197 = vmatprep.subr.mxu0 0.0
  %2198 = vmatpush1.msra.mxu0 0.0
  %2199 = vmatprep.subr.mxu0 0.0
  %2200 = vmatpush1.msra.mxu0 0.0
  %2201 = vmatprep.subr.mxu0 0.0
  %2202 = vmatpush1.msra.mxu0 0.0
  %2203 = vmatprep.subr.mxu0 0.0
  %2204 = vmatpush1.msra.mxu0 0.0
  %2205 = vmatprep.subr.mxu0 0.0
  %2206 = vmatpush1.msra.mxu0 0.0
  %2207 = vmatprep.subr.mxu0 0.0
  %2208 = vmatpush1.msra.mxu0 0.0
  %2209 = vmatprep.subr.mxu0 0.0
  %2210 = vmatpush1.msra.mxu0 0.0
  %2211 = vmatprep.subr.mxu0 0.0
  %2212 = vmatpush1.msra.mxu0 0.0
  %2213 = vmatprep.subr.mxu0 0.0
  %2214 = vmatpush1.msra.mxu0 0.0
  %2215 = vmatprep.subr.mxu0 0.0
  %2216 = vmatpush1.msra.mxu0 0.0
  %2217 = vmatprep.subr.mxu0 0.0
  %2218 = vmatpush1.msra.mxu0 0.0
  %2219 = vmatprep.subr.mxu0 0.0
  %2220 = vmatpush1.msra.mxu0 0.0
  %2221 = vmatprep.subr.mxu0 0.0
  %2222 = vmatpush1.msra.mxu0 0.0
  %2223 = vmatprep.subr.mxu0 0.0
  %2224 = vmatpush1.msra.mxu0 0.0
  %2225 = vmatprep.subr.mxu0 0.0
  %2226 = vmatpush1.msra.mxu0 0.0
  %2227 = vmatprep.subr.mxu0 0.0
  %2228 = vmatpush1.msra.mxu0 0.0
  %2229 = vmatprep.subr.mxu0 0.0
  %2230 = vmatpush1.msra.mxu0 0.0
  %2231 = vmatprep.subr.mxu0 0.0
  %2232 = vmatpush1.msra.mxu0 0.0
  %2233 = vmatprep.subr.mxu0 0.0
  %2234 = vmatpush1.msra.mxu0 0.0
  %2235 = vmatprep.subr.mxu0 0.0
  %2236 = vmatpush1.msra.mxu0 0.0
  %2237 = vmatprep.subr.mxu0 0.0
  %2238 = vmatpush1.msra.mxu0 0.0
  %2239 = vmatprep.subr.mxu0 0.0
  %2240 = vmatpush1.msra.mxu0 0.0
  %2241 = vmatprep.subr.mxu0 0.0
  %2242 = vmatpush1.msra.mxu0 0.0
  %2243 = vmatprep.subr.mxu0 0.0
  %2244 = vmatpush1.msra.mxu0 0.0
  %2245 = vmatprep.mubr.f32.mxu0 0.0
  %2246 = vmatmul.mubr.f32.gmra.mrb[0].mxu0 %v2179
  %v2247 = vpop.f32.mrb[0].mxu0
  %v2248 = vadd.f32 %v419, %v2247
  %v2249 = vpop.f32.mrb[0].mxu0
  %2250 = vdwg.mxu0
  %vm2251 = vcmp.ge.f32.partialorder %v2248, 0.0
  %v2252 = vmul.f32 %v2248, 0.01
  %v2253 = vsel %vm2251, %v2248, %v2252
  %v2255 = vsel %vm69, %v2253, 0
  %2257 = vmatprep.subr.mxu0 0.0
  %2258 = vmatpush1.msra.mxu0 %v51
  %2259 = vmatprep.subr.mxu0 0.0
  %2260 = vmatpush1.msra.mxu0 %v52
  %2261 = vmatprep.subr.mxu0 0.0
  %2262 = vmatpush1.msra.mxu0 %v53
  %2263 = vmatprep.subr.mxu0 0.0
  %2264 = vmatpush1.msra.mxu0 %v54
  %2265 = vmatprep.subr.mxu0 0.0
  %2266 = vmatpush1.msra.mxu0 0.0
  %2267 = vmatprep.subr.mxu0 0.0
  %2268 = vmatpush1.msra.mxu0 0.0
  %2269 = vmatprep.subr.mxu0 0.0
  %2270 = vmatpush1.msra.mxu0 0.0
  %2271 = vmatprep.subr.mxu0 0.0
  %2272 = vmatpush1.msra.mxu0 0.0
  %2273 = vmatprep.subr.mxu0 0.0
  %2274 = vmatpush1.msra.mxu0 0.0
  %2275 = vmatprep.subr.mxu0 0.0
  %2276 = vmatpush1.msra.mxu0 0.0
  %2277 = vmatprep.subr.mxu0 0.0
  %2278 = vmatpush1.msra.mxu0 0.0
  %2279 = vmatprep.subr.mxu0 0.0
  %2280 = vmatpush1.msra.mxu0 0.0
  %2281 = vmatprep.subr.mxu0 0.0
  %2282 = vmatpush1.msra.mxu0 0.0
  %2283 = vmatprep.subr.mxu0 0.0
  %2284 = vmatpush1.msra.mxu0 0.0
  %2285 = vmatprep.subr.mxu0 0.0
  %2286 = vmatpush1.msra.mxu0 0.0
  %2287 = vmatprep.subr.mxu0 0.0
  %2288 = vmatpush1.msra.mxu0 0.0
  %2289 = vmatprep.subr.mxu0 0.0
  %2290 = vmatpush1.msra.mxu0 0.0
  %2291 = vmatprep.subr.mxu0 0.0
  %2292 = vmatpush1.msra.mxu0 0.0
  %2293 = vmatprep.subr.mxu0 0.0
  %2294 = vmatpush1.msra.mxu0 0.0
  %2295 = vmatprep.subr.mxu0 0.0
  %2296 = vmatpush1.msra.mxu0 0.0
  %2297 = vmatprep.subr.mxu0 0.0
  %2298 = vmatpush1.msra.mxu0 0.0
  %2299 = vmatprep.subr.mxu0 0.0
  %2300 = vmatpush1.msra.mxu0 0.0
  %2301 = vmatprep.subr.mxu0 0.0
  %2302 = vmatpush1.msra.mxu0 0.0
  %2303 = vmatprep.subr.mxu0 0.0
  %2304 = vmatpush1.msra.mxu0 0.0
  %2305 = vmatprep.subr.mxu0 0.0
  %2306 = vmatpush1.msra.mxu0 0.0
  %2307 = vmatprep.subr.mxu0 0.0
  %2308 = vmatpush1.msra.mxu0 0.0
  %2309 = vmatprep.subr.mxu0 0.0
  %2310 = vmatpush1.msra.mxu0 0.0
  %2311 = vmatprep.subr.mxu0 0.0
  %2312 = vmatpush1.msra.mxu0 0.0
  %2313 = vmatprep.subr.mxu0 0.0
  %2314 = vmatpush1.msra.mxu0 0.0
  %2315 = vmatprep.subr.mxu0 0.0
  %2316 = vmatpush1.msra.mxu0 0.0
  %2317 = vmatprep.subr.mxu0 0.0
  %2318 = vmatpush1.msra.mxu0 0.0
  %2319 = vmatprep.subr.mxu0 0.0
  %2320 = vmatpush1.msra.mxu0 0.0
  %2321 = vmatprep.mubr.f32.mxu0 0.0
  %2322 = vmatmul.mubr.f32.gmra.mrb[0].mxu0 %v2255
  %v2323 = vpop.f32.mrb[0].mxu0
  %v2324 = vadd.f32 %v504, %v2323
  %v2325 = vpop.f32.mrb[0].mxu0
  %2326 = vdwg.mxu0
  %2327 = vmatprep.subr.mxu0 0.0
  %2328 = vmatpush1.msra.mxu0 %v55
  %2329 = vmatprep.subr.mxu0 0.0
  %2330 = vmatpush1.msra.mxu0 %v56
  %2331 = vmatprep.subr.mxu0 0.0
  %2332 = vmatpush1.msra.mxu0 %v57
  %2333 = vmatprep.subr.mxu0 0.0
  %2334 = vmatpush1.msra.mxu0 %v58
  %2335 = vmatprep.subr.mxu0 0.0
  %2336 = vmatpush1.msra.mxu0 0.0
  %2337 = vmatprep.subr.mxu0 0.0
  %2338 = vmatpush1.msra.mxu0 0.0
  %2339 = vmatprep.subr.mxu0 0.0
  %2340 = vmatpush1.msra.mxu0 0.0
  %2341 = vmatprep.subr.mxu0 0.0
  %2342 = vmatpush1.msra.mxu0 0.0
  %2343 = vmatprep.subr.mxu0 0.0
  %2344 = vmatpush1.msra.mxu0 0.0
  %2345 = vmatprep.subr.mxu0 0.0
  %2346 = vmatpush1.msra.mxu0 0.0
  %2347 = vmatprep.subr.mxu0 0.0
  %2348 = vmatpush1.msra.mxu0 0.0
  %2349 = vmatprep.subr.mxu0 0.0
  %2350 = vmatpush1.msra.mxu0 0.0
  %2351 = vmatprep.subr.mxu0 0.0
  %2352 = vmatpush1.msra.mxu0 0.0
  %2353 = vmatprep.subr.mxu0 0.0
  %2354 = vmatpush1.msra.mxu0 0.0
  %2355 = vmatprep.subr.mxu0 0.0
  %2356 = vmatpush1.msra.mxu0 0.0
  %2357 = vmatprep.subr.mxu0 0.0
  %2358 = vmatpush1.msra.mxu0 0.0
  %2359 = vmatprep.subr.mxu0 0.0
  %2360 = vmatpush1.msra.mxu0 0.0
  %2361 = vmatprep.subr.mxu0 0.0
  %2362 = vmatpush1.msra.mxu0 0.0
  %2363 = vmatprep.subr.mxu0 0.0
  %2364 = vmatpush1.msra.mxu0 0.0
  %2365 = vmatprep.subr.mxu0 0.0
  %2366 = vmatpush1.msra.mxu0 0.0
  %2367 = vmatprep.subr.mxu0 0.0
  %2368 = vmatpush1.msra.mxu0 0.0
  %2369 = vmatprep.subr.mxu0 0.0
  %2370 = vmatpush1.msra.mxu0 0.0
  %2371 = vmatprep.subr.mxu0 0.0
  %2372 = vmatpush1.msra.mxu0 0.0
  %2373 = vmatprep.subr.mxu0 0.0
  %2374 = vmatpush1.msra.mxu0 0.0
  %2375 = vmatprep.subr.mxu0 0.0
  %2376 = vmatpush1.msra.mxu0 0.0
  %2377 = vmatprep.subr.mxu0 0.0
  %2378 = vmatpush1.msra.mxu0 0.0
  %2379 = vmatprep.subr.mxu0 0.0
  %2380 = vmatpush1.msra.mxu0 0.0
  %2381 = vmatprep.subr.mxu0 0.0
  %2382 = vmatpush1.msra.mxu0 0.0
  %2383 = vmatprep.subr.mxu0 0.0
  %2384 = vmatpush1.msra.mxu0 0.0
  %2385 = vmatprep.subr.mxu0 0.0
  %2386 = vmatpush1.msra.mxu0 0.0
  %2387 = vmatprep.subr.mxu0 0.0
  %2388 = vmatpush1.msra.mxu0 0.0
  %2389 = vmatprep.subr.mxu0 0.0
  %2390 = vmatpush1.msra.mxu0 0.0
  %2391 = vmatprep.mubr.f32.mxu0 0.0
  %2392 = vmatmul.mubr.f32.gmra.mrb[0].mxu0 %v1850
  %v2393 = vpop.f32.mrb[0].mxu0
  %v2394 = vadd.f32 %v583, %v2393
  %v2395 = vpop.f32.mrb[0].mxu0
  %2396 = vdwg.mxu0
  %v2397 = vadd.f32 %v2324, %v2394
  %v2398 = vxor.u32 %v2397, 2147483648
  %v2399 = vmul.f32 %v2398, 1.442695
  %v2400 = vpow.pop %v2399
  %v2401 = vadd.f32 %v2400, 1.0
  %v2402 = vrcp.pop %v2401
  %v2403 = vmul.f32 1.0, %v2402
  %2405 = vrot.lane.b32.xlu0 %v2394, 64
  %v2406 = vpop.permute.xlu0 %2405
  %v2408 = vmul.f32 %v2403, %v2406
  %2410 = vrot.lane.b32.xlu0 %v2408, 64
  %v2411 = vpop.permute.xlu0 %2410
  %v2413 = vadd.f32 %v2324, %v2411
  %v2414 = vtanh.pop %v2413
  %v2415 = vsub.f32 1.0, %v2403
  %2417 = vrot.lane.b32.xlu0 %v2414, 96
  %v2418 = vpop.permute.xlu0 %2417
  %v2420 = vmul.f32 %v2415, %v2418
  %v2421 = vmul.f32 %v2403, %v1841
  %v2422 = vadd.f32 %v2420, %v2421
  %2424 = vrot.lane.b32.xlu0 %v2422, 96
  %v2425 = vpop.permute.xlu0 %2424
  %s2427 = scalar_lea.vmem %s11, 6
  %2428 = vst.msk [vmem:[%s2427] sm:$0x3] %vm159, %v2425
  %s2429 = scalar_lea.vmem %s1, 8
  %v2430 = vld [vmem:[%s2429] sm:$0x3]
  %v2431 = vsel %vm69, %v2425, 0
  %2433 = vmatprep.subr.mxu0 0.0
  %2434 = vmatpush1.msra.mxu0 %v40
  %2435 = vmatprep.subr.mxu0 0.0
  %2436 = vmatpush1.msra.mxu0 %v41
  %2437 = vmatprep.subr.mxu0 0.0
  %2438 = vmatpush1.msra.mxu0 %v42
  %2439 = vmatprep.subr.mxu0 0.0
  %2440 = vmatpush1.msra.mxu0 %v43
  %2441 = vmatprep.subr.mxu0 0.0
  %2442 = vmatpush1.msra.mxu0 0.0
  %2443 = vmatprep.subr.mxu0 0.0
  %2444 = vmatpush1.msra.mxu0 0.0
  %2445 = vmatprep.subr.mxu0 0.0
  %2446 = vmatpush1.msra.mxu0 0.0
  %2447 = vmatprep.subr.mxu0 0.0
  %2448 = vmatpush1.msra.mxu0 0.0
  %2449 = vmatprep.subr.mxu0 0.0
  %2450 = vmatpush1.msra.mxu0 0.0
  %2451 = vmatprep.subr.mxu0 0.0
  %2452 = vmatpush1.msra.mxu0 0.0
  %2453 = vmatprep.subr.mxu0 0.0
  %2454 = vmatpush1.msra.mxu0 0.0
  %2455 = vmatprep.subr.mxu0 0.0
  %2456 = vmatpush1.msra.mxu0 0.0
  %2457 = vmatprep.subr.mxu0 0.0
  %2458 = vmatpush1.msra.mxu0 0.0
  %2459 = vmatprep.subr.mxu0 0.0
  %2460 = vmatpush1.msra.mxu0 0.0
  %2461 = vmatprep.subr.mxu0 0.0
  %2462 = vmatpush1.msra.mxu0 0.0
  %2463 = vmatprep.subr.mxu0 0.0
  %2464 = vmatpush1.msra.mxu0 0.0
  %2465 = vmatprep.subr.mxu0 0.0
  %2466 = vmatpush1.msra.mxu0 0.0
  %2467 = vmatprep.subr.mxu0 0.0
  %2468 = vmatpush1.msra.mxu0 0.0
  %2469 = vmatprep.subr.mxu0 0.0
  %2470 = vmatpush1.msra.mxu0 0.0
  %2471 = vmatprep.subr.mxu0 0.0
  %2472 = vmatpush1.msra.mxu0 0.0
  %2473 = vmatprep.subr.mxu0 0.0
  %2474 = vmatpush1.msra.mxu0 0.0
  %2475 = vmatprep.subr.mxu0 0.0
  %2476 = vmatpush1.msra.mxu0 0.0
  %2477 = vmatprep.subr.mxu0 0.0
  %2478 = vmatpush1.msra.mxu0 0.0
  %2479 = vmatprep.subr.mxu0 0.0
  %2480 = vmatpush1.msra.mxu0 0.0
  %2481 = vmatprep.subr.mxu0 0.0
  %2482 = vmatpush1.msra.mxu0 0.0
  %2483 = vmatprep.subr.mxu0 0.0
  %2484 = vmatpush1.msra.mxu0 0.0
  %2485 = vmatprep.subr.mxu0 0.0
  %2486 = vmatpush1.msra.mxu0 0.0
  %2487 = vmatprep.subr.mxu0 0.0
  %2488 = vmatpush1.msra.mxu0 0.0
  %2489 = vmatprep.subr.mxu0 0.0
  %2490 = vmatpush1.msra.mxu0 0.0
  %2491 = vmatprep.subr.mxu0 0.0
  %2492 = vmatpush1.msra.mxu0 0.0
  %2493 = vmatprep.subr.mxu0 0.0
  %2494 = vmatpush1.msra.mxu0 0.0
  %2495 = vmatprep.subr.mxu0 0.0
  %2496 = vmatpush1.msra.mxu0 0.0
  %2497 = vmatprep.mubr.f32.mxu0 0.0
  %2498 = vmatmul.mubr.f32.gmra.mrb[0].mxu0 %v2431
  %v2499 = vpop.f32.mrb[0].mxu0
  %v2500 = vadd.f32 %v81, %v2499
  %v2501 = vpop.f32.mrb[0].mxu0
  %2502 = vdwg.mxu0
  %v2503 = vadd.f32 %v2500, %v2430
  %v2504 = vtanh.pop %v2503
  %v2505 = vmul.f32 %v2504, %v65
  %v2506 = vsel %vm159, %v2505, 0.0
  %2507 = vadd.xlane.f32.xlu0 %v2506
  %v2508 = vpop.xlane.xlu0 %2507
  %v2510 = vlaneseq
  %v2511 = vshrl.u32 %v2510, 7
  %v2512 = vsub.s32 0, %v2511
  %v2513 = vrot.slane %v2508, %v2512
  %v2514 = vlaneseq
  %v2515 = vshrl.u32 %v2514, 7
  %v2516 = vsub.s32 1, %v2515
  %v2517 = vrot.slane %v2508, %v2516
  %v2520 = vadd.f32 %v72, %v2513
  %v2521 = vadd.f32 %v75, %v2517
  %2524 = vset.pattern.permute.xlu0 0
  %2525 = vperm.xlu0 %2524, %v2520
  %v2526 = vpop.permute.xlu0 %2525
  %2527 = vset.pattern.permute.xlu0 0
  %2528 = vperm.xlu0 %2527, %v2521
  %v2529 = vpop.permute.xlu0 %2528
  %v2530 = vlaneseq
  %v2531 = vshrl.u32 %v2530, 7
  %v2532 = vsub.s32 %v185, %v2531
  %v2533 = vrot.slane %v2526, %v2532
  %v2534 = vlaneseq
  %v2535 = vshrl.u32 %v2534, 7
  %v2536 = vsub.s32 %v185, %v2535
  %v2537 = vrot.slane %v2529, %v2536
  %v2538 = vsel %vm194, %v2537, %v2533
  %v2540 = vsel %vm197, %v2538, -inf
  %2541 = vmax.xlane.f32.xlu0 %v2540
  %v2542 = vpop.xlane.xlu0 %2541
  %v2544 = vlaneseq
  %v2545 = vshrl.u32 %v2544, 7
  %v2546 = vsub.s32 0, %v2545
  %v2547 = vrot.slane %v2542, %v2546
  %v2548 = vlaneseq
  %v2549 = vshrl.u32 %v2548, 7
  %v2550 = vsub.s32 1, %v2549
  %v2551 = vrot.slane %v2542, %v2550
  %v2554 = vsub.f32 %v2520, %v2547
  %v2555 = vsub.f32 %v2521, %v2551
  %v2556 = vmul.f32 %v2554, 1.442695
  %v2557 = vpow.pop %v2556
  %v2558 = vmul.f32 %v2555, 1.442695
  %v2559 = vpow.pop %v2558
  %2562 = vset.pattern.permute.xlu0 0
  %2563 = vperm.xlu0 %2562, %v2557
  %v2564 = vpop.permute.xlu0 %2563
  %2565 = vset.pattern.permute.xlu0 0
  %2566 = vperm.xlu0 %2565, %v2559
  %v2567 = vpop.permute.xlu0 %2566
  %v2568 = vlaneseq
  %v2569 = vshrl.u32 %v2568, 7
  %v2570 = vsub.s32 %v185, %v2569
  %v2571 = vrot.slane %v2564, %v2570
  %v2572 = vlaneseq
  %v2573 = vshrl.u32 %v2572, 7
  %v2574 = vsub.s32 %v185, %v2573
  %v2575 = vrot.slane %v2567, %v2574
  %v2576 = vsel %vm194, %v2575, %v2571
  %v2578 = vsel %vm197, %v2576, 0.0
  %2579 = vadd.xlane.f32.xlu0 %v2578
  %v2580 = vpop.xlane.xlu0 %2579
  %v2582 = vlaneseq
  %v2583 = vshrl.u32 %v2582, 7
  %v2584 = vsub.s32 0, %v2583
  %v2585 = vrot.slane %v2580, %v2584
  %v2586 = vlaneseq
  %v2587 = vshrl.u32 %v2586, 7
  %v2588 = vsub.s32 1, %v2587
  %v2589 = vrot.slane %v2580, %v2588
  %v2592 = vrcp.pop %v2585
  %v2593 = vmul.f32 %v2557, %v2592
  %v2594 = vrcp.pop %v2589
  %v2595 = vmul.f32 %v2559, %v2594
  %2597 = vset.pattern.permute.xlu0 0
  %2598 = vperm.xlu0 %2597, %v2593
  %v2599 = vpop.permute.xlu0 %2598
  %v2600 = vlaneseq
  %v2601 = vshrl.u32 %v2600, 7
  %v2602 = vsub.s32 %v185, %v2601
  %v2603 = vrot.slane %v2599, %v2602
  %v2604 = vsel %vm262, %v2603, 0
  %2606 = vmatprep.subr.mxu0 0.0
  %2607 = vmatpush1.msra.mxu0 %v38
  %2608 = vmatprep.subr.mxu0 0.0
  %2609 = vmatpush1.msra.mxu0 0.0
  %2610 = vmatprep.subr.mxu0 0.0
  %2611 = vmatpush1.msra.mxu0 0.0
  %2612 = vmatprep.subr.mxu0 0.0
  %2613 = vmatpush1.msra.mxu0 0.0
  %2614 = vmatprep.subr.mxu0 0.0
  %2615 = vmatpush1.msra.mxu0 0.0
  %2616 = vmatprep.subr.mxu0 0.0
  %2617 = vmatpush1.msra.mxu0 0.0
  %2618 = vmatprep.subr.mxu0 0.0
  %2619 = vmatpush1.msra.mxu0 0.0
  %2620 = vmatprep.subr.mxu0 0.0
  %2621 = vmatpush1.msra.mxu0 0.0
  %2622 = vmatprep.subr.mxu0 0.0
  %2623 = vmatpush1.msra.mxu0 0.0
  %2624 = vmatprep.subr.mxu0 0.0
  %2625 = vmatpush1.msra.mxu0 0.0
  %2626 = vmatprep.subr.mxu0 0.0
  %2627 = vmatpush1.msra.mxu0 0.0
  %2628 = vmatprep.subr.mxu0 0.0
  %2629 = vmatpush1.msra.mxu0 0.0
  %2630 = vmatprep.subr.mxu0 0.0
  %2631 = vmatpush1.msra.mxu0 0.0
  %2632 = vmatprep.subr.mxu0 0.0
  %2633 = vmatpush1.msra.mxu0 0.0
  %2634 = vmatprep.subr.mxu0 0.0
  %2635 = vmatpush1.msra.mxu0 0.0
  %2636 = vmatprep.subr.mxu0 0.0
  %2637 = vmatpush1.msra.mxu0 0.0
  %2638 = vmatprep.subr.mxu0 0.0
  %2639 = vmatpush1.msra.mxu0 0.0
  %2640 = vmatprep.subr.mxu0 0.0
  %2641 = vmatpush1.msra.mxu0 0.0
  %2642 = vmatprep.subr.mxu0 0.0
  %2643 = vmatpush1.msra.mxu0 0.0
  %2644 = vmatprep.subr.mxu0 0.0
  %2645 = vmatpush1.msra.mxu0 0.0
  %2646 = vmatprep.subr.mxu0 0.0
  %2647 = vmatpush1.msra.mxu0 0.0
  %2648 = vmatprep.subr.mxu0 0.0
  %2649 = vmatpush1.msra.mxu0 0.0
  %2650 = vmatprep.subr.mxu0 0.0
  %2651 = vmatpush1.msra.mxu0 0.0
  %2652 = vmatprep.subr.mxu0 0.0
  %2653 = vmatpush1.msra.mxu0 0.0
  %2654 = vmatprep.subr.mxu0 0.0
  %2655 = vmatpush1.msra.mxu0 0.0
  %2656 = vmatprep.subr.mxu0 0.0
  %2657 = vmatpush1.msra.mxu0 0.0
  %2658 = vmatprep.subr.mxu0 0.0
  %2659 = vmatpush1.msra.mxu0 0.0
  %2660 = vmatprep.subr.mxu0 0.0
  %2661 = vmatpush1.msra.mxu0 0.0
  %2662 = vmatprep.subr.mxu0 0.0
  %2663 = vmatpush1.msra.mxu0 0.0
  %2664 = vmatprep.subr.mxu0 0.0
  %2665 = vmatpush1.msra.mxu0 0.0
  %2666 = vmatprep.subr.mxu0 0.0
  %2667 = vmatpush1.msra.mxu0 0.0
  %2668 = vmatprep.subr.mxu0 0.0
  %2669 = vmatpush1.msra.mxu0 0.0
  %2670 = vmatprep.mubr.f32.mxu0 0.0
  %2671 = vmatmul.mubr.f32.gmra.mrb[0].mxu0 %v2604
  %v2672 = vpop.f32.mrb[0].mxu0
  %v2673 = vadd.f32 0.0, %v2672
  %v2674 = vpop.f32.mrb[0].mxu0
  %2675 = vdwg.mxu0
  %2677 = vset.pattern.permute.xlu0 0
  %2678 = vperm.xlu0 %2677, %v2595
  %v2679 = vpop.permute.xlu0 %2678
  %v2680 = vlaneseq
  %v2681 = vshrl.u32 %v2680, 7
  %v2682 = vsub.s32 %v185, %v2681
  %v2683 = vrot.slane %v2679, %v2682
  %v2684 = vsel %vm262, %v2683, 0
  %2686 = vmatprep.subr.mxu0 0.0
  %2687 = vmatpush1.msra.mxu0 %v39
  %2688 = vmatprep.subr.mxu0 0.0
  %2689 = vmatpush1.msra.mxu0 0.0
  %2690 = vmatprep.subr.mxu0 0.0
  %2691 = vmatpush1.msra.mxu0 0.0
  %2692 = vmatprep.subr.mxu0 0.0
  %2693 = vmatpush1.msra.mxu0 0.0
  %2694 = vmatprep.subr.mxu0 0.0
  %2695 = vmatpush1.msra.mxu0 0.0
  %2696 = vmatprep.subr.mxu0 0.0
  %2697 = vmatpush1.msra.mxu0 0.0
  %2698 = vmatprep.subr.mxu0 0.0
  %2699 = vmatpush1.msra.mxu0 0.0
  %2700 = vmatprep.subr.mxu0 0.0
  %2701 = vmatpush1.msra.mxu0 0.0
  %2702 = vmatprep.subr.mxu0 0.0
  %2703 = vmatpush1.msra.mxu0 0.0
  %2704 = vmatprep.subr.mxu0 0.0
  %2705 = vmatpush1.msra.mxu0 0.0
  %2706 = vmatprep.subr.mxu0 0.0
  %2707 = vmatpush1.msra.mxu0 0.0
  %2708 = vmatprep.subr.mxu0 0.0
  %2709 = vmatpush1.msra.mxu0 0.0
  %2710 = vmatprep.subr.mxu0 0.0
  %2711 = vmatpush1.msra.mxu0 0.0
  %2712 = vmatprep.subr.mxu0 0.0
  %2713 = vmatpush1.msra.mxu0 0.0
  %2714 = vmatprep.subr.mxu0 0.0
  %2715 = vmatpush1.msra.mxu0 0.0
  %2716 = vmatprep.subr.mxu0 0.0
  %2717 = vmatpush1.msra.mxu0 0.0
  %2718 = vmatprep.subr.mxu0 0.0
  %2719 = vmatpush1.msra.mxu0 0.0
  %2720 = vmatprep.subr.mxu0 0.0
  %2721 = vmatpush1.msra.mxu0 0.0
  %2722 = vmatprep.subr.mxu0 0.0
  %2723 = vmatpush1.msra.mxu0 0.0
  %2724 = vmatprep.subr.mxu0 0.0
  %2725 = vmatpush1.msra.mxu0 0.0
  %2726 = vmatprep.subr.mxu0 0.0
  %2727 = vmatpush1.msra.mxu0 0.0
  %2728 = vmatprep.subr.mxu0 0.0
  %2729 = vmatpush1.msra.mxu0 0.0
  %2730 = vmatprep.subr.mxu0 0.0
  %2731 = vmatpush1.msra.mxu0 0.0
  %2732 = vmatprep.subr.mxu0 0.0
  %2733 = vmatpush1.msra.mxu0 0.0
  %2734 = vmatprep.subr.mxu0 0.0
  %2735 = vmatpush1.msra.mxu0 0.0
  %2736 = vmatprep.subr.mxu0 0.0
  %2737 = vmatpush1.msra.mxu0 0.0
  %2738 = vmatprep.subr.mxu0 0.0
  %2739 = vmatpush1.msra.mxu0 0.0
  %2740 = vmatprep.subr.mxu0 0.0
  %2741 = vmatpush1.msra.mxu0 0.0
  %2742 = vmatprep.subr.mxu0 0.0
  %2743 = vmatpush1.msra.mxu0 0.0
  %2744 = vmatprep.subr.mxu0 0.0
  %2745 = vmatpush1.msra.mxu0 0.0
  %2746 = vmatprep.subr.mxu0 0.0
  %2747 = vmatpush1.msra.mxu0 0.0
  %2748 = vmatprep.subr.mxu0 0.0
  %2749 = vmatpush1.msra.mxu0 0.0
  %2750 = vmatprep.mubr.f32.mxu0 0.0
  %2751 = vmatmul.mubr.f32.gmra.mrb[0].mxu0 %v2684
  %v2752 = vpop.f32.mrb[0].mxu0
  %v2753 = vadd.f32 0.0, %v2752
  %v2754 = vpop.f32.mrb[0].mxu0
  %2755 = vdwg.mxu0
  %v2758 = vrot.slane %v2753, 7
  %v2759 = vsel %vm194, %v2758, %v2673
  %v2760 = vsel %vm69, %v2759, 0
  %2762 = vmatprep.subr.mxu0 0.0
  %2763 = vmatpush1.msra.mxu0 %v46
  %2764 = vmatprep.subr.mxu0 0.0
  %2765 = vmatpush1.msra.mxu0 %v47
  %2766 = vmatprep.subr.mxu0 0.0
  %2767 = vmatpush1.msra.mxu0 %v48
  %2768 = vmatprep.subr.mxu0 0.0
  %2769 = vmatpush1.msra.mxu0 %v49
  %2770 = vmatprep.subr.mxu0 0.0
  %2771 = vmatpush1.msra.mxu0 0.0
  %2772 = vmatprep.subr.mxu0 0.0
  %2773 = vmatpush1.msra.mxu0 0.0
  %2774 = vmatprep.subr.mxu0 0.0
  %2775 = vmatpush1.msra.mxu0 0.0
  %2776 = vmatprep.subr.mxu0 0.0
  %2777 = vmatpush1.msra.mxu0 0.0
  %2778 = vmatprep.subr.mxu0 0.0
  %2779 = vmatpush1.msra.mxu0 0.0
  %2780 = vmatprep.subr.mxu0 0.0
  %2781 = vmatpush1.msra.mxu0 0.0
  %2782 = vmatprep.subr.mxu0 0.0
  %2783 = vmatpush1.msra.mxu0 0.0
  %2784 = vmatprep.subr.mxu0 0.0
  %2785 = vmatpush1.msra.mxu0 0.0
  %2786 = vmatprep.subr.mxu0 0.0
  %2787 = vmatpush1.msra.mxu0 0.0
  %2788 = vmatprep.subr.mxu0 0.0
  %2789 = vmatpush1.msra.mxu0 0.0
  %2790 = vmatprep.subr.mxu0 0.0
  %2791 = vmatpush1.msra.mxu0 0.0
  %2792 = vmatprep.subr.mxu0 0.0
  %2793 = vmatpush1.msra.mxu0 0.0
  %2794 = vmatprep.subr.mxu0 0.0
  %2795 = vmatpush1.msra.mxu0 0.0
  %2796 = vmatprep.subr.mxu0 0.0
  %2797 = vmatpush1.msra.mxu0 0.0
  %2798 = vmatprep.subr.mxu0 0.0
  %2799 = vmatpush1.msra.mxu0 0.0
  %2800 = vmatprep.subr.mxu0 0.0
  %2801 = vmatpush1.msra.mxu0 0.0
  %2802 = vmatprep.subr.mxu0 0.0
  %2803 = vmatpush1.msra.mxu0 0.0
  %2804 = vmatprep.subr.mxu0 0.0
  %2805 = vmatpush1.msra.mxu0 0.0
  %2806 = vmatprep.subr.mxu0 0.0
  %2807 = vmatpush1.msra.mxu0 0.0
  %2808 = vmatprep.subr.mxu0 0.0
  %2809 = vmatpush1.msra.mxu0 0.0
  %2810 = vmatprep.subr.mxu0 0.0
  %2811 = vmatpush1.msra.mxu0 0.0
  %2812 = vmatprep.subr.mxu0 0.0
  %2813 = vmatpush1.msra.mxu0 0.0
  %2814 = vmatprep.subr.mxu0 0.0
  %2815 = vmatpush1.msra.mxu0 0.0
  %2816 = vmatprep.subr.mxu0 0.0
  %2817 = vmatpush1.msra.mxu0 0.0
  %2818 = vmatprep.subr.mxu0 0.0
  %2819 = vmatpush1.msra.mxu0 0.0
  %2820 = vmatprep.subr.mxu0 0.0
  %2821 = vmatpush1.msra.mxu0 0.0
  %2822 = vmatprep.subr.mxu0 0.0
  %2823 = vmatpush1.msra.mxu0 0.0
  %2824 = vmatprep.subr.mxu0 0.0
  %2825 = vmatpush1.msra.mxu0 0.0
  %2826 = vmatprep.mubr.f32.mxu0 0.0
  %2827 = vmatmul.mubr.f32.gmra.mrb[0].mxu0 %v2760
  %v2828 = vpop.f32.mrb[0].mxu0
  %v2829 = vadd.f32 %v419, %v2828
  %v2830 = vpop.f32.mrb[0].mxu0
  %2831 = vdwg.mxu0
  %vm2832 = vcmp.ge.f32.partialorder %v2829, 0.0
  %v2833 = vmul.f32 %v2829, 0.01
  %v2834 = vsel %vm2832, %v2829, %v2833
  %v2836 = vsel %vm69, %v2834, 0
  %2838 = vmatprep.subr.mxu0 0.0
  %2839 = vmatpush1.msra.mxu0 %v51
  %2840 = vmatprep.subr.mxu0 0.0
  %2841 = vmatpush1.msra.mxu0 %v52
  %2842 = vmatprep.subr.mxu0 0.0
  %2843 = vmatpush1.msra.mxu0 %v53
  %2844 = vmatprep.subr.mxu0 0.0
  %2845 = vmatpush1.msra.mxu0 %v54
  %2846 = vmatprep.subr.mxu0 0.0
  %2847 = vmatpush1.msra.mxu0 0.0
  %2848 = vmatprep.subr.mxu0 0.0
  %2849 = vmatpush1.msra.mxu0 0.0
  %2850 = vmatprep.subr.mxu0 0.0
  %2851 = vmatpush1.msra.mxu0 0.0
  %2852 = vmatprep.subr.mxu0 0.0
  %2853 = vmatpush1.msra.mxu0 0.0
  %2854 = vmatprep.subr.mxu0 0.0
  %2855 = vmatpush1.msra.mxu0 0.0
  %2856 = vmatprep.subr.mxu0 0.0
  %2857 = vmatpush1.msra.mxu0 0.0
  %2858 = vmatprep.subr.mxu0 0.0
  %2859 = vmatpush1.msra.mxu0 0.0
  %2860 = vmatprep.subr.mxu0 0.0
  %2861 = vmatpush1.msra.mxu0 0.0
  %2862 = vmatprep.subr.mxu0 0.0
  %2863 = vmatpush1.msra.mxu0 0.0
  %2864 = vmatprep.subr.mxu0 0.0
  %2865 = vmatpush1.msra.mxu0 0.0
  %2866 = vmatprep.subr.mxu0 0.0
  %2867 = vmatpush1.msra.mxu0 0.0
  %2868 = vmatprep.subr.mxu0 0.0
  %2869 = vmatpush1.msra.mxu0 0.0
  %2870 = vmatprep.subr.mxu0 0.0
  %2871 = vmatpush1.msra.mxu0 0.0
  %2872 = vmatprep.subr.mxu0 0.0
  %2873 = vmatpush1.msra.mxu0 0.0
  %2874 = vmatprep.subr.mxu0 0.0
  %2875 = vmatpush1.msra.mxu0 0.0
  %2876 = vmatprep.subr.mxu0 0.0
  %2877 = vmatpush1.msra.mxu0 0.0
  %2878 = vmatprep.subr.mxu0 0.0
  %2879 = vmatpush1.msra.mxu0 0.0
  %2880 = vmatprep.subr.mxu0 0.0
  %2881 = vmatpush1.msra.mxu0 0.0
  %2882 = vmatprep.subr.mxu0 0.0
  %2883 = vmatpush1.msra.mxu0 0.0
  %2884 = vmatprep.subr.mxu0 0.0
  %2885 = vmatpush1.msra.mxu0 0.0
  %2886 = vmatprep.subr.mxu0 0.0
  %2887 = vmatpush1.msra.mxu0 0.0
  %2888 = vmatprep.subr.mxu0 0.0
  %2889 = vmatpush1.msra.mxu0 0.0
  %2890 = vmatprep.subr.mxu0 0.0
  %2891 = vmatpush1.msra.mxu0 0.0
  %2892 = vmatprep.subr.mxu0 0.0
  %2893 = vmatpush1.msra.mxu0 0.0
  %2894 = vmatprep.subr.mxu0 0.0
  %2895 = vmatpush1.msra.mxu0 0.0
  %2896 = vmatprep.subr.mxu0 0.0
  %2897 = vmatpush1.msra.mxu0 0.0
  %2898 = vmatprep.subr.mxu0 0.0
  %2899 = vmatpush1.msra.mxu0 0.0
  %2900 = vmatprep.subr.mxu0 0.0
  %2901 = vmatpush1.msra.mxu0 0.0
  %2902 = vmatprep.mubr.f32.mxu0 0.0
  %2903 = vmatmul.mubr.f32.gmra.mrb[0].mxu0 %v2836
  %v2904 = vpop.f32.mrb[0].mxu0
  %v2905 = vadd.f32 %v504, %v2904
  %v2906 = vpop.f32.mrb[0].mxu0
  %2907 = vdwg.mxu0
  %2908 = vmatprep.subr.mxu0 0.0
  %2909 = vmatpush1.msra.mxu0 %v55
  %2910 = vmatprep.subr.mxu0 0.0
  %2911 = vmatpush1.msra.mxu0 %v56
  %2912 = vmatprep.subr.mxu0 0.0
  %2913 = vmatpush1.msra.mxu0 %v57
  %2914 = vmatprep.subr.mxu0 0.0
  %2915 = vmatpush1.msra.mxu0 %v58
  %2916 = vmatprep.subr.mxu0 0.0
  %2917 = vmatpush1.msra.mxu0 0.0
  %2918 = vmatprep.subr.mxu0 0.0
  %2919 = vmatpush1.msra.mxu0 0.0
  %2920 = vmatprep.subr.mxu0 0.0
  %2921 = vmatpush1.msra.mxu0 0.0
  %2922 = vmatprep.subr.mxu0 0.0
  %2923 = vmatpush1.msra.mxu0 0.0
  %2924 = vmatprep.subr.mxu0 0.0
  %2925 = vmatpush1.msra.mxu0 0.0
  %2926 = vmatprep.subr.mxu0 0.0
  %2927 = vmatpush1.msra.mxu0 0.0
  %2928 = vmatprep.subr.mxu0 0.0
  %2929 = vmatpush1.msra.mxu0 0.0
  %2930 = vmatprep.subr.mxu0 0.0
  %2931 = vmatpush1.msra.mxu0 0.0
  %2932 = vmatprep.subr.mxu0 0.0
  %2933 = vmatpush1.msra.mxu0 0.0
  %2934 = vmatprep.subr.mxu0 0.0
  %2935 = vmatpush1.msra.mxu0 0.0
  %2936 = vmatprep.subr.mxu0 0.0
  %2937 = vmatpush1.msra.mxu0 0.0
  %2938 = vmatprep.subr.mxu0 0.0
  %2939 = vmatpush1.msra.mxu0 0.0
  %2940 = vmatprep.subr.mxu0 0.0
  %2941 = vmatpush1.msra.mxu0 0.0
  %2942 = vmatprep.subr.mxu0 0.0
  %2943 = vmatpush1.msra.mxu0 0.0
  %2944 = vmatprep.subr.mxu0 0.0
  %2945 = vmatpush1.msra.mxu0 0.0
  %2946 = vmatprep.subr.mxu0 0.0
  %2947 = vmatpush1.msra.mxu0 0.0
  %2948 = vmatprep.subr.mxu0 0.0
  %2949 = vmatpush1.msra.mxu0 0.0
  %2950 = vmatprep.subr.mxu0 0.0
  %2951 = vmatpush1.msra.mxu0 0.0
  %2952 = vmatprep.subr.mxu0 0.0
  %2953 = vmatpush1.msra.mxu0 0.0
  %2954 = vmatprep.subr.mxu0 0.0
  %2955 = vmatpush1.msra.mxu0 0.0
  %2956 = vmatprep.subr.mxu0 0.0
  %2957 = vmatpush1.msra.mxu0 0.0
  %2958 = vmatprep.subr.mxu0 0.0
  %2959 = vmatpush1.msra.mxu0 0.0
  %2960 = vmatprep.subr.mxu0 0.0
  %2961 = vmatpush1.msra.mxu0 0.0
  %2962 = vmatprep.subr.mxu0 0.0
  %2963 = vmatpush1.msra.mxu0 0.0
  %2964 = vmatprep.subr.mxu0 0.0
  %2965 = vmatpush1.msra.mxu0 0.0
  %2966 = vmatprep.subr.mxu0 0.0
  %2967 = vmatpush1.msra.mxu0 0.0
  %2968 = vmatprep.subr.mxu0 0.0
  %2969 = vmatpush1.msra.mxu0 0.0
  %2970 = vmatprep.subr.mxu0 0.0
  %2971 = vmatpush1.msra.mxu0 0.0
  %2972 = vmatprep.mubr.f32.mxu0 0.0
  %2973 = vmatmul.mubr.f32.gmra.mrb[0].mxu0 %v2431
  %v2974 = vpop.f32.mrb[0].mxu0
  %v2975 = vadd.f32 %v583, %v2974
  %v2976 = vpop.f32.mrb[0].mxu0
  %2977 = vdwg.mxu0
  %v2978 = vadd.f32 %v2905, %v2975
  %v2979 = vxor.u32 %v2978, 2147483648
  %v2980 = vmul.f32 %v2979, 1.442695
  %v2981 = vpow.pop %v2980
  %v2982 = vadd.f32 %v2981, 1.0
  %v2983 = vrcp.pop %v2982
  %v2984 = vmul.f32 1.0, %v2983
  %2986 = vrot.lane.b32.xlu0 %v2975, 64
  %v2987 = vpop.permute.xlu0 %2986
  %v2989 = vmul.f32 %v2984, %v2987
  %2991 = vrot.lane.b32.xlu0 %v2989, 64
  %v2992 = vpop.permute.xlu0 %2991
  %v2994 = vadd.f32 %v2905, %v2992
  %v2995 = vtanh.pop %v2994
  %v2996 = vsub.f32 1.0, %v2984
  %2998 = vrot.lane.b32.xlu0 %v2995, 96
  %v2999 = vpop.permute.xlu0 %2998
  %v3001 = vmul.f32 %v2996, %v2999
  %v3002 = vmul.f32 %v2984, %v2422
  %v3003 = vadd.f32 %v3001, %v3002
  %3005 = vrot.lane.b32.xlu0 %v3003, 96
  %v3006 = vpop.permute.xlu0 %3005
  %s3008 = scalar_lea.vmem %s11, 8
  %3009 = vst.msk [vmem:[%s3008] sm:$0x3] %vm159, %v3006
  // Predicated region
  $region46: #{attention_forward.4} parent=0 // pred_check
    _
  $region47: #{attention_forward.4} parent=0 // pred_check_branch
    %3011 = sbr.rel (0) target = $region49
  $region48: #{attention_forward.4} parent=0 // pred_region
    _
  $region49: #{attention_forward.4} parent=0 // pred_fallthru
    _
  // Predicated region
  $region50: #{attention_forward.4} parent=0 // pred_check
    _
  $region51: #{attention_forward.4} parent=0 // pred_check_branch
    %3013 = sbr.rel (0) target = $region53
  $region52: #{attention_forward.4} parent=0 // pred_region
    _
  $region53: #{attention_forward.4} parent=0 // pred_fallthru
    _

// kernel: attention_forward.3
$region0: #{attention_forward.3}
  #allocation0 [shape = 'u32[]', space=smem, size = 0x4, offset = 0x4, fixed_abs, tag = 'smem constant byte address 0x4 - core index']
  #allocation1 [shape = 'u32[144,128]{1,0:T(1,128)}', space=vmem, size = 0x12000, scoped, tag = 'internal scratch']
  %s0 = inlined_call_operand.vmem [shape: f32[16,384], index: 0, kind: input, shape index: {}]
  %s1 = inlined_call_operand.vmem [shape: f32[384,16], index: 1, kind: input, shape index: {}]
  %s2 = inlined_call_operand.vmem [shape: f32[1,16], index: 2, kind: input, shape index: {}]
  %s3 = inlined_call_operand.vmem [shape: f32[16,256], index: 3, kind: input, shape index: {}]
  %s4 = inlined_call_operand.vmem [shape: f32[1,256], index: 4, kind: input, shape index: {}]
  %s5 = inlined_call_operand.vmem [shape: f32[32,128], index: 5, kind: input, shape index: {}]
  %s6 = inlined_call_operand.vmem [shape: f32[32,128], index: 6, kind: input, shape index: {}]
  %s7 = inlined_call_operand.vmem [shape: f32[32,32], index: 7, kind: input, shape index: {}]
  %s8 = inlined_call_operand.vmem [shape: f32[32,32], index: 8, kind: input, shape index: {}]
  %s9 = inlined_call_operand.vmem [shape: f32[1,32], index: 9, kind: input, shape index: {}]
  %s10 = inlined_call_operand.vmem [shape: f32[8,2,32], index: 10, kind: output, shape index: {}]
  %s11 = sld [smem:[#allocation0]]
  $region50: #{attention_forward.3} parent=0
    _
  %s13 = ssub.s32 1, %s11
  %s14 = scalar_select 0, %s13, %s11
  // Predicated region
  $region2: #{attention_forward.3} parent=0 // pred_check
    _
  $region3: #{attention_forward.3} parent=0 // pred_check_branch
    %16 = sbr.rel (0) target = $region5
  $region4: #{attention_forward.3} parent=0 // pred_region
    _
  $region5: #{attention_forward.3} parent=0 // pred_fallthru
    _
  // Predicated region
  $region6: #{attention_forward.3} parent=0 // pred_check
    _
  $region7: #{attention_forward.3} parent=0 // pred_check_branch
    %18 = sbr.rel (0) target = $region9
  $region8: #{attention_forward.3} parent=0 // pred_region
    _
  $region9: #{attention_forward.3} parent=0 // pred_fallthru
    _
  // Predicated region
  $region10: #{attention_forward.3} parent=0 // pred_check
    _
  $region11: #{attention_forward.3} parent=0 // pred_check_branch
    %20 = sbr.rel (0) target = $region13
  $region12: #{attention_forward.3} parent=0 // pred_region
    _
  $region13: #{attention_forward.3} parent=0 // pred_fallthru
    _
  // Predicated region
  $region14: #{attention_forward.3} parent=0 // pred_check
    _
  $region15: #{attention_forward.3} parent=0 // pred_check_branch
    %22 = sbr.rel (0) target = $region17
  $region16: #{attention_forward.3} parent=0 // pred_region
    _
  $region17: #{attention_forward.3} parent=0 // pred_fallthru
    _
  // Predicated region
  $region18: #{attention_forward.3} parent=0 // pred_check
    _
  $region19: #{attention_forward.3} parent=0 // pred_check_branch
    %24 = sbr.rel (0) target = $region21
  $region20: #{attention_forward.3} parent=0 // pred_region
    _
  $region21: #{attention_forward.3} parent=0 // pred_fallthru
    _
  // Predicated region
  $region22: #{attention_forward.3} parent=0 // pred_check
    _
  $region23: #{attention_forward.3} parent=0 // pred_check_branch
    %26 = sbr.rel (0) target = $region25
  $region24: #{attention_forward.3} parent=0 // pred_region
    _
  $region25: #{attention_forward.3} parent=0 // pred_fallthru
    _
  // Predicated region
  $region26: #{attention_forward.3} parent=0 // pred_check
    _
  $region27: #{attention_forward.3} parent=0 // pred_check_branch
    %28 = sbr.rel (0) target = $region29
  $region28: #{attention_forward.3} parent=0 // pred_region
    _
  $region29: #{attention_forward.3} parent=0 // pred_fallthru
    _
  // Predicated region
  $region30: #{attention_forward.3} parent=0 // pred_check
    _
  $region31: #{attention_forward.3} parent=0 // pred_check_branch
    %30 = sbr.rel (0) target = $region33
  $region32: #{attention_forward.3} parent=0 // pred_region
    _
  $region33: #{attention_forward.3} parent=0 // pred_fallthru
    _
  // Predicated region
  $region34: #{attention_forward.3} parent=0 // pred_check
    _
  $region35: #{attention_forward.3} parent=0 // pred_check_branch
    %32 = sbr.rel (0) target = $region37
  $region36: #{attention_forward.3} parent=0 // pred_region
    _
  $region37: #{attention_forward.3} parent=0 // pred_fallthru
    _
  // Predicated region
  $region38: #{attention_forward.3} parent=0 // pred_check
    _
  $region39: #{attention_forward.3} parent=0 // pred_check_branch
    %34 = sbr.rel (0) target = $region41
  $region40: #{attention_forward.3} parent=0 // pred_region
    _
  $region41: #{attention_forward.3} parent=0 // pred_fallthru
    _
  %v35 = vld [vmem:[%s0] sm:$0xff]
  %v36 = vld [vmem:[%s0 + $0x8] sm:$0xff]
  %v37 = vld [vmem:[%s0 + $0x10] sm:$0xff]
  %v38 = vld [vmem:[%s0 + $0x18] sm:$0xff]
  %v39 = vld [vmem:[%s0 + $0x20] sm:$0xff]
  %v40 = vld [vmem:[%s0 + $0x28] sm:$0xff]
  %v41 = vld [vmem:[%s1] sm:$0xff]
  %v42 = vld [vmem:[%s1 + $0x8] sm:$0xff]
  %v43 = vld [vmem:[%s1 + $0x10] sm:$0xff]
  %v44 = vld [vmem:[%s1 + $0x18] sm:$0xff]
  %v45 = vld [vmem:[%s1 + $0x20] sm:$0xff]
  %v46 = vld [vmem:[%s1 + $0x28] sm:$0xff]
  %v47 = vld [vmem:[%s1 + $0x30] sm:$0xff]
  %v48 = vld [vmem:[%s1 + $0x38] sm:$0xff]
  %v49 = vld [vmem:[%s1 + $0x40] sm:$0xff]
  %v50 = vld [vmem:[%s1 + $0x48] sm:$0xff]
  %v51 = vld [vmem:[%s1 + $0x50] sm:$0xff]
  %v52 = vld [vmem:[%s1 + $0x58] sm:$0xff]
  %v53 = vld [vmem:[%s1 + $0x60] sm:$0xff]
  %v54 = vld [vmem:[%s1 + $0x68] sm:$0xff]
  %v55 = vld [vmem:[%s1 + $0x70] sm:$0xff]
  %v56 = vld [vmem:[%s1 + $0x78] sm:$0xff]
  %v57 = vld [vmem:[%s1 + $0x80] sm:$0xff]
  %v58 = vld [vmem:[%s1 + $0x88] sm:$0xff]
  %v59 = vld [vmem:[%s1 + $0x90] sm:$0xff]
  %v60 = vld [vmem:[%s1 + $0x98] sm:$0xff]
  %v61 = vld [vmem:[%s1 + $0xa0] sm:$0xff]
  %v62 = vld [vmem:[%s1 + $0xa8] sm:$0xff]
  %v63 = vld [vmem:[%s1 + $0xb0] sm:$0xff]
  %v64 = vld [vmem:[%s1 + $0xb8] sm:$0xff]
  %v65 = vld [vmem:[%s1 + $0xc0] sm:$0xff]
  %v66 = vld [vmem:[%s1 + $0xc8] sm:$0xff]
  %v67 = vld [vmem:[%s1 + $0xd0] sm:$0xff]
  %v68 = vld [vmem:[%s1 + $0xd8] sm:$0xff]
  %v69 = vld [vmem:[%s1 + $0xe0] sm:$0xff]
  %v70 = vld [vmem:[%s1 + $0xe8] sm:$0xff]
  %v71 = vld [vmem:[%s1 + $0xf0] sm:$0xff]
  %v72 = vld [vmem:[%s1 + $0xf8] sm:$0xff]
  %v73 = vld [vmem:[%s1 + $0x100] sm:$0xff]
  %v74 = vld [vmem:[%s1 + $0x108] sm:$0xff]
  %v75 = vld [vmem:[%s1 + $0x110] sm:$0xff]
  %v76 = vld [vmem:[%s1 + $0x118] sm:$0xff]
  %v77 = vld [vmem:[%s1 + $0x120] sm:$0xff]
  %v78 = vld [vmem:[%s1 + $0x128] sm:$0xff]
  %v79 = vld [vmem:[%s1 + $0x130] sm:$0xff]
  %v80 = vld [vmem:[%s1 + $0x138] sm:$0xff]
  %v81 = vld [vmem:[%s1 + $0x140] sm:$0xff]
  %v82 = vld [vmem:[%s1 + $0x148] sm:$0xff]
  %v83 = vld [vmem:[%s1 + $0x150] sm:$0xff]
  %v84 = vld [vmem:[%s1 + $0x158] sm:$0xff]
  %v85 = vld [vmem:[%s1 + $0x160] sm:$0xff]
  %v86 = vld [vmem:[%s1 + $0x168] sm:$0xff]
  %v87 = vld [vmem:[%s1 + $0x170] sm:$0xff]
  %v88 = vld [vmem:[%s1 + $0x178] sm:$0xff]
  %v89 = vld [vmem:[%s2] sm:$0x1]
  %v91 = vlaneseq
  %v92 = vshrl.u32 %v91, 7
  %v93 = vsub.s32 0, %v92
  %v94 = vrot.slane %v89, %v93
  %96 = vmatprep.subr.mxu0 0.0
  %97 = vmatpush1.msra.mxu0 %v41
  %98 = vmatprep.subr.mxu0 0.0
  %99 = vmatpush1.msra.mxu0 %v42
  %100 = vmatprep.subr.mxu0 0.0
  %101 = vmatpush1.msra.mxu0 %v43
  %102 = vmatprep.subr.mxu0 0.0
  %103 = vmatpush1.msra.mxu0 %v44
  %104 = vmatprep.subr.mxu0 0.0
  %105 = vmatpush1.msra.mxu0 %v45
  %106 = vmatprep.subr.mxu0 0.0
  %107 = vmatpush1.msra.mxu0 %v46
  %108 = vmatprep.subr.mxu0 0.0
  %109 = vmatpush1.msra.mxu0 %v47
  %110 = vmatprep.subr.mxu0 0.0
  %111 = vmatpush1.msra.mxu0 %v48
  %112 = vmatprep.subr.mxu0 0.0
  %113 = vmatpush1.msra.mxu0 %v49
  %114 = vmatprep.subr.mxu0 0.0
  %115 = vmatpush1.msra.mxu0 %v50
  %116 = vmatprep.subr.mxu0 0.0
  %117 = vmatpush1.msra.mxu0 %v51
  %118 = vmatprep.subr.mxu0 0.0
  %119 = vmatpush1.msra.mxu0 %v52
  %120 = vmatprep.subr.mxu0 0.0
  %121 = vmatpush1.msra.mxu0 %v53
  %122 = vmatprep.subr.mxu0 0.0
  %123 = vmatpush1.msra.mxu0 %v54
  %124 = vmatprep.subr.mxu0 0.0
  %125 = vmatpush1.msra.mxu0 %v55
  %126 = vmatprep.subr.mxu0 0.0
  %127 = vmatpush1.msra.mxu0 %v56
  %128 = vmatprep.subr.mxu0 0.0
  %129 = vmatpush1.msra.mxu0 %v57
  %130 = vmatprep.subr.mxu0 0.0
  %131 = vmatpush1.msra.mxu0 %v58
  %132 = vmatprep.subr.mxu0 0.0
  %133 = vmatpush1.msra.mxu0 %v59
  %134 = vmatprep.subr.mxu0 0.0
  %135 = vmatpush1.msra.mxu0 %v60
  %136 = vmatprep.subr.mxu0 0.0
  %137 = vmatpush1.msra.mxu0 %v61
  %138 = vmatprep.subr.mxu0 0.0
  %139 = vmatpush1.msra.mxu0 %v62
  %140 = vmatprep.subr.mxu0 0.0
  %141 = vmatpush1.msra.mxu0 %v63
  %142 = vmatprep.subr.mxu0 0.0
  %143 = vmatpush1.msra.mxu0 %v64
  %144 = vmatprep.subr.mxu0 0.0
  %145 = vmatpush1.msra.mxu0 %v65
  %146 = vmatprep.subr.mxu0 0.0
  %147 = vmatpush1.msra.mxu0 %v66
  %148 = vmatprep.subr.mxu0 0.0
  %149 = vmatpush1.msra.mxu0 %v67
  %150 = vmatprep.subr.mxu0 0.0
  %151 = vmatpush1.msra.mxu0 %v68
  %152 = vmatprep.subr.mxu0 0.0
  %153 = vmatpush1.msra.mxu0 %v69
  %154 = vmatprep.subr.mxu0 0.0
  %155 = vmatpush1.msra.mxu0 %v70
  %156 = vmatprep.subr.mxu0 0.0
  %157 = vmatpush1.msra.mxu0 %v71
  %158 = vmatprep.subr.mxu0 0.0
  %159 = vmatpush1.msra.mxu0 %v72
  %160 = vmatprep.mubr.f32.mxu0 %v36
  %161 = vmatmul.mubr.f32.gmra.mrb[0].mxu0 %v35
  %v162 = vpop.f32.mrb[0].mxu0
  %v163 = vadd.f32 %v94, %v162
  %v164 = vpop.f32.mrb[0].mxu0
  %165 = vmatprep.mubr.f32.mxu0 %v39
  %166 = vmatmul.mubr.f32.gmra.mrb[0].mxu0 %v38
  %v167 = vpop.f32.mrb[0].mxu0
  %v168 = vadd.f32 %v94, %v167
  %v169 = vpop.f32.mrb[0].mxu0
  %170 = vdwg.mxu0
  %171 = vmatprep.subr.mxu0 0.0
  %172 = vmatpush1.msra.mxu0 %v73
  %173 = vmatprep.subr.mxu0 0.0
  %174 = vmatpush1.msra.mxu0 %v74
  %175 = vmatprep.subr.mxu0 0.0
  %176 = vmatpush1.msra.mxu0 %v75
  %177 = vmatprep.subr.mxu0 0.0
  %178 = vmatpush1.msra.mxu0 %v76
  %179 = vmatprep.subr.mxu0 0.0
  %180 = vmatpush1.msra.mxu0 %v77
  %181 = vmatprep.subr.mxu0 0.0
  %182 = vmatpush1.msra.mxu0 %v78
  %183 = vmatprep.subr.mxu0 0.0
  %184 = vmatpush1.msra.mxu0 %v79
  %185 = vmatprep.subr.mxu0 0.0
  %186 = vmatpush1.msra.mxu0 %v80
  %187 = vmatprep.subr.mxu0 0.0
  %188 = vmatpush1.msra.mxu0 %v81
  %189 = vmatprep.subr.mxu0 0.0
  %190 = vmatpush1.msra.mxu0 %v82
  %191 = vmatprep.subr.mxu0 0.0
  %192 = vmatpush1.msra.mxu0 %v83
  %193 = vmatprep.subr.mxu0 0.0
  %194 = vmatpush1.msra.mxu0 %v84
  %195 = vmatprep.subr.mxu0 0.0
  %196 = vmatpush1.msra.mxu0 %v85
  %197 = vmatprep.subr.mxu0 0.0
  %198 = vmatpush1.msra.mxu0 %v86
  %199 = vmatprep.subr.mxu0 0.0
  %200 = vmatpush1.msra.mxu0 %v87
  %201 = vmatprep.subr.mxu0 0.0
  %202 = vmatpush1.msra.mxu0 %v88
  %203 = vmatprep.subr.mxu0 0.0
  %204 = vmatpush1.msra.mxu0 0.0
  %205 = vmatprep.subr.mxu0 0.0
  %206 = vmatpush1.msra.mxu0 0.0
  %207 = vmatprep.subr.mxu0 0.0
  %208 = vmatpush1.msra.mxu0 0.0
  %209 = vmatprep.subr.mxu0 0.0
  %210 = vmatpush1.msra.mxu0 0.0
  %211 = vmatprep.subr.mxu0 0.0
  %212 = vmatpush1.msra.mxu0 0.0
  %213 = vmatprep.subr.mxu0 0.0
  %214 = vmatpush1.msra.mxu0 0.0
  %215 = vmatprep.subr.mxu0 0.0
  %216 = vmatpush1.msra.mxu0 0.0
  %217 = vmatprep.subr.mxu0 0.0
  %218 = vmatpush1.msra.mxu0 0.0
  %219 = vmatprep.subr.mxu0 0.0
  %220 = vmatpush1.msra.mxu0 0.0
  %221 = vmatprep.subr.mxu0 0.0
  %222 = vmatpush1.msra.mxu0 0.0
  %223 = vmatprep.subr.mxu0 0.0
  %224 = vmatpush1.msra.mxu0 0.0
  %225 = vmatprep.subr.mxu0 0.0
  %226 = vmatpush1.msra.mxu0 0.0
  %227 = vmatprep.subr.mxu0 0.0
  %228 = vmatpush1.msra.mxu0 0.0
  %229 = vmatprep.subr.mxu0 0.0
  %230 = vmatpush1.msra.mxu0 0.0
  %231 = vmatprep.subr.mxu0 0.0
  %232 = vmatpush1.msra.mxu0 0.0
  %233 = vmatprep.subr.mxu0 0.0
  %234 = vmatpush1.msra.mxu0 0.0
  %235 = vmatprep.mubr.f32.mxu0 0.0
  %236 = vmatmul.mubr.f32.gmra.mrb[0].mxu0 %v37
  %v237 = vpop.f32.mrb[0].mxu0
  %v238 = vadd.f32 %v163, %v237
  %v239 = vpop.f32.mrb[0].mxu0
  %240 = vmatprep.mubr.f32.mxu0 0.0
  %241 = vmatmul.mubr.f32.gmra.mrb[0].mxu0 %v40
  %v242 = vpop.f32.mrb[0].mxu0
  %v243 = vadd.f32 %v168, %v242
  %v244 = vpop.f32.mrb[0].mxu0
  %245 = vdwg.mxu0
  %vm246 = vcmp.ge.f32.partialorder %v238, 0.0
  %vm247 = vcmp.ge.f32.partialorder %v243, 0.0
  %v248 = vmul.f32 %v238, 0.01
  %v249 = vmul.f32 %v243, 0.01
  %v250 = vsel %vm246, %v238, %v248
  %v251 = vsel %vm247, %v243, %v249
  %v252 = vld [vmem:[%s3] sm:$0xff]
  %v253 = vld [vmem:[%s3 + $0x8] sm:$0xff]
  %v254 = vld [vmem:[%s3 + $0x10] sm:$0xff]
  %v255 = vld [vmem:[%s3 + $0x18] sm:$0xff]
  %v256 = vld [vmem:[%s4] sm:$0x3]
  %v258 = vlaneseq
  %v259 = vshrl.u32 %v258, 7
  %v260 = vsub.s32 0, %v259
  %v261 = vrot.slane %v256, %v260
  %v262 = vlaneseq
  %v263 = vshrl.u32 %v262, 7
  %v264 = vsub.s32 1, %v263
  %v265 = vrot.slane %v256, %v264
  %vm268 = vcmask 130048
  %v270 = vsel %vm268, %v250, 0
  %v273 = vsel %vm268, %v251, 0
  %275 = vmatprep.subr.mxu0 %v253
  %276 = vmatpush1.msra.mxu0 %v252
  %277 = vmatprep.subr.mxu0 %v255
  %278 = vmatpush1.msra.mxu0 %v254
  %279 = vmatprep.subr.mxu0 0.0
  %280 = vmatpush1.msra.mxu0 0.0
  %281 = vmatprep.subr.mxu0 0.0
  %282 = vmatpush1.msra.mxu0 0.0
  %283 = vmatprep.subr.mxu0 0.0
  %284 = vmatpush1.msra.mxu0 0.0
  %285 = vmatprep.subr.mxu0 0.0
  %286 = vmatpush1.msra.mxu0 0.0
  %287 = vmatprep.subr.mxu0 0.0
  %288 = vmatpush1.msra.mxu0 0.0
  %289 = vmatprep.subr.mxu0 0.0
  %290 = vmatpush1.msra.mxu0 0.0
  %291 = vmatprep.subr.mxu0 0.0
  %292 = vmatpush1.msra.mxu0 0.0
  %293 = vmatprep.subr.mxu0 0.0
  %294 = vmatpush1.msra.mxu0 0.0
  %295 = vmatprep.subr.mxu0 0.0
  %296 = vmatpush1.msra.mxu0 0.0
  %297 = vmatprep.subr.mxu0 0.0
  %298 = vmatpush1.msra.mxu0 0.0
  %299 = vmatprep.subr.mxu0 0.0
  %300 = vmatpush1.msra.mxu0 0.0
  %301 = vmatprep.subr.mxu0 0.0
  %302 = vmatpush1.msra.mxu0 0.0
  %303 = vmatprep.subr.mxu0 0.0
  %304 = vmatpush1.msra.mxu0 0.0
  %305 = vmatprep.subr.mxu0 0.0
  %306 = vmatpush1.msra.mxu0 0.0
  %307 = vmatprep.subr.mxu0 0.0
  %308 = vmatpush1.msra.mxu0 0.0
  %309 = vmatprep.subr.mxu0 0.0
  %310 = vmatpush1.msra.mxu0 0.0
  %311 = vmatprep.subr.mxu0 0.0
  %312 = vmatpush1.msra.mxu0 0.0
  %313 = vmatprep.subr.mxu0 0.0
  %314 = vmatpush1.msra.mxu0 0.0
  %315 = vmatprep.subr.mxu0 0.0
  %316 = vmatpush1.msra.mxu0 0.0
  %317 = vmatprep.subr.mxu0 0.0
  %318 = vmatpush1.msra.mxu0 0.0
  %319 = vmatprep.subr.mxu0 0.0
  %320 = vmatpush1.msra.mxu0 0.0
  %321 = vmatprep.subr.mxu0 0.0
  %322 = vmatpush1.msra.mxu0 0.0
  %323 = vmatprep.subr.mxu0 0.0
  %324 = vmatpush1.msra.mxu0 0.0
  %325 = vmatprep.subr.mxu0 0.0
  %326 = vmatpush1.msra.mxu0 0.0
  %327 = vmatprep.subr.mxu0 0.0
  %328 = vmatpush1.msra.mxu0 0.0
  %329 = vmatprep.subr.mxu0 0.0
  %330 = vmatpush1.msra.mxu0 0.0
  %331 = vmatprep.subr.mxu0 0.0
  %332 = vmatpush1.msra.mxu0 0.0
  %333 = vmatprep.subr.mxu0 0.0
  %334 = vmatpush1.msra.mxu0 0.0
  %335 = vmatprep.subr.mxu0 0.0
  %336 = vmatpush1.msra.mxu0 0.0
  %337 = vmatprep.subr.mxu0 0.0
  %338 = vmatpush1.msra.mxu0 0.0
  %339 = vmatprep.mubr.f32.mxu0 0.0
  %340 = vmatmul.mubr.f32.gmra.mrb[0].mxu0 %v270
  %v341 = vpop.f32.mrb[0].mxu0
  %v342 = vadd.f32 %v261, %v341
  %v343 = vpop.f32.mrb[0].mxu0
  %v344 = vadd.f32 %v265, %v343
  %345 = vmatprep.mubr.f32.mxu0 0.0
  %346 = vmatmul.mubr.f32.gmra.mrb[0].mxu0 %v273
  %v347 = vpop.f32.mrb[0].mxu0
  %v348 = vadd.f32 %v261, %v347
  %v349 = vpop.f32.mrb[0].mxu0
  %v350 = vadd.f32 %v265, %v349
  %351 = vdwg.mxu0
  %v352 = vld [vmem:[%s5] sm:$0xff]
  %v353 = vld [vmem:[%s5 + $0x8] sm:$0xff]
  %v354 = vld [vmem:[%s5 + $0x10] sm:$0xff]
  %v355 = vld [vmem:[%s5 + $0x18] sm:$0xff]
  %v356 = vld [vmem:[%s6] sm:$0xff]
  %v357 = vld [vmem:[%s6 + $0x8] sm:$0xff]
  %v358 = vld [vmem:[%s6 + $0x10] sm:$0xff]
  %v359 = vld [vmem:[%s6 + $0x18] sm:$0xff]
  %v360 = vld [vmem:[%s7] sm:$0xff]
  %v361 = vld [vmem:[%s7 + $0x8] sm:$0xff]
  %v362 = vld [vmem:[%s7 + $0x10] sm:$0xff]
  %v363 = vld [vmem:[%s7 + $0x18] sm:$0xff]
  %v364 = vld [vmem:[%s8] sm:$0xff]
  %v365 = vld [vmem:[%s8 + $0x8] sm:$0xff]
  %v366 = vld [vmem:[%s8 + $0x10] sm:$0xff]
  %v367 = vld [vmem:[%s8 + $0x18] sm:$0xff]
  %v368 = vld [vmem:[%s9] sm:$0x1]
  %vm369 = vcmask 261120
  %v371 = vsel %vm369, 0.0, 0
  %373 = vmatprep.subr.mxu0 0.0
  %374 = vmatpush1.msra.mxu0 %v352
  %375 = vmatprep.subr.mxu0 0.0
  %376 = vmatpush1.msra.mxu0 %v353
  %377 = vmatprep.subr.mxu0 0.0
  %378 = vmatpush1.msra.mxu0 %v354
  %379 = vmatprep.subr.mxu0 0.0
  %380 = vmatpush1.msra.mxu0 %v355
  %381 = vmatprep.subr.mxu0 0.0
  %382 = vmatpush1.msra.mxu0 0.0
  %383 = vmatprep.subr.mxu0 0.0
  %384 = vmatpush1.msra.mxu0 0.0
  %385 = vmatprep.subr.mxu0 0.0
  %386 = vmatpush1.msra.mxu0 0.0
  %387 = vmatprep.subr.mxu0 0.0
  %388 = vmatpush1.msra.mxu0 0.0
  %389 = vmatprep.subr.mxu0 0.0
  %390 = vmatpush1.msra.mxu0 0.0
  %391 = vmatprep.subr.mxu0 0.0
  %392 = vmatpush1.msra.mxu0 0.0
  %393 = vmatprep.subr.mxu0 0.0
  %394 = vmatpush1.msra.mxu0 0.0
  %395 = vmatprep.subr.mxu0 0.0
  %396 = vmatpush1.msra.mxu0 0.0
  %397 = vmatprep.subr.mxu0 0.0
  %398 = vmatpush1.msra.mxu0 0.0
  %399 = vmatprep.subr.mxu0 0.0
  %400 = vmatpush1.msra.mxu0 0.0
  %401 = vmatprep.subr.mxu0 0.0
  %402 = vmatpush1.msra.mxu0 0.0
  %403 = vmatprep.subr.mxu0 0.0
  %404 = vmatpush1.msra.mxu0 0.0
  %405 = vmatprep.subr.mxu0 0.0
  %406 = vmatpush1.msra.mxu0 0.0
  %407 = vmatprep.subr.mxu0 0.0
  %408 = vmatpush1.msra.mxu0 0.0
  %409 = vmatprep.subr.mxu0 0.0
  %410 = vmatpush1.msra.mxu0 0.0
  %411 = vmatprep.subr.mxu0 0.0
  %412 = vmatpush1.msra.mxu0 0.0
  %413 = vmatprep.subr.mxu0 0.0
  %414 = vmatpush1.msra.mxu0 0.0
  %415 = vmatprep.subr.mxu0 0.0
  %416 = vmatpush1.msra.mxu0 0.0
  %417 = vmatprep.subr.mxu0 0.0
  %418 = vmatpush1.msra.mxu0 0.0
  %419 = vmatprep.subr.mxu0 0.0
  %420 = vmatpush1.msra.mxu0 0.0
  %421 = vmatprep.subr.mxu0 0.0
  %422 = vmatpush1.msra.mxu0 0.0
  %423 = vmatprep.subr.mxu0 0.0
  %424 = vmatpush1.msra.mxu0 0.0
  %425 = vmatprep.subr.mxu0 0.0
  %426 = vmatpush1.msra.mxu0 0.0
  %427 = vmatprep.subr.mxu0 0.0
  %428 = vmatpush1.msra.mxu0 0.0
  %429 = vmatprep.subr.mxu0 0.0
  %430 = vmatpush1.msra.mxu0 0.0
  %431 = vmatprep.subr.mxu0 0.0
  %432 = vmatpush1.msra.mxu0 0.0
  %433 = vmatprep.subr.mxu0 0.0
  %434 = vmatpush1.msra.mxu0 0.0
  %435 = vmatprep.subr.mxu0 0.0
  %436 = vmatpush1.msra.mxu0 0.0
  %437 = vmatprep.mubr.f32.mxu0 0.0
  %438 = vmatmul.mubr.f32.gmra.mrb[0].mxu0 %v371
  %v439 = vpop.f32.mrb[0].mxu0
  %v440 = vadd.f32 0.0, %v439
  %v441 = vpop.f32.mrb[0].mxu0
  %442 = vdwg.mxu0
  %v443 = vadd.f32 %v342, %v440
  %v444 = vxor.u32 %v443, 2147483648
  %v445 = vmul.f32 %v444, 1.442695
  %v446 = vpow.pop %v445
  %v447 = vadd.f32 %v446, 1.0
  %v448 = vrcp.pop %v447
  %v449 = vmul.f32 1.0, %v448
  %v450 = vtanh.pop %v443
  %v451 = vmul.f32 %v449, 0.0
  %453 = vrot.lane.b32.xlu0 %v450, 64
  %v454 = vpop.permute.xlu0 %453
  %v456 = vmul.f32 %v449, %v454
  %458 = vrot.lane.b32.xlu0 %v456, 32
  %v459 = vpop.permute.xlu0 %458
  %v461 = vadd.f32 %v451, %v459
  %v462 = vtanh.pop %v461
  %464 = vrot.lane.b32.xlu0 %v462, 64
  %v465 = vpop.permute.xlu0 %464
  %v467 = vmul.f32 %v449, %v465
  %469 = vrot.lane.b32.xlu0 %v467, 32
  %v470 = vpop.permute.xlu0 %469
  %v471 = vsel %vm369, %v470, 0
  %473 = vmatprep.subr.mxu0 0.0
  %474 = vmatpush1.msra.mxu0 %v352
  %475 = vmatprep.subr.mxu0 0.0
  %476 = vmatpush1.msra.mxu0 %v353
  %477 = vmatprep.subr.mxu0 0.0
  %478 = vmatpush1.msra.mxu0 %v354
  %479 = vmatprep.subr.mxu0 0.0
  %480 = vmatpush1.msra.mxu0 %v355
  %481 = vmatprep.subr.mxu0 0.0
  %482 = vmatpush1.msra.mxu0 0.0
  %483 = vmatprep.subr.mxu0 0.0
  %484 = vmatpush1.msra.mxu0 0.0
  %485 = vmatprep.subr.mxu0 0.0
  %486 = vmatpush1.msra.mxu0 0.0
  %487 = vmatprep.subr.mxu0 0.0
  %488 = vmatpush1.msra.mxu0 0.0
  %489 = vmatprep.subr.mxu0 0.0
  %490 = vmatpush1.msra.mxu0 0.0
  %491 = vmatprep.subr.mxu0 0.0
  %492 = vmatpush1.msra.mxu0 0.0
  %493 = vmatprep.subr.mxu0 0.0
  %494 = vmatpush1.msra.mxu0 0.0
  %495 = vmatprep.subr.mxu0 0.0
  %496 = vmatpush1.msra.mxu0 0.0
  %497 = vmatprep.subr.mxu0 0.0
  %498 = vmatpush1.msra.mxu0 0.0
  %499 = vmatprep.subr.mxu0 0.0
  %500 = vmatpush1.msra.mxu0 0.0
  %501 = vmatprep.subr.mxu0 0.0
  %502 = vmatpush1.msra.mxu0 0.0
  %503 = vmatprep.subr.mxu0 0.0
  %504 = vmatpush1.msra.mxu0 0.0
  %505 = vmatprep.subr.mxu0 0.0
  %506 = vmatpush1.msra.mxu0 0.0
  %507 = vmatprep.subr.mxu0 0.0
  %508 = vmatpush1.msra.mxu0 0.0
  %509 = vmatprep.subr.mxu0 0.0
  %510 = vmatpush1.msra.mxu0 0.0
  %511 = vmatprep.subr.mxu0 0.0
  %512 = vmatpush1.msra.mxu0 0.0
  %513 = vmatprep.subr.mxu0 0.0
  %514 = vmatpush1.msra.mxu0 0.0
  %515 = vmatprep.subr.mxu0 0.0
  %516 = vmatpush1.msra.mxu0 0.0
  %517 = vmatprep.subr.mxu0 0.0
  %518 = vmatpush1.msra.mxu0 0.0
  %519 = vmatprep.subr.mxu0 0.0
  %520 = vmatpush1.msra.mxu0 0.0
  %521 = vmatprep.subr.mxu0 0.0
  %522 = vmatpush1.msra.mxu0 0.0
  %523 = vmatprep.subr.mxu0 0.0
  %524 = vmatpush1.msra.mxu0 0.0
  %525 = vmatprep.subr.mxu0 0.0
  %526 = vmatpush1.msra.mxu0 0.0
  %527 = vmatprep.subr.mxu0 0.0
  %528 = vmatpush1.msra.mxu0 0.0
  %529 = vmatprep.subr.mxu0 0.0
  %530 = vmatpush1.msra.mxu0 0.0
  %531 = vmatprep.subr.mxu0 0.0
  %532 = vmatpush1.msra.mxu0 0.0
  %533 = vmatprep.subr.mxu0 0.0
  %534 = vmatpush1.msra.mxu0 0.0
  %535 = vmatprep.subr.mxu0 0.0
  %536 = vmatpush1.msra.mxu0 0.0
  %537 = vmatprep.mubr.f32.mxu0 0.0
  %538 = vmatmul.mubr.f32.gmra.mrb[0].mxu0 %v471
  %v539 = vpop.f32.mrb[0].mxu0
  %v540 = vadd.f32 0.0, %v539
  %v541 = vpop.f32.mrb[0].mxu0
  %542 = vdwg.mxu0
  %v544 = vrot.slane %v540, 6
  %v546 = vadd.f32 %v342, %v544
  %v547 = vxor.u32 %v546, 2147483648
  %v548 = vmul.f32 %v547, 1.442695
  %v549 = vpow.pop %v548
  %v550 = vadd.f32 %v549, 1.0
  %v551 = vrcp.pop %v550
  %v552 = vmul.f32 1.0, %v551
  %v553 = vtanh.pop %v546
  %v555 = vrot.slane %v461, 6
  %v557 = vmul.f32 %v552, %v555
  %559 = vrot.lane.b32.xlu0 %v553, 64
  %v560 = vpop.permute.xlu0 %559
  %v562 = vmul.f32 %v552, %v560
  %564 = vrot.lane.b32.xlu0 %v562, 32
  %v565 = vpop.permute.xlu0 %564
  %v567 = vadd.f32 %v557, %v565
  %v568 = vtanh.pop %v567
  %570 = vrot.lane.b32.xlu0 %v568, 64
  %v571 = vpop.permute.xlu0 %570
  %v573 = vmul.f32 %v552, %v571
  %v575 = vrot.slane %v573, 2
  %576 = vrot.lane.b32.xlu0 %v575, 32
  %v577 = vpop.permute.xlu0 %576
  %v578 = vsel %vm369, %v577, 0
  %580 = vmatprep.subr.mxu0 0.0
  %581 = vmatpush1.msra.mxu0 %v352
  %582 = vmatprep.subr.mxu0 0.0
  %583 = vmatpush1.msra.mxu0 %v353
  %584 = vmatprep.subr.mxu0 0.0
  %585 = vmatpush1.msra.mxu0 %v354
  %586 = vmatprep.subr.mxu0 0.0
  %587 = vmatpush1.msra.mxu0 %v355
  %588 = vmatprep.subr.mxu0 0.0
  %589 = vmatpush1.msra.mxu0 0.0
  %590 = vmatprep.subr.mxu0 0.0
  %591 = vmatpush1.msra.mxu0 0.0
  %592 = vmatprep.subr.mxu0 0.0
  %593 = vmatpush1.msra.mxu0 0.0
  %594 = vmatprep.subr.mxu0 0.0
  %595 = vmatpush1.msra.mxu0 0.0
  %596 = vmatprep.subr.mxu0 0.0
  %597 = vmatpush1.msra.mxu0 0.0
  %598 = vmatprep.subr.mxu0 0.0
  %599 = vmatpush1.msra.mxu0 0.0
  %600 = vmatprep.subr.mxu0 0.0
  %601 = vmatpush1.msra.mxu0 0.0
  %602 = vmatprep.subr.mxu0 0.0
  %603 = vmatpush1.msra.mxu0 0.0
  %604 = vmatprep.subr.mxu0 0.0
  %605 = vmatpush1.msra.mxu0 0.0
  %606 = vmatprep.subr.mxu0 0.0
  %607 = vmatpush1.msra.mxu0 0.0
  %608 = vmatprep.subr.mxu0 0.0
  %609 = vmatpush1.msra.mxu0 0.0
  %610 = vmatprep.subr.mxu0 0.0
  %611 = vmatpush1.msra.mxu0 0.0
  %612 = vmatprep.subr.mxu0 0.0
  %613 = vmatpush1.msra.mxu0 0.0
  %614 = vmatprep.subr.mxu0 0.0
  %615 = vmatpush1.msra.mxu0 0.0
  %616 = vmatprep.subr.mxu0 0.0
  %617 = vmatpush1.msra.mxu0 0.0
  %618 = vmatprep.subr.mxu0 0.0
  %619 = vmatpush1.msra.mxu0 0.0
  %620 = vmatprep.subr.mxu0 0.0
  %621 = vmatpush1.msra.mxu0 0.0
  %622 = vmatprep.subr.mxu0 0.0
  %623 = vmatpush1.msra.mxu0 0.0
  %624 = vmatprep.subr.mxu0 0.0
  %625 = vmatpush1.msra.mxu0 0.0
  %626 = vmatprep.subr.mxu0 0.0
  %627 = vmatpush1.msra.mxu0 0.0
  %628 = vmatprep.subr.mxu0 0.0
  %629 = vmatpush1.msra.mxu0 0.0
  %630 = vmatprep.subr.mxu0 0.0
  %631 = vmatpush1.msra.mxu0 0.0
  %632 = vmatprep.subr.mxu0 0.0
  %633 = vmatpush1.msra.mxu0 0.0
  %634 = vmatprep.subr.mxu0 0.0
  %635 = vmatpush1.msra.mxu0 0.0
  %636 = vmatprep.subr.mxu0 0.0
  %637 = vmatpush1.msra.mxu0 0.0
  %638 = vmatprep.subr.mxu0 0.0
  %639 = vmatpush1.msra.mxu0 0.0
  %640 = vmatprep.subr.mxu0 0.0
  %641 = vmatpush1.msra.mxu0 0.0
  %642 = vmatprep.subr.mxu0 0.0
  %643 = vmatpush1.msra.mxu0 0.0
  %644 = vmatprep.mubr.f32.mxu0 0.0
  %645 = vmatmul.mubr.f32.gmra.mrb[0].mxu0 %v578
  %v646 = vpop.f32.mrb[0].mxu0
  %v647 = vadd.f32 0.0, %v646
  %v648 = vpop.f32.mrb[0].mxu0
  %649 = vdwg.mxu0
  %v651 = vrot.slane %v647, 4
  %v653 = vadd.f32 %v342, %v651
  %v654 = vxor.u32 %v653, 2147483648
  %v655 = vmul.f32 %v654, 1.442695
  %v656 = vpow.pop %v655
  %v657 = vadd.f32 %v656, 1.0
  %v658 = vrcp.pop %v657
  %v659 = vmul.f32 1.0, %v658
  %v660 = vtanh.pop %v653
  %v662 = vrot.slane %v567, 6
  %v664 = vmul.f32 %v659, %v662
  %666 = vrot.lane.b32.xlu0 %v660, 64
  %v667 = vpop.permute.xlu0 %666
  %v669 = vmul.f32 %v659, %v667
  %671 = vrot.lane.b32.xlu0 %v669, 32
  %v672 = vpop.permute.xlu0 %671
  %v674 = vadd.f32 %v664, %v672
  %v675 = vtanh.pop %v674
  %677 = vrot.lane.b32.xlu0 %v675, 64
  %v678 = vpop.permute.xlu0 %677
  %v680 = vmul.f32 %v659, %v678
  %v682 = vrot.slane %v680, 4
  %683 = vrot.lane.b32.xlu0 %v682, 32
  %v684 = vpop.permute.xlu0 %683
  %v685 = vsel %vm369, %v684, 0
  %687 = vmatprep.subr.mxu0 0.0
  %688 = vmatpush1.msra.mxu0 %v352
  %689 = vmatprep.subr.mxu0 0.0
  %690 = vmatpush1.msra.mxu0 %v353
  %691 = vmatprep.subr.mxu0 0.0
  %692 = vmatpush1.msra.mxu0 %v354
  %693 = vmatprep.subr.mxu0 0.0
  %694 = vmatpush1.msra.mxu0 %v355
  %695 = vmatprep.subr.mxu0 0.0
  %696 = vmatpush1.msra.mxu0 0.0
  %697 = vmatprep.subr.mxu0 0.0
  %698 = vmatpush1.msra.mxu0 0.0
  %699 = vmatprep.subr.mxu0 0.0
  %700 = vmatpush1.msra.mxu0 0.0
  %701 = vmatprep.subr.mxu0 0.0
  %702 = vmatpush1.msra.mxu0 0.0
  %703 = vmatprep.subr.mxu0 0.0
  %704 = vmatpush1.msra.mxu0 0.0
  %705 = vmatprep.subr.mxu0 0.0
  %706 = vmatpush1.msra.mxu0 0.0
  %707 = vmatprep.subr.mxu0 0.0
  %708 = vmatpush1.msra.mxu0 0.0
  %709 = vmatprep.subr.mxu0 0.0
  %710 = vmatpush1.msra.mxu0 0.0
  %711 = vmatprep.subr.mxu0 0.0
  %712 = vmatpush1.msra.mxu0 0.0
  %713 = vmatprep.subr.mxu0 0.0
  %714 = vmatpush1.msra.mxu0 0.0
  %715 = vmatprep.subr.mxu0 0.0
  %716 = vmatpush1.msra.mxu0 0.0
  %717 = vmatprep.subr.mxu0 0.0
  %718 = vmatpush1.msra.mxu0 0.0
  %719 = vmatprep.subr.mxu0 0.0
  %720 = vmatpush1.msra.mxu0 0.0
  %721 = vmatprep.subr.mxu0 0.0
  %722 = vmatpush1.msra.mxu0 0.0
  %723 = vmatprep.subr.mxu0 0.0
  %724 = vmatpush1.msra.mxu0 0.0
  %725 = vmatprep.subr.mxu0 0.0
  %726 = vmatpush1.msra.mxu0 0.0
  %727 = vmatprep.subr.mxu0 0.0
  %728 = vmatpush1.msra.mxu0 0.0
  %729 = vmatprep.subr.mxu0 0.0
  %730 = vmatpush1.msra.mxu0 0.0
  %731 = vmatprep.subr.mxu0 0.0
  %732 = vmatpush1.msra.mxu0 0.0
  %733 = vmatprep.subr.mxu0 0.0
  %734 = vmatpush1.msra.mxu0 0.0
  %735 = vmatprep.subr.mxu0 0.0
  %736 = vmatpush1.msra.mxu0 0.0
  %737 = vmatprep.subr.mxu0 0.0
  %738 = vmatpush1.msra.mxu0 0.0
  %739 = vmatprep.subr.mxu0 0.0
  %740 = vmatpush1.msra.mxu0 0.0
  %741 = vmatprep.subr.mxu0 0.0
  %742 = vmatpush1.msra.mxu0 0.0
  %743 = vmatprep.subr.mxu0 0.0
  %744 = vmatpush1.msra.mxu0 0.0
  %745 = vmatprep.subr.mxu0 0.0
  %746 = vmatpush1.msra.mxu0 0.0
  %747 = vmatprep.subr.mxu0 0.0
  %748 = vmatpush1.msra.mxu0 0.0
  %749 = vmatprep.subr.mxu0 0.0
  %750 = vmatpush1.msra.mxu0 0.0
  %751 = vmatprep.mubr.f32.mxu0 0.0
  %752 = vmatmul.mubr.f32.gmra.mrb[0].mxu0 %v685
  %v753 = vpop.f32.mrb[0].mxu0
  %v754 = vadd.f32 0.0, %v753
  %v755 = vpop.f32.mrb[0].mxu0
  %756 = vdwg.mxu0
  %v758 = vrot.slane %v754, 2
  %v760 = vadd.f32 %v342, %v758
  %v761 = vxor.u32 %v760, 2147483648
  %v762 = vmul.f32 %v761, 1.442695
  %v763 = vpow.pop %v762
  %v764 = vadd.f32 %v763, 1.0
  %v765 = vrcp.pop %v764
  %v766 = vmul.f32 1.0, %v765
  %v767 = vtanh.pop %v760
  %v769 = vrot.slane %v674, 6
  %v771 = vmul.f32 %v766, %v769
  %773 = vrot.lane.b32.xlu0 %v767, 64
  %v774 = vpop.permute.xlu0 %773
  %v776 = vmul.f32 %v766, %v774
  %778 = vrot.lane.b32.xlu0 %v776, 32
  %v779 = vpop.permute.xlu0 %778
  %v781 = vadd.f32 %v771, %v779
  %v782 = vtanh.pop %v781
  %784 = vrot.lane.b32.xlu0 %v782, 64
  %v785 = vpop.permute.xlu0 %784
  %v787 = vmul.f32 %v766, %v785
  %v789 = vrot.slane %v787, 6
  %790 = vrot.lane.b32.xlu0 %v789, 32
  %v791 = vpop.permute.xlu0 %790
  %v792 = vsel %vm369, %v791, 0
  %794 = vmatprep.subr.mxu0 0.0
  %795 = vmatpush1.msra.mxu0 %v352
  %796 = vmatprep.subr.mxu0 0.0
  %797 = vmatpush1.msra.mxu0 %v353
  %798 = vmatprep.subr.mxu0 0.0
  %799 = vmatpush1.msra.mxu0 %v354
  %800 = vmatprep.subr.mxu0 0.0
  %801 = vmatpush1.msra.mxu0 %v355
  %802 = vmatprep.subr.mxu0 0.0
  %803 = vmatpush1.msra.mxu0 0.0
  %804 = vmatprep.subr.mxu0 0.0
  %805 = vmatpush1.msra.mxu0 0.0
  %806 = vmatprep.subr.mxu0 0.0
  %807 = vmatpush1.msra.mxu0 0.0
  %808 = vmatprep.subr.mxu0 0.0
  %809 = vmatpush1.msra.mxu0 0.0
  %810 = vmatprep.subr.mxu0 0.0
  %811 = vmatpush1.msra.mxu0 0.0
  %812 = vmatprep.subr.mxu0 0.0
  %813 = vmatpush1.msra.mxu0 0.0
  %814 = vmatprep.subr.mxu0 0.0
  %815 = vmatpush1.msra.mxu0 0.0
  %816 = vmatprep.subr.mxu0 0.0
  %817 = vmatpush1.msra.mxu0 0.0
  %818 = vmatprep.subr.mxu0 0.0
  %819 = vmatpush1.msra.mxu0 0.0
  %820 = vmatprep.subr.mxu0 0.0
  %821 = vmatpush1.msra.mxu0 0.0
  %822 = vmatprep.subr.mxu0 0.0
  %823 = vmatpush1.msra.mxu0 0.0
  %824 = vmatprep.subr.mxu0 0.0
  %825 = vmatpush1.msra.mxu0 0.0
  %826 = vmatprep.subr.mxu0 0.0
  %827 = vmatpush1.msra.mxu0 0.0
  %828 = vmatprep.subr.mxu0 0.0
  %829 = vmatpush1.msra.mxu0 0.0
  %830 = vmatprep.subr.mxu0 0.0
  %831 = vmatpush1.msra.mxu0 0.0
  %832 = vmatprep.subr.mxu0 0.0
  %833 = vmatpush1.msra.mxu0 0.0
  %834 = vmatprep.subr.mxu0 0.0
  %835 = vmatpush1.msra.mxu0 0.0
  %836 = vmatprep.subr.mxu0 0.0
  %837 = vmatpush1.msra.mxu0 0.0
  %838 = vmatprep.subr.mxu0 0.0
  %839 = vmatpush1.msra.mxu0 0.0
  %840 = vmatprep.subr.mxu0 0.0
  %841 = vmatpush1.msra.mxu0 0.0
  %842 = vmatprep.subr.mxu0 0.0
  %843 = vmatpush1.msra.mxu0 0.0
  %844 = vmatprep.subr.mxu0 0.0
  %845 = vmatpush1.msra.mxu0 0.0
  %846 = vmatprep.subr.mxu0 0.0
  %847 = vmatpush1.msra.mxu0 0.0
  %848 = vmatprep.subr.mxu0 0.0
  %849 = vmatpush1.msra.mxu0 0.0
  %850 = vmatprep.subr.mxu0 0.0
  %851 = vmatpush1.msra.mxu0 0.0
  %852 = vmatprep.subr.mxu0 0.0
  %853 = vmatpush1.msra.mxu0 0.0
  %854 = vmatprep.subr.mxu0 0.0
  %855 = vmatpush1.msra.mxu0 0.0
  %856 = vmatprep.subr.mxu0 0.0
  %857 = vmatpush1.msra.mxu0 0.0
  %858 = vmatprep.mubr.f32.mxu0 0.0
  %859 = vmatmul.mubr.f32.gmra.mrb[0].mxu0 %v792
  %v860 = vpop.f32.mrb[0].mxu0
  %v861 = vadd.f32 0.0, %v860
  %v862 = vpop.f32.mrb[0].mxu0
  %863 = vdwg.mxu0
  %v864 = vadd.f32 %v348, %v861
  %v865 = vxor.u32 %v864, 2147483648
  %v866 = vmul.f32 %v865, 1.442695
  %v867 = vpow.pop %v866
  %v868 = vadd.f32 %v867, 1.0
  %v869 = vrcp.pop %v868
  %v870 = vmul.f32 1.0, %v869
  %v871 = vtanh.pop %v864
  %v873 = vrot.slane %v781, 6
  %v875 = vmul.f32 %v870, %v873
  %877 = vrot.lane.b32.xlu0 %v871, 64
  %v878 = vpop.permute.xlu0 %877
  %v880 = vmul.f32 %v870, %v878
  %882 = vrot.lane.b32.xlu0 %v880, 32
  %v883 = vpop.permute.xlu0 %882
  %v885 = vadd.f32 %v875, %v883
  %v886 = vtanh.pop %v885
  %888 = vrot.lane.b32.xlu0 %v886, 64
  %v889 = vpop.permute.xlu0 %888
  %v891 = vmul.f32 %v870, %v889
  %893 = vrot.lane.b32.xlu0 %v891, 32
  %v894 = vpop.permute.xlu0 %893
  %v895 = vsel %vm369, %v894, 0
  %897 = vmatprep.subr.mxu0 0.0
  %898 = vmatpush1.msra.mxu0 %v352
  %899 = vmatprep.subr.mxu0 0.0
  %900 = vmatpush1.msra.mxu0 %v353
  %901 = vmatprep.subr.mxu0 0.0
  %902 = vmatpush1.msra.mxu0 %v354
  %903 = vmatprep.subr.mxu0 0.0
  %904 = vmatpush1.msra.mxu0 %v355
  %905 = vmatprep.subr.mxu0 0.0
  %906 = vmatpush1.msra.mxu0 0.0
  %907 = vmatprep.subr.mxu0 0.0
  %908 = vmatpush1.msra.mxu0 0.0
  %909 = vmatprep.subr.mxu0 0.0
  %910 = vmatpush1.msra.mxu0 0.0
  %911 = vmatprep.subr.mxu0 0.0
  %912 = vmatpush1.msra.mxu0 0.0
  %913 = vmatprep.subr.mxu0 0.0
  %914 = vmatpush1.msra.mxu0 0.0
  %915 = vmatprep.subr.mxu0 0.0
  %916 = vmatpush1.msra.mxu0 0.0
  %917 = vmatprep.subr.mxu0 0.0
  %918 = vmatpush1.msra.mxu0 0.0
  %919 = vmatprep.subr.mxu0 0.0
  %920 = vmatpush1.msra.mxu0 0.0
  %921 = vmatprep.subr.mxu0 0.0
  %922 = vmatpush1.msra.mxu0 0.0
  %923 = vmatprep.subr.mxu0 0.0
  %924 = vmatpush1.msra.mxu0 0.0
  %925 = vmatprep.subr.mxu0 0.0
  %926 = vmatpush1.msra.mxu0 0.0
  %927 = vmatprep.subr.mxu0 0.0
  %928 = vmatpush1.msra.mxu0 0.0
  %929 = vmatprep.subr.mxu0 0.0
  %930 = vmatpush1.msra.mxu0 0.0
  %931 = vmatprep.subr.mxu0 0.0
  %932 = vmatpush1.msra.mxu0 0.0
  %933 = vmatprep.subr.mxu0 0.0
  %934 = vmatpush1.msra.mxu0 0.0
  %935 = vmatprep.subr.mxu0 0.0
  %936 = vmatpush1.msra.mxu0 0.0
  %937 = vmatprep.subr.mxu0 0.0
  %938 = vmatpush1.msra.mxu0 0.0
  %939 = vmatprep.subr.mxu0 0.0
  %940 = vmatpush1.msra.mxu0 0.0
  %941 = vmatprep.subr.mxu0 0.0
  %942 = vmatpush1.msra.mxu0 0.0
  %943 = vmatprep.subr.mxu0 0.0
  %944 = vmatpush1.msra.mxu0 0.0
  %945 = vmatprep.subr.mxu0 0.0
  %946 = vmatpush1.msra.mxu0 0.0
  %947 = vmatprep.subr.mxu0 0.0
  %948 = vmatpush1.msra.mxu0 0.0
  %949 = vmatprep.subr.mxu0 0.0
  %950 = vmatpush1.msra.mxu0 0.0
  %951 = vmatprep.subr.mxu0 0.0
  %952 = vmatpush1.msra.mxu0 0.0
  %953 = vmatprep.subr.mxu0 0.0
  %954 = vmatpush1.msra.mxu0 0.0
  %955 = vmatprep.subr.mxu0 0.0
  %956 = vmatpush1.msra.mxu0 0.0
  %957 = vmatprep.subr.mxu0 0.0
  %958 = vmatpush1.msra.mxu0 0.0
  %959 = vmatprep.subr.mxu0 0.0
  %960 = vmatpush1.msra.mxu0 0.0
  %961 = vmatprep.mubr.f32.mxu0 0.0
  %962 = vmatmul.mubr.f32.gmra.mrb[0].mxu0 %v895
  %v963 = vpop.f32.mrb[0].mxu0
  %v964 = vadd.f32 0.0, %v963
  %v965 = vpop.f32.mrb[0].mxu0
  %966 = vdwg.mxu0
  %v968 = vrot.slane %v964, 6
  %v970 = vadd.f32 %v348, %v968
  %v971 = vxor.u32 %v970, 2147483648
  %v972 = vmul.f32 %v971, 1.442695
  %v973 = vpow.pop %v972
  %v974 = vadd.f32 %v973, 1.0
  %v975 = vrcp.pop %v974
  %v976 = vmul.f32 1.0, %v975
  %v977 = vtanh.pop %v970
  %v979 = vrot.slane %v885, 6
  %v981 = vmul.f32 %v976, %v979
  %983 = vrot.lane.b32.xlu0 %v977, 64
  %v984 = vpop.permute.xlu0 %983
  %v986 = vmul.f32 %v976, %v984
  %988 = vrot.lane.b32.xlu0 %v986, 32
  %v989 = vpop.permute.xlu0 %988
  %v991 = vadd.f32 %v981, %v989
  %v992 = vtanh.pop %v991
  %994 = vrot.lane.b32.xlu0 %v992, 64
  %v995 = vpop.permute.xlu0 %994
  %v997 = vmul.f32 %v976, %v995
  %v999 = vrot.slane %v997, 2
  %1000 = vrot.lane.b32.xlu0 %v999, 32
  %v1001 = vpop.permute.xlu0 %1000
  %v1002 = vsel %vm369, %v1001, 0
  %1004 = vmatprep.subr.mxu0 0.0
  %1005 = vmatpush1.msra.mxu0 %v352
  %1006 = vmatprep.subr.mxu0 0.0
  %1007 = vmatpush1.msra.mxu0 %v353
  %1008 = vmatprep.subr.mxu0 0.0
  %1009 = vmatpush1.msra.mxu0 %v354
  %1010 = vmatprep.subr.mxu0 0.0
  %1011 = vmatpush1.msra.mxu0 %v355
  %1012 = vmatprep.subr.mxu0 0.0
  %1013 = vmatpush1.msra.mxu0 0.0
  %1014 = vmatprep.subr.mxu0 0.0
  %1015 = vmatpush1.msra.mxu0 0.0
  %1016 = vmatprep.subr.mxu0 0.0
  %1017 = vmatpush1.msra.mxu0 0.0
  %1018 = vmatprep.subr.mxu0 0.0
  %1019 = vmatpush1.msra.mxu0 0.0
  %1020 = vmatprep.subr.mxu0 0.0
  %1021 = vmatpush1.msra.mxu0 0.0
  %1022 = vmatprep.subr.mxu0 0.0
  %1023 = vmatpush1.msra.mxu0 0.0
  %1024 = vmatprep.subr.mxu0 0.0
  %1025 = vmatpush1.msra.mxu0 0.0
  %1026 = vmatprep.subr.mxu0 0.0
  %1027 = vmatpush1.msra.mxu0 0.0
  %1028 = vmatprep.subr.mxu0 0.0
  %1029 = vmatpush1.msra.mxu0 0.0
  %1030 = vmatprep.subr.mxu0 0.0
  %1031 = vmatpush1.msra.mxu0 0.0
  %1032 = vmatprep.subr.mxu0 0.0
  %1033 = vmatpush1.msra.mxu0 0.0
  %1034 = vmatprep.subr.mxu0 0.0
  %1035 = vmatpush1.msra.mxu0 0.0
  %1036 = vmatprep.subr.mxu0 0.0
  %1037 = vmatpush1.msra.mxu0 0.0
  %1038 = vmatprep.subr.mxu0 0.0
  %1039 = vmatpush1.msra.mxu0 0.0
  %1040 = vmatprep.subr.mxu0 0.0
  %1041 = vmatpush1.msra.mxu0 0.0
  %1042 = vmatprep.subr.mxu0 0.0
  %1043 = vmatpush1.msra.mxu0 0.0
  %1044 = vmatprep.subr.mxu0 0.0
  %1045 = vmatpush1.msra.mxu0 0.0
  %1046 = vmatprep.subr.mxu0 0.0
  %1047 = vmatpush1.msra.mxu0 0.0
  %1048 = vmatprep.subr.mxu0 0.0
  %1049 = vmatpush1.msra.mxu0 0.0
  %1050 = vmatprep.subr.mxu0 0.0
  %1051 = vmatpush1.msra.mxu0 0.0
  %1052 = vmatprep.subr.mxu0 0.0
  %1053 = vmatpush1.msra.mxu0 0.0
  %1054 = vmatprep.subr.mxu0 0.0
  %1055 = vmatpush1.msra.mxu0 0.0
  %1056 = vmatprep.subr.mxu0 0.0
  %1057 = vmatpush1.msra.mxu0 0.0
  %1058 = vmatprep.subr.mxu0 0.0
  %1059 = vmatpush1.msra.mxu0 0.0
  %1060 = vmatprep.subr.mxu0 0.0
  %1061 = vmatpush1.msra.mxu0 0.0
  %1062 = vmatprep.subr.mxu0 0.0
  %1063 = vmatpush1.msra.mxu0 0.0
  %1064 = vmatprep.subr.mxu0 0.0
  %1065 = vmatpush1.msra.mxu0 0.0
  %1066 = vmatprep.subr.mxu0 0.0
  %1067 = vmatpush1.msra.mxu0 0.0
  %1068 = vmatprep.mubr.f32.mxu0 0.0
  %1069 = vmatmul.mubr.f32.gmra.mrb[0].mxu0 %v1002
  %v1070 = vpop.f32.mrb[0].mxu0
  %v1071 = vadd.f32 0.0, %v1070
  %v1072 = vpop.f32.mrb[0].mxu0
  %1073 = vdwg.mxu0
  %v1075 = vrot.slane %v1071, 4
  %v1077 = vadd.f32 %v348, %v1075
  %v1078 = vxor.u32 %v1077, 2147483648
  %v1079 = vmul.f32 %v1078, 1.442695
  %v1080 = vpow.pop %v1079
  %v1081 = vadd.f32 %v1080, 1.0
  %v1082 = vrcp.pop %v1081
  %v1083 = vmul.f32 1.0, %v1082
  %v1084 = vtanh.pop %v1077
  %v1086 = vrot.slane %v991, 6
  %v1088 = vmul.f32 %v1083, %v1086
  %1090 = vrot.lane.b32.xlu0 %v1084, 64
  %v1091 = vpop.permute.xlu0 %1090
  %v1093 = vmul.f32 %v1083, %v1091
  %1095 = vrot.lane.b32.xlu0 %v1093, 32
  %v1096 = vpop.permute.xlu0 %1095
  %v1098 = vadd.f32 %v1088, %v1096
  %v1099 = vtanh.pop %v1098
  %1101 = vrot.lane.b32.xlu0 %v1099, 64
  %v1102 = vpop.permute.xlu0 %1101
  %v1104 = vmul.f32 %v1083, %v1102
  %v1106 = vrot.slane %v1104, 4
  %1107 = vrot.lane.b32.xlu0 %v1106, 32
  %v1108 = vpop.permute.xlu0 %1107
  %v1109 = vsel %vm369, %v1108, 0
  %1111 = vmatprep.subr.mxu0 0.0
  %1112 = vmatpush1.msra.mxu0 %v352
  %1113 = vmatprep.subr.mxu0 0.0
  %1114 = vmatpush1.msra.mxu0 %v353
  %1115 = vmatprep.subr.mxu0 0.0
  %1116 = vmatpush1.msra.mxu0 %v354
  %1117 = vmatprep.subr.mxu0 0.0
  %1118 = vmatpush1.msra.mxu0 %v355
  %1119 = vmatprep.subr.mxu0 0.0
  %1120 = vmatpush1.msra.mxu0 0.0
  %1121 = vmatprep.subr.mxu0 0.0
  %1122 = vmatpush1.msra.mxu0 0.0
  %1123 = vmatprep.subr.mxu0 0.0
  %1124 = vmatpush1.msra.mxu0 0.0
  %1125 = vmatprep.subr.mxu0 0.0
  %1126 = vmatpush1.msra.mxu0 0.0
  %1127 = vmatprep.subr.mxu0 0.0
  %1128 = vmatpush1.msra.mxu0 0.0
  %1129 = vmatprep.subr.mxu0 0.0
  %1130 = vmatpush1.msra.mxu0 0.0
  %1131 = vmatprep.subr.mxu0 0.0
  %1132 = vmatpush1.msra.mxu0 0.0
  %1133 = vmatprep.subr.mxu0 0.0
  %1134 = vmatpush1.msra.mxu0 0.0
  %1135 = vmatprep.subr.mxu0 0.0
  %1136 = vmatpush1.msra.mxu0 0.0
  %1137 = vmatprep.subr.mxu0 0.0
  %1138 = vmatpush1.msra.mxu0 0.0
  %1139 = vmatprep.subr.mxu0 0.0
  %1140 = vmatpush1.msra.mxu0 0.0
  %1141 = vmatprep.subr.mxu0 0.0
  %1142 = vmatpush1.msra.mxu0 0.0
  %1143 = vmatprep.subr.mxu0 0.0
  %1144 = vmatpush1.msra.mxu0 0.0
  %1145 = vmatprep.subr.mxu0 0.0
  %1146 = vmatpush1.msra.mxu0 0.0
  %1147 = vmatprep.subr.mxu0 0.0
  %1148 = vmatpush1.msra.mxu0 0.0
  %1149 = vmatprep.subr.mxu0 0.0
  %1150 = vmatpush1.msra.mxu0 0.0
  %1151 = vmatprep.subr.mxu0 0.0
  %1152 = vmatpush1.msra.mxu0 0.0
  %1153 = vmatprep.subr.mxu0 0.0
  %1154 = vmatpush1.msra.mxu0 0.0
  %1155 = vmatprep.subr.mxu0 0.0
  %1156 = vmatpush1.msra.mxu0 0.0
  %1157 = vmatprep.subr.mxu0 0.0
  %1158 = vmatpush1.msra.mxu0 0.0
  %1159 = vmatprep.subr.mxu0 0.0
  %1160 = vmatpush1.msra.mxu0 0.0
  %1161 = vmatprep.subr.mxu0 0.0
  %1162 = vmatpush1.msra.mxu0 0.0
  %1163 = vmatprep.subr.mxu0 0.0
  %1164 = vmatpush1.msra.mxu0 0.0
  %1165 = vmatprep.subr.mxu0 0.0
  %1166 = vmatpush1.msra.mxu0 0.0
  %1167 = vmatprep.subr.mxu0 0.0
  %1168 = vmatpush1.msra.mxu0 0.0
  %1169 = vmatprep.subr.mxu0 0.0
  %1170 = vmatpush1.msra.mxu0 0.0
  %1171 = vmatprep.subr.mxu0 0.0
  %1172 = vmatpush1.msra.mxu0 0.0
  %1173 = vmatprep.subr.mxu0 0.0
  %1174 = vmatpush1.msra.mxu0 0.0
  %1175 = vmatprep.mubr.f32.mxu0 0.0
  %1176 = vmatmul.mubr.f32.gmra.mrb[0].mxu0 %v1109
  %v1177 = vpop.f32.mrb[0].mxu0
  %v1178 = vadd.f32 0.0, %v1177
  %v1179 = vpop.f32.mrb[0].mxu0
  %1180 = vdwg.mxu0
  %v1182 = vrot.slane %v1178, 2
  %v1184 = vadd.f32 %v348, %v1182
  %v1185 = vxor.u32 %v1184, 2147483648
  %v1186 = vmul.f32 %v1185, 1.442695
  %v1187 = vpow.pop %v1186
  %v1188 = vadd.f32 %v1187, 1.0
  %v1189 = vrcp.pop %v1188
  %v1190 = vmul.f32 1.0, %v1189
  %v1191 = vtanh.pop %v1184
  %v1193 = vrot.slane %v1098, 6
  %v1195 = vmul.f32 %v1190, %v1193
  %1197 = vrot.lane.b32.xlu0 %v1191, 64
  %v1198 = vpop.permute.xlu0 %1197
  %v1200 = vmul.f32 %v1190, %v1198
  %1202 = vrot.lane.b32.xlu0 %v1200, 32
  %v1203 = vpop.permute.xlu0 %1202
  %v1205 = vadd.f32 %v1195, %v1203
  %v1206 = vtanh.pop %v1205
  %1208 = vrot.lane.b32.xlu0 %v1206, 64
  %v1209 = vpop.permute.xlu0 %1208
  %v1211 = vmul.f32 %v1190, %v1209
  %1212 = vmatprep.subr.mxu0 0.0
  %1213 = vmatpush1.msra.mxu0 %v356
  %1214 = vmatprep.subr.mxu0 0.0
  %1215 = vmatpush1.msra.mxu0 %v357
  %1216 = vmatprep.subr.mxu0 0.0
  %1217 = vmatpush1.msra.mxu0 %v358
  %1218 = vmatprep.subr.mxu0 0.0
  %1219 = vmatpush1.msra.mxu0 %v359
  %1220 = vmatprep.subr.mxu0 0.0
  %1221 = vmatpush1.msra.mxu0 0.0
  %1222 = vmatprep.subr.mxu0 0.0
  %1223 = vmatpush1.msra.mxu0 0.0
  %1224 = vmatprep.subr.mxu0 0.0
  %1225 = vmatpush1.msra.mxu0 0.0
  %1226 = vmatprep.subr.mxu0 0.0
  %1227 = vmatpush1.msra.mxu0 0.0
  %1228 = vmatprep.subr.mxu0 0.0
  %1229 = vmatpush1.msra.mxu0 0.0
  %1230 = vmatprep.subr.mxu0 0.0
  %1231 = vmatpush1.msra.mxu0 0.0
  %1232 = vmatprep.subr.mxu0 0.0
  %1233 = vmatpush1.msra.mxu0 0.0
  %1234 = vmatprep.subr.mxu0 0.0
  %1235 = vmatpush1.msra.mxu0 0.0
  %1236 = vmatprep.subr.mxu0 0.0
  %1237 = vmatpush1.msra.mxu0 0.0
  %1238 = vmatprep.subr.mxu0 0.0
  %1239 = vmatpush1.msra.mxu0 0.0
  %1240 = vmatprep.subr.mxu0 0.0
  %1241 = vmatpush1.msra.mxu0 0.0
  %1242 = vmatprep.subr.mxu0 0.0
  %1243 = vmatpush1.msra.mxu0 0.0
  %1244 = vmatprep.subr.mxu0 0.0
  %1245 = vmatpush1.msra.mxu0 0.0
  %1246 = vmatprep.subr.mxu0 0.0
  %1247 = vmatpush1.msra.mxu0 0.0
  %1248 = vmatprep.subr.mxu0 0.0
  %1249 = vmatpush1.msra.mxu0 0.0
  %1250 = vmatprep.subr.mxu0 0.0
  %1251 = vmatpush1.msra.mxu0 0.0
  %1252 = vmatprep.subr.mxu0 0.0
  %1253 = vmatpush1.msra.mxu0 0.0
  %1254 = vmatprep.subr.mxu0 0.0
  %1255 = vmatpush1.msra.mxu0 0.0
  %1256 = vmatprep.subr.mxu0 0.0
  %1257 = vmatpush1.msra.mxu0 0.0
  %1258 = vmatprep.subr.mxu0 0.0
  %1259 = vmatpush1.msra.mxu0 0.0
  %1260 = vmatprep.subr.mxu0 0.0
  %1261 = vmatpush1.msra.mxu0 0.0
  %1262 = vmatprep.subr.mxu0 0.0
  %1263 = vmatpush1.msra.mxu0 0.0
  %1264 = vmatprep.subr.mxu0 0.0
  %1265 = vmatpush1.msra.mxu0 0.0
  %1266 = vmatprep.subr.mxu0 0.0
  %1267 = vmatpush1.msra.mxu0 0.0
  %1268 = vmatprep.subr.mxu0 0.0
  %1269 = vmatpush1.msra.mxu0 0.0
  %1270 = vmatprep.subr.mxu0 0.0
  %1271 = vmatpush1.msra.mxu0 0.0
  %1272 = vmatprep.subr.mxu0 0.0
  %1273 = vmatpush1.msra.mxu0 0.0
  %1274 = vmatprep.subr.mxu0 0.0
  %1275 = vmatpush1.msra.mxu0 0.0
  %1276 = vmatprep.mubr.f32.mxu0 0.0
  %1277 = vmatmul.mubr.f32.gmra.mrb[0].mxu0 %v371
  %v1278 = vpop.f32.mrb[0].mxu0
  %v1279 = vadd.f32 0.0, %v1278
  %v1280 = vpop.f32.mrb[0].mxu0
  %1281 = vdwg.mxu0
  %v1283 = vrot.slane %v1279, 2
  %v1285 = vadd.f32 %v350, %v1283
  %v1286 = vxor.u32 %v1285, 2147483648
  %v1287 = vmul.f32 %v1286, 1.442695
  %v1288 = vpow.pop %v1287
  %v1289 = vadd.f32 %v1288, 1.0
  %v1290 = vrcp.pop %v1289
  %v1291 = vmul.f32 1.0, %v1290
  %v1292 = vtanh.pop %v1285
  %v1293 = vmul.f32 %v1291, 0.0
  %1295 = vrot.lane.b32.xlu0 %v1292, 64
  %v1296 = vpop.permute.xlu0 %1295
  %v1298 = vmul.f32 %v1291, %v1296
  %1300 = vrot.lane.b32.xlu0 %v1298, 32
  %v1301 = vpop.permute.xlu0 %1300
  %v1303 = vadd.f32 %v1293, %v1301
  %v1304 = vtanh.pop %v1303
  %1306 = vrot.lane.b32.xlu0 %v1304, 64
  %v1307 = vpop.permute.xlu0 %1306
  %v1309 = vmul.f32 %v1291, %v1307
  %v1311 = vrot.slane %v1309, 6
  %1312 = vrot.lane.b32.xlu0 %v1311, 32
  %v1313 = vpop.permute.xlu0 %1312
  %v1314 = vsel %vm369, %v1313, 0
  %1316 = vmatprep.subr.mxu0 0.0
  %1317 = vmatpush1.msra.mxu0 %v364
  %1318 = vmatprep.subr.mxu0 0.0
  %1319 = vmatpush1.msra.mxu0 %v365
  %1320 = vmatprep.subr.mxu0 0.0
  %1321 = vmatpush1.msra.mxu0 %v366
  %1322 = vmatprep.subr.mxu0 0.0
  %1323 = vmatpush1.msra.mxu0 %v367
  %1324 = vmatprep.subr.mxu0 0.0
  %1325 = vmatpush1.msra.mxu0 0.0
  %1326 = vmatprep.subr.mxu0 0.0
  %1327 = vmatpush1.msra.mxu0 0.0
  %1328 = vmatprep.subr.mxu0 0.0
  %1329 = vmatpush1.msra.mxu0 0.0
  %1330 = vmatprep.subr.mxu0 0.0
  %1331 = vmatpush1.msra.mxu0 0.0
  %1332 = vmatprep.subr.mxu0 0.0
  %1333 = vmatpush1.msra.mxu0 0.0
  %1334 = vmatprep.subr.mxu0 0.0
  %1335 = vmatpush1.msra.mxu0 0.0
  %1336 = vmatprep.subr.mxu0 0.0
  %1337 = vmatpush1.msra.mxu0 0.0
  %1338 = vmatprep.subr.mxu0 0.0
  %1339 = vmatpush1.msra.mxu0 0.0
  %1340 = vmatprep.subr.mxu0 0.0
  %1341 = vmatpush1.msra.mxu0 0.0
  %1342 = vmatprep.subr.mxu0 0.0
  %1343 = vmatpush1.msra.mxu0 0.0
  %1344 = vmatprep.subr.mxu0 0.0
  %1345 = vmatpush1.msra.mxu0 0.0
  %1346 = vmatprep.subr.mxu0 0.0
  %1347 = vmatpush1.msra.mxu0 0.0
  %1348 = vmatprep.subr.mxu0 0.0
  %1349 = vmatpush1.msra.mxu0 0.0
  %1350 = vmatprep.subr.mxu0 0.0
  %1351 = vmatpush1.msra.mxu0 0.0
  %1352 = vmatprep.subr.mxu0 0.0
  %1353 = vmatpush1.msra.mxu0 0.0
  %1354 = vmatprep.subr.mxu0 0.0
  %1355 = vmatpush1.msra.mxu0 0.0
  %1356 = vmatprep.subr.mxu0 0.0
  %1357 = vmatpush1.msra.mxu0 0.0
  %1358 = vmatprep.subr.mxu0 0.0
  %1359 = vmatpush1.msra.mxu0 0.0
  %1360 = vmatprep.subr.mxu0 0.0
  %1361 = vmatpush1.msra.mxu0 0.0
  %1362 = vmatprep.subr.mxu0 0.0
  %1363 = vmatpush1.msra.mxu0 0.0
  %1364 = vmatprep.subr.mxu0 0.0
  %1365 = vmatpush1.msra.mxu0 0.0
  %1366 = vmatprep.subr.mxu0 0.0
  %1367 = vmatpush1.msra.mxu0 0.0
  %1368 = vmatprep.subr.mxu0 0.0
  %1369 = vmatpush1.msra.mxu0 0.0
  %1370 = vmatprep.subr.mxu0 0.0
  %1371 = vmatpush1.msra.mxu0 0.0
  %1372 = vmatprep.subr.mxu0 0.0
  %1373 = vmatpush1.msra.mxu0 0.0
  %1374 = vmatprep.subr.mxu0 0.0
  %1375 = vmatpush1.msra.mxu0 0.0
  %1376 = vmatprep.subr.mxu0 0.0
  %1377 = vmatpush1.msra.mxu0 0.0
  %1378 = vmatprep.subr.mxu0 0.0
  %1379 = vmatpush1.msra.mxu0 0.0
  %1380 = vmatprep.mubr.f32.mxu0 0.0
  %1381 = vmatmul.mubr.f32.gmra.mrb[0].mxu0 %v1314
  %v1382 = vpop.f32.mrb[0].mxu0
  %v1383 = vadd.f32 0.0, %v1382
  %v1384 = vpop.f32.mrb[0].mxu0
  %1385 = vdwg.mxu0
  %v1387 = vrot.slane %v1211, 6
  %1388 = vrot.lane.b32.xlu0 %v1387, 32
  %v1389 = vpop.permute.xlu0 %1388
  %v1390 = vsel %vm369, %v1389, 0
  %1392 = vmatprep.subr.mxu0 0.0
  %1393 = vmatpush1.msra.mxu0 %v360
  %1394 = vmatprep.subr.mxu0 0.0
  %1395 = vmatpush1.msra.mxu0 %v361
  %1396 = vmatprep.subr.mxu0 0.0
  %1397 = vmatpush1.msra.mxu0 %v362
  %1398 = vmatprep.subr.mxu0 0.0
  %1399 = vmatpush1.msra.mxu0 %v363
  %1400 = vmatprep.subr.mxu0 0.0
  %1401 = vmatpush1.msra.mxu0 0.0
  %1402 = vmatprep.subr.mxu0 0.0
  %1403 = vmatpush1.msra.mxu0 0.0
  %1404 = vmatprep.subr.mxu0 0.0
  %1405 = vmatpush1.msra.mxu0 0.0
  %1406 = vmatprep.subr.mxu0 0.0
  %1407 = vmatpush1.msra.mxu0 0.0
  %1408 = vmatprep.subr.mxu0 0.0
  %1409 = vmatpush1.msra.mxu0 0.0
  %1410 = vmatprep.subr.mxu0 0.0
  %1411 = vmatpush1.msra.mxu0 0.0
  %1412 = vmatprep.subr.mxu0 0.0
  %1413 = vmatpush1.msra.mxu0 0.0
  %1414 = vmatprep.subr.mxu0 0.0
  %1415 = vmatpush1.msra.mxu0 0.0
  %1416 = vmatprep.subr.mxu0 0.0
  %1417 = vmatpush1.msra.mxu0 0.0
  %1418 = vmatprep.subr.mxu0 0.0
  %1419 = vmatpush1.msra.mxu0 0.0
  %1420 = vmatprep.subr.mxu0 0.0
  %1421 = vmatpush1.msra.mxu0 0.0
  %1422 = vmatprep.subr.mxu0 0.0
  %1423 = vmatpush1.msra.mxu0 0.0
  %1424 = vmatprep.subr.mxu0 0.0
  %1425 = vmatpush1.msra.mxu0 0.0
  %1426 = vmatprep.subr.mxu0 0.0
  %1427 = vmatpush1.msra.mxu0 0.0
  %1428 = vmatprep.subr.mxu0 0.0
  %1429 = vmatpush1.msra.mxu0 0.0
  %1430 = vmatprep.subr.mxu0 0.0
  %1431 = vmatpush1.msra.mxu0 0.0
  %1432 = vmatprep.subr.mxu0 0.0
  %1433 = vmatpush1.msra.mxu0 0.0
  %1434 = vmatprep.subr.mxu0 0.0
  %1435 = vmatpush1.msra.mxu0 0.0
  %1436 = vmatprep.subr.mxu0 0.0
  %1437 = vmatpush1.msra.mxu0 0.0
  %1438 = vmatprep.subr.mxu0 0.0
  %1439 = vmatpush1.msra.mxu0 0.0
  %1440 = vmatprep.subr.mxu0 0.0
  %1441 = vmatpush1.msra.mxu0 0.0
  %1442 = vmatprep.subr.mxu0 0.0
  %1443 = vmatpush1.msra.mxu0 0.0
  %1444 = vmatprep.subr.mxu0 0.0
  %1445 = vmatpush1.msra.mxu0 0.0
  %1446 = vmatprep.subr.mxu0 0.0
  %1447 = vmatpush1.msra.mxu0 0.0
  %1448 = vmatprep.subr.mxu0 0.0
  %1449 = vmatpush1.msra.mxu0 0.0
  %1450 = vmatprep.subr.mxu0 0.0
  %1451 = vmatpush1.msra.mxu0 0.0
  %1452 = vmatprep.subr.mxu0 0.0
  %1453 = vmatpush1.msra.mxu0 0.0
  %1454 = vmatprep.subr.mxu0 0.0
  %1455 = vmatpush1.msra.mxu0 0.0
  %1456 = vmatprep.mubr.f32.mxu0 0.0
  %1457 = vmatmul.mubr.f32.gmra.mrb[0].mxu0 %v1390
  %v1458 = vpop.f32.mrb[0].mxu0
  %v1459 = vadd.f32 %v1383, %v1458
  %v1460 = vpop.f32.mrb[0].mxu0
  %1461 = vdwg.mxu0
  %v1463 = vlaneseq
  %v1464 = vshrl.u32 %v1463, 7
  %v1465 = vsub.s32 0, %v1464
  %v1466 = vrot.slane %v368, %v1465
  %v1468 = vadd.f32 %v1459, %v1466
  %s1469 = scalar_lea.vmem %s10, 14
  %vm1470 = vcmask 254976
  %1471 = vst.msk [vmem:[%s1469] sm:$0x3] %vm1470, %v1468
  %1472 = vmatprep.subr.mxu0 0.0
  %1473 = vmatpush1.msra.mxu0 %v356
  %1474 = vmatprep.subr.mxu0 0.0
  %1475 = vmatpush1.msra.mxu0 %v357
  %1476 = vmatprep.subr.mxu0 0.0
  %1477 = vmatpush1.msra.mxu0 %v358
  %1478 = vmatprep.subr.mxu0 0.0
  %1479 = vmatpush1.msra.mxu0 %v359
  %1480 = vmatprep.subr.mxu0 0.0
  %1481 = vmatpush1.msra.mxu0 0.0
  %1482 = vmatprep.subr.mxu0 0.0
  %1483 = vmatpush1.msra.mxu0 0.0
  %1484 = vmatprep.subr.mxu0 0.0
  %1485 = vmatpush1.msra.mxu0 0.0
  %1486 = vmatprep.subr.mxu0 0.0
  %1487 = vmatpush1.msra.mxu0 0.0
  %1488 = vmatprep.subr.mxu0 0.0
  %1489 = vmatpush1.msra.mxu0 0.0
  %1490 = vmatprep.subr.mxu0 0.0
  %1491 = vmatpush1.msra.mxu0 0.0
  %1492 = vmatprep.subr.mxu0 0.0
  %1493 = vmatpush1.msra.mxu0 0.0
  %1494 = vmatprep.subr.mxu0 0.0
  %1495 = vmatpush1.msra.mxu0 0.0
  %1496 = vmatprep.subr.mxu0 0.0
  %1497 = vmatpush1.msra.mxu0 0.0
  %1498 = vmatprep.subr.mxu0 0.0
  %1499 = vmatpush1.msra.mxu0 0.0
  %1500 = vmatprep.subr.mxu0 0.0
  %1501 = vmatpush1.msra.mxu0 0.0
  %1502 = vmatprep.subr.mxu0 0.0
  %1503 = vmatpush1.msra.mxu0 0.0
  %1504 = vmatprep.subr.mxu0 0.0
  %1505 = vmatpush1.msra.mxu0 0.0
  %1506 = vmatprep.subr.mxu0 0.0
  %1507 = vmatpush1.msra.mxu0 0.0
  %1508 = vmatprep.subr.mxu0 0.0
  %1509 = vmatpush1.msra.mxu0 0.0
  %1510 = vmatprep.subr.mxu0 0.0
  %1511 = vmatpush1.msra.mxu0 0.0
  %1512 = vmatprep.subr.mxu0 0.0
  %1513 = vmatpush1.msra.mxu0 0.0
  %1514 = vmatprep.subr.mxu0 0.0
  %1515 = vmatpush1.msra.mxu0 0.0
  %1516 = vmatprep.subr.mxu0 0.0
  %1517 = vmatpush1.msra.mxu0 0.0
  %1518 = vmatprep.subr.mxu0 0.0
  %1519 = vmatpush1.msra.mxu0 0.0
  %1520 = vmatprep.subr.mxu0 0.0
  %1521 = vmatpush1.msra.mxu0 0.0
  %1522 = vmatprep.subr.mxu0 0.0
  %1523 = vmatpush1.msra.mxu0 0.0
  %1524 = vmatprep.subr.mxu0 0.0
  %1525 = vmatpush1.msra.mxu0 0.0
  %1526 = vmatprep.subr.mxu0 0.0
  %1527 = vmatpush1.msra.mxu0 0.0
  %1528 = vmatprep.subr.mxu0 0.0
  %1529 = vmatpush1.msra.mxu0 0.0
  %1530 = vmatprep.subr.mxu0 0.0
  %1531 = vmatpush1.msra.mxu0 0.0
  %1532 = vmatprep.subr.mxu0 0.0
  %1533 = vmatpush1.msra.mxu0 0.0
  %1534 = vmatprep.subr.mxu0 0.0
  %1535 = vmatpush1.msra.mxu0 0.0
  %1536 = vmatprep.mubr.f32.mxu0 0.0
  %1537 = vmatmul.mubr.f32.gmra.mrb[0].mxu0 %v1314
  %v1538 = vpop.f32.mrb[0].mxu0
  %v1539 = vadd.f32 0.0, %v1538
  %v1540 = vpop.f32.mrb[0].mxu0
  %1541 = vdwg.mxu0
  %v1543 = vrot.slane %v1539, 4
  %v1545 = vadd.f32 %v350, %v1543
  %v1546 = vxor.u32 %v1545, 2147483648
  %v1547 = vmul.f32 %v1546, 1.442695
  %v1548 = vpow.pop %v1547
  %v1549 = vadd.f32 %v1548, 1.0
  %v1550 = vrcp.pop %v1549
  %v1551 = vmul.f32 1.0, %v1550
  %v1552 = vtanh.pop %v1545
  %v1554 = vrot.slane %v1303, 2
  %v1556 = vmul.f32 %v1551, %v1554
  %1558 = vrot.lane.b32.xlu0 %v1552, 64
  %v1559 = vpop.permute.xlu0 %1558
  %v1561 = vmul.f32 %v1551, %v1559
  %1563 = vrot.lane.b32.xlu0 %v1561, 32
  %v1564 = vpop.permute.xlu0 %1563
  %v1566 = vadd.f32 %v1556, %v1564
  %v1567 = vtanh.pop %v1566
  %1569 = vrot.lane.b32.xlu0 %v1567, 64
  %v1570 = vpop.permute.xlu0 %1569
  %v1572 = vmul.f32 %v1551, %v1570
  %v1574 = vrot.slane %v1572, 4
  %1575 = vrot.lane.b32.xlu0 %v1574, 32
  %v1576 = vpop.permute.xlu0 %1575
  %v1577 = vsel %vm369, %v1576, 0
  %1579 = vmatprep.subr.mxu0 0.0
  %1580 = vmatpush1.msra.mxu0 %v364
  %1581 = vmatprep.subr.mxu0 0.0
  %1582 = vmatpush1.msra.mxu0 %v365
  %1583 = vmatprep.subr.mxu0 0.0
  %1584 = vmatpush1.msra.mxu0 %v366
  %1585 = vmatprep.subr.mxu0 0.0
  %1586 = vmatpush1.msra.mxu0 %v367
  %1587 = vmatprep.subr.mxu0 0.0
  %1588 = vmatpush1.msra.mxu0 0.0
  %1589 = vmatprep.subr.mxu0 0.0
  %1590 = vmatpush1.msra.mxu0 0.0
  %1591 = vmatprep.subr.mxu0 0.0
  %1592 = vmatpush1.msra.mxu0 0.0
  %1593 = vmatprep.subr.mxu0 0.0
  %1594 = vmatpush1.msra.mxu0 0.0
  %1595 = vmatprep.subr.mxu0 0.0
  %1596 = vmatpush1.msra.mxu0 0.0
  %1597 = vmatprep.subr.mxu0 0.0
  %1598 = vmatpush1.msra.mxu0 0.0
  %1599 = vmatprep.subr.mxu0 0.0
  %1600 = vmatpush1.msra.mxu0 0.0
  %1601 = vmatprep.subr.mxu0 0.0
  %1602 = vmatpush1.msra.mxu0 0.0
  %1603 = vmatprep.subr.mxu0 0.0
  %1604 = vmatpush1.msra.mxu0 0.0
  %1605 = vmatprep.subr.mxu0 0.0
  %1606 = vmatpush1.msra.mxu0 0.0
  %1607 = vmatprep.subr.mxu0 0.0
  %1608 = vmatpush1.msra.mxu0 0.0
  %1609 = vmatprep.subr.mxu0 0.0
  %1610 = vmatpush1.msra.mxu0 0.0
  %1611 = vmatprep.subr.mxu0 0.0
  %1612 = vmatpush1.msra.mxu0 0.0
  %1613 = vmatprep.subr.mxu0 0.0
  %1614 = vmatpush1.msra.mxu0 0.0
  %1615 = vmatprep.subr.mxu0 0.0
  %1616 = vmatpush1.msra.mxu0 0.0
  %1617 = vmatprep.subr.mxu0 0.0
  %1618 = vmatpush1.msra.mxu0 0.0
  %1619 = vmatprep.subr.mxu0 0.0
  %1620 = vmatpush1.msra.mxu0 0.0
  %1621 = vmatprep.subr.mxu0 0.0
  %1622 = vmatpush1.msra.mxu0 0.0
  %1623 = vmatprep.subr.mxu0 0.0
  %1624 = vmatpush1.msra.mxu0 0.0
  %1625 = vmatprep.subr.mxu0 0.0
  %1626 = vmatpush1.msra.mxu0 0.0
  %1627 = vmatprep.subr.mxu0 0.0
  %1628 = vmatpush1.msra.mxu0 0.0
  %1629 = vmatprep.subr.mxu0 0.0
  %1630 = vmatpush1.msra.mxu0 0.0
  %1631 = vmatprep.subr.mxu0 0.0
  %1632 = vmatpush1.msra.mxu0 0.0
  %1633 = vmatprep.subr.mxu0 0.0
  %1634 = vmatpush1.msra.mxu0 0.0
  %1635 = vmatprep.subr.mxu0 0.0
  %1636 = vmatpush1.msra.mxu0 0.0
  %1637 = vmatprep.subr.mxu0 0.0
  %1638 = vmatpush1.msra.mxu0 0.0
  %1639 = vmatprep.subr.mxu0 0.0
  %1640 = vmatpush1.msra.mxu0 0.0
  %1641 = vmatprep.subr.mxu0 0.0
  %1642 = vmatpush1.msra.mxu0 0.0
  %1643 = vmatprep.mubr.f32.mxu0 0.0
  %1644 = vmatmul.mubr.f32.gmra.mrb[0].mxu0 %v1577
  %v1645 = vpop.f32.mrb[0].mxu0
  %v1646 = vadd.f32 0.0, %v1645
  %v1647 = vpop.f32.mrb[0].mxu0
  %1648 = vdwg.mxu0
  %1649 = vmatprep.subr.mxu0 0.0
  %1650 = vmatpush1.msra.mxu0 %v360
  %1651 = vmatprep.subr.mxu0 0.0
  %1652 = vmatpush1.msra.mxu0 %v361
  %1653 = vmatprep.subr.mxu0 0.0
  %1654 = vmatpush1.msra.mxu0 %v362
  %1655 = vmatprep.subr.mxu0 0.0
  %1656 = vmatpush1.msra.mxu0 %v363
  %1657 = vmatprep.subr.mxu0 0.0
  %1658 = vmatpush1.msra.mxu0 0.0
  %1659 = vmatprep.subr.mxu0 0.0
  %1660 = vmatpush1.msra.mxu0 0.0
  %1661 = vmatprep.subr.mxu0 0.0
  %1662 = vmatpush1.msra.mxu0 0.0
  %1663 = vmatprep.subr.mxu0 0.0
  %1664 = vmatpush1.msra.mxu0 0.0
  %1665 = vmatprep.subr.mxu0 0.0
  %1666 = vmatpush1.msra.mxu0 0.0
  %1667 = vmatprep.subr.mxu0 0.0
  %1668 = vmatpush1.msra.mxu0 0.0
  %1669 = vmatprep.subr.mxu0 0.0
  %1670 = vmatpush1.msra.mxu0 0.0
  %1671 = vmatprep.subr.mxu0 0.0
  %1672 = vmatpush1.msra.mxu0 0.0
  %1673 = vmatprep.subr.mxu0 0.0
  %1674 = vmatpush1.msra.mxu0 0.0
  %1675 = vmatprep.subr.mxu0 0.0
  %1676 = vmatpush1.msra.mxu0 0.0
  %1677 = vmatprep.subr.mxu0 0.0
  %1678 = vmatpush1.msra.mxu0 0.0
  %1679 = vmatprep.subr.mxu0 0.0
  %1680 = vmatpush1.msra.mxu0 0.0
  %1681 = vmatprep.subr.mxu0 0.0
  %1682 = vmatpush1.msra.mxu0 0.0
  %1683 = vmatprep.subr.mxu0 0.0
  %1684 = vmatpush1.msra.mxu0 0.0
  %1685 = vmatprep.subr.mxu0 0.0
  %1686 = vmatpush1.msra.mxu0 0.0
  %1687 = vmatprep.subr.mxu0 0.0
  %1688 = vmatpush1.msra.mxu0 0.0
  %1689 = vmatprep.subr.mxu0 0.0
  %1690 = vmatpush1.msra.mxu0 0.0
  %1691 = vmatprep.subr.mxu0 0.0
  %1692 = vmatpush1.msra.mxu0 0.0
  %1693 = vmatprep.subr.mxu0 0.0
  %1694 = vmatpush1.msra.mxu0 0.0
  %1695 = vmatprep.subr.mxu0 0.0
  %1696 = vmatpush1.msra.mxu0 0.0
  %1697 = vmatprep.subr.mxu0 0.0
  %1698 = vmatpush1.msra.mxu0 0.0
  %1699 = vmatprep.subr.mxu0 0.0
  %1700 = vmatpush1.msra.mxu0 0.0
  %1701 = vmatprep.subr.mxu0 0.0
  %1702 = vmatpush1.msra.mxu0 0.0
  %1703 = vmatprep.subr.mxu0 0.0
  %1704 = vmatpush1.msra.mxu0 0.0
  %1705 = vmatprep.subr.mxu0 0.0
  %1706 = vmatpush1.msra.mxu0 0.0
  %1707 = vmatprep.subr.mxu0 0.0
  %1708 = vmatpush1.msra.mxu0 0.0
  %1709 = vmatprep.subr.mxu0 0.0
  %1710 = vmatpush1.msra.mxu0 0.0
  %1711 = vmatprep.subr.mxu0 0.0
  %1712 = vmatpush1.msra.mxu0 0.0
  %1713 = vmatprep.mubr.f32.mxu0 0.0
  %1714 = vmatmul.mubr.f32.gmra.mrb[0].mxu0 %v1109
  %v1715 = vpop.f32.mrb[0].mxu0
  %v1716 = vadd.f32 %v1646, %v1715
  %v1717 = vpop.f32.mrb[0].mxu0
  %1718 = vdwg.mxu0
  %v1719 = vadd.f32 %v1716, %v1466
  %s1720 = scalar_lea.vmem %s10, 12
  %1721 = vst.msk [vmem:[%s1720] sm:$0x3] %vm1470, %v1719
  %1722 = vmatprep.subr.mxu0 0.0
  %1723 = vmatpush1.msra.mxu0 %v356
  %1724 = vmatprep.subr.mxu0 0.0
  %1725 = vmatpush1.msra.mxu0 %v357
  %1726 = vmatprep.subr.mxu0 0.0
  %1727 = vmatpush1.msra.mxu0 %v358
  %1728 = vmatprep.subr.mxu0 0.0
  %1729 = vmatpush1.msra.mxu0 %v359
  %1730 = vmatprep.subr.mxu0 0.0
  %1731 = vmatpush1.msra.mxu0 0.0
  %1732 = vmatprep.subr.mxu0 0.0
  %1733 = vmatpush1.msra.mxu0 0.0
  %1734 = vmatprep.subr.mxu0 0.0
  %1735 = vmatpush1.msra.mxu0 0.0
  %1736 = vmatprep.subr.mxu0 0.0
  %1737 = vmatpush1.msra.mxu0 0.0
  %1738 = vmatprep.subr.mxu0 0.0
  %1739 = vmatpush1.msra.mxu0 0.0
  %1740 = vmatprep.subr.mxu0 0.0
  %1741 = vmatpush1.msra.mxu0 0.0
  %1742 = vmatprep.subr.mxu0 0.0
  %1743 = vmatpush1.msra.mxu0 0.0
  %1744 = vmatprep.subr.mxu0 0.0
  %1745 = vmatpush1.msra.mxu0 0.0
  %1746 = vmatprep.subr.mxu0 0.0
  %1747 = vmatpush1.msra.mxu0 0.0
  %1748 = vmatprep.subr.mxu0 0.0
  %1749 = vmatpush1.msra.mxu0 0.0
  %1750 = vmatprep.subr.mxu0 0.0
  %1751 = vmatpush1.msra.mxu0 0.0
  %1752 = vmatprep.subr.mxu0 0.0
  %1753 = vmatpush1.msra.mxu0 0.0
  %1754 = vmatprep.subr.mxu0 0.0
  %1755 = vmatpush1.msra.mxu0 0.0
  %1756 = vmatprep.subr.mxu0 0.0
  %1757 = vmatpush1.msra.mxu0 0.0
  %1758 = vmatprep.subr.mxu0 0.0
  %1759 = vmatpush1.msra.mxu0 0.0
  %1760 = vmatprep.subr.mxu0 0.0
  %1761 = vmatpush1.msra.mxu0 0.0
  %1762 = vmatprep.subr.mxu0 0.0
  %1763 = vmatpush1.msra.mxu0 0.0
  %1764 = vmatprep.subr.mxu0 0.0
  %1765 = vmatpush1.msra.mxu0 0.0
  %1766 = vmatprep.subr.mxu0 0.0
  %1767 = vmatpush1.msra.mxu0 0.0
  %1768 = vmatprep.subr.mxu0 0.0
  %1769 = vmatpush1.msra.mxu0 0.0
  %1770 = vmatprep.subr.mxu0 0.0
  %1771 = vmatpush1.msra.mxu0 0.0
  %1772 = vmatprep.subr.mxu0 0.0
  %1773 = vmatpush1.msra.mxu0 0.0
  %1774 = vmatprep.subr.mxu0 0.0
  %1775 = vmatpush1.msra.mxu0 0.0
  %1776 = vmatprep.subr.mxu0 0.0
  %1777 = vmatpush1.msra.mxu0 0.0
  %1778 = vmatprep.subr.mxu0 0.0
  %1779 = vmatpush1.msra.mxu0 0.0
  %1780 = vmatprep.subr.mxu0 0.0
  %1781 = vmatpush1.msra.mxu0 0.0
  %1782 = vmatprep.subr.mxu0 0.0
  %1783 = vmatpush1.msra.mxu0 0.0
  %1784 = vmatprep.subr.mxu0 0.0
  %1785 = vmatpush1.msra.mxu0 0.0
  %1786 = vmatprep.mubr.f32.mxu0 0.0
  %1787 = vmatmul.mubr.f32.gmra.mrb[0].mxu0 %v1577
  %v1788 = vpop.f32.mrb[0].mxu0
  %v1789 = vadd.f32 0.0, %v1788
  %v1790 = vpop.f32.mrb[0].mxu0
  %1791 = vdwg.mxu0
  %v1793 = vrot.slane %v1789, 6
  %v1795 = vadd.f32 %v350, %v1793
  %v1796 = vxor.u32 %v1795, 2147483648
  %v1797 = vmul.f32 %v1796, 1.442695
  %v1798 = vpow.pop %v1797
  %v1799 = vadd.f32 %v1798, 1.0
  %v1800 = vrcp.pop %v1799
  %v1801 = vmul.f32 1.0, %v1800
  %v1802 = vtanh.pop %v1795
  %v1804 = vrot.slane %v1566, 2
  %v1806 = vmul.f32 %v1801, %v1804
  %1808 = vrot.lane.b32.xlu0 %v1802, 64
  %v1809 = vpop.permute.xlu0 %1808
  %v1811 = vmul.f32 %v1801, %v1809
  %1813 = vrot.lane.b32.xlu0 %v1811, 32
  %v1814 = vpop.permute.xlu0 %1813
  %v1816 = vadd.f32 %v1806, %v1814
  %v1817 = vtanh.pop %v1816
  %1819 = vrot.lane.b32.xlu0 %v1817, 64
  %v1820 = vpop.permute.xlu0 %1819
  %v1822 = vmul.f32 %v1801, %v1820
  %v1824 = vrot.slane %v1822, 2
  %1825 = vrot.lane.b32.xlu0 %v1824, 32
  %v1826 = vpop.permute.xlu0 %1825
  %v1827 = vsel %vm369, %v1826, 0
  %1829 = vmatprep.subr.mxu0 0.0
  %1830 = vmatpush1.msra.mxu0 %v364
  %1831 = vmatprep.subr.mxu0 0.0
  %1832 = vmatpush1.msra.mxu0 %v365
  %1833 = vmatprep.subr.mxu0 0.0
  %1834 = vmatpush1.msra.mxu0 %v366
  %1835 = vmatprep.subr.mxu0 0.0
  %1836 = vmatpush1.msra.mxu0 %v367
  %1837 = vmatprep.subr.mxu0 0.0
  %1838 = vmatpush1.msra.mxu0 0.0
  %1839 = vmatprep.subr.mxu0 0.0
  %1840 = vmatpush1.msra.mxu0 0.0
  %1841 = vmatprep.subr.mxu0 0.0
  %1842 = vmatpush1.msra.mxu0 0.0
  %1843 = vmatprep.subr.mxu0 0.0
  %1844 = vmatpush1.msra.mxu0 0.0
  %1845 = vmatprep.subr.mxu0 0.0
  %1846 = vmatpush1.msra.mxu0 0.0
  %1847 = vmatprep.subr.mxu0 0.0
  %1848 = vmatpush1.msra.mxu0 0.0
  %1849 = vmatprep.subr.mxu0 0.0
  %1850 = vmatpush1.msra.mxu0 0.0
  %1851 = vmatprep.subr.mxu0 0.0
  %1852 = vmatpush1.msra.mxu0 0.0
  %1853 = vmatprep.subr.mxu0 0.0
  %1854 = vmatpush1.msra.mxu0 0.0
  %1855 = vmatprep.subr.mxu0 0.0
  %1856 = vmatpush1.msra.mxu0 0.0
  %1857 = vmatprep.subr.mxu0 0.0
  %1858 = vmatpush1.msra.mxu0 0.0
  %1859 = vmatprep.subr.mxu0 0.0
  %1860 = vmatpush1.msra.mxu0 0.0
  %1861 = vmatprep.subr.mxu0 0.0
  %1862 = vmatpush1.msra.mxu0 0.0
  %1863 = vmatprep.subr.mxu0 0.0
  %1864 = vmatpush1.msra.mxu0 0.0
  %1865 = vmatprep.subr.mxu0 0.0
  %1866 = vmatpush1.msra.mxu0 0.0
  %1867 = vmatprep.subr.mxu0 0.0
  %1868 = vmatpush1.msra.mxu0 0.0
  %1869 = vmatprep.subr.mxu0 0.0
  %1870 = vmatpush1.msra.mxu0 0.0
  %1871 = vmatprep.subr.mxu0 0.0
  %1872 = vmatpush1.msra.mxu0 0.0
  %1873 = vmatprep.subr.mxu0 0.0
  %1874 = vmatpush1.msra.mxu0 0.0
  %1875 = vmatprep.subr.mxu0 0.0
  %1876 = vmatpush1.msra.mxu0 0.0
  %1877 = vmatprep.subr.mxu0 0.0
  %1878 = vmatpush1.msra.mxu0 0.0
  %1879 = vmatprep.subr.mxu0 0.0
  %1880 = vmatpush1.msra.mxu0 0.0
  %1881 = vmatprep.subr.mxu0 0.0
  %1882 = vmatpush1.msra.mxu0 0.0
  %1883 = vmatprep.subr.mxu0 0.0
  %1884 = vmatpush1.msra.mxu0 0.0
  %1885 = vmatprep.subr.mxu0 0.0
  %1886 = vmatpush1.msra.mxu0 0.0
  %1887 = vmatprep.subr.mxu0 0.0
  %1888 = vmatpush1.msra.mxu0 0.0
  %1889 = vmatprep.subr.mxu0 0.0
  %1890 = vmatpush1.msra.mxu0 0.0
  %1891 = vmatprep.subr.mxu0 0.0
  %1892 = vmatpush1.msra.mxu0 0.0
  %1893 = vmatprep.mubr.f32.mxu0 0.0
  %1894 = vmatmul.mubr.f32.gmra.mrb[0].mxu0 %v1827
  %v1895 = vpop.f32.mrb[0].mxu0
  %v1896 = vadd.f32 0.0, %v1895
  %v1897 = vpop.f32.mrb[0].mxu0
  %1898 = vdwg.mxu0
  %1899 = vmatprep.subr.mxu0 0.0
  %1900 = vmatpush1.msra.mxu0 %v360
  %1901 = vmatprep.subr.mxu0 0.0
  %1902 = vmatpush1.msra.mxu0 %v361
  %1903 = vmatprep.subr.mxu0 0.0
  %1904 = vmatpush1.msra.mxu0 %v362
  %1905 = vmatprep.subr.mxu0 0.0
  %1906 = vmatpush1.msra.mxu0 %v363
  %1907 = vmatprep.subr.mxu0 0.0
  %1908 = vmatpush1.msra.mxu0 0.0
  %1909 = vmatprep.subr.mxu0 0.0
  %1910 = vmatpush1.msra.mxu0 0.0
  %1911 = vmatprep.subr.mxu0 0.0
  %1912 = vmatpush1.msra.mxu0 0.0
  %1913 = vmatprep.subr.mxu0 0.0
  %1914 = vmatpush1.msra.mxu0 0.0
  %1915 = vmatprep.subr.mxu0 0.0
  %1916 = vmatpush1.msra.mxu0 0.0
  %1917 = vmatprep.subr.mxu0 0.0
  %1918 = vmatpush1.msra.mxu0 0.0
  %1919 = vmatprep.subr.mxu0 0.0
  %1920 = vmatpush1.msra.mxu0 0.0
  %1921 = vmatprep.subr.mxu0 0.0
  %1922 = vmatpush1.msra.mxu0 0.0
  %1923 = vmatprep.subr.mxu0 0.0
  %1924 = vmatpush1.msra.mxu0 0.0
  %1925 = vmatprep.subr.mxu0 0.0
  %1926 = vmatpush1.msra.mxu0 0.0
  %1927 = vmatprep.subr.mxu0 0.0
  %1928 = vmatpush1.msra.mxu0 0.0
  %1929 = vmatprep.subr.mxu0 0.0
  %1930 = vmatpush1.msra.mxu0 0.0
  %1931 = vmatprep.subr.mxu0 0.0
  %1932 = vmatpush1.msra.mxu0 0.0
  %1933 = vmatprep.subr.mxu0 0.0
  %1934 = vmatpush1.msra.mxu0 0.0
  %1935 = vmatprep.subr.mxu0 0.0
  %1936 = vmatpush1.msra.mxu0 0.0
  %1937 = vmatprep.subr.mxu0 0.0
  %1938 = vmatpush1.msra.mxu0 0.0
  %1939 = vmatprep.subr.mxu0 0.0
  %1940 = vmatpush1.msra.mxu0 0.0
  %1941 = vmatprep.subr.mxu0 0.0
  %1942 = vmatpush1.msra.mxu0 0.0
  %1943 = vmatprep.subr.mxu0 0.0
  %1944 = vmatpush1.msra.mxu0 0.0
  %1945 = vmatprep.subr.mxu0 0.0
  %1946 = vmatpush1.msra.mxu0 0.0
  %1947 = vmatprep.subr.mxu0 0.0
  %1948 = vmatpush1.msra.mxu0 0.0
  %1949 = vmatprep.subr.mxu0 0.0
  %1950 = vmatpush1.msra.mxu0 0.0
  %1951 = vmatprep.subr.mxu0 0.0
  %1952 = vmatpush1.msra.mxu0 0.0
  %1953 = vmatprep.subr.mxu0 0.0
  %1954 = vmatpush1.msra.mxu0 0.0
  %1955 = vmatprep.subr.mxu0 0.0
  %1956 = vmatpush1.msra.mxu0 0.0
  %1957 = vmatprep.subr.mxu0 0.0
  %1958 = vmatpush1.msra.mxu0 0.0
  %1959 = vmatprep.subr.mxu0 0.0
  %1960 = vmatpush1.msra.mxu0 0.0
  %1961 = vmatprep.subr.mxu0 0.0
  %1962 = vmatpush1.msra.mxu0 0.0
  %1963 = vmatprep.mubr.f32.mxu0 0.0
  %1964 = vmatmul.mubr.f32.gmra.mrb[0].mxu0 %v1002
  %v1965 = vpop.f32.mrb[0].mxu0
  %v1966 = vadd.f32 %v1896, %v1965
  %v1967 = vpop.f32.mrb[0].mxu0
  %1968 = vdwg.mxu0
  %v1969 = vadd.f32 %v1966, %v1466
  %s1970 = scalar_lea.vmem %s10, 10
  %1971 = vst.msk [vmem:[%s1970] sm:$0x3] %vm1470, %v1969
  %1972 = vmatprep.subr.mxu0 0.0
  %1973 = vmatpush1.msra.mxu0 %v356
  %1974 = vmatprep.subr.mxu0 0.0
  %1975 = vmatpush1.msra.mxu0 %v357
  %1976 = vmatprep.subr.mxu0 0.0
  %1977 = vmatpush1.msra.mxu0 %v358
  %1978 = vmatprep.subr.mxu0 0.0
  %1979 = vmatpush1.msra.mxu0 %v359
  %1980 = vmatprep.subr.mxu0 0.0
  %1981 = vmatpush1.msra.mxu0 0.0
  %1982 = vmatprep.subr.mxu0 0.0
  %1983 = vmatpush1.msra.mxu0 0.0
  %1984 = vmatprep.subr.mxu0 0.0
  %1985 = vmatpush1.msra.mxu0 0.0
  %1986 = vmatprep.subr.mxu0 0.0
  %1987 = vmatpush1.msra.mxu0 0.0
  %1988 = vmatprep.subr.mxu0 0.0
  %1989 = vmatpush1.msra.mxu0 0.0
  %1990 = vmatprep.subr.mxu0 0.0
  %1991 = vmatpush1.msra.mxu0 0.0
  %1992 = vmatprep.subr.mxu0 0.0
  %1993 = vmatpush1.msra.mxu0 0.0
  %1994 = vmatprep.subr.mxu0 0.0
  %1995 = vmatpush1.msra.mxu0 0.0
  %1996 = vmatprep.subr.mxu0 0.0
  %1997 = vmatpush1.msra.mxu0 0.0
  %1998 = vmatprep.subr.mxu0 0.0
  %1999 = vmatpush1.msra.mxu0 0.0
  %2000 = vmatprep.subr.mxu0 0.0
  %2001 = vmatpush1.msra.mxu0 0.0
  %2002 = vmatprep.subr.mxu0 0.0
  %2003 = vmatpush1.msra.mxu0 0.0
  %2004 = vmatprep.subr.mxu0 0.0
  %2005 = vmatpush1.msra.mxu0 0.0
  %2006 = vmatprep.subr.mxu0 0.0
  %2007 = vmatpush1.msra.mxu0 0.0
  %2008 = vmatprep.subr.mxu0 0.0
  %2009 = vmatpush1.msra.mxu0 0.0
  %2010 = vmatprep.subr.mxu0 0.0
  %2011 = vmatpush1.msra.mxu0 0.0
  %2012 = vmatprep.subr.mxu0 0.0
  %2013 = vmatpush1.msra.mxu0 0.0
  %2014 = vmatprep.subr.mxu0 0.0
  %2015 = vmatpush1.msra.mxu0 0.0
  %2016 = vmatprep.subr.mxu0 0.0
  %2017 = vmatpush1.msra.mxu0 0.0
  %2018 = vmatprep.subr.mxu0 0.0
  %2019 = vmatpush1.msra.mxu0 0.0
  %2020 = vmatprep.subr.mxu0 0.0
  %2021 = vmatpush1.msra.mxu0 0.0
  %2022 = vmatprep.subr.mxu0 0.0
  %2023 = vmatpush1.msra.mxu0 0.0
  %2024 = vmatprep.subr.mxu0 0.0
  %2025 = vmatpush1.msra.mxu0 0.0
  %2026 = vmatprep.subr.mxu0 0.0
  %2027 = vmatpush1.msra.mxu0 0.0
  %2028 = vmatprep.subr.mxu0 0.0
  %2029 = vmatpush1.msra.mxu0 0.0
  %2030 = vmatprep.subr.mxu0 0.0
  %2031 = vmatpush1.msra.mxu0 0.0
  %2032 = vmatprep.subr.mxu0 0.0
  %2033 = vmatpush1.msra.mxu0 0.0
  %2034 = vmatprep.subr.mxu0 0.0
  %2035 = vmatpush1.msra.mxu0 0.0
  %2036 = vmatprep.mubr.f32.mxu0 0.0
  %2037 = vmatmul.mubr.f32.gmra.mrb[0].mxu0 %v1827
  %v2038 = vpop.f32.mrb[0].mxu0
  %v2039 = vadd.f32 0.0, %v2038
  %v2040 = vpop.f32.mrb[0].mxu0
  %2041 = vdwg.mxu0
  %v2042 = vadd.f32 %v350, %v2039
  %v2043 = vxor.u32 %v2042, 2147483648
  %v2044 = vmul.f32 %v2043, 1.442695
  %v2045 = vpow.pop %v2044
  %v2046 = vadd.f32 %v2045, 1.0
  %v2047 = vrcp.pop %v2046
  %v2048 = vmul.f32 1.0, %v2047
  %v2049 = vtanh.pop %v2042
  %v2051 = vrot.slane %v1816, 2
  %v2053 = vmul.f32 %v2048, %v2051
  %2055 = vrot.lane.b32.xlu0 %v2049, 64
  %v2056 = vpop.permute.xlu0 %2055
  %v2058 = vmul.f32 %v2048, %v2056
  %2060 = vrot.lane.b32.xlu0 %v2058, 32
  %v2061 = vpop.permute.xlu0 %2060
  %v2063 = vadd.f32 %v2053, %v2061
  %v2064 = vtanh.pop %v2063
  %2066 = vrot.lane.b32.xlu0 %v2064, 64
  %v2067 = vpop.permute.xlu0 %2066
  %v2069 = vmul.f32 %v2048, %v2067
  %2071 = vrot.lane.b32.xlu0 %v2069, 32
  %v2072 = vpop.permute.xlu0 %2071
  %v2073 = vsel %vm369, %v2072, 0
  %2075 = vmatprep.subr.mxu0 0.0
  %2076 = vmatpush1.msra.mxu0 %v364
  %2077 = vmatprep.subr.mxu0 0.0
  %2078 = vmatpush1.msra.mxu0 %v365
  %2079 = vmatprep.subr.mxu0 0.0
  %2080 = vmatpush1.msra.mxu0 %v366
  %2081 = vmatprep.subr.mxu0 0.0
  %2082 = vmatpush1.msra.mxu0 %v367
  %2083 = vmatprep.subr.mxu0 0.0
  %2084 = vmatpush1.msra.mxu0 0.0
  %2085 = vmatprep.subr.mxu0 0.0
  %2086 = vmatpush1.msra.mxu0 0.0
  %2087 = vmatprep.subr.mxu0 0.0
  %2088 = vmatpush1.msra.mxu0 0.0
  %2089 = vmatprep.subr.mxu0 0.0
  %2090 = vmatpush1.msra.mxu0 0.0
  %2091 = vmatprep.subr.mxu0 0.0
  %2092 = vmatpush1.msra.mxu0 0.0
  %2093 = vmatprep.subr.mxu0 0.0
  %2094 = vmatpush1.msra.mxu0 0.0
  %2095 = vmatprep.subr.mxu0 0.0
  %2096 = vmatpush1.msra.mxu0 0.0
  %2097 = vmatprep.subr.mxu0 0.0
  %2098 = vmatpush1.msra.mxu0 0.0
  %2099 = vmatprep.subr.mxu0 0.0
  %2100 = vmatpush1.msra.mxu0 0.0
  %2101 = vmatprep.subr.mxu0 0.0
  %2102 = vmatpush1.msra.mxu0 0.0
  %2103 = vmatprep.subr.mxu0 0.0
  %2104 = vmatpush1.msra.mxu0 0.0
  %2105 = vmatprep.subr.mxu0 0.0
  %2106 = vmatpush1.msra.mxu0 0.0
  %2107 = vmatprep.subr.mxu0 0.0
  %2108 = vmatpush1.msra.mxu0 0.0
  %2109 = vmatprep.subr.mxu0 0.0
  %2110 = vmatpush1.msra.mxu0 0.0
  %2111 = vmatprep.subr.mxu0 0.0
  %2112 = vmatpush1.msra.mxu0 0.0
  %2113 = vmatprep.subr.mxu0 0.0
  %2114 = vmatpush1.msra.mxu0 0.0
  %2115 = vmatprep.subr.mxu0 0.0
  %2116 = vmatpush1.msra.mxu0 0.0
  %2117 = vmatprep.subr.mxu0 0.0
  %2118 = vmatpush1.msra.mxu0 0.0
  %2119 = vmatprep.subr.mxu0 0.0
  %2120 = vmatpush1.msra.mxu0 0.0
  %2121 = vmatprep.subr.mxu0 0.0
  %2122 = vmatpush1.msra.mxu0 0.0
  %2123 = vmatprep.subr.mxu0 0.0
  %2124 = vmatpush1.msra.mxu0 0.0
  %2125 = vmatprep.subr.mxu0 0.0
  %2126 = vmatpush1.msra.mxu0 0.0
  %2127 = vmatprep.subr.mxu0 0.0
  %2128 = vmatpush1.msra.mxu0 0.0
  %2129 = vmatprep.subr.mxu0 0.0
  %2130 = vmatpush1.msra.mxu0 0.0
  %2131 = vmatprep.subr.mxu0 0.0
  %2132 = vmatpush1.msra.mxu0 0.0
  %2133 = vmatprep.subr.mxu0 0.0
  %2134 = vmatpush1.msra.mxu0 0.0
  %2135 = vmatprep.subr.mxu0 0.0
  %2136 = vmatpush1.msra.mxu0 0.0
  %2137 = vmatprep.subr.mxu0 0.0
  %2138 = vmatpush1.msra.mxu0 0.0
  %2139 = vmatprep.mubr.f32.mxu0 0.0
  %2140 = vmatmul.mubr.f32.gmra.mrb[0].mxu0 %v2073
  %v2141 = vpop.f32.mrb[0].mxu0
  %v2142 = vadd.f32 0.0, %v2141
  %v2143 = vpop.f32.mrb[0].mxu0
  %2144 = vdwg.mxu0
  %2145 = vmatprep.subr.mxu0 0.0
  %2146 = vmatpush1.msra.mxu0 %v360
  %2147 = vmatprep.subr.mxu0 0.0
  %2148 = vmatpush1.msra.mxu0 %v361
  %2149 = vmatprep.subr.mxu0 0.0
  %2150 = vmatpush1.msra.mxu0 %v362
  %2151 = vmatprep.subr.mxu0 0.0
  %2152 = vmatpush1.msra.mxu0 %v363
  %2153 = vmatprep.subr.mxu0 0.0
  %2154 = vmatpush1.msra.mxu0 0.0
  %2155 = vmatprep.subr.mxu0 0.0
  %2156 = vmatpush1.msra.mxu0 0.0
  %2157 = vmatprep.subr.mxu0 0.0
  %2158 = vmatpush1.msra.mxu0 0.0
  %2159 = vmatprep.subr.mxu0 0.0
  %2160 = vmatpush1.msra.mxu0 0.0
  %2161 = vmatprep.subr.mxu0 0.0
  %2162 = vmatpush1.msra.mxu0 0.0
  %2163 = vmatprep.subr.mxu0 0.0
  %2164 = vmatpush1.msra.mxu0 0.0
  %2165 = vmatprep.subr.mxu0 0.0
  %2166 = vmatpush1.msra.mxu0 0.0
  %2167 = vmatprep.subr.mxu0 0.0
  %2168 = vmatpush1.msra.mxu0 0.0
  %2169 = vmatprep.subr.mxu0 0.0
  %2170 = vmatpush1.msra.mxu0 0.0
  %2171 = vmatprep.subr.mxu0 0.0
  %2172 = vmatpush1.msra.mxu0 0.0
  %2173 = vmatprep.subr.mxu0 0.0
  %2174 = vmatpush1.msra.mxu0 0.0
  %2175 = vmatprep.subr.mxu0 0.0
  %2176 = vmatpush1.msra.mxu0 0.0
  %2177 = vmatprep.subr.mxu0 0.0
  %2178 = vmatpush1.msra.mxu0 0.0
  %2179 = vmatprep.subr.mxu0 0.0
  %2180 = vmatpush1.msra.mxu0 0.0
  %2181 = vmatprep.subr.mxu0 0.0
  %2182 = vmatpush1.msra.mxu0 0.0
  %2183 = vmatprep.subr.mxu0 0.0
  %2184 = vmatpush1.msra.mxu0 0.0
  %2185 = vmatprep.subr.mxu0 0.0
  %2186 = vmatpush1.msra.mxu0 0.0
  %2187 = vmatprep.subr.mxu0 0.0
  %2188 = vmatpush1.msra.mxu0 0.0
  %2189 = vmatprep.subr.mxu0 0.0
  %2190 = vmatpush1.msra.mxu0 0.0
  %2191 = vmatprep.subr.mxu0 0.0
  %2192 = vmatpush1.msra.mxu0 0.0
  %2193 = vmatprep.subr.mxu0 0.0
  %2194 = vmatpush1.msra.mxu0 0.0
  %2195 = vmatprep.subr.mxu0 0.0
  %2196 = vmatpush1.msra.mxu0 0.0
  %2197 = vmatprep.subr.mxu0 0.0
  %2198 = vmatpush1.msra.mxu0 0.0
  %2199 = vmatprep.subr.mxu0 0.0
  %2200 = vmatpush1.msra.mxu0 0.0
  %2201 = vmatprep.subr.mxu0 0.0
  %2202 = vmatpush1.msra.mxu0 0.0
  %2203 = vmatprep.subr.mxu0 0.0
  %2204 = vmatpush1.msra.mxu0 0.0
  %2205 = vmatprep.subr.mxu0 0.0
  %2206 = vmatpush1.msra.mxu0 0.0
  %2207 = vmatprep.subr.mxu0 0.0
  %2208 = vmatpush1.msra.mxu0 0.0
  %2209 = vmatprep.mubr.f32.mxu0 0.0
  %2210 = vmatmul.mubr.f32.gmra.mrb[0].mxu0 %v895
  %v2211 = vpop.f32.mrb[0].mxu0
  %v2212 = vadd.f32 %v2142, %v2211
  %v2213 = vpop.f32.mrb[0].mxu0
  %2214 = vdwg.mxu0
  %v2215 = vadd.f32 %v2212, %v1466
  %s2216 = scalar_lea.vmem %s10, 8
  %2217 = vst.msk [vmem:[%s2216] sm:$0x3] %vm1470, %v2215
  %2218 = vmatprep.subr.mxu0 0.0
  %2219 = vmatpush1.msra.mxu0 %v356
  %2220 = vmatprep.subr.mxu0 0.0
  %2221 = vmatpush1.msra.mxu0 %v357
  %2222 = vmatprep.subr.mxu0 0.0
  %2223 = vmatpush1.msra.mxu0 %v358
  %2224 = vmatprep.subr.mxu0 0.0
  %2225 = vmatpush1.msra.mxu0 %v359
  %2226 = vmatprep.subr.mxu0 0.0
  %2227 = vmatpush1.msra.mxu0 0.0
  %2228 = vmatprep.subr.mxu0 0.0
  %2229 = vmatpush1.msra.mxu0 0.0
  %2230 = vmatprep.subr.mxu0 0.0
  %2231 = vmatpush1.msra.mxu0 0.0
  %2232 = vmatprep.subr.mxu0 0.0
  %2233 = vmatpush1.msra.mxu0 0.0
  %2234 = vmatprep.subr.mxu0 0.0
  %2235 = vmatpush1.msra.mxu0 0.0
  %2236 = vmatprep.subr.mxu0 0.0
  %2237 = vmatpush1.msra.mxu0 0.0
  %2238 = vmatprep.subr.mxu0 0.0
  %2239 = vmatpush1.msra.mxu0 0.0
  %2240 = vmatprep.subr.mxu0 0.0
  %2241 = vmatpush1.msra.mxu0 0.0
  %2242 = vmatprep.subr.mxu0 0.0
  %2243 = vmatpush1.msra.mxu0 0.0
  %2244 = vmatprep.subr.mxu0 0.0
  %2245 = vmatpush1.msra.mxu0 0.0
  %2246 = vmatprep.subr.mxu0 0.0
  %2247 = vmatpush1.msra.mxu0 0.0
  %2248 = vmatprep.subr.mxu0 0.0
  %2249 = vmatpush1.msra.mxu0 0.0
  %2250 = vmatprep.subr.mxu0 0.0
  %2251 = vmatpush1.msra.mxu0 0.0
  %2252 = vmatprep.subr.mxu0 0.0
  %2253 = vmatpush1.msra.mxu0 0.0
  %2254 = vmatprep.subr.mxu0 0.0
  %2255 = vmatpush1.msra.mxu0 0.0
  %2256 = vmatprep.subr.mxu0 0.0
  %2257 = vmatpush1.msra.mxu0 0.0
  %2258 = vmatprep.subr.mxu0 0.0
  %2259 = vmatpush1.msra.mxu0 0.0
  %2260 = vmatprep.subr.mxu0 0.0
  %2261 = vmatpush1.msra.mxu0 0.0
  %2262 = vmatprep.subr.mxu0 0.0
  %2263 = vmatpush1.msra.mxu0 0.0
  %2264 = vmatprep.subr.mxu0 0.0
  %2265 = vmatpush1.msra.mxu0 0.0
  %2266 = vmatprep.subr.mxu0 0.0
  %2267 = vmatpush1.msra.mxu0 0.0
  %2268 = vmatprep.subr.mxu0 0.0
  %2269 = vmatpush1.msra.mxu0 0.0
  %2270 = vmatprep.subr.mxu0 0.0
  %2271 = vmatpush1.msra.mxu0 0.0
  %2272 = vmatprep.subr.mxu0 0.0
  %2273 = vmatpush1.msra.mxu0 0.0
  %2274 = vmatprep.subr.mxu0 0.0
  %2275 = vmatpush1.msra.mxu0 0.0
  %2276 = vmatprep.subr.mxu0 0.0
  %2277 = vmatpush1.msra.mxu0 0.0
  %2278 = vmatprep.subr.mxu0 0.0
  %2279 = vmatpush1.msra.mxu0 0.0
  %2280 = vmatprep.subr.mxu0 0.0
  %2281 = vmatpush1.msra.mxu0 0.0
  %2282 = vmatprep.mubr.f32.mxu0 0.0
  %2283 = vmatmul.mubr.f32.gmra.mrb[0].mxu0 %v2073
  %v2284 = vpop.f32.mrb[0].mxu0
  %v2285 = vadd.f32 0.0, %v2284
  %v2286 = vpop.f32.mrb[0].mxu0
  %2287 = vdwg.mxu0
  %v2289 = vrot.slane %v2285, 2
  %v2291 = vadd.f32 %v344, %v2289
  %v2292 = vxor.u32 %v2291, 2147483648
  %v2293 = vmul.f32 %v2292, 1.442695
  %v2294 = vpow.pop %v2293
  %v2295 = vadd.f32 %v2294, 1.0
  %v2296 = vrcp.pop %v2295
  %v2297 = vmul.f32 1.0, %v2296
  %v2298 = vtanh.pop %v2291
  %v2300 = vrot.slane %v2063, 2
  %v2302 = vmul.f32 %v2297, %v2300
  %2304 = vrot.lane.b32.xlu0 %v2298, 64
  %v2305 = vpop.permute.xlu0 %2304
  %v2307 = vmul.f32 %v2297, %v2305
  %2309 = vrot.lane.b32.xlu0 %v2307, 32
  %v2310 = vpop.permute.xlu0 %2309
  %v2312 = vadd.f32 %v2302, %v2310
  %v2313 = vtanh.pop %v2312
  %2315 = vrot.lane.b32.xlu0 %v2313, 64
  %v2316 = vpop.permute.xlu0 %2315
  %v2318 = vmul.f32 %v2297, %v2316
  %v2320 = vrot.slane %v2318, 6
  %2321 = vrot.lane.b32.xlu0 %v2320, 32
  %v2322 = vpop.permute.xlu0 %2321
  %v2323 = vsel %vm369, %v2322, 0
  %2325 = vmatprep.subr.mxu0 0.0
  %2326 = vmatpush1.msra.mxu0 %v364
  %2327 = vmatprep.subr.mxu0 0.0
  %2328 = vmatpush1.msra.mxu0 %v365
  %2329 = vmatprep.subr.mxu0 0.0
  %2330 = vmatpush1.msra.mxu0 %v366
  %2331 = vmatprep.subr.mxu0 0.0
  %2332 = vmatpush1.msra.mxu0 %v367
  %2333 = vmatprep.subr.mxu0 0.0
  %2334 = vmatpush1.msra.mxu0 0.0
  %2335 = vmatprep.subr.mxu0 0.0
  %2336 = vmatpush1.msra.mxu0 0.0
  %2337 = vmatprep.subr.mxu0 0.0
  %2338 = vmatpush1.msra.mxu0 0.0
  %2339 = vmatprep.subr.mxu0 0.0
  %2340 = vmatpush1.msra.mxu0 0.0
  %2341 = vmatprep.subr.mxu0 0.0
  %2342 = vmatpush1.msra.mxu0 0.0
  %2343 = vmatprep.subr.mxu0 0.0
  %2344 = vmatpush1.msra.mxu0 0.0
  %2345 = vmatprep.subr.mxu0 0.0
  %2346 = vmatpush1.msra.mxu0 0.0
  %2347 = vmatprep.subr.mxu0 0.0
  %2348 = vmatpush1.msra.mxu0 0.0
  %2349 = vmatprep.subr.mxu0 0.0
  %2350 = vmatpush1.msra.mxu0 0.0
  %2351 = vmatprep.subr.mxu0 0.0
  %2352 = vmatpush1.msra.mxu0 0.0
  %2353 = vmatprep.subr.mxu0 0.0
  %2354 = vmatpush1.msra.mxu0 0.0
  %2355 = vmatprep.subr.mxu0 0.0
  %2356 = vmatpush1.msra.mxu0 0.0
  %2357 = vmatprep.subr.mxu0 0.0
  %2358 = vmatpush1.msra.mxu0 0.0
  %2359 = vmatprep.subr.mxu0 0.0
  %2360 = vmatpush1.msra.mxu0 0.0
  %2361 = vmatprep.subr.mxu0 0.0
  %2362 = vmatpush1.msra.mxu0 0.0
  %2363 = vmatprep.subr.mxu0 0.0
  %2364 = vmatpush1.msra.mxu0 0.0
  %2365 = vmatprep.subr.mxu0 0.0
  %2366 = vmatpush1.msra.mxu0 0.0
  %2367 = vmatprep.subr.mxu0 0.0
  %2368 = vmatpush1.msra.mxu0 0.0
  %2369 = vmatprep.subr.mxu0 0.0
  %2370 = vmatpush1.msra.mxu0 0.0
  %2371 = vmatprep.subr.mxu0 0.0
  %2372 = vmatpush1.msra.mxu0 0.0
  %2373 = vmatprep.subr.mxu0 0.0
  %2374 = vmatpush1.msra.mxu0 0.0
  %2375 = vmatprep.subr.mxu0 0.0
  %2376 = vmatpush1.msra.mxu0 0.0
  %2377 = vmatprep.subr.mxu0 0.0
  %2378 = vmatpush1.msra.mxu0 0.0
  %2379 = vmatprep.subr.mxu0 0.0
  %2380 = vmatpush1.msra.mxu0 0.0
  %2381 = vmatprep.subr.mxu0 0.0
  %2382 = vmatpush1.msra.mxu0 0.0
  %2383 = vmatprep.subr.mxu0 0.0
  %2384 = vmatpush1.msra.mxu0 0.0
  %2385 = vmatprep.subr.mxu0 0.0
  %2386 = vmatpush1.msra.mxu0 0.0
  %2387 = vmatprep.subr.mxu0 0.0
  %2388 = vmatpush1.msra.mxu0 0.0
  %2389 = vmatprep.mubr.f32.mxu0 0.0
  %2390 = vmatmul.mubr.f32.gmra.mrb[0].mxu0 %v2323
  %v2391 = vpop.f32.mrb[0].mxu0
  %v2392 = vadd.f32 0.0, %v2391
  %v2393 = vpop.f32.mrb[0].mxu0
  %2394 = vdwg.mxu0
  %2395 = vmatprep.subr.mxu0 0.0
  %2396 = vmatpush1.msra.mxu0 %v360
  %2397 = vmatprep.subr.mxu0 0.0
  %2398 = vmatpush1.msra.mxu0 %v361
  %2399 = vmatprep.subr.mxu0 0.0
  %2400 = vmatpush1.msra.mxu0 %v362
  %2401 = vmatprep.subr.mxu0 0.0
  %2402 = vmatpush1.msra.mxu0 %v363
  %2403 = vmatprep.subr.mxu0 0.0
  %2404 = vmatpush1.msra.mxu0 0.0
  %2405 = vmatprep.subr.mxu0 0.0
  %2406 = vmatpush1.msra.mxu0 0.0
  %2407 = vmatprep.subr.mxu0 0.0
  %2408 = vmatpush1.msra.mxu0 0.0
  %2409 = vmatprep.subr.mxu0 0.0
  %2410 = vmatpush1.msra.mxu0 0.0
  %2411 = vmatprep.subr.mxu0 0.0
  %2412 = vmatpush1.msra.mxu0 0.0
  %2413 = vmatprep.subr.mxu0 0.0
  %2414 = vmatpush1.msra.mxu0 0.0
  %2415 = vmatprep.subr.mxu0 0.0
  %2416 = vmatpush1.msra.mxu0 0.0
  %2417 = vmatprep.subr.mxu0 0.0
  %2418 = vmatpush1.msra.mxu0 0.0
  %2419 = vmatprep.subr.mxu0 0.0
  %2420 = vmatpush1.msra.mxu0 0.0
  %2421 = vmatprep.subr.mxu0 0.0
  %2422 = vmatpush1.msra.mxu0 0.0
  %2423 = vmatprep.subr.mxu0 0.0
  %2424 = vmatpush1.msra.mxu0 0.0
  %2425 = vmatprep.subr.mxu0 0.0
  %2426 = vmatpush1.msra.mxu0 0.0
  %2427 = vmatprep.subr.mxu0 0.0
  %2428 = vmatpush1.msra.mxu0 0.0
  %2429 = vmatprep.subr.mxu0 0.0
  %2430 = vmatpush1.msra.mxu0 0.0
  %2431 = vmatprep.subr.mxu0 0.0
  %2432 = vmatpush1.msra.mxu0 0.0
  %2433 = vmatprep.subr.mxu0 0.0
  %2434 = vmatpush1.msra.mxu0 0.0
  %2435 = vmatprep.subr.mxu0 0.0
  %2436 = vmatpush1.msra.mxu0 0.0
  %2437 = vmatprep.subr.mxu0 0.0
  %2438 = vmatpush1.msra.mxu0 0.0
  %2439 = vmatprep.subr.mxu0 0.0
  %2440 = vmatpush1.msra.mxu0 0.0
  %2441 = vmatprep.subr.mxu0 0.0
  %2442 = vmatpush1.msra.mxu0 0.0
  %2443 = vmatprep.subr.mxu0 0.0
  %2444 = vmatpush1.msra.mxu0 0.0
  %2445 = vmatprep.subr.mxu0 0.0
  %2446 = vmatpush1.msra.mxu0 0.0
  %2447 = vmatprep.subr.mxu0 0.0
  %2448 = vmatpush1.msra.mxu0 0.0
  %2449 = vmatprep.subr.mxu0 0.0
  %2450 = vmatpush1.msra.mxu0 0.0
  %2451 = vmatprep.subr.mxu0 0.0
  %2452 = vmatpush1.msra.mxu0 0.0
  %2453 = vmatprep.subr.mxu0 0.0
  %2454 = vmatpush1.msra.mxu0 0.0
  %2455 = vmatprep.subr.mxu0 0.0
  %2456 = vmatpush1.msra.mxu0 0.0
  %2457 = vmatprep.subr.mxu0 0.0
  %2458 = vmatpush1.msra.mxu0 0.0
  %2459 = vmatprep.mubr.f32.mxu0 0.0
  %2460 = vmatmul.mubr.f32.gmra.mrb[0].mxu0 %v792
  %v2461 = vpop.f32.mrb[0].mxu0
  %v2462 = vadd.f32 %v2392, %v2461
  %v2463 = vpop.f32.mrb[0].mxu0
  %2464 = vdwg.mxu0
  %v2465 = vadd.f32 %v2462, %v1466
  %s2466 = scalar_lea.vmem %s10, 6
  %2467 = vst.msk [vmem:[%s2466] sm:$0x3] %vm1470, %v2465
  %2468 = vmatprep.subr.mxu0 0.0
  %2469 = vmatpush1.msra.mxu0 %v356
  %2470 = vmatprep.subr.mxu0 0.0
  %2471 = vmatpush1.msra.mxu0 %v357
  %2472 = vmatprep.subr.mxu0 0.0
  %2473 = vmatpush1.msra.mxu0 %v358
  %2474 = vmatprep.subr.mxu0 0.0
  %2475 = vmatpush1.msra.mxu0 %v359
  %2476 = vmatprep.subr.mxu0 0.0
  %2477 = vmatpush1.msra.mxu0 0.0
  %2478 = vmatprep.subr.mxu0 0.0
  %2479 = vmatpush1.msra.mxu0 0.0
  %2480 = vmatprep.subr.mxu0 0.0
  %2481 = vmatpush1.msra.mxu0 0.0
  %2482 = vmatprep.subr.mxu0 0.0
  %2483 = vmatpush1.msra.mxu0 0.0
  %2484 = vmatprep.subr.mxu0 0.0
  %2485 = vmatpush1.msra.mxu0 0.0
  %2486 = vmatprep.subr.mxu0 0.0
  %2487 = vmatpush1.msra.mxu0 0.0
  %2488 = vmatprep.subr.mxu0 0.0
  %2489 = vmatpush1.msra.mxu0 0.0
  %2490 = vmatprep.subr.mxu0 0.0
  %2491 = vmatpush1.msra.mxu0 0.0
  %2492 = vmatprep.subr.mxu0 0.0
  %2493 = vmatpush1.msra.mxu0 0.0
  %2494 = vmatprep.subr.mxu0 0.0
  %2495 = vmatpush1.msra.mxu0 0.0
  %2496 = vmatprep.subr.mxu0 0.0
  %2497 = vmatpush1.msra.mxu0 0.0
  %2498 = vmatprep.subr.mxu0 0.0
  %2499 = vmatpush1.msra.mxu0 0.0
  %2500 = vmatprep.subr.mxu0 0.0
  %2501 = vmatpush1.msra.mxu0 0.0
  %2502 = vmatprep.subr.mxu0 0.0
  %2503 = vmatpush1.msra.mxu0 0.0
  %2504 = vmatprep.subr.mxu0 0.0
  %2505 = vmatpush1.msra.mxu0 0.0
  %2506 = vmatprep.subr.mxu0 0.0
  %2507 = vmatpush1.msra.mxu0 0.0
  %2508 = vmatprep.subr.mxu0 0.0
  %2509 = vmatpush1.msra.mxu0 0.0
  %2510 = vmatprep.subr.mxu0 0.0
  %2511 = vmatpush1.msra.mxu0 0.0
  %2512 = vmatprep.subr.mxu0 0.0
  %2513 = vmatpush1.msra.mxu0 0.0
  %2514 = vmatprep.subr.mxu0 0.0
  %2515 = vmatpush1.msra.mxu0 0.0
  %2516 = vmatprep.subr.mxu0 0.0
  %2517 = vmatpush1.msra.mxu0 0.0
  %2518 = vmatprep.subr.mxu0 0.0
  %2519 = vmatpush1.msra.mxu0 0.0
  %2520 = vmatprep.subr.mxu0 0.0
  %2521 = vmatpush1.msra.mxu0 0.0
  %2522 = vmatprep.subr.mxu0 0.0
  %2523 = vmatpush1.msra.mxu0 0.0
  %2524 = vmatprep.subr.mxu0 0.0
  %2525 = vmatpush1.msra.mxu0 0.0
  %2526 = vmatprep.subr.mxu0 0.0
  %2527 = vmatpush1.msra.mxu0 0.0
  %2528 = vmatprep.subr.mxu0 0.0
  %2529 = vmatpush1.msra.mxu0 0.0
  %2530 = vmatprep.subr.mxu0 0.0
  %2531 = vmatpush1.msra.mxu0 0.0
  %2532 = vmatprep.mubr.f32.mxu0 0.0
  %2533 = vmatmul.mubr.f32.gmra.mrb[0].mxu0 %v2323
  %v2534 = vpop.f32.mrb[0].mxu0
  %v2535 = vadd.f32 0.0, %v2534
  %v2536 = vpop.f32.mrb[0].mxu0
  %2537 = vdwg.mxu0
  %v2539 = vrot.slane %v2535, 4
  %v2541 = vadd.f32 %v344, %v2539
  %v2542 = vxor.u32 %v2541, 2147483648
  %v2543 = vmul.f32 %v2542, 1.442695
  %v2544 = vpow.pop %v2543
  %v2545 = vadd.f32 %v2544, 1.0
  %v2546 = vrcp.pop %v2545
  %v2547 = vmul.f32 1.0, %v2546
  %v2548 = vtanh.pop %v2541
  %v2550 = vrot.slane %v2312, 2
  %v2552 = vmul.f32 %v2547, %v2550
  %2554 = vrot.lane.b32.xlu0 %v2548, 64
  %v2555 = vpop.permute.xlu0 %2554
  %v2557 = vmul.f32 %v2547, %v2555
  %2559 = vrot.lane.b32.xlu0 %v2557, 32
  %v2560 = vpop.permute.xlu0 %2559
  %v2562 = vadd.f32 %v2552, %v2560
  %v2563 = vtanh.pop %v2562
  %2565 = vrot.lane.b32.xlu0 %v2563, 64
  %v2566 = vpop.permute.xlu0 %2565
  %v2568 = vmul.f32 %v2547, %v2566
  %v2570 = vrot.slane %v2568, 4
  %2571 = vrot.lane.b32.xlu0 %v2570, 32
  %v2572 = vpop.permute.xlu0 %2571
  %v2573 = vsel %vm369, %v2572, 0
  %2575 = vmatprep.subr.mxu0 0.0
  %2576 = vmatpush1.msra.mxu0 %v364
  %2577 = vmatprep.subr.mxu0 0.0
  %2578 = vmatpush1.msra.mxu0 %v365
  %2579 = vmatprep.subr.mxu0 0.0
  %2580 = vmatpush1.msra.mxu0 %v366
  %2581 = vmatprep.subr.mxu0 0.0
  %2582 = vmatpush1.msra.mxu0 %v367
  %2583 = vmatprep.subr.mxu0 0.0
  %2584 = vmatpush1.msra.mxu0 0.0
  %2585 = vmatprep.subr.mxu0 0.0
  %2586 = vmatpush1.msra.mxu0 0.0
  %2587 = vmatprep.subr.mxu0 0.0
  %2588 = vmatpush1.msra.mxu0 0.0
  %2589 = vmatprep.subr.mxu0 0.0
  %2590 = vmatpush1.msra.mxu0 0.0
  %2591 = vmatprep.subr.mxu0 0.0
  %2592 = vmatpush1.msra.mxu0 0.0
  %2593 = vmatprep.subr.mxu0 0.0
  %2594 = vmatpush1.msra.mxu0 0.0
  %2595 = vmatprep.subr.mxu0 0.0
  %2596 = vmatpush1.msra.mxu0 0.0
  %2597 = vmatprep.subr.mxu0 0.0
  %2598 = vmatpush1.msra.mxu0 0.0
  %2599 = vmatprep.subr.mxu0 0.0
  %2600 = vmatpush1.msra.mxu0 0.0
  %2601 = vmatprep.subr.mxu0 0.0
  %2602 = vmatpush1.msra.mxu0 0.0
  %2603 = vmatprep.subr.mxu0 0.0
  %2604 = vmatpush1.msra.mxu0 0.0
  %2605 = vmatprep.subr.mxu0 0.0
  %2606 = vmatpush1.msra.mxu0 0.0
  %2607 = vmatprep.subr.mxu0 0.0
  %2608 = vmatpush1.msra.mxu0 0.0
  %2609 = vmatprep.subr.mxu0 0.0
  %2610 = vmatpush1.msra.mxu0 0.0
  %2611 = vmatprep.subr.mxu0 0.0
  %2612 = vmatpush1.msra.mxu0 0.0
  %2613 = vmatprep.subr.mxu0 0.0
  %2614 = vmatpush1.msra.mxu0 0.0
  %2615 = vmatprep.subr.mxu0 0.0
  %2616 = vmatpush1.msra.mxu0 0.0
  %2617 = vmatprep.subr.mxu0 0.0
  %2618 = vmatpush1.msra.mxu0 0.0
  %2619 = vmatprep.subr.mxu0 0.0
  %2620 = vmatpush1.msra.mxu0 0.0
  %2621 = vmatprep.subr.mxu0 0.0
  %2622 = vmatpush1.msra.mxu0 0.0
  %2623 = vmatprep.subr.mxu0 0.0
  %2624 = vmatpush1.msra.mxu0 0.0
  %2625 = vmatprep.subr.mxu0 0.0
  %2626 = vmatpush1.msra.mxu0 0.0
  %2627 = vmatprep.subr.mxu0 0.0
  %2628 = vmatpush1.msra.mxu0 0.0
  %2629 = vmatprep.subr.mxu0 0.0
  %2630 = vmatpush1.msra.mxu0 0.0
  %2631 = vmatprep.subr.mxu0 0.0
  %2632 = vmatpush1.msra.mxu0 0.0
  %2633 = vmatprep.subr.mxu0 0.0
  %2634 = vmatpush1.msra.mxu0 0.0
  %2635 = vmatprep.subr.mxu0 0.0
  %2636 = vmatpush1.msra.mxu0 0.0
  %2637 = vmatprep.subr.mxu0 0.0
  %2638 = vmatpush1.msra.mxu0 0.0
  %2639 = vmatprep.mubr.f32.mxu0 0.0
  %2640 = vmatmul.mubr.f32.gmra.mrb[0].mxu0 %v2573
  %v2641 = vpop.f32.mrb[0].mxu0
  %v2642 = vadd.f32 0.0, %v2641
  %v2643 = vpop.f32.mrb[0].mxu0
  %2644 = vdwg.mxu0
  %2645 = vmatprep.subr.mxu0 0.0
  %2646 = vmatpush1.msra.mxu0 %v360
  %2647 = vmatprep.subr.mxu0 0.0
  %2648 = vmatpush1.msra.mxu0 %v361
  %2649 = vmatprep.subr.mxu0 0.0
  %2650 = vmatpush1.msra.mxu0 %v362
  %2651 = vmatprep.subr.mxu0 0.0
  %2652 = vmatpush1.msra.mxu0 %v363
  %2653 = vmatprep.subr.mxu0 0.0
  %2654 = vmatpush1.msra.mxu0 0.0
  %2655 = vmatprep.subr.mxu0 0.0
  %2656 = vmatpush1.msra.mxu0 0.0
  %2657 = vmatprep.subr.mxu0 0.0
  %2658 = vmatpush1.msra.mxu0 0.0
  %2659 = vmatprep.subr.mxu0 0.0
  %2660 = vmatpush1.msra.mxu0 0.0
  %2661 = vmatprep.subr.mxu0 0.0
  %2662 = vmatpush1.msra.mxu0 0.0
  %2663 = vmatprep.subr.mxu0 0.0
  %2664 = vmatpush1.msra.mxu0 0.0
  %2665 = vmatprep.subr.mxu0 0.0
  %2666 = vmatpush1.msra.mxu0 0.0
  %2667 = vmatprep.subr.mxu0 0.0
  %2668 = vmatpush1.msra.mxu0 0.0
  %2669 = vmatprep.subr.mxu0 0.0
  %2670 = vmatpush1.msra.mxu0 0.0
  %2671 = vmatprep.subr.mxu0 0.0
  %2672 = vmatpush1.msra.mxu0 0.0
  %2673 = vmatprep.subr.mxu0 0.0
  %2674 = vmatpush1.msra.mxu0 0.0
  %2675 = vmatprep.subr.mxu0 0.0
  %2676 = vmatpush1.msra.mxu0 0.0
  %2677 = vmatprep.subr.mxu0 0.0
  %2678 = vmatpush1.msra.mxu0 0.0
  %2679 = vmatprep.subr.mxu0 0.0
  %2680 = vmatpush1.msra.mxu0 0.0
  %2681 = vmatprep.subr.mxu0 0.0
  %2682 = vmatpush1.msra.mxu0 0.0
  %2683 = vmatprep.subr.mxu0 0.0
  %2684 = vmatpush1.msra.mxu0 0.0
  %2685 = vmatprep.subr.mxu0 0.0
  %2686 = vmatpush1.msra.mxu0 0.0
  %2687 = vmatprep.subr.mxu0 0.0
  %2688 = vmatpush1.msra.mxu0 0.0
  %2689 = vmatprep.subr.mxu0 0.0
  %2690 = vmatpush1.msra.mxu0 0.0
  %2691 = vmatprep.subr.mxu0 0.0
  %2692 = vmatpush1.msra.mxu0 0.0
  %2693 = vmatprep.subr.mxu0 0.0
  %2694 = vmatpush1.msra.mxu0 0.0
  %2695 = vmatprep.subr.mxu0 0.0
  %2696 = vmatpush1.msra.mxu0 0.0
  %2697 = vmatprep.subr.mxu0 0.0
  %2698 = vmatpush1.msra.mxu0 0.0
  %2699 = vmatprep.subr.mxu0 0.0
  %2700 = vmatpush1.msra.mxu0 0.0
  %2701 = vmatprep.subr.mxu0 0.0
  %2702 = vmatpush1.msra.mxu0 0.0
  %2703 = vmatprep.subr.mxu0 0.0
  %2704 = vmatpush1.msra.mxu0 0.0
  %2705 = vmatprep.subr.mxu0 0.0
  %2706 = vmatpush1.msra.mxu0 0.0
  %2707 = vmatprep.subr.mxu0 0.0
  %2708 = vmatpush1.msra.mxu0 0.0
  %2709 = vmatprep.mubr.f32.mxu0 0.0
  %2710 = vmatmul.mubr.f32.gmra.mrb[0].mxu0 %v685
  %v2711 = vpop.f32.mrb[0].mxu0
  %v2712 = vadd.f32 %v2642, %v2711
  %v2713 = vpop.f32.mrb[0].mxu0
  %2714 = vdwg.mxu0
  %v2715 = vadd.f32 %v2712, %v1466
  %s2716 = scalar_lea.vmem %s10, 4
  %2717 = vst.msk [vmem:[%s2716] sm:$0x3] %vm1470, %v2715
  %2718 = vmatprep.subr.mxu0 0.0
  %2719 = vmatpush1.msra.mxu0 %v356
  %2720 = vmatprep.subr.mxu0 0.0
  %2721 = vmatpush1.msra.mxu0 %v357
  %2722 = vmatprep.subr.mxu0 0.0
  %2723 = vmatpush1.msra.mxu0 %v358
  %2724 = vmatprep.subr.mxu0 0.0
  %2725 = vmatpush1.msra.mxu0 %v359
  %2726 = vmatprep.subr.mxu0 0.0
  %2727 = vmatpush1.msra.mxu0 0.0
  %2728 = vmatprep.subr.mxu0 0.0
  %2729 = vmatpush1.msra.mxu0 0.0
  %2730 = vmatprep.subr.mxu0 0.0
  %2731 = vmatpush1.msra.mxu0 0.0
  %2732 = vmatprep.subr.mxu0 0.0
  %2733 = vmatpush1.msra.mxu0 0.0
  %2734 = vmatprep.subr.mxu0 0.0
  %2735 = vmatpush1.msra.mxu0 0.0
  %2736 = vmatprep.subr.mxu0 0.0
  %2737 = vmatpush1.msra.mxu0 0.0
  %2738 = vmatprep.subr.mxu0 0.0
  %2739 = vmatpush1.msra.mxu0 0.0
  %2740 = vmatprep.subr.mxu0 0.0
  %2741 = vmatpush1.msra.mxu0 0.0
  %2742 = vmatprep.subr.mxu0 0.0
  %2743 = vmatpush1.msra.mxu0 0.0
  %2744 = vmatprep.subr.mxu0 0.0
  %2745 = vmatpush1.msra.mxu0 0.0
  %2746 = vmatprep.subr.mxu0 0.0
  %2747 = vmatpush1.msra.mxu0 0.0
  %2748 = vmatprep.subr.mxu0 0.0
  %2749 = vmatpush1.msra.mxu0 0.0
  %2750 = vmatprep.subr.mxu0 0.0
  %2751 = vmatpush1.msra.mxu0 0.0
  %2752 = vmatprep.subr.mxu0 0.0
  %2753 = vmatpush1.msra.mxu0 0.0
  %2754 = vmatprep.subr.mxu0 0.0
  %2755 = vmatpush1.msra.mxu0 0.0
  %2756 = vmatprep.subr.mxu0 0.0
  %2757 = vmatpush1.msra.mxu0 0.0
  %2758 = vmatprep.subr.mxu0 0.0
  %2759 = vmatpush1.msra.mxu0 0.0
  %2760 = vmatprep.subr.mxu0 0.0
  %2761 = vmatpush1.msra.mxu0 0.0
  %2762 = vmatprep.subr.mxu0 0.0
  %2763 = vmatpush1.msra.mxu0 0.0
  %2764 = vmatprep.subr.mxu0 0.0
  %2765 = vmatpush1.msra.mxu0 0.0
  %2766 = vmatprep.subr.mxu0 0.0
  %2767 = vmatpush1.msra.mxu0 0.0
  %2768 = vmatprep.subr.mxu0 0.0
  %2769 = vmatpush1.msra.mxu0 0.0
  %2770 = vmatprep.subr.mxu0 0.0
  %2771 = vmatpush1.msra.mxu0 0.0
  %2772 = vmatprep.subr.mxu0 0.0
  %2773 = vmatpush1.msra.mxu0 0.0
  %2774 = vmatprep.subr.mxu0 0.0
  %2775 = vmatpush1.msra.mxu0 0.0
  %2776 = vmatprep.subr.mxu0 0.0
  %2777 = vmatpush1.msra.mxu0 0.0
  %2778 = vmatprep.subr.mxu0 0.0
  %2779 = vmatpush1.msra.mxu0 0.0
  %2780 = vmatprep.subr.mxu0 0.0
  %2781 = vmatpush1.msra.mxu0 0.0
  %2782 = vmatprep.mubr.f32.mxu0 0.0
  %2783 = vmatmul.mubr.f32.gmra.mrb[0].mxu0 %v2573
  %v2784 = vpop.f32.mrb[0].mxu0
  %v2785 = vadd.f32 0.0, %v2784
  %v2786 = vpop.f32.mrb[0].mxu0
  %2787 = vdwg.mxu0
  %v2789 = vrot.slane %v2785, 6
  %v2791 = vadd.f32 %v344, %v2789
  %v2792 = vxor.u32 %v2791, 2147483648
  %v2793 = vmul.f32 %v2792, 1.442695
  %v2794 = vpow.pop %v2793
  %v2795 = vadd.f32 %v2794, 1.0
  %v2796 = vrcp.pop %v2795
  %v2797 = vmul.f32 1.0, %v2796
  %v2798 = vtanh.pop %v2791
  %v2800 = vrot.slane %v2562, 2
  %v2802 = vmul.f32 %v2797, %v2800
  %2804 = vrot.lane.b32.xlu0 %v2798, 64
  %v2805 = vpop.permute.xlu0 %2804
  %v2807 = vmul.f32 %v2797, %v2805
  %2809 = vrot.lane.b32.xlu0 %v2807, 32
  %v2810 = vpop.permute.xlu0 %2809
  %v2812 = vadd.f32 %v2802, %v2810
  %v2813 = vtanh.pop %v2812
  %2815 = vrot.lane.b32.xlu0 %v2813, 64
  %v2816 = vpop.permute.xlu0 %2815
  %v2818 = vmul.f32 %v2797, %v2816
  %v2820 = vrot.slane %v2818, 2
  %2821 = vrot.lane.b32.xlu0 %v2820, 32
  %v2822 = vpop.permute.xlu0 %2821
  %v2823 = vsel %vm369, %v2822, 0
  %2825 = vmatprep.subr.mxu0 0.0
  %2826 = vmatpush1.msra.mxu0 %v364
  %2827 = vmatprep.subr.mxu0 0.0
  %2828 = vmatpush1.msra.mxu0 %v365
  %2829 = vmatprep.subr.mxu0 0.0
  %2830 = vmatpush1.msra.mxu0 %v366
  %2831 = vmatprep.subr.mxu0 0.0
  %2832 = vmatpush1.msra.mxu0 %v367
  %2833 = vmatprep.subr.mxu0 0.0
  %2834 = vmatpush1.msra.mxu0 0.0
  %2835 = vmatprep.subr.mxu0 0.0
  %2836 = vmatpush1.msra.mxu0 0.0
  %2837 = vmatprep.subr.mxu0 0.0
  %2838 = vmatpush1.msra.mxu0 0.0
  %2839 = vmatprep.subr.mxu0 0.0
  %2840 = vmatpush1.msra.mxu0 0.0
  %2841 = vmatprep.subr.mxu0 0.0
  %2842 = vmatpush1.msra.mxu0 0.0
  %2843 = vmatprep.subr.mxu0 0.0
  %2844 = vmatpush1.msra.mxu0 0.0
  %2845 = vmatprep.subr.mxu0 0.0
  %2846 = vmatpush1.msra.mxu0 0.0
  %2847 = vmatprep.subr.mxu0 0.0
  %2848 = vmatpush1.msra.mxu0 0.0
  %2849 = vmatprep.subr.mxu0 0.0
  %2850 = vmatpush1.msra.mxu0 0.0
  %2851 = vmatprep.subr.mxu0 0.0
  %2852 = vmatpush1.msra.mxu0 0.0
  %2853 = vmatprep.subr.mxu0 0.0
  %2854 = vmatpush1.msra.mxu0 0.0
  %2855 = vmatprep.subr.mxu0 0.0
  %2856 = vmatpush1.msra.mxu0 0.0
  %2857 = vmatprep.subr.mxu0 0.0
  %2858 = vmatpush1.msra.mxu0 0.0
  %2859 = vmatprep.subr.mxu0 0.0
  %2860 = vmatpush1.msra.mxu0 0.0
  %2861 = vmatprep.subr.mxu0 0.0
  %2862 = vmatpush1.msra.mxu0 0.0
  %2863 = vmatprep.subr.mxu0 0.0
  %2864 = vmatpush1.msra.mxu0 0.0
  %2865 = vmatprep.subr.mxu0 0.0
  %2866 = vmatpush1.msra.mxu0 0.0
  %2867 = vmatprep.subr.mxu0 0.0
  %2868 = vmatpush1.msra.mxu0 0.0
  %2869 = vmatprep.subr.mxu0 0.0
  %2870 = vmatpush1.msra.mxu0 0.0
  %2871 = vmatprep.subr.mxu0 0.0
  %2872 = vmatpush1.msra.mxu0 0.0
  %2873 = vmatprep.subr.mxu0 0.0
  %2874 = vmatpush1.msra.mxu0 0.0
  %2875 = vmatprep.subr.mxu0 0.0
  %2876 = vmatpush1.msra.mxu0 0.0
  %2877 = vmatprep.subr.mxu0 0.0
  %2878 = vmatpush1.msra.mxu0 0.0
  %2879 = vmatprep.subr.mxu0 0.0
  %2880 = vmatpush1.msra.mxu0 0.0
  %2881 = vmatprep.subr.mxu0 0.0
  %2882 = vmatpush1.msra.mxu0 0.0
  %2883 = vmatprep.subr.mxu0 0.0
  %2884 = vmatpush1.msra.mxu0 0.0
  %2885 = vmatprep.subr.mxu0 0.0
  %2886 = vmatpush1.msra.mxu0 0.0
  %2887 = vmatprep.subr.mxu0 0.0
  %2888 = vmatpush1.msra.mxu0 0.0
  %2889 = vmatprep.mubr.f32.mxu0 0.0
  %2890 = vmatmul.mubr.f32.gmra.mrb[0].mxu0 %v2823
  %v2891 = vpop.f32.mrb[0].mxu0
  %v2892 = vadd.f32 0.0, %v2891
  %v2893 = vpop.f32.mrb[0].mxu0
  %2894 = vdwg.mxu0
  %2895 = vmatprep.subr.mxu0 0.0
  %2896 = vmatpush1.msra.mxu0 %v360
  %2897 = vmatprep.subr.mxu0 0.0
  %2898 = vmatpush1.msra.mxu0 %v361
  %2899 = vmatprep.subr.mxu0 0.0
  %2900 = vmatpush1.msra.mxu0 %v362
  %2901 = vmatprep.subr.mxu0 0.0
  %2902 = vmatpush1.msra.mxu0 %v363
  %2903 = vmatprep.subr.mxu0 0.0
  %2904 = vmatpush1.msra.mxu0 0.0
  %2905 = vmatprep.subr.mxu0 0.0
  %2906 = vmatpush1.msra.mxu0 0.0
  %2907 = vmatprep.subr.mxu0 0.0
  %2908 = vmatpush1.msra.mxu0 0.0
  %2909 = vmatprep.subr.mxu0 0.0
  %2910 = vmatpush1.msra.mxu0 0.0
  %2911 = vmatprep.subr.mxu0 0.0
  %2912 = vmatpush1.msra.mxu0 0.0
  %2913 = vmatprep.subr.mxu0 0.0
  %2914 = vmatpush1.msra.mxu0 0.0
  %2915 = vmatprep.subr.mxu0 0.0
  %2916 = vmatpush1.msra.mxu0 0.0
  %2917 = vmatprep.subr.mxu0 0.0
  %2918 = vmatpush1.msra.mxu0 0.0
  %2919 = vmatprep.subr.mxu0 0.0
  %2920 = vmatpush1.msra.mxu0 0.0
  %2921 = vmatprep.subr.mxu0 0.0
  %2922 = vmatpush1.msra.mxu0 0.0
  %2923 = vmatprep.subr.mxu0 0.0
  %2924 = vmatpush1.msra.mxu0 0.0
  %2925 = vmatprep.subr.mxu0 0.0
  %2926 = vmatpush1.msra.mxu0 0.0
  %2927 = vmatprep.subr.mxu0 0.0
  %2928 = vmatpush1.msra.mxu0 0.0
  %2929 = vmatprep.subr.mxu0 0.0
  %2930 = vmatpush1.msra.mxu0 0.0
  %2931 = vmatprep.subr.mxu0 0.0
  %2932 = vmatpush1.msra.mxu0 0.0
  %2933 = vmatprep.subr.mxu0 0.0
  %2934 = vmatpush1.msra.mxu0 0.0
  %2935 = vmatprep.subr.mxu0 0.0
  %2936 = vmatpush1.msra.mxu0 0.0
  %2937 = vmatprep.subr.mxu0 0.0
  %2938 = vmatpush1.msra.mxu0 0.0
  %2939 = vmatprep.subr.mxu0 0.0
  %2940 = vmatpush1.msra.mxu0 0.0
  %2941 = vmatprep.subr.mxu0 0.0
  %2942 = vmatpush1.msra.mxu0 0.0
  %2943 = vmatprep.subr.mxu0 0.0
  %2944 = vmatpush1.msra.mxu0 0.0
  %2945 = vmatprep.subr.mxu0 0.0
  %2946 = vmatpush1.msra.mxu0 0.0
  %2947 = vmatprep.subr.mxu0 0.0
  %2948 = vmatpush1.msra.mxu0 0.0
  %2949 = vmatprep.subr.mxu0 0.0
  %2950 = vmatpush1.msra.mxu0 0.0
  %2951 = vmatprep.subr.mxu0 0.0
  %2952 = vmatpush1.msra.mxu0 0.0
  %2953 = vmatprep.subr.mxu0 0.0
  %2954 = vmatpush1.msra.mxu0 0.0
  %2955 = vmatprep.subr.mxu0 0.0
  %2956 = vmatpush1.msra.mxu0 0.0
  %2957 = vmatprep.subr.mxu0 0.0
  %2958 = vmatpush1.msra.mxu0 0.0
  %2959 = vmatprep.mubr.f32.mxu0 0.0
  %2960 = vmatmul.mubr.f32.gmra.mrb[0].mxu0 %v578
  %v2961 = vpop.f32.mrb[0].mxu0
  %v2962 = vadd.f32 %v2892, %v2961
  %v2963 = vpop.f32.mrb[0].mxu0
  %2964 = vdwg.mxu0
  %v2965 = vadd.f32 %v2962, %v1466
  %s2966 = scalar_lea.vmem %s10, 2
  %2967 = vst.msk [vmem:[%s2966] sm:$0x3] %vm1470, %v2965
  %2968 = vmatprep.subr.mxu0 0.0
  %2969 = vmatpush1.msra.mxu0 %v356
  %2970 = vmatprep.subr.mxu0 0.0
  %2971 = vmatpush1.msra.mxu0 %v357
  %2972 = vmatprep.subr.mxu0 0.0
  %2973 = vmatpush1.msra.mxu0 %v358
  %2974 = vmatprep.subr.mxu0 0.0
  %2975 = vmatpush1.msra.mxu0 %v359
  %2976 = vmatprep.subr.mxu0 0.0
  %2977 = vmatpush1.msra.mxu0 0.0
  %2978 = vmatprep.subr.mxu0 0.0
  %2979 = vmatpush1.msra.mxu0 0.0
  %2980 = vmatprep.subr.mxu0 0.0
  %2981 = vmatpush1.msra.mxu0 0.0
  %2982 = vmatprep.subr.mxu0 0.0
  %2983 = vmatpush1.msra.mxu0 0.0
  %2984 = vmatprep.subr.mxu0 0.0
  %2985 = vmatpush1.msra.mxu0 0.0
  %2986 = vmatprep.subr.mxu0 0.0
  %2987 = vmatpush1.msra.mxu0 0.0
  %2988 = vmatprep.subr.mxu0 0.0
  %2989 = vmatpush1.msra.mxu0 0.0
  %2990 = vmatprep.subr.mxu0 0.0
  %2991 = vmatpush1.msra.mxu0 0.0
  %2992 = vmatprep.subr.mxu0 0.0
  %2993 = vmatpush1.msra.mxu0 0.0
  %2994 = vmatprep.subr.mxu0 0.0
  %2995 = vmatpush1.msra.mxu0 0.0
  %2996 = vmatprep.subr.mxu0 0.0
  %2997 = vmatpush1.msra.mxu0 0.0
  %2998 = vmatprep.subr.mxu0 0.0
  %2999 = vmatpush1.msra.mxu0 0.0
  %3000 = vmatprep.subr.mxu0 0.0
  %3001 = vmatpush1.msra.mxu0 0.0
  %3002 = vmatprep.subr.mxu0 0.0
  %3003 = vmatpush1.msra.mxu0 0.0
  %3004 = vmatprep.subr.mxu0 0.0
  %3005 = vmatpush1.msra.mxu0 0.0
  %3006 = vmatprep.subr.mxu0 0.0
  %3007 = vmatpush1.msra.mxu0 0.0
  %3008 = vmatprep.subr.mxu0 0.0
  %3009 = vmatpush1.msra.mxu0 0.0
  %3010 = vmatprep.subr.mxu0 0.0
  %3011 = vmatpush1.msra.mxu0 0.0
  %3012 = vmatprep.subr.mxu0 0.0
  %3013 = vmatpush1.msra.mxu0 0.0
  %3014 = vmatprep.subr.mxu0 0.0
  %3015 = vmatpush1.msra.mxu0 0.0
  %3016 = vmatprep.subr.mxu0 0.0
  %3017 = vmatpush1.msra.mxu0 0.0
  %3018 = vmatprep.subr.mxu0 0.0
  %3019 = vmatpush1.msra.mxu0 0.0
  %3020 = vmatprep.subr.mxu0 0.0
  %3021 = vmatpush1.msra.mxu0 0.0
  %3022 = vmatprep.subr.mxu0 0.0
  %3023 = vmatpush1.msra.mxu0 0.0
  %3024 = vmatprep.subr.mxu0 0.0
  %3025 = vmatpush1.msra.mxu0 0.0
  %3026 = vmatprep.subr.mxu0 0.0
  %3027 = vmatpush1.msra.mxu0 0.0
  %3028 = vmatprep.subr.mxu0 0.0
  %3029 = vmatpush1.msra.mxu0 0.0
  %3030 = vmatprep.subr.mxu0 0.0
  %3031 = vmatpush1.msra.mxu0 0.0
  %3032 = vmatprep.mubr.f32.mxu0 0.0
  %3033 = vmatmul.mubr.f32.gmra.mrb[0].mxu0 %v2823
  %v3034 = vpop.f32.mrb[0].mxu0
  %v3035 = vadd.f32 0.0, %v3034
  %v3036 = vpop.f32.mrb[0].mxu0
  %3037 = vdwg.mxu0
  %v3038 = vadd.f32 %v344, %v3035
  %v3039 = vxor.u32 %v3038, 2147483648
  %v3040 = vmul.f32 %v3039, 1.442695
  %v3041 = vpow.pop %v3040
  %v3042 = vadd.f32 %v3041, 1.0
  %v3043 = vrcp.pop %v3042
  %v3044 = vmul.f32 1.0, %v3043
  %v3045 = vtanh.pop %v3038
  %v3047 = vrot.slane %v2812, 2
  %v3049 = vmul.f32 %v3044, %v3047
  %3051 = vrot.lane.b32.xlu0 %v3045, 64
  %v3052 = vpop.permute.xlu0 %3051
  %v3054 = vmul.f32 %v3044, %v3052
  %3056 = vrot.lane.b32.xlu0 %v3054, 32
  %v3057 = vpop.permute.xlu0 %3056
  %v3059 = vadd.f32 %v3049, %v3057
  %v3060 = vtanh.pop %v3059
  %3062 = vrot.lane.b32.xlu0 %v3060, 64
  %v3063 = vpop.permute.xlu0 %3062
  %v3065 = vmul.f32 %v3044, %v3063
  %3067 = vrot.lane.b32.xlu0 %v3065, 32
  %v3068 = vpop.permute.xlu0 %3067
  %v3069 = vsel %vm369, %v3068, 0
  %3071 = vmatprep.subr.mxu0 0.0
  %3072 = vmatpush1.msra.mxu0 %v364
  %3073 = vmatprep.subr.mxu0 0.0
  %3074 = vmatpush1.msra.mxu0 %v365
  %3075 = vmatprep.subr.mxu0 0.0
  %3076 = vmatpush1.msra.mxu0 %v366
  %3077 = vmatprep.subr.mxu0 0.0
  %3078 = vmatpush1.msra.mxu0 %v367
  %3079 = vmatprep.subr.mxu0 0.0
  %3080 = vmatpush1.msra.mxu0 0.0
  %3081 = vmatprep.subr.mxu0 0.0
  %3082 = vmatpush1.msra.mxu0 0.0
  %3083 = vmatprep.subr.mxu0 0.0
  %3084 = vmatpush1.msra.mxu0 0.0
  %3085 = vmatprep.subr.mxu0 0.0
  %3086 = vmatpush1.msra.mxu0 0.0
  %3087 = vmatprep.subr.mxu0 0.0
  %3088 = vmatpush1.msra.mxu0 0.0
  %3089 = vmatprep.subr.mxu0 0.0
  %3090 = vmatpush1.msra.mxu0 0.0
  %3091 = vmatprep.subr.mxu0 0.0
  %3092 = vmatpush1.msra.mxu0 0.0
  %3093 = vmatprep.subr.mxu0 0.0
  %3094 = vmatpush1.msra.mxu0 0.0
  %3095 = vmatprep.subr.mxu0 0.0
  %3096 = vmatpush1.msra.mxu0 0.0
  %3097 = vmatprep.subr.mxu0 0.0
  %3098 = vmatpush1.msra.mxu0 0.0
  %3099 = vmatprep.subr.mxu0 0.0
  %3100 = vmatpush1.msra.mxu0 0.0
  %3101 = vmatprep.subr.mxu0 0.0
  %3102 = vmatpush1.msra.mxu0 0.0
  %3103 = vmatprep.subr.mxu0 0.0
  %3104 = vmatpush1.msra.mxu0 0.0
  %3105 = vmatprep.subr.mxu0 0.0
  %3106 = vmatpush1.msra.mxu0 0.0
  %3107 = vmatprep.subr.mxu0 0.0
  %3108 = vmatpush1.msra.mxu0 0.0
  %3109 = vmatprep.subr.mxu0 0.0
  %3110 = vmatpush1.msra.mxu0 0.0
  %3111 = vmatprep.subr.mxu0 0.0
  %3112 = vmatpush1.msra.mxu0 0.0
  %3113 = vmatprep.subr.mxu0 0.0
  %3114 = vmatpush1.msra.mxu0 0.0
  %3115 = vmatprep.subr.mxu0 0.0
  %3116 = vmatpush1.msra.mxu0 0.0
  %3117 = vmatprep.subr.mxu0 0.0
  %3118 = vmatpush1.msra.mxu0 0.0
  %3119 = vmatprep.subr.mxu0 0.0
  %3120 = vmatpush1.msra.mxu0 0.0
  %3121 = vmatprep.subr.mxu0 0.0
  %3122 = vmatpush1.msra.mxu0 0.0
  %3123 = vmatprep.subr.mxu0 0.0
  %3124 = vmatpush1.msra.mxu0 0.0
  %3125 = vmatprep.subr.mxu0 0.0
  %3126 = vmatpush1.msra.mxu0 0.0
  %3127 = vmatprep.subr.mxu0 0.0
  %3128 = vmatpush1.msra.mxu0 0.0
  %3129 = vmatprep.subr.mxu0 0.0
  %3130 = vmatpush1.msra.mxu0 0.0
  %3131 = vmatprep.subr.mxu0 0.0
  %3132 = vmatpush1.msra.mxu0 0.0
  %3133 = vmatprep.subr.mxu0 0.0
  %3134 = vmatpush1.msra.mxu0 0.0
  %3135 = vmatprep.mubr.f32.mxu0 0.0
  %3136 = vmatmul.mubr.f32.gmra.mrb[0].mxu0 %v3069
  %v3137 = vpop.f32.mrb[0].mxu0
  %v3138 = vadd.f32 0.0, %v3137
  %v3139 = vpop.f32.mrb[0].mxu0
  %3140 = vdwg.mxu0
  %3141 = vmatprep.subr.mxu0 0.0
  %3142 = vmatpush1.msra.mxu0 %v360
  %3143 = vmatprep.subr.mxu0 0.0
  %3144 = vmatpush1.msra.mxu0 %v361
  %3145 = vmatprep.subr.mxu0 0.0
  %3146 = vmatpush1.msra.mxu0 %v362
  %3147 = vmatprep.subr.mxu0 0.0
  %3148 = vmatpush1.msra.mxu0 %v363
  %3149 = vmatprep.subr.mxu0 0.0
  %3150 = vmatpush1.msra.mxu0 0.0
  %3151 = vmatprep.subr.mxu0 0.0
  %3152 = vmatpush1.msra.mxu0 0.0
  %3153 = vmatprep.subr.mxu0 0.0
  %3154 = vmatpush1.msra.mxu0 0.0
  %3155 = vmatprep.subr.mxu0 0.0
  %3156 = vmatpush1.msra.mxu0 0.0
  %3157 = vmatprep.subr.mxu0 0.0
  %3158 = vmatpush1.msra.mxu0 0.0
  %3159 = vmatprep.subr.mxu0 0.0
  %3160 = vmatpush1.msra.mxu0 0.0
  %3161 = vmatprep.subr.mxu0 0.0
  %3162 = vmatpush1.msra.mxu0 0.0
  %3163 = vmatprep.subr.mxu0 0.0
  %3164 = vmatpush1.msra.mxu0 0.0
  %3165 = vmatprep.subr.mxu0 0.0
  %3166 = vmatpush1.msra.mxu0 0.0
  %3167 = vmatprep.subr.mxu0 0.0
  %3168 = vmatpush1.msra.mxu0 0.0
  %3169 = vmatprep.subr.mxu0 0.0
  %3170 = vmatpush1.msra.mxu0 0.0
  %3171 = vmatprep.subr.mxu0 0.0
  %3172 = vmatpush1.msra.mxu0 0.0
  %3173 = vmatprep.subr.mxu0 0.0
  %3174 = vmatpush1.msra.mxu0 0.0
  %3175 = vmatprep.subr.mxu0 0.0
  %3176 = vmatpush1.msra.mxu0 0.0
  %3177 = vmatprep.subr.mxu0 0.0
  %3178 = vmatpush1.msra.mxu0 0.0
  %3179 = vmatprep.subr.mxu0 0.0
  %3180 = vmatpush1.msra.mxu0 0.0
  %3181 = vmatprep.subr.mxu0 0.0
  %3182 = vmatpush1.msra.mxu0 0.0
  %3183 = vmatprep.subr.mxu0 0.0
  %3184 = vmatpush1.msra.mxu0 0.0
  %3185 = vmatprep.subr.mxu0 0.0
  %3186 = vmatpush1.msra.mxu0 0.0
  %3187 = vmatprep.subr.mxu0 0.0
  %3188 = vmatpush1.msra.mxu0 0.0
  %3189 = vmatprep.subr.mxu0 0.0
  %3190 = vmatpush1.msra.mxu0 0.0
  %3191 = vmatprep.subr.mxu0 0.0
  %3192 = vmatpush1.msra.mxu0 0.0
  %3193 = vmatprep.subr.mxu0 0.0
  %3194 = vmatpush1.msra.mxu0 0.0
  %3195 = vmatprep.subr.mxu0 0.0
  %3196 = vmatpush1.msra.mxu0 0.0
  %3197 = vmatprep.subr.mxu0 0.0
  %3198 = vmatpush1.msra.mxu0 0.0
  %3199 = vmatprep.subr.mxu0 0.0
  %3200 = vmatpush1.msra.mxu0 0.0
  %3201 = vmatprep.subr.mxu0 0.0
  %3202 = vmatpush1.msra.mxu0 0.0
  %3203 = vmatprep.subr.mxu0 0.0
  %3204 = vmatpush1.msra.mxu0 0.0
  %3205 = vmatprep.mubr.f32.mxu0 0.0
  %3206 = vmatmul.mubr.f32.gmra.mrb[0].mxu0 %v471
  %v3207 = vpop.f32.mrb[0].mxu0
  %v3208 = vadd.f32 %v3138, %v3207
  %v3209 = vpop.f32.mrb[0].mxu0
  %3210 = vdwg.mxu0
  %v3211 = vadd.f32 %v3208, %v1466
  %3212 = vst.msk [vmem:[%s10] sm:$0x3] %vm1470, %v3211
  // Predicated region
  $region42: #{attention_forward.3} parent=0 // pred_check
    _
  $region43: #{attention_forward.3} parent=0 // pred_check_branch
    %3214 = sbr.rel (0) target = $region45
  $region44: #{attention_forward.3} parent=0 // pred_region
    _
  $region45: #{attention_forward.3} parent=0 // pred_fallthru
    _
  // Predicated region
  $region46: #{attention_forward.3} parent=0 // pred_check
    _
  $region47: #{attention_forward.3} parent=0 // pred_check_branch
    %3216 = sbr.rel (0) target = $region49
  $region48: #{attention_forward.3} parent=0 // pred_region
    _
  $region49: #{attention_forward.3} parent=0 // pred_fallthru
    _

</llo_original>
